<compile_context>
chip_gen: v7x
topology: tpu7x:2x2x1
jax: 0.10.0
libtpu: 0.0.40
codegen_flags: <defaults>
</compile_context>

<pallas_src>
import jax
import jax.numpy as jnp
from jax.experimental import pallas as pl
from jax.experimental.pallas import tpu as pltpu


# -----------------------------------------------------------------------------
# Fused Pallas kernel: whole FS_Network forward for one batch element.
# -----------------------------------------------------------------------------
def _fs_network_kernel(x_ref,
                       w1a_ref, b1a_ref, w1b_ref, b1b_ref,
                       w2a_ref, b2a_ref, w2b_ref, b2b_ref,
                       w3a_ref, b3a_ref, w3b_ref, b3b_ref,
                       w4a_ref, b4a_ref, w4b_ref, b4b_ref,
                       x16_ref, x32_ref, x64_ref, x128_ref,
                       pad_sc, col_sc):
    """All activations live in VMEM; outputs are the 4 returned tensors.

    pad_sc: (128, L+8) f32 scratch — zero-padded activation staging.
    col_sc: (384, L)   f32 scratch — im2col buffer (K*C_in rows).
    """
    f32 = jnp.float32

    def conv_relu(act, w_ref, b_ref, K, pad):
        """'same' Conv1d + bias + ReLU via a single im2col MXU matmul.

        act:   (C_in, L) f32 value
        w_ref: (C_out, K*C_in) ref, im2col-packed (row = k*C_in + ci)
        b_ref: (C_out, 1) f32 ref
        """
        C_in, L = act.shape
        # Zero-fill only the halo borders, then write the interior.  Every
        # lane/row that is read below is written here, so no stale scratch.
        pad_sc[0:C_in, 0:pad] = jnp.zeros((C_in, pad), f32)
        pad_sc[0:C_in, pad + L:L + 2 * pad] = jnp.zeros((C_in, pad), f32)
        pad_sc[0:C_in, pad:pad + L] = act
        # Stack the K shifted windows along the sublane (C_in) axis.
        for k in range(K):
            col_sc[k * C_in:(k + 1) * C_in, 0:L] = pad_sc[0:C_in, k:k + L]
        col = col_sc[0:K * C_in, 0:L]
        y = jnp.dot(w_ref[...], col.astype(w_ref.dtype),
                    preferred_element_type=f32)
        return jnp.maximum(y + b_ref[...], 0.0)

    def conv1a_relu(act, w_ref, b_ref, K, pad):
        """First layer (C_in == 1): K broadcast multiply-adds on the VPU."""
        L = act.shape[1]
        C_out = w_ref.shape[0]
        pad_sc[0:1, 0:pad] = jnp.zeros((1, pad), f32)
        pad_sc[0:1, pad + L:L + 2 * pad] = jnp.zeros((1, pad), f32)
        pad_sc[0:1, pad:pad + L] = act
        acc = jnp.zeros((C_out, L), f32)
        for k in range(K):
            # (C_out, 1) * (1, L) -> (C_out, L) broadcast multiply-add
            acc = acc + w_ref[:, k:k + 1] * pad_sc[0:1, k:k + L]
        return jnp.maximum(acc + b_ref[...], 0.0)

    def maxpool4(x):
        """MaxPool1d(4, 4) as max over 4 exact one-hot selection matmuls.

        Keeps the pooled axis on the lanes with no reshape / strided access.
        Selection in f32 is exact (one-hot columns), so the pool is bit-exact.
        """
        C, L = x.shape
        Lout = L // 4
        rows = jax.lax.broadcasted_iota(jnp.int32, (L, Lout), 0)
        cols = jax.lax.broadcasted_iota(jnp.int32, (L, Lout), 1)
        out = None
        for j in range(4):
            sel = (rows == 4 * cols + j).astype(f32)      # one-hot (L, Lout)
            v = jnp.dot(x, sel, preferred_element_type=f32)
            out = v if out is None else jnp.maximum(out, v)
        return out

    x = x_ref[0].astype(f32)                               # (1, L)

    # ---- stage 1 ----
    h = conv1a_relu(x, w1a_ref, b1a_ref, K=9, pad=4)
    x16 = conv_relu(h, w1b_ref, b1b_ref, K=9, pad=4)
    x16_ref[0] = x16.astype(x16_ref.dtype)

    # ---- stage 2 ----
    h = maxpool4(x16)
    h = conv_relu(h, w2a_ref, b2a_ref, K=7, pad=3)
    x32 = conv_relu(h, w2b_ref, b2b_ref, K=7, pad=3)
    x32_ref[0] = x32.astype(x32_ref.dtype)

    # ---- stage 3 ----
    h = maxpool4(x32)
    h = conv_relu(h, w3a_ref, b3a_ref, K=3, pad=1)
    x64 = conv_relu(h, w3b_ref, b3b_ref, K=3, pad=1)
    x64_ref[0] = x64.astype(x64_ref.dtype)

    # ---- stage 4 ----
    h = maxpool4(x64)
    h = conv_relu(h, w4a_ref, b4a_ref, K=3, pad=1)
    x128 = conv_relu(h, w4b_ref, b4b_ref, K=3, pad=1)
    x128_ref[0] = x128.astype(x128_ref.dtype)


# -----------------------------------------------------------------------------
# Parameters
# -----------------------------------------------------------------------------
_LAYER_CFG = [
    # (name, C_in, C_out, K, pad)
    ("1a", 1, 16, 9, 4), ("1b", 16, 16, 9, 4),
    ("2a", 16, 32, 7, 3), ("2b", 32, 32, 7, 3),
    ("3a", 32, 64, 3, 1), ("3b", 64, 64, 3, 1),
    ("4a", 64, 128, 3, 1), ("4b", 128, 128, 3, 1),
]


def init_params(key):
    params = {}
    for name, c_in, c_out, k, _ in _LAYER_CFG:
        key, kw, kb = jax.random.split(key, 3)
        params["w" + name] = 0.1 * jax.random.normal(kw, (c_out, c_in, k), jnp.float32)
        params["b" + name] = 0.1 * jax.random.normal(kb, (c_out,), jnp.float32)
    return params


# -----------------------------------------------------------------------------
# Wrapper: weight repacking + single pallas_call
# -----------------------------------------------------------------------------
def fs_network_forward(params, x, *, matmul_dtype=jnp.bfloat16):
    """x: (N, 1, L) f32.  Returns (x_16, x_32, x_64, x_128) as in PyTorch."""
    N, c0, L = x.shape
    assert c0 == 1, "FS_Network expects a single input channel"
    assert L % 64 == 0, "three exact MaxPool1d(4,4) stages require L % 64 == 0"

    def w_im2col(name):
        # (C_out, C_in, K) -> (C_out, K*C_in) with row index = k*C_in + ci
        w = params["w" + name]
        c_out, c_in, k = w.shape
        return jnp.transpose(w, (0, 2, 1)).reshape(c_out, k * c_in).astype(matmul_dtype)

    def bias(name):
        return params["b" + name].reshape(-1, 1).astype(jnp.float32)

    # Layer 1a stays f32 (VPU path); all other weights go to the MXU dtype.
    w1a = params["w1a"].reshape(16, 9).astype(jnp.float32)

    ins = [x.astype(jnp.float32), w1a, bias("1a")]
    for name in ("1b", "2a", "2b", "3a", "3b", "4a", "4b"):
        ins += [w_im2col(name), bias(name)]

    in_specs = [pl.BlockSpec((1, 1, L), lambda n: (n, 0, 0))]
    for a in ins[1:]:
        in_specs.append(pl.BlockSpec(a.shape, lambda n: (0, 0)))

    out_shapes = (
        jax.ShapeDtypeStruct((N, 16, L), jnp.float32),
        jax.ShapeDtypeStruct((N, 32, L // 4), jnp.float32),
        jax.ShapeDtypeStruct((N, 64, L // 16), jnp.float32),
        jax.ShapeDtypeStruct((N, 128, L // 64), jnp.float32),
    )
    out_specs = tuple(
        pl.BlockSpec((1, s.shape[1], s.shape[2]), lambda n: (n, 0, 0))
        for s in out_shapes
    )

    # Shared scratch sized for the largest layer:
    #   padded activations: max C_in = 128 rows, max L + 2*pad = L + 8 lanes
    #   im2col buffer:      max K*C_in = 3*128 = 384 rows, max L lanes
    scratch_shapes = [
        pltpu.VMEM((128, L + 8), jnp.float32),
        pltpu.VMEM((384, L), jnp.float32),
    ]

    return pl.pallas_call(
        _fs_network_kernel,
        out_shape=out_shapes,
        grid=(N,),
        in_specs=in_specs,
        out_specs=out_specs,
        scratch_shapes=scratch_shapes,
        compiler_params=pltpu.CompilerParams(
            dimension_semantics=("parallel",)),
    )(*ins)


# -----------------------------------------------------------------------------
# Pure-JAX reference (for correctness check)
# -----------------------------------------------------------------------------
def _ref_conv1d_relu(x, w, b, pad):
    y = jax.lax.conv_general_dilated(
        x, w, window_strides=(1,), padding=[(pad, pad)],
        dimension_numbers=("NCH", "OIH", "NCH"))
    return jnp.maximum(y + b[None, :, None], 0.0)


def _ref_pool(x):
    return jax.lax.reduce_window(x, -jnp.inf, jax.lax.max, (1, 1, 4), (1, 1, 4), "VALID")


def fs_network_ref(params, x):
    h = _ref_conv1d_relu(x, params["w1a"], params["b1a"], 4)
    x_16 = _ref_conv1d_relu(h, params["w1b"], params["b1b"], 4)
    h = _ref_pool(x_16)
    h = _ref_conv1d_relu(h, params["w2a"], params["b2a"], 3)
    x_32 = _ref_conv1d_relu(h, params["w2b"], params["b2b"], 3)
    h = _ref_pool(x_32)
    h = _ref_conv1d_relu(h, params["w3a"], params["b3a"], 1)
    x_64 = _ref_conv1d_relu(h, params["w3b"], params["b3b"], 1)
    h = _ref_pool(x_64)
    h = _ref_conv1d_relu(h, params["w4a"], params["b4a"], 1)
    x_128 = _ref_conv1d_relu(h, params["w4b"], params["b4b"], 1)
    return x_16, x_32, x_64, x_128


# -----------------------------------------------------------------------------
if __name__ == "__main__":
    key = jax.random.PRNGKey(0)
    k_param, k_x = jax.random.split(key)

    N, L = 2, 256  # L % 64 == 0 so all three pools divide exactly
    x = jax.random.normal(k_x, (N, 1, L), jnp.float32)
    params = init_params(k_param)

    outs = jax.jit(fs_network_forward)(params, x)
    outs = jax.block_until_ready(outs)

    refs = jax.jit(fs_network_ref)(params, x)
    refs = jax.block_until_ready(refs)

    expected_shapes = [(N, 16, L), (N, 32, L // 4), (N, 64, L // 16), (N, 128, L // 64)]
    for o, r, s in zip(outs, refs, expected_shapes):
        assert o.shape == s, (o.shape, s)
        assert jnp.allclose(o, r, rtol=2e-2, atol=2e-2), "mismatch vs reference"

    print("KERNEL_OK")
</pallas_src>

<mosaic_0001>
module attributes {stable_mosaic.version = 11 : i64} {
  func.func @_fs_network_kernel(%arg0: i32, %arg1: memref<1x1x256xf32, #tpu.memory_space<vmem>>, %arg2: memref<16x9xf32, #tpu.memory_space<vmem>>, %arg3: memref<16x1xf32, #tpu.memory_space<vmem>>, %arg4: memref<16x144xbf16, #tpu.memory_space<vmem>>, %arg5: memref<16x1xf32, #tpu.memory_space<vmem>>, %arg6: memref<32x112xbf16, #tpu.memory_space<vmem>>, %arg7: memref<32x1xf32, #tpu.memory_space<vmem>>, %arg8: memref<32x224xbf16, #tpu.memory_space<vmem>>, %arg9: memref<32x1xf32, #tpu.memory_space<vmem>>, %arg10: memref<64x96xbf16, #tpu.memory_space<vmem>>, %arg11: memref<64x1xf32, #tpu.memory_space<vmem>>, %arg12: memref<64x192xbf16, #tpu.memory_space<vmem>>, %arg13: memref<64x1xf32, #tpu.memory_space<vmem>>, %arg14: memref<128x192xbf16, #tpu.memory_space<vmem>>, %arg15: memref<128x1xf32, #tpu.memory_space<vmem>>, %arg16: memref<128x384xbf16, #tpu.memory_space<vmem>>, %arg17: memref<128x1xf32, #tpu.memory_space<vmem>>, %arg18: memref<1x16x256xf32, #tpu.memory_space<vmem>>, %arg19: memref<1x32x64xf32, #tpu.memory_space<vmem>>, %arg20: memref<1x64x16xf32, #tpu.memory_space<vmem>>, %arg21: memref<1x128x4xf32, #tpu.memory_space<vmem>>, %arg22: memref<128x264xf32, #tpu.memory_space<vmem>>, %arg23: memref<384x256xf32, #tpu.memory_space<vmem>>) attributes {dimension_semantics = [#tpu.dimension_semantics<parallel>], iteration_bounds = array<i64: 2>, scalar_prefetch = 0 : i64, scratch_operands = 2 : i64, tpu.core_type = #tpu.core_type<tc>, window_params = [{transform_indices = @transform_0, window_bounds = array<i64: 1, 1, 256>}, {pipeline_mode = #tpu.pipeline_mode<synchronous>, transform_indices = @transform_1, window_bounds = array<i64: 16, 9>}, {pipeline_mode = #tpu.pipeline_mode<synchronous>, transform_indices = @transform_2, window_bounds = array<i64: 16, 1>}, {pipeline_mode = #tpu.pipeline_mode<synchronous>, transform_indices = @transform_3, window_bounds = array<i64: 16, 144>}, {pipeline_mode = #tpu.pipeline_mode<synchronous>, transform_indices = @transform_4, window_bounds = array<i64: 16, 1>}, {pipeline_mode = #tpu.pipeline_mode<synchronous>, transform_indices = @transform_5, window_bounds = array<i64: 32, 112>}, {pipeline_mode = #tpu.pipeline_mode<synchronous>, transform_indices = @transform_6, window_bounds = array<i64: 32, 1>}, {pipeline_mode = #tpu.pipeline_mode<synchronous>, transform_indices = @transform_7, window_bounds = array<i64: 32, 224>}, {pipeline_mode = #tpu.pipeline_mode<synchronous>, transform_indices = @transform_8, window_bounds = array<i64: 32, 1>}, {pipeline_mode = #tpu.pipeline_mode<synchronous>, transform_indices = @transform_9, window_bounds = array<i64: 64, 96>}, {pipeline_mode = #tpu.pipeline_mode<synchronous>, transform_indices = @transform_10, window_bounds = array<i64: 64, 1>}, {pipeline_mode = #tpu.pipeline_mode<synchronous>, transform_indices = @transform_11, window_bounds = array<i64: 64, 192>}, {pipeline_mode = #tpu.pipeline_mode<synchronous>, transform_indices = @transform_12, window_bounds = array<i64: 64, 1>}, {pipeline_mode = #tpu.pipeline_mode<synchronous>, transform_indices = @transform_13, window_bounds = array<i64: 128, 192>}, {pipeline_mode = #tpu.pipeline_mode<synchronous>, transform_indices = @transform_14, window_bounds = array<i64: 128, 1>}, {pipeline_mode = #tpu.pipeline_mode<synchronous>, transform_indices = @transform_15, window_bounds = array<i64: 128, 384>}, {pipeline_mode = #tpu.pipeline_mode<synchronous>, transform_indices = @transform_16, window_bounds = array<i64: 128, 1>}, {transform_indices = @transform_17, window_bounds = array<i64: 1, 16, 256>}, {transform_indices = @transform_18, window_bounds = array<i64: 1, 32, 64>}, {transform_indices = @transform_19, window_bounds = array<i64: 1, 64, 16>}, {transform_indices = @transform_20, window_bounds = array<i64: 1, 128, 4>}]} {
    %c0 = arith.constant 0 : index
    %c0_0 = arith.constant 0 : index
    %c0_1 = arith.constant 0 : index
    %0 = vector.load %arg1[%c0, %c0_0, %c0_1] : memref<1x1x256xf32, #tpu.memory_space<vmem>>, vector<1x1x256xf32>
    %1 = vector.shape_cast %0 : vector<1x1x256xf32> to vector<1x256xf32>
    %cst = arith.constant 0.000000e+00 : f32
    %2 = vector.broadcast %cst : f32 to vector<1x4xf32>
    %c0_2 = arith.constant 0 : index
    %c0_3 = arith.constant 0 : index
    %3 = vector.load %arg22[%c0_2, %c0_3] : memref<128x264xf32, #tpu.memory_space<vmem>>, vector<1x4xf32>
    tpu.vector_store %arg22[%c0_2, %c0_3], %2 {strides = array<i32>} : memref<128x264xf32, #tpu.memory_space<vmem>>, vector<1x4xf32>,
    %cst_4 = arith.constant 0.000000e+00 : f32
    %4 = vector.broadcast %cst_4 : f32 to vector<1x4xf32>
    %c0_5 = arith.constant 0 : index
    %c260 = arith.constant 260 : index
    %5 = vector.load %arg22[%c0_5, %c260] : memref<128x264xf32, #tpu.memory_space<vmem>>, vector<1x4xf32>
    tpu.vector_store %arg22[%c0_5, %c260], %4 {strides = array<i32>} : memref<128x264xf32, #tpu.memory_space<vmem>>, vector<1x4xf32>,
    %c0_6 = arith.constant 0 : index
    %c4 = arith.constant 4 : index
    %6 = vector.load %arg22[%c0_6, %c4] : memref<128x264xf32, #tpu.memory_space<vmem>>, vector<1x256xf32>
    tpu.vector_store %arg22[%c0_6, %c4], %1 {strides = array<i32>} : memref<128x264xf32, #tpu.memory_space<vmem>>, vector<1x256xf32>,
    %cst_7 = arith.constant 0.000000e+00 : f32
    %7 = vector.broadcast %cst_7 : f32 to vector<16x256xf32>
    %c0_8 = arith.constant 0 : index
    %c0_9 = arith.constant 0 : index
    %8 = vector.load %arg2[%c0_8, %c0_9] : memref<16x9xf32, #tpu.memory_space<vmem>>, vector<16x1xf32>
    %c0_10 = arith.constant 0 : index
    %c0_11 = arith.constant 0 : index
    %9 = vector.load %arg22[%c0_10, %c0_11] : memref<128x264xf32, #tpu.memory_space<vmem>>, vector<1x256xf32>
    %10 = vector.broadcast %8 : vector<16x1xf32> to vector<16x256xf32>
    %11 = vector.broadcast %9 : vector<1x256xf32> to vector<16x256xf32>
    %12 = arith.mulf %10, %11 : vector<16x256xf32>
    %13 = arith.addf %7, %12 : vector<16x256xf32>
    %c0_12 = arith.constant 0 : index
    %c1 = arith.constant 1 : index
    %14 = vector.load %arg2[%c0_12, %c1] : memref<16x9xf32, #tpu.memory_space<vmem>>, vector<16x1xf32>
    %c0_13 = arith.constant 0 : index
    %c1_14 = arith.constant 1 : index
    %15 = vector.load %arg22[%c0_13, %c1_14] : memref<128x264xf32, #tpu.memory_space<vmem>>, vector<1x256xf32>
    %16 = vector.broadcast %14 : vector<16x1xf32> to vector<16x256xf32>
    %17 = vector.broadcast %15 : vector<1x256xf32> to vector<16x256xf32>
    %18 = arith.mulf %16, %17 : vector<16x256xf32>
    %19 = arith.addf %13, %18 : vector<16x256xf32>
    %c0_15 = arith.constant 0 : index
    %c2 = arith.constant 2 : index
    %20 = vector.load %arg2[%c0_15, %c2] : memref<16x9xf32, #tpu.memory_space<vmem>>, vector<16x1xf32>
    %c0_16 = arith.constant 0 : index
    %c2_17 = arith.constant 2 : index
    %21 = vector.load %arg22[%c0_16, %c2_17] : memref<128x264xf32, #tpu.memory_space<vmem>>, vector<1x256xf32>
    %22 = vector.broadcast %20 : vector<16x1xf32> to vector<16x256xf32>
    %23 = vector.broadcast %21 : vector<1x256xf32> to vector<16x256xf32>
    %24 = arith.mulf %22, %23 : vector<16x256xf32>
    %25 = arith.addf %19, %24 : vector<16x256xf32>
    %c0_18 = arith.constant 0 : index
    %c3 = arith.constant 3 : index
    %26 = vector.load %arg2[%c0_18, %c3] : memref<16x9xf32, #tpu.memory_space<vmem>>, vector<16x1xf32>
    %c0_19 = arith.constant 0 : index
    %c3_20 = arith.constant 3 : index
    %27 = vector.load %arg22[%c0_19, %c3_20] : memref<128x264xf32, #tpu.memory_space<vmem>>, vector<1x256xf32>
    %28 = vector.broadcast %26 : vector<16x1xf32> to vector<16x256xf32>
    %29 = vector.broadcast %27 : vector<1x256xf32> to vector<16x256xf32>
    %30 = arith.mulf %28, %29 : vector<16x256xf32>
    %31 = arith.addf %25, %30 : vector<16x256xf32>
    %c0_21 = arith.constant 0 : index
    %c4_22 = arith.constant 4 : index
    %32 = vector.load %arg2[%c0_21, %c4_22] : memref<16x9xf32, #tpu.memory_space<vmem>>, vector<16x1xf32>
    %c0_23 = arith.constant 0 : index
    %c4_24 = arith.constant 4 : index
    %33 = vector.load %arg22[%c0_23, %c4_24] : memref<128x264xf32, #tpu.memory_space<vmem>>, vector<1x256xf32>
    %34 = vector.broadcast %32 : vector<16x1xf32> to vector<16x256xf32>
    %35 = vector.broadcast %33 : vector<1x256xf32> to vector<16x256xf32>
    %36 = arith.mulf %34, %35 : vector<16x256xf32>
    %37 = arith.addf %31, %36 : vector<16x256xf32>
    %c0_25 = arith.constant 0 : index
    %c5 = arith.constant 5 : index
    %38 = vector.load %arg2[%c0_25, %c5] : memref<16x9xf32, #tpu.memory_space<vmem>>, vector<16x1xf32>
    %c0_26 = arith.constant 0 : index
    %c5_27 = arith.constant 5 : index
    %39 = vector.load %arg22[%c0_26, %c5_27] : memref<128x264xf32, #tpu.memory_space<vmem>>, vector<1x256xf32>
    %40 = vector.broadcast %38 : vector<16x1xf32> to vector<16x256xf32>
    %41 = vector.broadcast %39 : vector<1x256xf32> to vector<16x256xf32>
    %42 = arith.mulf %40, %41 : vector<16x256xf32>
    %43 = arith.addf %37, %42 : vector<16x256xf32>
    %c0_28 = arith.constant 0 : index
    %c6 = arith.constant 6 : index
    %44 = vector.load %arg2[%c0_28, %c6] : memref<16x9xf32, #tpu.memory_space<vmem>>, vector<16x1xf32>
    %c0_29 = arith.constant 0 : index
    %c6_30 = arith.constant 6 : index
    %45 = vector.load %arg22[%c0_29, %c6_30] : memref<128x264xf32, #tpu.memory_space<vmem>>, vector<1x256xf32>
    %46 = vector.broadcast %44 : vector<16x1xf32> to vector<16x256xf32>
    %47 = vector.broadcast %45 : vector<1x256xf32> to vector<16x256xf32>
    %48 = arith.mulf %46, %47 : vector<16x256xf32>
    %49 = arith.addf %43, %48 : vector<16x256xf32>
    %c0_31 = arith.constant 0 : index
    %c7 = arith.constant 7 : index
    %50 = vector.load %arg2[%c0_31, %c7] : memref<16x9xf32, #tpu.memory_space<vmem>>, vector<16x1xf32>
    %c0_32 = arith.constant 0 : index
    %c7_33 = arith.constant 7 : index
    %51 = vector.load %arg22[%c0_32, %c7_33] : memref<128x264xf32, #tpu.memory_space<vmem>>, vector<1x256xf32>
    %52 = vector.broadcast %50 : vector<16x1xf32> to vector<16x256xf32>
    %53 = vector.broadcast %51 : vector<1x256xf32> to vector<16x256xf32>
    %54 = arith.mulf %52, %53 : vector<16x256xf32>
    %55 = arith.addf %49, %54 : vector<16x256xf32>
    %c0_34 = arith.constant 0 : index
    %c8 = arith.constant 8 : index
    %56 = vector.load %arg2[%c0_34, %c8] : memref<16x9xf32, #tpu.memory_space<vmem>>, vector<16x1xf32>
    %c0_35 = arith.constant 0 : index
    %c8_36 = arith.constant 8 : index
    %57 = vector.load %arg22[%c0_35, %c8_36] : memref<128x264xf32, #tpu.memory_space<vmem>>, vector<1x256xf32>
    %58 = vector.broadcast %56 : vector<16x1xf32> to vector<16x256xf32>
    %59 = vector.broadcast %57 : vector<1x256xf32> to vector<16x256xf32>
    %60 = arith.mulf %58, %59 : vector<16x256xf32>
    %61 = arith.addf %55, %60 : vector<16x256xf32>
    %c0_37 = arith.constant 0 : index
    %c0_38 = arith.constant 0 : index
    %62 = vector.load %arg3[%c0_37, %c0_38] : memref<16x1xf32, #tpu.memory_space<vmem>>, vector<16x1xf32>
    %63 = vector.broadcast %62 : vector<16x1xf32> to vector<16x256xf32>
    %64 = arith.addf %61, %63 : vector<16x256xf32>
    %cst_39 = arith.constant 0.000000e+00 : f32
    %65 = vector.broadcast %cst_39 : f32 to vector<16x256xf32>
    %66 = arith.maximumf %64, %65 : vector<16x256xf32>
    %cst_40 = arith.constant 0.000000e+00 : f32
    %67 = vector.broadcast %cst_40 : f32 to vector<16x4xf32>
    %c0_41 = arith.constant 0 : index
    %c0_42 = arith.constant 0 : index
    %68 = vector.load %arg22[%c0_41, %c0_42] : memref<128x264xf32, #tpu.memory_space<vmem>>, vector<16x4xf32>
    tpu.vector_store %arg22[%c0_41, %c0_42], %67 {strides = array<i32>} : memref<128x264xf32, #tpu.memory_space<vmem>>, vector<16x4xf32>,
    %cst_43 = arith.constant 0.000000e+00 : f32
    %69 = vector.broadcast %cst_43 : f32 to vector<16x4xf32>
    %c0_44 = arith.constant 0 : index
    %c260_45 = arith.constant 260 : index
    %70 = vector.load %arg22[%c0_44, %c260_45] : memref<128x264xf32, #tpu.memory_space<vmem>>, vector<16x4xf32>
    tpu.vector_store %arg22[%c0_44, %c260_45], %69 {strides = array<i32>} : memref<128x264xf32, #tpu.memory_space<vmem>>, vector<16x4xf32>,
    %c0_46 = arith.constant 0 : index
    %c4_47 = arith.constant 4 : index
    %71 = vector.load %arg22[%c0_46, %c4_47] : memref<128x264xf32, #tpu.memory_space<vmem>>, vector<16x256xf32>
    tpu.vector_store %arg22[%c0_46, %c4_47], %66 {strides = array<i32>} : memref<128x264xf32, #tpu.memory_space<vmem>>, vector<16x256xf32>,
    %c0_48 = arith.constant 0 : index
    %c0_49 = arith.constant 0 : index
    %72 = vector.load %arg22[%c0_48, %c0_49] : memref<128x264xf32, #tpu.memory_space<vmem>>, vector<16x256xf32>
    %c0_50 = arith.constant 0 : index
    %c0_51 = arith.constant 0 : index
    %73 = vector.load %arg23[%c0_50, %c0_51] : memref<384x256xf32, #tpu.memory_space<vmem>>, vector<16x256xf32>
    tpu.vector_store %arg23[%c0_50, %c0_51], %72 {strides = array<i32>} : memref<384x256xf32, #tpu.memory_space<vmem>>, vector<16x256xf32>,
    %c0_52 = arith.constant 0 : index
    %c1_53 = arith.constant 1 : index
    %74 = vector.load %arg22[%c0_52, %c1_53] : memref<128x264xf32, #tpu.memory_space<vmem>>, vector<16x256xf32>
    %c16 = arith.constant 16 : index
    %c0_54 = arith.constant 0 : index
    %75 = vector.load %arg23[%c16, %c0_54] : memref<384x256xf32, #tpu.memory_space<vmem>>, vector<16x256xf32>
    tpu.vector_store %arg23[%c16, %c0_54], %74 {strides = array<i32>} : memref<384x256xf32, #tpu.memory_space<vmem>>, vector<16x256xf32>,
    %c0_55 = arith.constant 0 : index
    %c2_56 = arith.constant 2 : index
    %76 = vector.load %arg22[%c0_55, %c2_56] : memref<128x264xf32, #tpu.memory_space<vmem>>, vector<16x256xf32>
    %c32 = arith.constant 32 : index
    %c0_57 = arith.constant 0 : index
    %77 = vector.load %arg23[%c32, %c0_57] : memref<384x256xf32, #tpu.memory_space<vmem>>, vector<16x256xf32>
    tpu.vector_store %arg23[%c32, %c0_57], %76 {strides = array<i32>} : memref<384x256xf32, #tpu.memory_space<vmem>>, vector<16x256xf32>,
    %c0_58 = arith.constant 0 : index
    %c3_59 = arith.constant 3 : index
    %78 = vector.load %arg22[%c0_58, %c3_59] : memref<128x264xf32, #tpu.memory_space<vmem>>, vector<16x256xf32>
    %c48 = arith.constant 48 : index
    %c0_60 = arith.constant 0 : index
    %79 = vector.load %arg23[%c48, %c0_60] : memref<384x256xf32, #tpu.memory_space<vmem>>, vector<16x256xf32>
    tpu.vector_store %arg23[%c48, %c0_60], %78 {strides = array<i32>} : memref<384x256xf32, #tpu.memory_space<vmem>>, vector<16x256xf32>,
    %c0_61 = arith.constant 0 : index
    %c4_62 = arith.constant 4 : index
    %80 = vector.load %arg22[%c0_61, %c4_62] : memref<128x264xf32, #tpu.memory_space<vmem>>, vector<16x256xf32>
    %c64 = arith.constant 64 : index
    %c0_63 = arith.constant 0 : index
    %81 = vector.load %arg23[%c64, %c0_63] : memref<384x256xf32, #tpu.memory_space<vmem>>, vector<16x256xf32>
    tpu.vector_store %arg23[%c64, %c0_63], %80 {strides = array<i32>} : memref<384x256xf32, #tpu.memory_space<vmem>>, vector<16x256xf32>,
    %c0_64 = arith.constant 0 : index
    %c5_65 = arith.constant 5 : index
    %82 = vector.load %arg22[%c0_64, %c5_65] : memref<128x264xf32, #tpu.memory_space<vmem>>, vector<16x256xf32>
    %c80 = arith.constant 80 : index
    %c0_66 = arith.constant 0 : index
    %83 = vector.load %arg23[%c80, %c0_66] : memref<384x256xf32, #tpu.memory_space<vmem>>, vector<16x256xf32>
    tpu.vector_store %arg23[%c80, %c0_66], %82 {strides = array<i32>} : memref<384x256xf32, #tpu.memory_space<vmem>>, vector<16x256xf32>,
    %c0_67 = arith.constant 0 : index
    %c6_68 = arith.constant 6 : index
    %84 = vector.load %arg22[%c0_67, %c6_68] : memref<128x264xf32, #tpu.memory_space<vmem>>, vector<16x256xf32>
    %c96 = arith.constant 96 : index
    %c0_69 = arith.constant 0 : index
    %85 = vector.load %arg23[%c96, %c0_69] : memref<384x256xf32, #tpu.memory_space<vmem>>, vector<16x256xf32>
    tpu.vector_store %arg23[%c96, %c0_69], %84 {strides = array<i32>} : memref<384x256xf32, #tpu.memory_space<vmem>>, vector<16x256xf32>,
    %c0_70 = arith.constant 0 : index
    %c7_71 = arith.constant 7 : index
    %86 = vector.load %arg22[%c0_70, %c7_71] : memref<128x264xf32, #tpu.memory_space<vmem>>, vector<16x256xf32>
    %c112 = arith.constant 112 : index
    %c0_72 = arith.constant 0 : index
    %87 = vector.load %arg23[%c112, %c0_72] : memref<384x256xf32, #tpu.memory_space<vmem>>, vector<16x256xf32>
    tpu.vector_store %arg23[%c112, %c0_72], %86 {strides = array<i32>} : memref<384x256xf32, #tpu.memory_space<vmem>>, vector<16x256xf32>,
    %c0_73 = arith.constant 0 : index
    %c8_74 = arith.constant 8 : index
    %88 = vector.load %arg22[%c0_73, %c8_74] : memref<128x264xf32, #tpu.memory_space<vmem>>, vector<16x256xf32>
    %c128 = arith.constant 128 : index
    %c0_75 = arith.constant 0 : index
    %89 = vector.load %arg23[%c128, %c0_75] : memref<384x256xf32, #tpu.memory_space<vmem>>, vector<16x256xf32>
    tpu.vector_store %arg23[%c128, %c0_75], %88 {strides = array<i32>} : memref<384x256xf32, #tpu.memory_space<vmem>>, vector<16x256xf32>,
    %c0_76 = arith.constant 0 : index
    %c0_77 = arith.constant 0 : index
    %90 = vector.load %arg23[%c0_76, %c0_77] : memref<384x256xf32, #tpu.memory_space<vmem>>, vector<144x256xf32>
    %c0_78 = arith.constant 0 : index
    %c0_79 = arith.constant 0 : index
    %91 = vector.load %arg4[%c0_78, %c0_79] : memref<16x144xbf16, #tpu.memory_space<vmem>>, vector<16x144xbf16>
    %92 = arith.truncf %90 : vector<144x256xf32> to vector<144x256xbf16>
    %cst_80 = arith.constant dense<0.000000e+00> : vector<16x256xf32>
    %93 = tpu.matmul %91, %92, %cst_80 {dimension_numbers = #tpu.dot_dimension_numbers<[1], [0], [0], [1], [0, 0, 1, 1], [], []>} : vector<16x144xbf16>, vector<144x256xbf16>, vector<16x256xf32> -> vector<16x256xf32>
    %c0_81 = arith.constant 0 : index
    %c0_82 = arith.constant 0 : index
    %94 = vector.load %arg5[%c0_81, %c0_82] : memref<16x1xf32, #tpu.memory_space<vmem>>, vector<16x1xf32>
    %95 = vector.broadcast %94 : vector<16x1xf32> to vector<16x256xf32>
    %96 = arith.addf %93, %95 : vector<16x256xf32>
    %cst_83 = arith.constant 0.000000e+00 : f32
    %97 = vector.broadcast %cst_83 : f32 to vector<16x256xf32>
    %98 = arith.maximumf %96, %97 : vector<16x256xf32>
    %c0_84 = arith.constant 0 : index
    %c0_85 = arith.constant 0 : index
    %c0_86 = arith.constant 0 : index
    %99 = vector.load %arg18[%c0_84, %c0_85, %c0_86] : memref<1x16x256xf32, #tpu.memory_space<vmem>>, vector<1x16x256xf32>
    %100 = vector.shape_cast %99 : vector<1x16x256xf32> to vector<16x256xf32>
    %101 = vector.shape_cast %98 : vector<16x256xf32> to vector<1x16x256xf32>
    tpu.vector_store %arg18[%c0_84, %c0_85, %c0_86], %101 {strides = array<i32>} : memref<1x16x256xf32, #tpu.memory_space<vmem>>, vector<1x16x256xf32>,
    %102 = tpu.iota {dimensions = array<i32: 0>} : vector<256x64xi32>
    %103 = tpu.iota {dimensions = array<i32: 1>} : vector<256x64xi32>
    %c4_i32 = arith.constant 4 : i32
    %104 = vector.broadcast %c4_i32 : i32 to vector<256x64xi32>
    %105 = arith.muli %104, %103 : vector<256x64xi32>
    %c0_i32 = arith.constant 0 : i32
    %106 = vector.broadcast %c0_i32 : i32 to vector<256x64xi32>
    %107 = arith.addi %105, %106 : vector<256x64xi32>
    %108 = arith.cmpi eq, %102, %107 : vector<256x64xi32>
    %109 = arith.extui %108 : vector<256x64xi1> to vector<256x64xi32>
    %110 = arith.sitofp %109 : vector<256x64xi32> to vector<256x64xf32>
    %cst_87 = arith.constant dense<0.000000e+00> : vector<16x64xf32>
    %111 = tpu.matmul %98, %110, %cst_87 {dimension_numbers = #tpu.dot_dimension_numbers<[1], [0], [0], [1], [0, 0, 1, 1], [], []>} : vector<16x256xf32>, vector<256x64xf32>, vector<16x64xf32> -> vector<16x64xf32>
    %c4_i32_88 = arith.constant 4 : i32
    %112 = vector.broadcast %c4_i32_88 : i32 to vector<256x64xi32>
    %113 = arith.muli %112, %103 : vector<256x64xi32>
    %c1_i32 = arith.constant 1 : i32
    %114 = vector.broadcast %c1_i32 : i32 to vector<256x64xi32>
    %115 = arith.addi %113, %114 : vector<256x64xi32>
    %116 = arith.cmpi eq, %102, %115 : vector<256x64xi32>
    %117 = arith.extui %116 : vector<256x64xi1> to vector<256x64xi32>
    %118 = arith.sitofp %117 : vector<256x64xi32> to vector<256x64xf32>
    %cst_89 = arith.constant dense<0.000000e+00> : vector<16x64xf32>
    %119 = tpu.matmul %98, %118, %cst_89 {dimension_numbers = #tpu.dot_dimension_numbers<[1], [0], [0], [1], [0, 0, 1, 1], [], []>} : vector<16x256xf32>, vector<256x64xf32>, vector<16x64xf32> -> vector<16x64xf32>
    %120 = arith.maximumf %111, %119 : vector<16x64xf32>
    %c4_i32_90 = arith.constant 4 : i32
    %121 = vector.broadcast %c4_i32_90 : i32 to vector<256x64xi32>
    %122 = arith.muli %121, %103 : vector<256x64xi32>
    %c2_i32 = arith.constant 2 : i32
    %123 = vector.broadcast %c2_i32 : i32 to vector<256x64xi32>
    %124 = arith.addi %122, %123 : vector<256x64xi32>
    %125 = arith.cmpi eq, %102, %124 : vector<256x64xi32>
    %126 = arith.extui %125 : vector<256x64xi1> to vector<256x64xi32>
    %127 = arith.sitofp %126 : vector<256x64xi32> to vector<256x64xf32>
    %cst_91 = arith.constant dense<0.000000e+00> : vector<16x64xf32>
    %128 = tpu.matmul %98, %127, %cst_91 {dimension_numbers = #tpu.dot_dimension_numbers<[1], [0], [0], [1], [0, 0, 1, 1], [], []>} : vector<16x256xf32>, vector<256x64xf32>, vector<16x64xf32> -> vector<16x64xf32>
    %129 = arith.maximumf %120, %128 : vector<16x64xf32>
    %c4_i32_92 = arith.constant 4 : i32
    %130 = vector.broadcast %c4_i32_92 : i32 to vector<256x64xi32>
    %131 = arith.muli %130, %103 : vector<256x64xi32>
    %c3_i32 = arith.constant 3 : i32
    %132 = vector.broadcast %c3_i32 : i32 to vector<256x64xi32>
    %133 = arith.addi %131, %132 : vector<256x64xi32>
    %134 = arith.cmpi eq, %102, %133 : vector<256x64xi32>
    %135 = arith.extui %134 : vector<256x64xi1> to vector<256x64xi32>
    %136 = arith.sitofp %135 : vector<256x64xi32> to vector<256x64xf32>
    %cst_93 = arith.constant dense<0.000000e+00> : vector<16x64xf32>
    %137 = tpu.matmul %98, %136, %cst_93 {dimension_numbers = #tpu.dot_dimension_numbers<[1], [0], [0], [1], [0, 0, 1, 1], [], []>} : vector<16x256xf32>, vector<256x64xf32>, vector<16x64xf32> -> vector<16x64xf32>
    %138 = arith.maximumf %129, %137 : vector<16x64xf32>
    %cst_94 = arith.constant 0.000000e+00 : f32
    %139 = vector.broadcast %cst_94 : f32 to vector<16x3xf32>
    %c0_95 = arith.constant 0 : index
    %c0_96 = arith.constant 0 : index
    %140 = vector.load %arg22[%c0_95, %c0_96] : memref<128x264xf32, #tpu.memory_space<vmem>>, vector<16x3xf32>
    tpu.vector_store %arg22[%c0_95, %c0_96], %139 {strides = array<i32>} : memref<128x264xf32, #tpu.memory_space<vmem>>, vector<16x3xf32>,
    %cst_97 = arith.constant 0.000000e+00 : f32
    %141 = vector.broadcast %cst_97 : f32 to vector<16x3xf32>
    %c0_98 = arith.constant 0 : index
    %c67 = arith.constant 67 : index
    %142 = vector.load %arg22[%c0_98, %c67] : memref<128x264xf32, #tpu.memory_space<vmem>>, vector<16x3xf32>
    tpu.vector_store %arg22[%c0_98, %c67], %141 {strides = array<i32>} : memref<128x264xf32, #tpu.memory_space<vmem>>, vector<16x3xf32>,
    %c0_99 = arith.constant 0 : index
    %c3_100 = arith.constant 3 : index
    %143 = vector.load %arg22[%c0_99, %c3_100] : memref<128x264xf32, #tpu.memory_space<vmem>>, vector<16x64xf32>
    tpu.vector_store %arg22[%c0_99, %c3_100], %138 {strides = array<i32>} : memref<128x264xf32, #tpu.memory_space<vmem>>, vector<16x64xf32>,
    %c0_101 = arith.constant 0 : index
    %c0_102 = arith.constant 0 : index
    %144 = vector.load %arg22[%c0_101, %c0_102] : memref<128x264xf32, #tpu.memory_space<vmem>>, vector<16x64xf32>
    %c0_103 = arith.constant 0 : index
    %c0_104 = arith.constant 0 : index
    %145 = vector.load %arg23[%c0_103, %c0_104] : memref<384x256xf32, #tpu.memory_space<vmem>>, vector<16x64xf32>
    tpu.vector_store %arg23[%c0_103, %c0_104], %144 {strides = array<i32>} : memref<384x256xf32, #tpu.memory_space<vmem>>, vector<16x64xf32>,
    %c0_105 = arith.constant 0 : index
    %c1_106 = arith.constant 1 : index
    %146 = vector.load %arg22[%c0_105, %c1_106] : memref<128x264xf32, #tpu.memory_space<vmem>>, vector<16x64xf32>
    %c16_107 = arith.constant 16 : index
    %c0_108 = arith.constant 0 : index
    %147 = vector.load %arg23[%c16_107, %c0_108] : memref<384x256xf32, #tpu.memory_space<vmem>>, vector<16x64xf32>
    tpu.vector_store %arg23[%c16_107, %c0_108], %146 {strides = array<i32>} : memref<384x256xf32, #tpu.memory_space<vmem>>, vector<16x64xf32>,
    %c0_109 = arith.constant 0 : index
    %c2_110 = arith.constant 2 : index
    %148 = vector.load %arg22[%c0_109, %c2_110] : memref<128x264xf32, #tpu.memory_space<vmem>>, vector<16x64xf32>
    %c32_111 = arith.constant 32 : index
    %c0_112 = arith.constant 0 : index
    %149 = vector.load %arg23[%c32_111, %c0_112] : memref<384x256xf32, #tpu.memory_space<vmem>>, vector<16x64xf32>
    tpu.vector_store %arg23[%c32_111, %c0_112], %148 {strides = array<i32>} : memref<384x256xf32, #tpu.memory_space<vmem>>, vector<16x64xf32>,
    %c0_113 = arith.constant 0 : index
    %c3_114 = arith.constant 3 : index
    %150 = vector.load %arg22[%c0_113, %c3_114] : memref<128x264xf32, #tpu.memory_space<vmem>>, vector<16x64xf32>
    %c48_115 = arith.constant 48 : index
    %c0_116 = arith.constant 0 : index
    %151 = vector.load %arg23[%c48_115, %c0_116] : memref<384x256xf32, #tpu.memory_space<vmem>>, vector<16x64xf32>
    tpu.vector_store %arg23[%c48_115, %c0_116], %150 {strides = array<i32>} : memref<384x256xf32, #tpu.memory_space<vmem>>, vector<16x64xf32>,
    %c0_117 = arith.constant 0 : index
    %c4_118 = arith.constant 4 : index
    %152 = vector.load %arg22[%c0_117, %c4_118] : memref<128x264xf32, #tpu.memory_space<vmem>>, vector<16x64xf32>
    %c64_119 = arith.constant 64 : index
    %c0_120 = arith.constant 0 : index
    %153 = vector.load %arg23[%c64_119, %c0_120] : memref<384x256xf32, #tpu.memory_space<vmem>>, vector<16x64xf32>
    tpu.vector_store %arg23[%c64_119, %c0_120], %152 {strides = array<i32>} : memref<384x256xf32, #tpu.memory_space<vmem>>, vector<16x64xf32>,
    %c0_121 = arith.constant 0 : index
    %c5_122 = arith.constant 5 : index
    %154 = vector.load %arg22[%c0_121, %c5_122] : memref<128x264xf32, #tpu.memory_space<vmem>>, vector<16x64xf32>
    %c80_123 = arith.constant 80 : index
    %c0_124 = arith.constant 0 : index
    %155 = vector.load %arg23[%c80_123, %c0_124] : memref<384x256xf32, #tpu.memory_space<vmem>>, vector<16x64xf32>
    tpu.vector_store %arg23[%c80_123, %c0_124], %154 {strides = array<i32>} : memref<384x256xf32, #tpu.memory_space<vmem>>, vector<16x64xf32>,
    %c0_125 = arith.constant 0 : index
    %c6_126 = arith.constant 6 : index
    %156 = vector.load %arg22[%c0_125, %c6_126] : memref<128x264xf32, #tpu.memory_space<vmem>>, vector<16x64xf32>
    %c96_127 = arith.constant 96 : index
    %c0_128 = arith.constant 0 : index
    %157 = vector.load %arg23[%c96_127, %c0_128] : memref<384x256xf32, #tpu.memory_space<vmem>>, vector<16x64xf32>
    tpu.vector_store %arg23[%c96_127, %c0_128], %156 {strides = array<i32>} : memref<384x256xf32, #tpu.memory_space<vmem>>, vector<16x64xf32>,
    %c0_129 = arith.constant 0 : index
    %c0_130 = arith.constant 0 : index
    %158 = vector.load %arg23[%c0_129, %c0_130] : memref<384x256xf32, #tpu.memory_space<vmem>>, vector<112x64xf32>
    %c0_131 = arith.constant 0 : index
    %c0_132 = arith.constant 0 : index
    %159 = vector.load %arg6[%c0_131, %c0_132] : memref<32x112xbf16, #tpu.memory_space<vmem>>, vector<32x112xbf16>
    %160 = arith.truncf %158 : vector<112x64xf32> to vector<112x64xbf16>
    %cst_133 = arith.constant dense<0.000000e+00> : vector<32x64xf32>
    %161 = tpu.matmul %159, %160, %cst_133 {dimension_numbers = #tpu.dot_dimension_numbers<[1], [0], [0], [1], [0, 0, 1, 1], [], []>} : vector<32x112xbf16>, vector<112x64xbf16>, vector<32x64xf32> -> vector<32x64xf32>
    %c0_134 = arith.constant 0 : index
    %c0_135 = arith.constant 0 : index
    %162 = vector.load %arg7[%c0_134, %c0_135] : memref<32x1xf32, #tpu.memory_space<vmem>>, vector<32x1xf32>
    %163 = vector.broadcast %162 : vector<32x1xf32> to vector<32x64xf32>
    %164 = arith.addf %161, %163 : vector<32x64xf32>
    %cst_136 = arith.constant 0.000000e+00 : f32
    %165 = vector.broadcast %cst_136 : f32 to vector<32x64xf32>
    %166 = arith.maximumf %164, %165 : vector<32x64xf32>
    %cst_137 = arith.constant 0.000000e+00 : f32
    %167 = vector.broadcast %cst_137 : f32 to vector<32x3xf32>
    %c0_138 = arith.constant 0 : index
    %c0_139 = arith.constant 0 : index
    %168 = vector.load %arg22[%c0_138, %c0_139] : memref<128x264xf32, #tpu.memory_space<vmem>>, vector<32x3xf32>
    tpu.vector_store %arg22[%c0_138, %c0_139], %167 {strides = array<i32>} : memref<128x264xf32, #tpu.memory_space<vmem>>, vector<32x3xf32>,
    %cst_140 = arith.constant 0.000000e+00 : f32
    %169 = vector.broadcast %cst_140 : f32 to vector<32x3xf32>
    %c0_141 = arith.constant 0 : index
    %c67_142 = arith.constant 67 : index
    %170 = vector.load %arg22[%c0_141, %c67_142] : memref<128x264xf32, #tpu.memory_space<vmem>>, vector<32x3xf32>
    tpu.vector_store %arg22[%c0_141, %c67_142], %169 {strides = array<i32>} : memref<128x264xf32, #tpu.memory_space<vmem>>, vector<32x3xf32>,
    %c0_143 = arith.constant 0 : index
    %c3_144 = arith.constant 3 : index
    %171 = vector.load %arg22[%c0_143, %c3_144] : memref<128x264xf32, #tpu.memory_space<vmem>>, vector<32x64xf32>
    tpu.vector_store %arg22[%c0_143, %c3_144], %166 {strides = array<i32>} : memref<128x264xf32, #tpu.memory_space<vmem>>, vector<32x64xf32>,
    %c0_145 = arith.constant 0 : index
    %c0_146 = arith.constant 0 : index
    %172 = vector.load %arg22[%c0_145, %c0_146] : memref<128x264xf32, #tpu.memory_space<vmem>>, vector<32x64xf32>
    %c0_147 = arith.constant 0 : index
    %c0_148 = arith.constant 0 : index
    %173 = vector.load %arg23[%c0_147, %c0_148] : memref<384x256xf32, #tpu.memory_space<vmem>>, vector<32x64xf32>
    tpu.vector_store %arg23[%c0_147, %c0_148], %172 {strides = array<i32>} : memref<384x256xf32, #tpu.memory_space<vmem>>, vector<32x64xf32>,
    %c0_149 = arith.constant 0 : index
    %c1_150 = arith.constant 1 : index
    %174 = vector.load %arg22[%c0_149, %c1_150] : memref<128x264xf32, #tpu.memory_space<vmem>>, vector<32x64xf32>
    %c32_151 = arith.constant 32 : index
    %c0_152 = arith.constant 0 : index
    %175 = vector.load %arg23[%c32_151, %c0_152] : memref<384x256xf32, #tpu.memory_space<vmem>>, vector<32x64xf32>
    tpu.vector_store %arg23[%c32_151, %c0_152], %174 {strides = array<i32>} : memref<384x256xf32, #tpu.memory_space<vmem>>, vector<32x64xf32>,
    %c0_153 = arith.constant 0 : index
    %c2_154 = arith.constant 2 : index
    %176 = vector.load %arg22[%c0_153, %c2_154] : memref<128x264xf32, #tpu.memory_space<vmem>>, vector<32x64xf32>
    %c64_155 = arith.constant 64 : index
    %c0_156 = arith.constant 0 : index
    %177 = vector.load %arg23[%c64_155, %c0_156] : memref<384x256xf32, #tpu.memory_space<vmem>>, vector<32x64xf32>
    tpu.vector_store %arg23[%c64_155, %c0_156], %176 {strides = array<i32>} : memref<384x256xf32, #tpu.memory_space<vmem>>, vector<32x64xf32>,
    %c0_157 = arith.constant 0 : index
    %c3_158 = arith.constant 3 : index
    %178 = vector.load %arg22[%c0_157, %c3_158] : memref<128x264xf32, #tpu.memory_space<vmem>>, vector<32x64xf32>
    %c96_159 = arith.constant 96 : index
    %c0_160 = arith.constant 0 : index
    %179 = vector.load %arg23[%c96_159, %c0_160] : memref<384x256xf32, #tpu.memory_space<vmem>>, vector<32x64xf32>
    tpu.vector_store %arg23[%c96_159, %c0_160], %178 {strides = array<i32>} : memref<384x256xf32, #tpu.memory_space<vmem>>, vector<32x64xf32>,
    %c0_161 = arith.constant 0 : index
    %c4_162 = arith.constant 4 : index
    %180 = vector.load %arg22[%c0_161, %c4_162] : memref<128x264xf32, #tpu.memory_space<vmem>>, vector<32x64xf32>
    %c128_163 = arith.constant 128 : index
    %c0_164 = arith.constant 0 : index
    %181 = vector.load %arg23[%c128_163, %c0_164] : memref<384x256xf32, #tpu.memory_space<vmem>>, vector<32x64xf32>
    tpu.vector_store %arg23[%c128_163, %c0_164], %180 {strides = array<i32>} : memref<384x256xf32, #tpu.memory_space<vmem>>, vector<32x64xf32>,
    %c0_165 = arith.constant 0 : index
    %c5_166 = arith.constant 5 : index
    %182 = vector.load %arg22[%c0_165, %c5_166] : memref<128x264xf32, #tpu.memory_space<vmem>>, vector<32x64xf32>
    %c160 = arith.constant 160 : index
    %c0_167 = arith.constant 0 : index
    %183 = vector.load %arg23[%c160, %c0_167] : memref<384x256xf32, #tpu.memory_space<vmem>>, vector<32x64xf32>
    tpu.vector_store %arg23[%c160, %c0_167], %182 {strides = array<i32>} : memref<384x256xf32, #tpu.memory_space<vmem>>, vector<32x64xf32>,
    %c0_168 = arith.constant 0 : index
    %c6_169 = arith.constant 6 : index
    %184 = vector.load %arg22[%c0_168, %c6_169] : memref<128x264xf32, #tpu.memory_space<vmem>>, vector<32x64xf32>
    %c192 = arith.constant 192 : index
    %c0_170 = arith.constant 0 : index
    %185 = vector.load %arg23[%c192, %c0_170] : memref<384x256xf32, #tpu.memory_space<vmem>>, vector<32x64xf32>
    tpu.vector_store %arg23[%c192, %c0_170], %184 {strides = array<i32>} : memref<384x256xf32, #tpu.memory_space<vmem>>, vector<32x64xf32>,
    %c0_171 = arith.constant 0 : index
    %c0_172 = arith.constant 0 : index
    %186 = vector.load %arg23[%c0_171, %c0_172] : memref<384x256xf32, #tpu.memory_space<vmem>>, vector<224x64xf32>
    %c0_173 = arith.constant 0 : index
    %c0_174 = arith.constant 0 : index
    %187 = vector.load %arg8[%c0_173, %c0_174] : memref<32x224xbf16, #tpu.memory_space<vmem>>, vector<32x224xbf16>
    %188 = arith.truncf %186 : vector<224x64xf32> to vector<224x64xbf16>
    %cst_175 = arith.constant dense<0.000000e+00> : vector<32x64xf32>
    %189 = tpu.matmul %187, %188, %cst_175 {dimension_numbers = #tpu.dot_dimension_numbers<[1], [0], [0], [1], [0, 0, 1, 1], [], []>} : vector<32x224xbf16>, vector<224x64xbf16>, vector<32x64xf32> -> vector<32x64xf32>
    %c0_176 = arith.constant 0 : index
    %c0_177 = arith.constant 0 : index
    %190 = vector.load %arg9[%c0_176, %c0_177] : memref<32x1xf32, #tpu.memory_space<vmem>>, vector<32x1xf32>
    %191 = vector.broadcast %190 : vector<32x1xf32> to vector<32x64xf32>
    %192 = arith.addf %189, %191 : vector<32x64xf32>
    %cst_178 = arith.constant 0.000000e+00 : f32
    %193 = vector.broadcast %cst_178 : f32 to vector<32x64xf32>
    %194 = arith.maximumf %192, %193 : vector<32x64xf32>
    %c0_179 = arith.constant 0 : index
    %c0_180 = arith.constant 0 : index
    %c0_181 = arith.constant 0 : index
    %195 = vector.load %arg19[%c0_179, %c0_180, %c0_181] : memref<1x32x64xf32, #tpu.memory_space<vmem>>, vector<1x32x64xf32>
    %196 = vector.shape_cast %195 : vector<1x32x64xf32> to vector<32x64xf32>
    %197 = vector.shape_cast %194 : vector<32x64xf32> to vector<1x32x64xf32>
    tpu.vector_store %arg19[%c0_179, %c0_180, %c0_181], %197 {strides = array<i32>} : memref<1x32x64xf32, #tpu.memory_space<vmem>>, vector<1x32x64xf32>,
    %198 = tpu.iota {dimensions = array<i32: 0>} : vector<64x16xi32>
    %199 = tpu.iota {dimensions = array<i32: 1>} : vector<64x16xi32>
    %c4_i32_182 = arith.constant 4 : i32
    %200 = vector.broadcast %c4_i32_182 : i32 to vector<64x16xi32>
    %201 = arith.muli %200, %199 : vector<64x16xi32>
    %c0_i32_183 = arith.constant 0 : i32
    %202 = vector.broadcast %c0_i32_183 : i32 to vector<64x16xi32>
    %203 = arith.addi %201, %202 : vector<64x16xi32>
    %204 = arith.cmpi eq, %198, %203 : vector<64x16xi32>
    %205 = arith.extui %204 : vector<64x16xi1> to vector<64x16xi32>
    %206 = arith.sitofp %205 : vector<64x16xi32> to vector<64x16xf32>
    %cst_184 = arith.constant dense<0.000000e+00> : vector<32x16xf32>
    %207 = tpu.matmul %194, %206, %cst_184 {dimension_numbers = #tpu.dot_dimension_numbers<[1], [0], [0], [1], [0, 0, 1, 1], [], []>} : vector<32x64xf32>, vector<64x16xf32>, vector<32x16xf32> -> vector<32x16xf32>
    %c4_i32_185 = arith.constant 4 : i32
    %208 = vector.broadcast %c4_i32_185 : i32 to vector<64x16xi32>
    %209 = arith.muli %208, %199 : vector<64x16xi32>
    %c1_i32_186 = arith.constant 1 : i32
    %210 = vector.broadcast %c1_i32_186 : i32 to vector<64x16xi32>
    %211 = arith.addi %209, %210 : vector<64x16xi32>
    %212 = arith.cmpi eq, %198, %211 : vector<64x16xi32>
    %213 = arith.extui %212 : vector<64x16xi1> to vector<64x16xi32>
    %214 = arith.sitofp %213 : vector<64x16xi32> to vector<64x16xf32>
    %cst_187 = arith.constant dense<0.000000e+00> : vector<32x16xf32>
    %215 = tpu.matmul %194, %214, %cst_187 {dimension_numbers = #tpu.dot_dimension_numbers<[1], [0], [0], [1], [0, 0, 1, 1], [], []>} : vector<32x64xf32>, vector<64x16xf32>, vector<32x16xf32> -> vector<32x16xf32>
    %216 = arith.maximumf %207, %215 : vector<32x16xf32>
    %c4_i32_188 = arith.constant 4 : i32
    %217 = vector.broadcast %c4_i32_188 : i32 to vector<64x16xi32>
    %218 = arith.muli %217, %199 : vector<64x16xi32>
    %c2_i32_189 = arith.constant 2 : i32
    %219 = vector.broadcast %c2_i32_189 : i32 to vector<64x16xi32>
    %220 = arith.addi %218, %219 : vector<64x16xi32>
    %221 = arith.cmpi eq, %198, %220 : vector<64x16xi32>
    %222 = arith.extui %221 : vector<64x16xi1> to vector<64x16xi32>
    %223 = arith.sitofp %222 : vector<64x16xi32> to vector<64x16xf32>
    %cst_190 = arith.constant dense<0.000000e+00> : vector<32x16xf32>
    %224 = tpu.matmul %194, %223, %cst_190 {dimension_numbers = #tpu.dot_dimension_numbers<[1], [0], [0], [1], [0, 0, 1, 1], [], []>} : vector<32x64xf32>, vector<64x16xf32>, vector<32x16xf32> -> vector<32x16xf32>
    %225 = arith.maximumf %216, %224 : vector<32x16xf32>
    %c4_i32_191 = arith.constant 4 : i32
    %226 = vector.broadcast %c4_i32_191 : i32 to vector<64x16xi32>
    %227 = arith.muli %226, %199 : vector<64x16xi32>
    %c3_i32_192 = arith.constant 3 : i32
    %228 = vector.broadcast %c3_i32_192 : i32 to vector<64x16xi32>
    %229 = arith.addi %227, %228 : vector<64x16xi32>
    %230 = arith.cmpi eq, %198, %229 : vector<64x16xi32>
    %231 = arith.extui %230 : vector<64x16xi1> to vector<64x16xi32>
    %232 = arith.sitofp %231 : vector<64x16xi32> to vector<64x16xf32>
    %cst_193 = arith.constant dense<0.000000e+00> : vector<32x16xf32>
    %233 = tpu.matmul %194, %232, %cst_193 {dimension_numbers = #tpu.dot_dimension_numbers<[1], [0], [0], [1], [0, 0, 1, 1], [], []>} : vector<32x64xf32>, vector<64x16xf32>, vector<32x16xf32> -> vector<32x16xf32>
    %234 = arith.maximumf %225, %233 : vector<32x16xf32>
    %cst_194 = arith.constant 0.000000e+00 : f32
    %235 = vector.broadcast %cst_194 : f32 to vector<32x1xf32>
    %c0_195 = arith.constant 0 : index
    %c0_196 = arith.constant 0 : index
    %236 = vector.load %arg22[%c0_195, %c0_196] : memref<128x264xf32, #tpu.memory_space<vmem>>, vector<32x1xf32>
    tpu.vector_store %arg22[%c0_195, %c0_196], %235 {strides = array<i32>} : memref<128x264xf32, #tpu.memory_space<vmem>>, vector<32x1xf32>,
    %cst_197 = arith.constant 0.000000e+00 : f32
    %237 = vector.broadcast %cst_197 : f32 to vector<32x1xf32>
    %c0_198 = arith.constant 0 : index
    %c17 = arith.constant 17 : index
    %238 = vector.load %arg22[%c0_198, %c17] : memref<128x264xf32, #tpu.memory_space<vmem>>, vector<32x1xf32>
    tpu.vector_store %arg22[%c0_198, %c17], %237 {strides = array<i32>} : memref<128x264xf32, #tpu.memory_space<vmem>>, vector<32x1xf32>,
    %c0_199 = arith.constant 0 : index
    %c1_200 = arith.constant 1 : index
    %239 = vector.load %arg22[%c0_199, %c1_200] : memref<128x264xf32, #tpu.memory_space<vmem>>, vector<32x16xf32>
    tpu.vector_store %arg22[%c0_199, %c1_200], %234 {strides = array<i32>} : memref<128x264xf32, #tpu.memory_space<vmem>>, vector<32x16xf32>,
    %c0_201 = arith.constant 0 : index
    %c0_202 = arith.constant 0 : index
    %240 = vector.load %arg22[%c0_201, %c0_202] : memref<128x264xf32, #tpu.memory_space<vmem>>, vector<32x16xf32>
    %c0_203 = arith.constant 0 : index
    %c0_204 = arith.constant 0 : index
    %241 = vector.load %arg23[%c0_203, %c0_204] : memref<384x256xf32, #tpu.memory_space<vmem>>, vector<32x16xf32>
    tpu.vector_store %arg23[%c0_203, %c0_204], %240 {strides = array<i32>} : memref<384x256xf32, #tpu.memory_space<vmem>>, vector<32x16xf32>,
    %c0_205 = arith.constant 0 : index
    %c1_206 = arith.constant 1 : index
    %242 = vector.load %arg22[%c0_205, %c1_206] : memref<128x264xf32, #tpu.memory_space<vmem>>, vector<32x16xf32>
    %c32_207 = arith.constant 32 : index
    %c0_208 = arith.constant 0 : index
    %243 = vector.load %arg23[%c32_207, %c0_208] : memref<384x256xf32, #tpu.memory_space<vmem>>, vector<32x16xf32>
    tpu.vector_store %arg23[%c32_207, %c0_208], %242 {strides = array<i32>} : memref<384x256xf32, #tpu.memory_space<vmem>>, vector<32x16xf32>,
    %c0_209 = arith.constant 0 : index
    %c2_210 = arith.constant 2 : index
    %244 = vector.load %arg22[%c0_209, %c2_210] : memref<128x264xf32, #tpu.memory_space<vmem>>, vector<32x16xf32>
    %c64_211 = arith.constant 64 : index
    %c0_212 = arith.constant 0 : index
    %245 = vector.load %arg23[%c64_211, %c0_212] : memref<384x256xf32, #tpu.memory_space<vmem>>, vector<32x16xf32>
    tpu.vector_store %arg23[%c64_211, %c0_212], %244 {strides = array<i32>} : memref<384x256xf32, #tpu.memory_space<vmem>>, vector<32x16xf32>,
    %c0_213 = arith.constant 0 : index
    %c0_214 = arith.constant 0 : index
    %246 = vector.load %arg23[%c0_213, %c0_214] : memref<384x256xf32, #tpu.memory_space<vmem>>, vector<96x16xf32>
    %c0_215 = arith.constant 0 : index
    %c0_216 = arith.constant 0 : index
    %247 = vector.load %arg10[%c0_215, %c0_216] : memref<64x96xbf16, #tpu.memory_space<vmem>>, vector<64x96xbf16>
    %248 = arith.truncf %246 : vector<96x16xf32> to vector<96x16xbf16>
    %cst_217 = arith.constant dense<0.000000e+00> : vector<64x16xf32>
    %249 = tpu.matmul %247, %248, %cst_217 {dimension_numbers = #tpu.dot_dimension_numbers<[1], [0], [0], [1], [0, 0, 1, 1], [], []>} : vector<64x96xbf16>, vector<96x16xbf16>, vector<64x16xf32> -> vector<64x16xf32>
    %c0_218 = arith.constant 0 : index
    %c0_219 = arith.constant 0 : index
    %250 = vector.load %arg11[%c0_218, %c0_219] : memref<64x1xf32, #tpu.memory_space<vmem>>, vector<64x1xf32>
    %251 = vector.broadcast %250 : vector<64x1xf32> to vector<64x16xf32>
    %252 = arith.addf %249, %251 : vector<64x16xf32>
    %cst_220 = arith.constant 0.000000e+00 : f32
    %253 = vector.broadcast %cst_220 : f32 to vector<64x16xf32>
    %254 = arith.maximumf %252, %253 : vector<64x16xf32>
    %cst_221 = arith.constant 0.000000e+00 : f32
    %255 = vector.broadcast %cst_221 : f32 to vector<64x1xf32>
    %c0_222 = arith.constant 0 : index
    %c0_223 = arith.constant 0 : index
    %256 = vector.load %arg22[%c0_222, %c0_223] : memref<128x264xf32, #tpu.memory_space<vmem>>, vector<64x1xf32>
    tpu.vector_store %arg22[%c0_222, %c0_223], %255 {strides = array<i32>} : memref<128x264xf32, #tpu.memory_space<vmem>>, vector<64x1xf32>,
    %cst_224 = arith.constant 0.000000e+00 : f32
    %257 = vector.broadcast %cst_224 : f32 to vector<64x1xf32>
    %c0_225 = arith.constant 0 : index
    %c17_226 = arith.constant 17 : index
    %258 = vector.load %arg22[%c0_225, %c17_226] : memref<128x264xf32, #tpu.memory_space<vmem>>, vector<64x1xf32>
    tpu.vector_store %arg22[%c0_225, %c17_226], %257 {strides = array<i32>} : memref<128x264xf32, #tpu.memory_space<vmem>>, vector<64x1xf32>,
    %c0_227 = arith.constant 0 : index
    %c1_228 = arith.constant 1 : index
    %259 = vector.load %arg22[%c0_227, %c1_228] : memref<128x264xf32, #tpu.memory_space<vmem>>, vector<64x16xf32>
    tpu.vector_store %arg22[%c0_227, %c1_228], %254 {strides = array<i32>} : memref<128x264xf32, #tpu.memory_space<vmem>>, vector<64x16xf32>,
    %c0_229 = arith.constant 0 : index
    %c0_230 = arith.constant 0 : index
    %260 = vector.load %arg22[%c0_229, %c0_230] : memref<128x264xf32, #tpu.memory_space<vmem>>, vector<64x16xf32>
    %c0_231 = arith.constant 0 : index
    %c0_232 = arith.constant 0 : index
    %261 = vector.load %arg23[%c0_231, %c0_232] : memref<384x256xf32, #tpu.memory_space<vmem>>, vector<64x16xf32>
    tpu.vector_store %arg23[%c0_231, %c0_232], %260 {strides = array<i32>} : memref<384x256xf32, #tpu.memory_space<vmem>>, vector<64x16xf32>,
    %c0_233 = arith.constant 0 : index
    %c1_234 = arith.constant 1 : index
    %262 = vector.load %arg22[%c0_233, %c1_234] : memref<128x264xf32, #tpu.memory_space<vmem>>, vector<64x16xf32>
    %c64_235 = arith.constant 64 : index
    %c0_236 = arith.constant 0 : index
    %263 = vector.load %arg23[%c64_235, %c0_236] : memref<384x256xf32, #tpu.memory_space<vmem>>, vector<64x16xf32>
    tpu.vector_store %arg23[%c64_235, %c0_236], %262 {strides = array<i32>} : memref<384x256xf32, #tpu.memory_space<vmem>>, vector<64x16xf32>,
    %c0_237 = arith.constant 0 : index
    %c2_238 = arith.constant 2 : index
    %264 = vector.load %arg22[%c0_237, %c2_238] : memref<128x264xf32, #tpu.memory_space<vmem>>, vector<64x16xf32>
    %c128_239 = arith.constant 128 : index
    %c0_240 = arith.constant 0 : index
    %265 = vector.load %arg23[%c128_239, %c0_240] : memref<384x256xf32, #tpu.memory_space<vmem>>, vector<64x16xf32>
    tpu.vector_store %arg23[%c128_239, %c0_240], %264 {strides = array<i32>} : memref<384x256xf32, #tpu.memory_space<vmem>>, vector<64x16xf32>,
    %c0_241 = arith.constant 0 : index
    %c0_242 = arith.constant 0 : index
    %266 = vector.load %arg23[%c0_241, %c0_242] : memref<384x256xf32, #tpu.memory_space<vmem>>, vector<192x16xf32>
    %c0_243 = arith.constant 0 : index
    %c0_244 = arith.constant 0 : index
    %267 = vector.load %arg12[%c0_243, %c0_244] : memref<64x192xbf16, #tpu.memory_space<vmem>>, vector<64x192xbf16>
    %268 = arith.truncf %266 : vector<192x16xf32> to vector<192x16xbf16>
    %cst_245 = arith.constant dense<0.000000e+00> : vector<64x16xf32>
    %269 = tpu.matmul %267, %268, %cst_245 {dimension_numbers = #tpu.dot_dimension_numbers<[1], [0], [0], [1], [0, 0, 1, 1], [], []>} : vector<64x192xbf16>, vector<192x16xbf16>, vector<64x16xf32> -> vector<64x16xf32>
    %c0_246 = arith.constant 0 : index
    %c0_247 = arith.constant 0 : index
    %270 = vector.load %arg13[%c0_246, %c0_247] : memref<64x1xf32, #tpu.memory_space<vmem>>, vector<64x1xf32>
    %271 = vector.broadcast %270 : vector<64x1xf32> to vector<64x16xf32>
    %272 = arith.addf %269, %271 : vector<64x16xf32>
    %cst_248 = arith.constant 0.000000e+00 : f32
    %273 = vector.broadcast %cst_248 : f32 to vector<64x16xf32>
    %274 = arith.maximumf %272, %273 : vector<64x16xf32>
    %c0_249 = arith.constant 0 : index
    %c0_250 = arith.constant 0 : index
    %c0_251 = arith.constant 0 : index
    %275 = vector.load %arg20[%c0_249, %c0_250, %c0_251] : memref<1x64x16xf32, #tpu.memory_space<vmem>>, vector<1x64x16xf32>
    %276 = vector.shape_cast %275 : vector<1x64x16xf32> to vector<64x16xf32>
    %277 = vector.shape_cast %274 : vector<64x16xf32> to vector<1x64x16xf32>
    tpu.vector_store %arg20[%c0_249, %c0_250, %c0_251], %277 {strides = array<i32>} : memref<1x64x16xf32, #tpu.memory_space<vmem>>, vector<1x64x16xf32>,
    %278 = tpu.iota {dimensions = array<i32: 0>} : vector<16x4xi32>
    %279 = tpu.iota {dimensions = array<i32: 1>} : vector<16x4xi32>
    %c4_i32_252 = arith.constant 4 : i32
    %280 = vector.broadcast %c4_i32_252 : i32 to vector<16x4xi32>
    %281 = arith.muli %280, %279 : vector<16x4xi32>
    %c0_i32_253 = arith.constant 0 : i32
    %282 = vector.broadcast %c0_i32_253 : i32 to vector<16x4xi32>
    %283 = arith.addi %281, %282 : vector<16x4xi32>
    %284 = arith.cmpi eq, %278, %283 : vector<16x4xi32>
    %285 = arith.extui %284 : vector<16x4xi1> to vector<16x4xi32>
    %286 = arith.sitofp %285 : vector<16x4xi32> to vector<16x4xf32>
    %cst_254 = arith.constant dense<0.000000e+00> : vector<64x4xf32>
    %287 = tpu.matmul %274, %286, %cst_254 {dimension_numbers = #tpu.dot_dimension_numbers<[1], [0], [0], [1], [0, 0, 1, 1], [], []>} : vector<64x16xf32>, vector<16x4xf32>, vector<64x4xf32> -> vector<64x4xf32>
    %c4_i32_255 = arith.constant 4 : i32
    %288 = vector.broadcast %c4_i32_255 : i32 to vector<16x4xi32>
    %289 = arith.muli %288, %279 : vector<16x4xi32>
    %c1_i32_256 = arith.constant 1 : i32
    %290 = vector.broadcast %c1_i32_256 : i32 to vector<16x4xi32>
    %291 = arith.addi %289, %290 : vector<16x4xi32>
    %292 = arith.cmpi eq, %278, %291 : vector<16x4xi32>
    %293 = arith.extui %292 : vector<16x4xi1> to vector<16x4xi32>
    %294 = arith.sitofp %293 : vector<16x4xi32> to vector<16x4xf32>
    %cst_257 = arith.constant dense<0.000000e+00> : vector<64x4xf32>
    %295 = tpu.matmul %274, %294, %cst_257 {dimension_numbers = #tpu.dot_dimension_numbers<[1], [0], [0], [1], [0, 0, 1, 1], [], []>} : vector<64x16xf32>, vector<16x4xf32>, vector<64x4xf32> -> vector<64x4xf32>
    %296 = arith.maximumf %287, %295 : vector<64x4xf32>
    %c4_i32_258 = arith.constant 4 : i32
    %297 = vector.broadcast %c4_i32_258 : i32 to vector<16x4xi32>
    %298 = arith.muli %297, %279 : vector<16x4xi32>
    %c2_i32_259 = arith.constant 2 : i32
    %299 = vector.broadcast %c2_i32_259 : i32 to vector<16x4xi32>
    %300 = arith.addi %298, %299 : vector<16x4xi32>
    %301 = arith.cmpi eq, %278, %300 : vector<16x4xi32>
    %302 = arith.extui %301 : vector<16x4xi1> to vector<16x4xi32>
    %303 = arith.sitofp %302 : vector<16x4xi32> to vector<16x4xf32>
    %cst_260 = arith.constant dense<0.000000e+00> : vector<64x4xf32>
    %304 = tpu.matmul %274, %303, %cst_260 {dimension_numbers = #tpu.dot_dimension_numbers<[1], [0], [0], [1], [0, 0, 1, 1], [], []>} : vector<64x16xf32>, vector<16x4xf32>, vector<64x4xf32> -> vector<64x4xf32>
    %305 = arith.maximumf %296, %304 : vector<64x4xf32>
    %c4_i32_261 = arith.constant 4 : i32
    %306 = vector.broadcast %c4_i32_261 : i32 to vector<16x4xi32>
    %307 = arith.muli %306, %279 : vector<16x4xi32>
    %c3_i32_262 = arith.constant 3 : i32
    %308 = vector.broadcast %c3_i32_262 : i32 to vector<16x4xi32>
    %309 = arith.addi %307, %308 : vector<16x4xi32>
    %310 = arith.cmpi eq, %278, %309 : vector<16x4xi32>
    %311 = arith.extui %310 : vector<16x4xi1> to vector<16x4xi32>
    %312 = arith.sitofp %311 : vector<16x4xi32> to vector<16x4xf32>
    %cst_263 = arith.constant dense<0.000000e+00> : vector<64x4xf32>
    %313 = tpu.matmul %274, %312, %cst_263 {dimension_numbers = #tpu.dot_dimension_numbers<[1], [0], [0], [1], [0, 0, 1, 1], [], []>} : vector<64x16xf32>, vector<16x4xf32>, vector<64x4xf32> -> vector<64x4xf32>
    %314 = arith.maximumf %305, %313 : vector<64x4xf32>
    %cst_264 = arith.constant 0.000000e+00 : f32
    %315 = vector.broadcast %cst_264 : f32 to vector<64x1xf32>
    %c0_265 = arith.constant 0 : index
    %c0_266 = arith.constant 0 : index
    %316 = vector.load %arg22[%c0_265, %c0_266] : memref<128x264xf32, #tpu.memory_space<vmem>>, vector<64x1xf32>
    tpu.vector_store %arg22[%c0_265, %c0_266], %315 {strides = array<i32>} : memref<128x264xf32, #tpu.memory_space<vmem>>, vector<64x1xf32>,
    %cst_267 = arith.constant 0.000000e+00 : f32
    %317 = vector.broadcast %cst_267 : f32 to vector<64x1xf32>
    %c0_268 = arith.constant 0 : index
    %c5_269 = arith.constant 5 : index
    %318 = vector.load %arg22[%c0_268, %c5_269] : memref<128x264xf32, #tpu.memory_space<vmem>>, vector<64x1xf32>
    tpu.vector_store %arg22[%c0_268, %c5_269], %317 {strides = array<i32>} : memref<128x264xf32, #tpu.memory_space<vmem>>, vector<64x1xf32>,
    %c0_270 = arith.constant 0 : index
    %c1_271 = arith.constant 1 : index
    %319 = vector.load %arg22[%c0_270, %c1_271] : memref<128x264xf32, #tpu.memory_space<vmem>>, vector<64x4xf32>
    tpu.vector_store %arg22[%c0_270, %c1_271], %314 {strides = array<i32>} : memref<128x264xf32, #tpu.memory_space<vmem>>, vector<64x4xf32>,
    %c0_272 = arith.constant 0 : index
    %c0_273 = arith.constant 0 : index
    %320 = vector.load %arg22[%c0_272, %c0_273] : memref<128x264xf32, #tpu.memory_space<vmem>>, vector<64x4xf32>
    %c0_274 = arith.constant 0 : index
    %c0_275 = arith.constant 0 : index
    %321 = vector.load %arg23[%c0_274, %c0_275] : memref<384x256xf32, #tpu.memory_space<vmem>>, vector<64x4xf32>
    tpu.vector_store %arg23[%c0_274, %c0_275], %320 {strides = array<i32>} : memref<384x256xf32, #tpu.memory_space<vmem>>, vector<64x4xf32>,
    %c0_276 = arith.constant 0 : index
    %c1_277 = arith.constant 1 : index
    %322 = vector.load %arg22[%c0_276, %c1_277] : memref<128x264xf32, #tpu.memory_space<vmem>>, vector<64x4xf32>
    %c64_278 = arith.constant 64 : index
    %c0_279 = arith.constant 0 : index
    %323 = vector.load %arg23[%c64_278, %c0_279] : memref<384x256xf32, #tpu.memory_space<vmem>>, vector<64x4xf32>
    tpu.vector_store %arg23[%c64_278, %c0_279], %322 {strides = array<i32>} : memref<384x256xf32, #tpu.memory_space<vmem>>, vector<64x4xf32>,
    %c0_280 = arith.constant 0 : index
    %c2_281 = arith.constant 2 : index
    %324 = vector.load %arg22[%c0_280, %c2_281] : memref<128x264xf32, #tpu.memory_space<vmem>>, vector<64x4xf32>
    %c128_282 = arith.constant 128 : index
    %c0_283 = arith.constant 0 : index
    %325 = vector.load %arg23[%c128_282, %c0_283] : memref<384x256xf32, #tpu.memory_space<vmem>>, vector<64x4xf32>
    tpu.vector_store %arg23[%c128_282, %c0_283], %324 {strides = array<i32>} : memref<384x256xf32, #tpu.memory_space<vmem>>, vector<64x4xf32>,
    %c0_284 = arith.constant 0 : index
    %c0_285 = arith.constant 0 : index
    %326 = vector.load %arg23[%c0_284, %c0_285] : memref<384x256xf32, #tpu.memory_space<vmem>>, vector<192x4xf32>
    %c0_286 = arith.constant 0 : index
    %c0_287 = arith.constant 0 : index
    %327 = vector.load %arg14[%c0_286, %c0_287] : memref<128x192xbf16, #tpu.memory_space<vmem>>, vector<128x192xbf16>
    %328 = arith.truncf %326 : vector<192x4xf32> to vector<192x4xbf16>
    %cst_288 = arith.constant dense<0.000000e+00> : vector<128x4xf32>
    %329 = tpu.matmul %327, %328, %cst_288 {dimension_numbers = #tpu.dot_dimension_numbers<[1], [0], [0], [1], [0, 0, 1, 1], [], []>} : vector<128x192xbf16>, vector<192x4xbf16>, vector<128x4xf32> -> vector<128x4xf32>
    %c0_289 = arith.constant 0 : index
    %c0_290 = arith.constant 0 : index
    %330 = vector.load %arg15[%c0_289, %c0_290] : memref<128x1xf32, #tpu.memory_space<vmem>>, vector<128x1xf32>
    %331 = vector.broadcast %330 : vector<128x1xf32> to vector<128x4xf32>
    %332 = arith.addf %329, %331 : vector<128x4xf32>
    %cst_291 = arith.constant 0.000000e+00 : f32
    %333 = vector.broadcast %cst_291 : f32 to vector<128x4xf32>
    %334 = arith.maximumf %332, %333 : vector<128x4xf32>
    %cst_292 = arith.constant 0.000000e+00 : f32
    %335 = vector.broadcast %cst_292 : f32 to vector<128x1xf32>
    %c0_293 = arith.constant 0 : index
    %c0_294 = arith.constant 0 : index
    %336 = vector.load %arg22[%c0_293, %c0_294] : memref<128x264xf32, #tpu.memory_space<vmem>>, vector<128x1xf32>
    tpu.vector_store %arg22[%c0_293, %c0_294], %335 {strides = array<i32>} : memref<128x264xf32, #tpu.memory_space<vmem>>, vector<128x1xf32>,
    %cst_295 = arith.constant 0.000000e+00 : f32
    %337 = vector.broadcast %cst_295 : f32 to vector<128x1xf32>
    %c0_296 = arith.constant 0 : index
    %c5_297 = arith.constant 5 : index
    %338 = vector.load %arg22[%c0_296, %c5_297] : memref<128x264xf32, #tpu.memory_space<vmem>>, vector<128x1xf32>
    tpu.vector_store %arg22[%c0_296, %c5_297], %337 {strides = array<i32>} : memref<128x264xf32, #tpu.memory_space<vmem>>, vector<128x1xf32>,
    %c0_298 = arith.constant 0 : index
    %c1_299 = arith.constant 1 : index
    %339 = vector.load %arg22[%c0_298, %c1_299] : memref<128x264xf32, #tpu.memory_space<vmem>>, vector<128x4xf32>
    tpu.vector_store %arg22[%c0_298, %c1_299], %334 {strides = array<i32>} : memref<128x264xf32, #tpu.memory_space<vmem>>, vector<128x4xf32>,
    %c0_300 = arith.constant 0 : index
    %c0_301 = arith.constant 0 : index
    %340 = vector.load %arg22[%c0_300, %c0_301] : memref<128x264xf32, #tpu.memory_space<vmem>>, vector<128x4xf32>
    %c0_302 = arith.constant 0 : index
    %c0_303 = arith.constant 0 : index
    %341 = vector.load %arg23[%c0_302, %c0_303] : memref<384x256xf32, #tpu.memory_space<vmem>>, vector<128x4xf32>
    tpu.vector_store %arg23[%c0_302, %c0_303], %340 {strides = array<i32>} : memref<384x256xf32, #tpu.memory_space<vmem>>, vector<128x4xf32>,
    %c0_304 = arith.constant 0 : index
    %c1_305 = arith.constant 1 : index
    %342 = vector.load %arg22[%c0_304, %c1_305] : memref<128x264xf32, #tpu.memory_space<vmem>>, vector<128x4xf32>
    %c128_306 = arith.constant 128 : index
    %c0_307 = arith.constant 0 : index
    %343 = vector.load %arg23[%c128_306, %c0_307] : memref<384x256xf32, #tpu.memory_space<vmem>>, vector<128x4xf32>
    tpu.vector_store %arg23[%c128_306, %c0_307], %342 {strides = array<i32>} : memref<384x256xf32, #tpu.memory_space<vmem>>, vector<128x4xf32>,
    %c0_308 = arith.constant 0 : index
    %c2_309 = arith.constant 2 : index
    %344 = vector.load %arg22[%c0_308, %c2_309] : memref<128x264xf32, #tpu.memory_space<vmem>>, vector<128x4xf32>
    %c256 = arith.constant 256 : index
    %c0_310 = arith.constant 0 : index
    %345 = vector.load %arg23[%c256, %c0_310] : memref<384x256xf32, #tpu.memory_space<vmem>>, vector<128x4xf32>
    tpu.vector_store %arg23[%c256, %c0_310], %344 {strides = array<i32>} : memref<384x256xf32, #tpu.memory_space<vmem>>, vector<128x4xf32>,
    %c0_311 = arith.constant 0 : index
    %c0_312 = arith.constant 0 : index
    %346 = vector.load %arg23[%c0_311, %c0_312] : memref<384x256xf32, #tpu.memory_space<vmem>>, vector<384x4xf32>
    %c0_313 = arith.constant 0 : index
    %c0_314 = arith.constant 0 : index
    %347 = vector.load %arg16[%c0_313, %c0_314] : memref<128x384xbf16, #tpu.memory_space<vmem>>, vector<128x384xbf16>
    %348 = arith.truncf %346 : vector<384x4xf32> to vector<384x4xbf16>
    %cst_315 = arith.constant dense<0.000000e+00> : vector<128x4xf32>
    %349 = tpu.matmul %347, %348, %cst_315 {dimension_numbers = #tpu.dot_dimension_numbers<[1], [0], [0], [1], [0, 0, 1, 1], [], []>} : vector<128x384xbf16>, vector<384x4xbf16>, vector<128x4xf32> -> vector<128x4xf32>
    %c0_316 = arith.constant 0 : index
    %c0_317 = arith.constant 0 : index
    %350 = vector.load %arg17[%c0_316, %c0_317] : memref<128x1xf32, #tpu.memory_space<vmem>>, vector<128x1xf32>
    %351 = vector.broadcast %350 : vector<128x1xf32> to vector<128x4xf32>
    %352 = arith.addf %349, %351 : vector<128x4xf32>
    %cst_318 = arith.constant 0.000000e+00 : f32
    %353 = vector.broadcast %cst_318 : f32 to vector<128x4xf32>
    %354 = arith.maximumf %352, %353 : vector<128x4xf32>
    %c0_319 = arith.constant 0 : index
    %c0_320 = arith.constant 0 : index
    %c0_321 = arith.constant 0 : index
    %355 = vector.load %arg21[%c0_319, %c0_320, %c0_321] : memref<1x128x4xf32, #tpu.memory_space<vmem>>, vector<1x128x4xf32>
    %356 = vector.shape_cast %355 : vector<1x128x4xf32> to vector<128x4xf32>
    %357 = vector.shape_cast %354 : vector<128x4xf32> to vector<1x128x4xf32>
    tpu.vector_store %arg21[%c0_319, %c0_320, %c0_321], %357 {strides = array<i32>} : memref<1x128x4xf32, #tpu.memory_space<vmem>>, vector<1x128x4xf32>,
    return
  }
  func.func @transform_0(%arg0: i32) -> (i32, i32, i32) {
    %c0_i32 = arith.constant 0 : i32
    %c0_i32_0 = arith.constant 0 : i32
    %c0_i32_1 = arith.constant 0 : i32
    return %arg0, %c0_i32, %c0_i32_0 : i32, i32, i32
  }
  func.func @transform_1(%arg0: i32) -> (i32, i32) {
    %c0_i32 = arith.constant 0 : i32
    %c0_i32_0 = arith.constant 0 : i32
    %c0_i32_1 = arith.constant 0 : i32
    return %c0_i32, %c0_i32_0 : i32, i32
  }
  func.func @transform_2(%arg0: i32) -> (i32, i32) {
    %c0_i32 = arith.constant 0 : i32
    %c0_i32_0 = arith.constant 0 : i32
    %c0_i32_1 = arith.constant 0 : i32
    return %c0_i32, %c0_i32_0 : i32, i32
  }
  func.func @transform_3(%arg0: i32) -> (i32, i32) {
    %c0_i32 = arith.constant 0 : i32
    %c0_i32_0 = arith.constant 0 : i32
    %c0_i32_1 = arith.constant 0 : i32
    return %c0_i32, %c0_i32_0 : i32, i32
  }
  func.func @transform_4(%arg0: i32) -> (i32, i32) {
    %c0_i32 = arith.constant 0 : i32
    %c0_i32_0 = arith.constant 0 : i32
    %c0_i32_1 = arith.constant 0 : i32
    return %c0_i32, %c0_i32_0 : i32, i32
  }
  func.func @transform_5(%arg0: i32) -> (i32, i32) {
    %c0_i32 = arith.constant 0 : i32
    %c0_i32_0 = arith.constant 0 : i32
    %c0_i32_1 = arith.constant 0 : i32
    return %c0_i32, %c0_i32_0 : i32, i32
  }
  func.func @transform_6(%arg0: i32) -> (i32, i32) {
    %c0_i32 = arith.constant 0 : i32
    %c0_i32_0 = arith.constant 0 : i32
    %c0_i32_1 = arith.constant 0 : i32
    return %c0_i32, %c0_i32_0 : i32, i32
  }
  func.func @transform_7(%arg0: i32) -> (i32, i32) {
    %c0_i32 = arith.constant 0 : i32
    %c0_i32_0 = arith.constant 0 : i32
    %c0_i32_1 = arith.constant 0 : i32
    return %c0_i32, %c0_i32_0 : i32, i32
  }
  func.func @transform_8(%arg0: i32) -> (i32, i32) {
    %c0_i32 = arith.constant 0 : i32
    %c0_i32_0 = arith.constant 0 : i32
    %c0_i32_1 = arith.constant 0 : i32
    return %c0_i32, %c0_i32_0 : i32, i32
  }
  func.func @transform_9(%arg0: i32) -> (i32, i32) {
    %c0_i32 = arith.constant 0 : i32
    %c0_i32_0 = arith.constant 0 : i32
    %c0_i32_1 = arith.constant 0 : i32
    return %c0_i32, %c0_i32_0 : i32, i32
  }
  func.func @transform_10(%arg0: i32) -> (i32, i32) {
    %c0_i32 = arith.constant 0 : i32
    %c0_i32_0 = arith.constant 0 : i32
    %c0_i32_1 = arith.constant 0 : i32
    return %c0_i32, %c0_i32_0 : i32, i32
  }
  func.func @transform_11(%arg0: i32) -> (i32, i32) {
    %c0_i32 = arith.constant 0 : i32
    %c0_i32_0 = arith.constant 0 : i32
    %c0_i32_1 = arith.constant 0 : i32
    return %c0_i32, %c0_i32_0 : i32, i32
  }
  func.func @transform_12(%arg0: i32) -> (i32, i32) {
    %c0_i32 = arith.constant 0 : i32
    %c0_i32_0 = arith.constant 0 : i32
    %c0_i32_1 = arith.constant 0 : i32
    return %c0_i32, %c0_i32_0 : i32, i32
  }
  func.func @transform_13(%arg0: i32) -> (i32, i32) {
    %c0_i32 = arith.constant 0 : i32
    %c0_i32_0 = arith.constant 0 : i32
    %c0_i32_1 = arith.constant 0 : i32
    return %c0_i32, %c0_i32_0 : i32, i32
  }
  func.func @transform_14(%arg0: i32) -> (i32, i32) {
    %c0_i32 = arith.constant 0 : i32
    %c0_i32_0 = arith.constant 0 : i32
    %c0_i32_1 = arith.constant 0 : i32
    return %c0_i32, %c0_i32_0 : i32, i32
  }
  func.func @transform_15(%arg0: i32) -> (i32, i32) {
    %c0_i32 = arith.constant 0 : i32
    %c0_i32_0 = arith.constant 0 : i32
    %c0_i32_1 = arith.constant 0 : i32
    return %c0_i32, %c0_i32_0 : i32, i32
  }
  func.func @transform_16(%arg0: i32) -> (i32, i32) {
    %c0_i32 = arith.constant 0 : i32
    %c0_i32_0 = arith.constant 0 : i32
    %c0_i32_1 = arith.constant 0 : i32
    return %c0_i32, %c0_i32_0 : i32, i32
  }
  func.func @transform_17(%arg0: i32) -> (i32, i32, i32) {
    %c0_i32 = arith.constant 0 : i32
    %c0_i32_0 = arith.constant 0 : i32
    %c0_i32_1 = arith.constant 0 : i32
    return %arg0, %c0_i32, %c0_i32_0 : i32, i32, i32
  }
  func.func @transform_18(%arg0: i32) -> (i32, i32, i32) {
    %c0_i32 = arith.constant 0 : i32
    %c0_i32_0 = arith.constant 0 : i32
    %c0_i32_1 = arith.constant 0 : i32
    return %arg0, %c0_i32, %c0_i32_0 : i32, i32, i32
  }
  func.func @transform_19(%arg0: i32) -> (i32, i32, i32) {
    %c0_i32 = arith.constant 0 : i32
    %c0_i32_0 = arith.constant 0 : i32
    %c0_i32_1 = arith.constant 0 : i32
    return %arg0, %c0_i32, %c0_i32_0 : i32, i32, i32
  }
  func.func @transform_20(%arg0: i32) -> (i32, i32, i32) {
    %c0_i32 = arith.constant 0 : i32
    %c0_i32_0 = arith.constant 0 : i32
    %c0_i32_1 = arith.constant 0 : i32
    return %arg0, %c0_i32, %c0_i32_0 : i32, i32, i32
  }
}

</mosaic_0001>

<llo_original>
// kernel: fs_network_forward.1
$region0: #{fs_network_forward.1}
  #allocation0 [shape = 'u32[]', space=smem, size = 0x4, offset = 0x4, fixed_abs, tag = 'smem constant byte address 0x4 - core index']
  #allocation1 [shape = 'u32[144,128]{1,0:T(1,128)}', space=vmem, size = 0x12000, scoped, tag = 'internal scratch']
  #allocation2 [shape = 'f32[128,264]{1,0:T(8,128)}', space=vmem, size = 0x30000, scoped, tag = 'scratch operand']
  #allocation3 [shape = 'f32[384,256]{1,0:T(8,128)}', space=vmem, size = 0x60000, scoped, tag = 'scratch operand']
  %s0 = inlined_call_operand.vmem [shape: f32[2,1,256], index: 0, kind: input, shape index: {}]
  %s1 = inlined_call_operand.vmem [shape: f32[16,9], index: 1, kind: input, shape index: {}]
  %s2 = inlined_call_operand.vmem [shape: f32[16,1], index: 2, kind: input, shape index: {}]
  %s3 = inlined_call_operand.vmem [shape: bf16[16,144], index: 3, kind: input, shape index: {}]
  %s4 = inlined_call_operand.vmem [shape: f32[16,1], index: 4, kind: input, shape index: {}]
  %s5 = inlined_call_operand.vmem [shape: bf16[32,112], index: 5, kind: input, shape index: {}]
  %s6 = inlined_call_operand.vmem [shape: f32[32,1], index: 6, kind: input, shape index: {}]
  %s7 = inlined_call_operand.vmem [shape: bf16[32,224], index: 7, kind: input, shape index: {}]
  %s8 = inlined_call_operand.vmem [shape: f32[32,1], index: 8, kind: input, shape index: {}]
  %s9 = inlined_call_operand.vmem [shape: bf16[64,96], index: 9, kind: input, shape index: {}]
  %s10 = inlined_call_operand.vmem [shape: f32[64,1], index: 10, kind: input, shape index: {}]
  %s11 = inlined_call_operand.vmem [shape: bf16[64,192], index: 11, kind: input, shape index: {}]
  %s12 = inlined_call_operand.vmem [shape: f32[64,1], index: 12, kind: input, shape index: {}]
  %s13 = inlined_call_operand.vmem [shape: bf16[128,192], index: 13, kind: input, shape index: {}]
  %s14 = inlined_call_operand.vmem [shape: f32[128,1], index: 14, kind: input, shape index: {}]
  %s15 = inlined_call_operand.vmem [shape: bf16[128,384], index: 15, kind: input, shape index: {}]
  %s16 = inlined_call_operand.vmem [shape: f32[128,1], index: 16, kind: input, shape index: {}]
  %s17 = inlined_call_operand.hbm [shape: f32[2,16,256], index: 17, kind: output, shape index: {0}]
  %s18 = inlined_call_operand.hbm [shape: f32[2,32,64], index: 18, kind: output, shape index: {1}]
  %s19 = inlined_call_operand.vmem [shape: f32[2,64,16], index: 19, kind: output, shape index: {2}]
  %s20 = inlined_call_operand.vmem [shape: f32[2,128,4], index: 20, kind: output, shape index: {3}]
  %21 = xla_tuple %s17, %s18, %s19, %s20
  %s22 = sld [smem:[#allocation0]]
  $region125: #{fs_network_forward.1} parent=0
    _
  %s24 = ssub.s32 1, %s22
  %s25 = scalar_select 0, %s24, %s22
  $region1: #{fs_network_forward.1} parent=0
    #allocation4 [shape = 'u8[32768]{0}', space=vmem, size = 0x8000, scoped, tag = 'output window, operand 0']
    #allocation5 [shape = 's32[2]{0}', space=sflag, size = 0x8, scoped, tag = 'scoped memory for fs_network_forward.1']
    #allocation6 [shape = 'u8[32768]{0}', space=vmem, size = 0x8000, scoped, tag = 'output window, operand 1']
    #allocation7 [shape = 's32[2]{0}', space=sflag, size = 0x8, scoped, tag = 'scoped memory for fs_network_forward.1']
    %26 = vsyncpa [#allocation5], 0
    %s27 = scalar_lea.sflag [#allocation5], 1
    %28 = vsyncpa %s27, 0
    %29 = vsyncpa [#allocation7], 0
    %s30 = scalar_lea.sflag [#allocation7], 1
    %31 = vsyncpa %s30, 0
    loop: start=0, step=1, limit=4
    $region2: #{fs_network_forward.1} parent=1 // loop_pre_header
      _
    $region3: #{fs_network_forward.1} parent=1 // loop_header
      %s33 = sphi 0, %s37
      %p34 = scmp.ge.s32.totalorder %s33, 4
      %s43 = sphi 0, %s45
      %s46 = sphi 0, %s43
      %s47 = sphi 0, %s46
      %s63 = sphi 0, %s47
      %s67 = sphi 0, %s67
      %s69 = sphi 0, %s67
      %s70 = sphi 0, %s69
      %s84 = sphi 0, %s70
      %s88 = sphi 0, %s88
      %s90 = sphi 0, %s88
      %s91 = sphi 0, %s90
      %s105 = sphi 0, %s91
      %s109 = sphi 0, %s109
      %s111 = sphi 0, %s109
      %s112 = sphi 0, %s111
      %s126 = sphi 0, %s112
      %s130 = sphi 0, %s130
      %s132 = sphi 0, %s130
      %s133 = sphi 0, %s132
      %s147 = sphi 0, %s133
      %s151 = sphi 0, %s151
      %s153 = sphi 0, %s151
      %s154 = sphi 0, %s153
      %s168 = sphi 0, %s154
      %s172 = sphi 0, %s172
      %s174 = sphi 0, %s172
      %s175 = sphi 0, %s174
      %s189 = sphi 0, %s175
      %s193 = sphi 0, %s193
      %s195 = sphi 0, %s193
      %s196 = sphi 0, %s195
      %s210 = sphi 0, %s196
      %s214 = sphi 0, %s214
      %s216 = sphi 0, %s214
      %s217 = sphi 0, %s216
      %s231 = sphi 0, %s217
      %s235 = sphi 0, %s235
      %s237 = sphi 0, %s235
      %s238 = sphi 0, %s237
      %s252 = sphi 0, %s238
      %s256 = sphi 0, %s256
      %s258 = sphi 0, %s256
      %s259 = sphi 0, %s258
      %s273 = sphi 0, %s259
      %s277 = sphi 0, %s277
      %s279 = sphi 0, %s277
      %s280 = sphi 0, %s279
      %s294 = sphi 0, %s280
      %s298 = sphi 0, %s298
      %s300 = sphi 0, %s298
      %s301 = sphi 0, %s300
      %s315 = sphi 0, %s301
      %s319 = sphi 0, %s319
      %s321 = sphi 0, %s319
      %s322 = sphi 0, %s321
      %s336 = sphi 0, %s322
      %s340 = sphi 0, %s340
      %s342 = sphi 0, %s340
      %s343 = sphi 0, %s342
      %s357 = sphi 0, %s343
      %s361 = sphi 0, %s361
      %s363 = sphi 0, %s361
      %s364 = sphi 0, %s363
      %s378 = sphi 0, %s364
      %s382 = sphi 0, %s382
      %s384 = sphi 0, %s382
      %s385 = sphi 0, %s384
      %s399 = sphi 0, %s385
      %s405 = sphi 0, %s407
      %s408 = sphi 0, %s405
      %s409 = sphi 0, %s408
      %s425 = sphi 0, %s409
      %s431 = sphi 0, %s433
      %s434 = sphi 0, %s431
      %s435 = sphi 0, %s434
      %s451 = sphi 0, %s435
      %s457 = sphi 0, %s459
      %s460 = sphi 0, %s457
      %s461 = sphi 0, %s460
      %s477 = sphi 0, %s461
      %s483 = sphi 0, %s485
      %s486 = sphi 0, %s483
      %s487 = sphi 0, %s486
      %s503 = sphi 0, %s487
    $region4: #{fs_network_forward.1} parent=1 // loop_header_branch
      %36 = sbr.rel (%p34) target = $region8
    $region5: #{fs_network_forward.1} parent=1 // loop_body
      %s38 = ssub.s32 %s33, 1
      %s39 = ssub.s32 %s33, 2
      %s40 = sadd.s32 %s33, 1
      %s41 = ssub.s32 %s33, %s40
      %p42 = scmp.eq.s32.totalorder %s41, 0
      %s44 = sadd.s32 %s43, 1
      %s45 = scalar_select %p42, %s43, %s44
      %p48 = pneg %p42
      %p49 = scmp.eq.s32.totalorder %s33, 1
      %p50 = por %p48, %p49
      %p51 = scmp.ne.s32.totalorder %s43, %s46
      %p52 = scmp.eq.s32.totalorder %s33, 0
      %p53 = por %p51, %p52
      %p54 = scmp.ne.s32.totalorder %s43, %s46
      %p55 = scmp.eq.s32.totalorder %s38, 1
      %p56 = por %p54, %p55
      %p57 = scmp.ne.s32.totalorder %s46, %s47
      %p58 = scmp.eq.s32.totalorder %s38, 0
      %p59 = por %p57, %p58
      %p60 = scmp.ne.s32.totalorder %s46, %s47
      %p61 = scmp.eq.s32.totalorder %s39, 1
      %p62 = por %p60, %p61
      %p64 = scmp.ne.s32.totalorder %s47, %s63
      %p65 = scmp.eq.s32.totalorder %s39, 0
      %p66 = por %p64, %p65
      %s68 = sadd.s32 %s67, 1
      %p71 = scmp.eq.s32.totalorder %s33, 1
      %p72 = scmp.ne.s32.totalorder %s67, %s69
      %p73 = scmp.eq.s32.totalorder %s33, 0
      %p74 = por %p72, %p73
      %p75 = scmp.ne.s32.totalorder %s67, %s69
      %p76 = scmp.eq.s32.totalorder %s38, 1
      %p77 = por %p75, %p76
      %p78 = scmp.ne.s32.totalorder %s69, %s70
      %p79 = scmp.eq.s32.totalorder %s38, 0
      %p80 = por %p78, %p79
      %p81 = scmp.ne.s32.totalorder %s69, %s70
      %p82 = scmp.eq.s32.totalorder %s39, 1
      %p83 = por %p81, %p82
      %p85 = scmp.ne.s32.totalorder %s70, %s84
      %p86 = scmp.eq.s32.totalorder %s39, 0
      %p87 = por %p85, %p86
      %s89 = sadd.s32 %s88, 1
      %p92 = scmp.eq.s32.totalorder %s33, 1
      %p93 = scmp.ne.s32.totalorder %s88, %s90
      %p94 = scmp.eq.s32.totalorder %s33, 0
      %p95 = por %p93, %p94
      %p96 = scmp.ne.s32.totalorder %s88, %s90
      %p97 = scmp.eq.s32.totalorder %s38, 1
      %p98 = por %p96, %p97
      %p99 = scmp.ne.s32.totalorder %s90, %s91
      %p100 = scmp.eq.s32.totalorder %s38, 0
      %p101 = por %p99, %p100
      %p102 = scmp.ne.s32.totalorder %s90, %s91
      %p103 = scmp.eq.s32.totalorder %s39, 1
      %p104 = por %p102, %p103
      %p106 = scmp.ne.s32.totalorder %s91, %s105
      %p107 = scmp.eq.s32.totalorder %s39, 0
      %p108 = por %p106, %p107
      %s110 = sadd.s32 %s109, 1
      %p113 = scmp.eq.s32.totalorder %s33, 1
      %p114 = scmp.ne.s32.totalorder %s109, %s111
      %p115 = scmp.eq.s32.totalorder %s33, 0
      %p116 = por %p114, %p115
      %p117 = scmp.ne.s32.totalorder %s109, %s111
      %p118 = scmp.eq.s32.totalorder %s38, 1
      %p119 = por %p117, %p118
      %p120 = scmp.ne.s32.totalorder %s111, %s112
      %p121 = scmp.eq.s32.totalorder %s38, 0
      %p122 = por %p120, %p121
      %p123 = scmp.ne.s32.totalorder %s111, %s112
      %p124 = scmp.eq.s32.totalorder %s39, 1
      %p125 = por %p123, %p124
      %p127 = scmp.ne.s32.totalorder %s112, %s126
      %p128 = scmp.eq.s32.totalorder %s39, 0
      %p129 = por %p127, %p128
      %s131 = sadd.s32 %s130, 1
      %p134 = scmp.eq.s32.totalorder %s33, 1
      %p135 = scmp.ne.s32.totalorder %s130, %s132
      %p136 = scmp.eq.s32.totalorder %s33, 0
      %p137 = por %p135, %p136
      %p138 = scmp.ne.s32.totalorder %s130, %s132
      %p139 = scmp.eq.s32.totalorder %s38, 1
      %p140 = por %p138, %p139
      %p141 = scmp.ne.s32.totalorder %s132, %s133
      %p142 = scmp.eq.s32.totalorder %s38, 0
      %p143 = por %p141, %p142
      %p144 = scmp.ne.s32.totalorder %s132, %s133
      %p145 = scmp.eq.s32.totalorder %s39, 1
      %p146 = por %p144, %p145
      %p148 = scmp.ne.s32.totalorder %s133, %s147
      %p149 = scmp.eq.s32.totalorder %s39, 0
      %p150 = por %p148, %p149
      %s152 = sadd.s32 %s151, 1
      %p155 = scmp.eq.s32.totalorder %s33, 1
      %p156 = scmp.ne.s32.totalorder %s151, %s153
      %p157 = scmp.eq.s32.totalorder %s33, 0
      %p158 = por %p156, %p157
      %p159 = scmp.ne.s32.totalorder %s151, %s153
      %p160 = scmp.eq.s32.totalorder %s38, 1
      %p161 = por %p159, %p160
      %p162 = scmp.ne.s32.totalorder %s153, %s154
      %p163 = scmp.eq.s32.totalorder %s38, 0
      %p164 = por %p162, %p163
      %p165 = scmp.ne.s32.totalorder %s153, %s154
      %p166 = scmp.eq.s32.totalorder %s39, 1
      %p167 = por %p165, %p166
      %p169 = scmp.ne.s32.totalorder %s154, %s168
      %p170 = scmp.eq.s32.totalorder %s39, 0
      %p171 = por %p169, %p170
      %s173 = sadd.s32 %s172, 1
      %p176 = scmp.eq.s32.totalorder %s33, 1
      %p177 = scmp.ne.s32.totalorder %s172, %s174
      %p178 = scmp.eq.s32.totalorder %s33, 0
      %p179 = por %p177, %p178
      %p180 = scmp.ne.s32.totalorder %s172, %s174
      %p181 = scmp.eq.s32.totalorder %s38, 1
      %p182 = por %p180, %p181
      %p183 = scmp.ne.s32.totalorder %s174, %s175
      %p184 = scmp.eq.s32.totalorder %s38, 0
      %p185 = por %p183, %p184
      %p186 = scmp.ne.s32.totalorder %s174, %s175
      %p187 = scmp.eq.s32.totalorder %s39, 1
      %p188 = por %p186, %p187
      %p190 = scmp.ne.s32.totalorder %s175, %s189
      %p191 = scmp.eq.s32.totalorder %s39, 0
      %p192 = por %p190, %p191
      %s194 = sadd.s32 %s193, 1
      %p197 = scmp.eq.s32.totalorder %s33, 1
      %p198 = scmp.ne.s32.totalorder %s193, %s195
      %p199 = scmp.eq.s32.totalorder %s33, 0
      %p200 = por %p198, %p199
      %p201 = scmp.ne.s32.totalorder %s193, %s195
      %p202 = scmp.eq.s32.totalorder %s38, 1
      %p203 = por %p201, %p202
      %p204 = scmp.ne.s32.totalorder %s195, %s196
      %p205 = scmp.eq.s32.totalorder %s38, 0
      %p206 = por %p204, %p205
      %p207 = scmp.ne.s32.totalorder %s195, %s196
      %p208 = scmp.eq.s32.totalorder %s39, 1
      %p209 = por %p207, %p208
      %p211 = scmp.ne.s32.totalorder %s196, %s210
      %p212 = scmp.eq.s32.totalorder %s39, 0
      %p213 = por %p211, %p212
      %s215 = sadd.s32 %s214, 1
      %p218 = scmp.eq.s32.totalorder %s33, 1
      %p219 = scmp.ne.s32.totalorder %s214, %s216
      %p220 = scmp.eq.s32.totalorder %s33, 0
      %p221 = por %p219, %p220
      %p222 = scmp.ne.s32.totalorder %s214, %s216
      %p223 = scmp.eq.s32.totalorder %s38, 1
      %p224 = por %p222, %p223
      %p225 = scmp.ne.s32.totalorder %s216, %s217
      %p226 = scmp.eq.s32.totalorder %s38, 0
      %p227 = por %p225, %p226
      %p228 = scmp.ne.s32.totalorder %s216, %s217
      %p229 = scmp.eq.s32.totalorder %s39, 1
      %p230 = por %p228, %p229
      %p232 = scmp.ne.s32.totalorder %s217, %s231
      %p233 = scmp.eq.s32.totalorder %s39, 0
      %p234 = por %p232, %p233
      %s236 = sadd.s32 %s235, 1
      %p239 = scmp.eq.s32.totalorder %s33, 1
      %p240 = scmp.ne.s32.totalorder %s235, %s237
      %p241 = scmp.eq.s32.totalorder %s33, 0
      %p242 = por %p240, %p241
      %p243 = scmp.ne.s32.totalorder %s235, %s237
      %p244 = scmp.eq.s32.totalorder %s38, 1
      %p245 = por %p243, %p244
      %p246 = scmp.ne.s32.totalorder %s237, %s238
      %p247 = scmp.eq.s32.totalorder %s38, 0
      %p248 = por %p246, %p247
      %p249 = scmp.ne.s32.totalorder %s237, %s238
      %p250 = scmp.eq.s32.totalorder %s39, 1
      %p251 = por %p249, %p250
      %p253 = scmp.ne.s32.totalorder %s238, %s252
      %p254 = scmp.eq.s32.totalorder %s39, 0
      %p255 = por %p253, %p254
      %s257 = sadd.s32 %s256, 1
      %p260 = scmp.eq.s32.totalorder %s33, 1
      %p261 = scmp.ne.s32.totalorder %s256, %s258
      %p262 = scmp.eq.s32.totalorder %s33, 0
      %p263 = por %p261, %p262
      %p264 = scmp.ne.s32.totalorder %s256, %s258
      %p265 = scmp.eq.s32.totalorder %s38, 1
      %p266 = por %p264, %p265
      %p267 = scmp.ne.s32.totalorder %s258, %s259
      %p268 = scmp.eq.s32.totalorder %s38, 0
      %p269 = por %p267, %p268
      %p270 = scmp.ne.s32.totalorder %s258, %s259
      %p271 = scmp.eq.s32.totalorder %s39, 1
      %p272 = por %p270, %p271
      %p274 = scmp.ne.s32.totalorder %s259, %s273
      %p275 = scmp.eq.s32.totalorder %s39, 0
      %p276 = por %p274, %p275
      %s278 = sadd.s32 %s277, 1
      %p281 = scmp.eq.s32.totalorder %s33, 1
      %p282 = scmp.ne.s32.totalorder %s277, %s279
      %p283 = scmp.eq.s32.totalorder %s33, 0
      %p284 = por %p282, %p283
      %p285 = scmp.ne.s32.totalorder %s277, %s279
      %p286 = scmp.eq.s32.totalorder %s38, 1
      %p287 = por %p285, %p286
      %p288 = scmp.ne.s32.totalorder %s279, %s280
      %p289 = scmp.eq.s32.totalorder %s38, 0
      %p290 = por %p288, %p289
      %p291 = scmp.ne.s32.totalorder %s279, %s280
      %p292 = scmp.eq.s32.totalorder %s39, 1
      %p293 = por %p291, %p292
      %p295 = scmp.ne.s32.totalorder %s280, %s294
      %p296 = scmp.eq.s32.totalorder %s39, 0
      %p297 = por %p295, %p296
      %s299 = sadd.s32 %s298, 1
      %p302 = scmp.eq.s32.totalorder %s33, 1
      %p303 = scmp.ne.s32.totalorder %s298, %s300
      %p304 = scmp.eq.s32.totalorder %s33, 0
      %p305 = por %p303, %p304
      %p306 = scmp.ne.s32.totalorder %s298, %s300
      %p307 = scmp.eq.s32.totalorder %s38, 1
      %p308 = por %p306, %p307
      %p309 = scmp.ne.s32.totalorder %s300, %s301
      %p310 = scmp.eq.s32.totalorder %s38, 0
      %p311 = por %p309, %p310
      %p312 = scmp.ne.s32.totalorder %s300, %s301
      %p313 = scmp.eq.s32.totalorder %s39, 1
      %p314 = por %p312, %p313
      %p316 = scmp.ne.s32.totalorder %s301, %s315
      %p317 = scmp.eq.s32.totalorder %s39, 0
      %p318 = por %p316, %p317
      %s320 = sadd.s32 %s319, 1
      %p323 = scmp.eq.s32.totalorder %s33, 1
      %p324 = scmp.ne.s32.totalorder %s319, %s321
      %p325 = scmp.eq.s32.totalorder %s33, 0
      %p326 = por %p324, %p325
      %p327 = scmp.ne.s32.totalorder %s319, %s321
      %p328 = scmp.eq.s32.totalorder %s38, 1
      %p329 = por %p327, %p328
      %p330 = scmp.ne.s32.totalorder %s321, %s322
      %p331 = scmp.eq.s32.totalorder %s38, 0
      %p332 = por %p330, %p331
      %p333 = scmp.ne.s32.totalorder %s321, %s322
      %p334 = scmp.eq.s32.totalorder %s39, 1
      %p335 = por %p333, %p334
      %p337 = scmp.ne.s32.totalorder %s322, %s336
      %p338 = scmp.eq.s32.totalorder %s39, 0
      %p339 = por %p337, %p338
      %s341 = sadd.s32 %s340, 1
      %p344 = scmp.eq.s32.totalorder %s33, 1
      %p345 = scmp.ne.s32.totalorder %s340, %s342
      %p346 = scmp.eq.s32.totalorder %s33, 0
      %p347 = por %p345, %p346
      %p348 = scmp.ne.s32.totalorder %s340, %s342
      %p349 = scmp.eq.s32.totalorder %s38, 1
      %p350 = por %p348, %p349
      %p351 = scmp.ne.s32.totalorder %s342, %s343
      %p352 = scmp.eq.s32.totalorder %s38, 0
      %p353 = por %p351, %p352
      %p354 = scmp.ne.s32.totalorder %s342, %s343
      %p355 = scmp.eq.s32.totalorder %s39, 1
      %p356 = por %p354, %p355
      %p358 = scmp.ne.s32.totalorder %s343, %s357
      %p359 = scmp.eq.s32.totalorder %s39, 0
      %p360 = por %p358, %p359
      %s362 = sadd.s32 %s361, 1
      %p365 = scmp.eq.s32.totalorder %s33, 1
      %p366 = scmp.ne.s32.totalorder %s361, %s363
      %p367 = scmp.eq.s32.totalorder %s33, 0
      %p368 = por %p366, %p367
      %p369 = scmp.ne.s32.totalorder %s361, %s363
      %p370 = scmp.eq.s32.totalorder %s38, 1
      %p371 = por %p369, %p370
      %p372 = scmp.ne.s32.totalorder %s363, %s364
      %p373 = scmp.eq.s32.totalorder %s38, 0
      %p374 = por %p372, %p373
      %p375 = scmp.ne.s32.totalorder %s363, %s364
      %p376 = scmp.eq.s32.totalorder %s39, 1
      %p377 = por %p375, %p376
      %p379 = scmp.ne.s32.totalorder %s364, %s378
      %p380 = scmp.eq.s32.totalorder %s39, 0
      %p381 = por %p379, %p380
      %s383 = sadd.s32 %s382, 1
      %p386 = scmp.eq.s32.totalorder %s33, 1
      %p387 = scmp.ne.s32.totalorder %s382, %s384
      %p388 = scmp.eq.s32.totalorder %s33, 0
      %p389 = por %p387, %p388
      %p390 = scmp.ne.s32.totalorder %s382, %s384
      %p391 = scmp.eq.s32.totalorder %s38, 1
      %p392 = por %p390, %p391
      %p393 = scmp.ne.s32.totalorder %s384, %s385
      %p394 = scmp.eq.s32.totalorder %s38, 0
      %p395 = por %p393, %p394
      %p396 = scmp.ne.s32.totalorder %s384, %s385
      %p397 = scmp.eq.s32.totalorder %s39, 1
      %p398 = por %p396, %p397
      %p400 = scmp.ne.s32.totalorder %s385, %s399
      %p401 = scmp.eq.s32.totalorder %s39, 0
      %p402 = por %p400, %p401
      %s403 = ssub.s32 %s33, %s40
      %p404 = scmp.eq.s32.totalorder %s403, 0
      %s406 = sadd.s32 %s405, 1
      %s407 = scalar_select %p404, %s405, %s406
      %p410 = pneg %p404
      %p411 = scmp.eq.s32.totalorder %s33, 1
      %p412 = por %p410, %p411
      %p413 = scmp.ne.s32.totalorder %s405, %s408
      %p414 = scmp.eq.s32.totalorder %s33, 0
      %p415 = por %p413, %p414
      %p416 = scmp.ne.s32.totalorder %s405, %s408
      %p417 = scmp.eq.s32.totalorder %s38, 1
      %p418 = por %p416, %p417
      %p419 = scmp.ne.s32.totalorder %s408, %s409
      %p420 = scmp.eq.s32.totalorder %s38, 0
      %p421 = por %p419, %p420
      %p422 = scmp.ne.s32.totalorder %s408, %s409
      %p423 = scmp.eq.s32.totalorder %s39, 1
      %p424 = por %p422, %p423
      %p426 = scmp.ne.s32.totalorder %s409, %s425
      %p427 = scmp.eq.s32.totalorder %s39, 0
      %p428 = por %p426, %p427
      %s429 = ssub.s32 %s33, %s40
      %p430 = scmp.eq.s32.totalorder %s429, 0
      %s432 = sadd.s32 %s431, 1
      %s433 = scalar_select %p430, %s431, %s432
      %p436 = pneg %p430
      %p437 = scmp.eq.s32.totalorder %s33, 1
      %p438 = por %p436, %p437
      %p439 = scmp.ne.s32.totalorder %s431, %s434
      %p440 = scmp.eq.s32.totalorder %s33, 0
      %p441 = por %p439, %p440
      %p442 = scmp.ne.s32.totalorder %s431, %s434
      %p443 = scmp.eq.s32.totalorder %s38, 1
      %p444 = por %p442, %p443
      %p445 = scmp.ne.s32.totalorder %s434, %s435
      %p446 = scmp.eq.s32.totalorder %s38, 0
      %p447 = por %p445, %p446
      %p448 = scmp.ne.s32.totalorder %s434, %s435
      %p449 = scmp.eq.s32.totalorder %s39, 1
      %p450 = por %p448, %p449
      %p452 = scmp.ne.s32.totalorder %s435, %s451
      %p453 = scmp.eq.s32.totalorder %s39, 0
      %p454 = por %p452, %p453
      %s455 = ssub.s32 %s33, %s40
      %p456 = scmp.eq.s32.totalorder %s455, 0
      %s458 = sadd.s32 %s457, 1
      %s459 = scalar_select %p456, %s457, %s458
      %p462 = pneg %p456
      %p463 = scmp.eq.s32.totalorder %s33, 1
      %p464 = por %p462, %p463
      %p465 = scmp.ne.s32.totalorder %s457, %s460
      %p466 = scmp.eq.s32.totalorder %s33, 0
      %p467 = por %p465, %p466
      %p468 = scmp.ne.s32.totalorder %s457, %s460
      %p469 = scmp.eq.s32.totalorder %s38, 1
      %p470 = por %p468, %p469
      %p471 = scmp.ne.s32.totalorder %s460, %s461
      %p472 = scmp.eq.s32.totalorder %s38, 0
      %p473 = por %p471, %p472
      %p474 = scmp.ne.s32.totalorder %s460, %s461
      %p475 = scmp.eq.s32.totalorder %s39, 1
      %p476 = por %p474, %p475
      %p478 = scmp.ne.s32.totalorder %s461, %s477
      %p479 = scmp.eq.s32.totalorder %s39, 0
      %p480 = por %p478, %p479
      %s481 = ssub.s32 %s33, %s40
      %p482 = scmp.eq.s32.totalorder %s481, 0
      %s484 = sadd.s32 %s483, 1
      %s485 = scalar_select %p482, %s483, %s484
      %p488 = pneg %p482
      %p489 = scmp.eq.s32.totalorder %s33, 1
      %p490 = por %p488, %p489
      %p491 = scmp.ne.s32.totalorder %s483, %s486
      %p492 = scmp.eq.s32.totalorder %s33, 0
      %p493 = por %p491, %p492
      %p494 = scmp.ne.s32.totalorder %s483, %s486
      %p495 = scmp.eq.s32.totalorder %s38, 1
      %p496 = por %p494, %p495
      %p497 = scmp.ne.s32.totalorder %s486, %s487
      %p498 = scmp.eq.s32.totalorder %s38, 0
      %p499 = por %p497, %p498
      %p500 = scmp.ne.s32.totalorder %s486, %s487
      %p501 = scmp.eq.s32.totalorder %s39, 1
      %p502 = por %p500, %p501
      %p504 = scmp.ne.s32.totalorder %s487, %s503
      %p505 = scmp.eq.s32.totalorder %s39, 0
      %p506 = por %p504, %p505
      %p507 = scmp.le.s32.totalorder 1, %s33
      %p508 = scmp.lt.s32.totalorder %s33, 3
      %p509 = pnand %p507, %p508
      %p510 = pneg %p509
      // Predicated region
      $region9: #{fs_network_forward.1} parent=5 // pred_check
        _
      $region10: #{fs_network_forward.1} parent=5 // pred_check_branch
        %512 = sbr.rel (%p509) target = $region12
      $region11: #{fs_network_forward.1} parent=5 // pred_region
        %s513 = ssub.s32 %s33, 1
        // Predicated region
        $region13: #{fs_network_forward.1} parent=11 // pred_check
          %p514 = pneg %p80
        $region14: #{fs_network_forward.1} parent=11 // pred_check_branch
          %516 = sbr.rel (%p514) target = $region16
        $region15: #{fs_network_forward.1} parent=11 // pred_region
          _
        $region16: #{fs_network_forward.1} parent=11 // pred_fallthru
          _
        // Predicated region
        $region17: #{fs_network_forward.1} parent=11 // pred_check
          %p517 = pneg %p101
        $region18: #{fs_network_forward.1} parent=11 // pred_check_branch
          %519 = sbr.rel (%p517) target = $region20
        $region19: #{fs_network_forward.1} parent=11 // pred_region
          _
        $region20: #{fs_network_forward.1} parent=11 // pred_fallthru
          _
        // Predicated region
        $region21: #{fs_network_forward.1} parent=11 // pred_check
          %p520 = pneg %p122
        $region22: #{fs_network_forward.1} parent=11 // pred_check_branch
          %522 = sbr.rel (%p520) target = $region24
        $region23: #{fs_network_forward.1} parent=11 // pred_region
          _
        $region24: #{fs_network_forward.1} parent=11 // pred_fallthru
          _
        // Predicated region
        $region25: #{fs_network_forward.1} parent=11 // pred_check
          %p523 = pneg %p143
        $region26: #{fs_network_forward.1} parent=11 // pred_check_branch
          %525 = sbr.rel (%p523) target = $region28
        $region27: #{fs_network_forward.1} parent=11 // pred_region
          _
        $region28: #{fs_network_forward.1} parent=11 // pred_fallthru
          _
        // Predicated region
        $region29: #{fs_network_forward.1} parent=11 // pred_check
          %p526 = pneg %p164
        $region30: #{fs_network_forward.1} parent=11 // pred_check_branch
          %528 = sbr.rel (%p526) target = $region32
        $region31: #{fs_network_forward.1} parent=11 // pred_region
          _
        $region32: #{fs_network_forward.1} parent=11 // pred_fallthru
          _
        // Predicated region
        $region33: #{fs_network_forward.1} parent=11 // pred_check
          %p529 = pneg %p185
        $region34: #{fs_network_forward.1} parent=11 // pred_check_branch
          %531 = sbr.rel (%p529) target = $region36
        $region35: #{fs_network_forward.1} parent=11 // pred_region
          _
        $region36: #{fs_network_forward.1} parent=11 // pred_fallthru
          _
        // Predicated region
        $region37: #{fs_network_forward.1} parent=11 // pred_check
          %p532 = pneg %p206
        $region38: #{fs_network_forward.1} parent=11 // pred_check_branch
          %534 = sbr.rel (%p532) target = $region40
        $region39: #{fs_network_forward.1} parent=11 // pred_region
          _
        $region40: #{fs_network_forward.1} parent=11 // pred_fallthru
          _
        // Predicated region
        $region41: #{fs_network_forward.1} parent=11 // pred_check
          %p535 = pneg %p227
        $region42: #{fs_network_forward.1} parent=11 // pred_check_branch
          %537 = sbr.rel (%p535) target = $region44
        $region43: #{fs_network_forward.1} parent=11 // pred_region
          _
        $region44: #{fs_network_forward.1} parent=11 // pred_fallthru
          _
        // Predicated region
        $region45: #{fs_network_forward.1} parent=11 // pred_check
          %p538 = pneg %p248
        $region46: #{fs_network_forward.1} parent=11 // pred_check_branch
          %540 = sbr.rel (%p538) target = $region48
        $region47: #{fs_network_forward.1} parent=11 // pred_region
          _
        $region48: #{fs_network_forward.1} parent=11 // pred_fallthru
          _
        // Predicated region
        $region49: #{fs_network_forward.1} parent=11 // pred_check
          %p541 = pneg %p269
        $region50: #{fs_network_forward.1} parent=11 // pred_check_branch
          %543 = sbr.rel (%p541) target = $region52
        $region51: #{fs_network_forward.1} parent=11 // pred_region
          _
        $region52: #{fs_network_forward.1} parent=11 // pred_fallthru
          _
        // Predicated region
        $region53: #{fs_network_forward.1} parent=11 // pred_check
          %p544 = pneg %p290
        $region54: #{fs_network_forward.1} parent=11 // pred_check_branch
          %546 = sbr.rel (%p544) target = $region56
        $region55: #{fs_network_forward.1} parent=11 // pred_region
          _
        $region56: #{fs_network_forward.1} parent=11 // pred_fallthru
          _
        // Predicated region
        $region57: #{fs_network_forward.1} parent=11 // pred_check
          %p547 = pneg %p311
        $region58: #{fs_network_forward.1} parent=11 // pred_check_branch
          %549 = sbr.rel (%p547) target = $region60
        $region59: #{fs_network_forward.1} parent=11 // pred_region
          _
        $region60: #{fs_network_forward.1} parent=11 // pred_fallthru
          _
        // Predicated region
        $region61: #{fs_network_forward.1} parent=11 // pred_check
          %p550 = pneg %p332
        $region62: #{fs_network_forward.1} parent=11 // pred_check_branch
          %552 = sbr.rel (%p550) target = $region64
        $region63: #{fs_network_forward.1} parent=11 // pred_region
          _
        $region64: #{fs_network_forward.1} parent=11 // pred_fallthru
          _
        // Predicated region
        $region65: #{fs_network_forward.1} parent=11 // pred_check
          %p553 = pneg %p353
        $region66: #{fs_network_forward.1} parent=11 // pred_check_branch
          %555 = sbr.rel (%p553) target = $region68
        $region67: #{fs_network_forward.1} parent=11 // pred_region
          _
        $region68: #{fs_network_forward.1} parent=11 // pred_fallthru
          _
        // Predicated region
        $region69: #{fs_network_forward.1} parent=11 // pred_check
          %p556 = pneg %p374
        $region70: #{fs_network_forward.1} parent=11 // pred_check_branch
          %558 = sbr.rel (%p556) target = $region72
        $region71: #{fs_network_forward.1} parent=11 // pred_region
          _
        $region72: #{fs_network_forward.1} parent=11 // pred_fallthru
          _
        // Predicated region
        $region73: #{fs_network_forward.1} parent=11 // pred_check
          %p559 = pneg %p395
        $region74: #{fs_network_forward.1} parent=11 // pred_check_branch
          %561 = sbr.rel (%p559) target = $region76
        $region75: #{fs_network_forward.1} parent=11 // pred_region
          _
        $region76: #{fs_network_forward.1} parent=11 // pred_fallthru
          _
      $region12: #{fs_network_forward.1} parent=5 // pred_fallthru
        _
      %p562 = scmp.lt.s32.totalorder %s33, 2
      // Predicated region
      $region77: #{fs_network_forward.1} parent=5 // pred_check
        %p563 = pneg %p562
      $region78: #{fs_network_forward.1} parent=5 // pred_check_branch
        %565 = sbr.rel (%p563) target = $region80
      $region79: #{fs_network_forward.1} parent=5 // pred_region
        // Predicated region
        $region81: #{fs_network_forward.1} parent=79 // pred_check
          %p566 = pneg %p53
        $region82: #{fs_network_forward.1} parent=79 // pred_check_branch
          %568 = sbr.rel (%p566) target = $region84
        $region83: #{fs_network_forward.1} parent=79 // pred_region
          %p569 = scmp.lt.s32.totalorder %s33, 1
          %s570 = scalar_select %p569, %s33, 1
          %s571 = smul.addr %s570, 2
          %s572 = scalar_lea.vmem %s0, %s571
        $region84: #{fs_network_forward.1} parent=79 // pred_fallthru
          _
      $region80: #{fs_network_forward.1} parent=5 // pred_fallthru
        _
      %p573 = scmp.le.s32.totalorder 1, %s33
      %p574 = scmp.lt.s32.totalorder %s33, 3
      %p575 = pnand %p573, %p574
      %p576 = pneg %p575
      // Predicated region
      $region85: #{fs_network_forward.1} parent=5 // pred_check
        _
      $region86: #{fs_network_forward.1} parent=5 // pred_check_branch
        %578 = sbr.rel (%p575) target = $region88
      $region87: #{fs_network_forward.1} parent=5 // pred_region
        %s579 = ssub.s32 %s33, 1
        %p580 = scmp.lt.s32.totalorder %s38, 1
        %s581 = scalar_select %p580, %s38, 1
        %s582 = smul.addr %s581, 2
        %s583 = scalar_lea.vmem %s0, %s582
        %p584 = pneg %p59
        %p585 = pneg %p56
        %p586 = pneg %p80
        %p587 = pneg %p77
        %p588 = pneg %p101
        %p589 = pneg %p98
        %p590 = pneg %p122
        %p591 = pneg %p119
        %p592 = pneg %p143
        %p593 = pneg %p140
        %p594 = pneg %p164
        %p595 = pneg %p161
        %p596 = pneg %p185
        %p597 = pneg %p182
        %p598 = pneg %p206
        %p599 = pneg %p203
        %p600 = pneg %p227
        %p601 = pneg %p224
        %p602 = pneg %p248
        %p603 = pneg %p245
        %p604 = pneg %p269
        %p605 = pneg %p266
        %p606 = pneg %p290
        %p607 = pneg %p287
        %p608 = pneg %p311
        %p609 = pneg %p308
        %p610 = pneg %p332
        %p611 = pneg %p329
        %p612 = pneg %p353
        %p613 = pneg %p350
        %p614 = pneg %p374
        %p615 = pneg %p371
        %p616 = pneg %p395
        %p617 = pneg %p392
        %p618 = pneg %p421
        %p619 = pneg %p418
        %s620 = sand.u32 %s408, 1
        %s621 = scalar_lea.sflag [#allocation5], %s620
        %s622 = sand.u32 %s408, 1
        %s623 = smul.addr %s622, 32
        %s624 = scalar_lea.vmem [#allocation4], %s623
        %p625 = pneg %p447
        %p626 = pneg %p444
        %s627 = sand.u32 %s434, 1
        %s628 = scalar_lea.sflag [#allocation7], %s627
        %s629 = sand.u32 %s434, 1
        %s630 = smul.addr %s629, 32
        %s631 = scalar_lea.vmem [#allocation6], %s630
        %p632 = pneg %p473
        %p633 = pneg %p470
        %p634 = scmp.lt.s32.totalorder %s38, 1
        %s635 = scalar_select %p634, %s38, 1
        %s636 = smul.addr %s635, 8
        %s637 = smul.addr %s636, 8
        %s638 = scalar_lea.vmem %s19, %s637
        %p639 = pneg %p499
        %p640 = pneg %p496
        %p641 = scmp.lt.s32.totalorder %s38, 1
        %s642 = scalar_select %p641, %s38, 1
        %s643 = smul.addr %s642, 16
        %s644 = smul.addr %s643, 8
        %s645 = scalar_lea.vmem %s20, %s644
        %p646 = scmp.lt.s32.totalorder %s38, 1
        %s647 = scalar_select %p646, %s38, 1
        %s648 = smul.addr %s647, 2
        %s649 = scalar_lea.vmem %s0, %s648
        %p650 = scmp.lt.s32.totalorder %s38, 1
        %s651 = scalar_select %p650, %s38, 1
        %s652 = smul.addr %s651, 8
        %s653 = smul.addr %s652, 8
        %s654 = scalar_lea.vmem %s19, %s653
        %p655 = scmp.lt.s32.totalorder %s38, 1
        %s656 = scalar_select %p655, %s38, 1
        %s657 = smul.addr %s656, 16
        %s658 = smul.addr %s657, 8
        %s659 = scalar_lea.vmem %s20, %s658
        %v661 = vld [vmem:[%s649] sm:$0x3]
        %vm662 = vcmask 24576
        %663 = vst.msk [vmem:[#allocation2] sm:$0x1] %vm662, 0.0
        %vm664 = vcmask 57376
        %665 = vst.msk [vmem:[#allocation2 + $0x10] sm:$0x1] %vm664, 0.0
        %667 = vrot.lane.b32.xlu0 %v661, 4
        %v668 = vpop.permute.xlu0 %667
        %v669 = vrot.slane %v668, 7
        %vm670 = vcmask 31744
        %v671 = vsel %vm670, %v669, %v668
        %v673 = vlaneseq
        %vm674 = vcmp.ge.s32.totalorder %v673, 4
        %vm675 = vcmp.lt.s32.totalorder %v673, 260
        %vm676 = vmand %vm674, %vm675
        %677 = vst.msk [vmem:[#allocation2] ss:$8 sm:$0x7] %vm676, %v671
        %678 = vst.msk [vmem:[#allocation2] ss:$8 sm:$0x0] %vm676, %v671
        %v679 = vld [vmem:[%s1] sm:$0xff]
        %v680 = vld [vmem:[%s1 + $0x8] sm:$0xff]
        %v681 = vld [vmem:[#allocation2] ss:$8 sm:$0x3]
        %683 = vset.pattern.permute.xlu0 0
        %684 = vperm.xlu0 %683, %v679
        %v685 = vpop.permute.xlu0 %684
        %688 = vset.pattern.permute.xlu0 0
        %689 = vperm.xlu0 %688, %v680
        %v690 = vpop.permute.xlu0 %689
        %v693 = vlaneseq
        %v694 = vshrl.u32 %v693, 7
        %v695 = vsub.s32 0, %v694
        %v696 = vrot.slane %v681, %v695
        %v697 = vlaneseq
        %v698 = vshrl.u32 %v697, 7
        %v699 = vsub.s32 1, %v698
        %v700 = vrot.slane %v681, %v699
        %v703 = vmul.f32 %v685, %v696
        %v704 = vmul.f32 %v685, %v700
        %v705 = vmul.f32 %v690, %v696
        %v706 = vmul.f32 %v690, %v700
        %v707 = vadd.f32 %v703, 0.0
        %v708 = vadd.f32 %v704, 0.0
        %v709 = vadd.f32 %v705, 0.0
        %v710 = vadd.f32 %v706, 0.0
        %v711 = vld [vmem:[#allocation2] ss:$8 sm:$0x7]
        %712 = vset.pattern.permute.xlu0 1
        %713 = vperm.xlu0 %712, %v679
        %v714 = vpop.permute.xlu0 %713
        %716 = vset.pattern.permute.xlu0 1
        %717 = vperm.xlu0 %716, %v680
        %v718 = vpop.permute.xlu0 %717
        %v721 = vlaneseq
        %v722 = vshrl.u32 %v721, 7
        %v723 = vsub.s32 0, %v722
        %v724 = vrot.slane %v711, %v723
        %v725 = vlaneseq
        %v726 = vshrl.u32 %v725, 7
        %v727 = vsub.s32 1, %v726
        %v728 = vrot.slane %v711, %v727
        %v729 = vlaneseq
        %v730 = vshrl.u32 %v729, 7
        %v731 = vsub.s32 2, %v730
        %v732 = vrot.slane %v711, %v731
        %v736 = vmul.f32 %v714, %v724
        %v737 = vmul.f32 %v714, %v728
        %v738 = vmul.f32 %v714, %v732
        %v739 = vmul.f32 %v718, %v724
        %v740 = vmul.f32 %v718, %v728
        %v741 = vmul.f32 %v718, %v732
        %748 = vrot.lane.b32.xlu0 %v736, 127
        %v749 = vpop.permute.xlu0 %748
        %750 = vrot.lane.b32.xlu0 %v737, 127
        %v751 = vpop.permute.xlu0 %750
        %752 = vrot.lane.b32.xlu0 %v738, 127
        %v753 = vpop.permute.xlu0 %752
        %754 = vrot.lane.b32.xlu0 %v739, 127
        %v755 = vpop.permute.xlu0 %754
        %756 = vrot.lane.b32.xlu0 %v740, 127
        %v757 = vpop.permute.xlu0 %756
        %758 = vrot.lane.b32.xlu0 %v741, 127
        %v759 = vpop.permute.xlu0 %758
        %vm760 = vcmask 1039360
        %v761 = vsel %vm760, %v749, %v751
        %v762 = vsel %vm760, %v751, %v753
        %v763 = vsel %vm760, %v755, %v757
        %v764 = vsel %vm760, %v757, %v759
        %v769 = vadd.f32 %v707, %v761
        %v770 = vadd.f32 %v708, %v762
        %v771 = vadd.f32 %v709, %v763
        %v772 = vadd.f32 %v710, %v764
        %773 = vset.pattern.permute.xlu0 2
        %774 = vperm.xlu0 %773, %v679
        %v775 = vpop.permute.xlu0 %774
        %777 = vset.pattern.permute.xlu0 2
        %778 = vperm.xlu0 %777, %v680
        %v779 = vpop.permute.xlu0 %778
        %v781 = vmul.f32 %v775, %v724
        %v782 = vmul.f32 %v775, %v728
        %v783 = vmul.f32 %v775, %v732
        %v784 = vmul.f32 %v779, %v724
        %v785 = vmul.f32 %v779, %v728
        %v786 = vmul.f32 %v779, %v732
        %793 = vrot.lane.b32.xlu0 %v781, 126
        %v794 = vpop.permute.xlu0 %793
        %795 = vrot.lane.b32.xlu0 %v782, 126
        %v796 = vpop.permute.xlu0 %795
        %797 = vrot.lane.b32.xlu0 %v783, 126
        %v798 = vpop.permute.xlu0 %797
        %799 = vrot.lane.b32.xlu0 %v784, 126
        %v800 = vpop.permute.xlu0 %799
        %801 = vrot.lane.b32.xlu0 %v785, 126
        %v802 = vpop.permute.xlu0 %801
        %803 = vrot.lane.b32.xlu0 %v786, 126
        %v804 = vpop.permute.xlu0 %803
        %vm805 = vcmask 1031168
        %v806 = vsel %vm805, %v794, %v796
        %v807 = vsel %vm805, %v796, %v798
        %v808 = vsel %vm805, %v800, %v802
        %v809 = vsel %vm805, %v802, %v804
        %v814 = vadd.f32 %v769, %v806
        %v815 = vadd.f32 %v770, %v807
        %v816 = vadd.f32 %v771, %v808
        %v817 = vadd.f32 %v772, %v809
        %818 = vset.pattern.permute.xlu0 3
        %819 = vperm.xlu0 %818, %v679
        %v820 = vpop.permute.xlu0 %819
        %822 = vset.pattern.permute.xlu0 3
        %823 = vperm.xlu0 %822, %v680
        %v824 = vpop.permute.xlu0 %823
        %v826 = vmul.f32 %v820, %v724
        %v827 = vmul.f32 %v820, %v728
        %v828 = vmul.f32 %v820, %v732
        %v829 = vmul.f32 %v824, %v724
        %v830 = vmul.f32 %v824, %v728
        %v831 = vmul.f32 %v824, %v732
        %838 = vrot.lane.b32.xlu0 %v826, 125
        %v839 = vpop.permute.xlu0 %838
        %840 = vrot.lane.b32.xlu0 %v827, 125
        %v841 = vpop.permute.xlu0 %840
        %842 = vrot.lane.b32.xlu0 %v828, 125
        %v843 = vpop.permute.xlu0 %842
        %844 = vrot.lane.b32.xlu0 %v829, 125
        %v845 = vpop.permute.xlu0 %844
        %846 = vrot.lane.b32.xlu0 %v830, 125
        %v847 = vpop.permute.xlu0 %846
        %848 = vrot.lane.b32.xlu0 %v831, 125
        %v849 = vpop.permute.xlu0 %848
        %vm850 = vcmask 1022976
        %v851 = vsel %vm850, %v839, %v841
        %v852 = vsel %vm850, %v841, %v843
        %v853 = vsel %vm850, %v845, %v847
        %v854 = vsel %vm850, %v847, %v849
        %v859 = vadd.f32 %v814, %v851
        %v860 = vadd.f32 %v815, %v852
        %v861 = vadd.f32 %v816, %v853
        %v862 = vadd.f32 %v817, %v854
        %863 = vset.pattern.permute.xlu0 4
        %864 = vperm.xlu0 %863, %v679
        %v865 = vpop.permute.xlu0 %864
        %867 = vset.pattern.permute.xlu0 4
        %868 = vperm.xlu0 %867, %v680
        %v869 = vpop.permute.xlu0 %868
        %v871 = vmul.f32 %v865, %v724
        %v872 = vmul.f32 %v865, %v728
        %v873 = vmul.f32 %v865, %v732
        %v874 = vmul.f32 %v869, %v724
        %v875 = vmul.f32 %v869, %v728
        %v876 = vmul.f32 %v869, %v732
        %883 = vrot.lane.b32.xlu0 %v871, 124
        %v884 = vpop.permute.xlu0 %883
        %885 = vrot.lane.b32.xlu0 %v872, 124
        %v886 = vpop.permute.xlu0 %885
        %887 = vrot.lane.b32.xlu0 %v873, 124
        %v888 = vpop.permute.xlu0 %887
        %889 = vrot.lane.b32.xlu0 %v874, 124
        %v890 = vpop.permute.xlu0 %889
        %891 = vrot.lane.b32.xlu0 %v875, 124
        %v892 = vpop.permute.xlu0 %891
        %893 = vrot.lane.b32.xlu0 %v876, 124
        %v894 = vpop.permute.xlu0 %893
        %vm895 = vcmask 1014784
        %v896 = vsel %vm895, %v884, %v886
        %v897 = vsel %vm895, %v886, %v888
        %v898 = vsel %vm895, %v890, %v892
        %v899 = vsel %vm895, %v892, %v894
        %v904 = vadd.f32 %v859, %v896
        %v905 = vadd.f32 %v860, %v897
        %v906 = vadd.f32 %v861, %v898
        %v907 = vadd.f32 %v862, %v899
        %908 = vset.pattern.permute.xlu0 5
        %909 = vperm.xlu0 %908, %v679
        %v910 = vpop.permute.xlu0 %909
        %912 = vset.pattern.permute.xlu0 5
        %913 = vperm.xlu0 %912, %v680
        %v914 = vpop.permute.xlu0 %913
        %v916 = vmul.f32 %v910, %v724
        %v917 = vmul.f32 %v910, %v728
        %v918 = vmul.f32 %v910, %v732
        %v919 = vmul.f32 %v914, %v724
        %v920 = vmul.f32 %v914, %v728
        %v921 = vmul.f32 %v914, %v732
        %928 = vrot.lane.b32.xlu0 %v916, 123
        %v929 = vpop.permute.xlu0 %928
        %930 = vrot.lane.b32.xlu0 %v917, 123
        %v931 = vpop.permute.xlu0 %930
        %932 = vrot.lane.b32.xlu0 %v918, 123
        %v933 = vpop.permute.xlu0 %932
        %934 = vrot.lane.b32.xlu0 %v919, 123
        %v935 = vpop.permute.xlu0 %934
        %936 = vrot.lane.b32.xlu0 %v920, 123
        %v937 = vpop.permute.xlu0 %936
        %938 = vrot.lane.b32.xlu0 %v921, 123
        %v939 = vpop.permute.xlu0 %938
        %vm940 = vcmask 1006592
        %v941 = vsel %vm940, %v929, %v931
        %v942 = vsel %vm940, %v931, %v933
        %v943 = vsel %vm940, %v935, %v937
        %v944 = vsel %vm940, %v937, %v939
        %v949 = vadd.f32 %v904, %v941
        %v950 = vadd.f32 %v905, %v942
        %v951 = vadd.f32 %v906, %v943
        %v952 = vadd.f32 %v907, %v944
        %953 = vset.pattern.permute.xlu0 6
        %954 = vperm.xlu0 %953, %v679
        %v955 = vpop.permute.xlu0 %954
        %957 = vset.pattern.permute.xlu0 6
        %958 = vperm.xlu0 %957, %v680
        %v959 = vpop.permute.xlu0 %958
        %v961 = vmul.f32 %v955, %v724
        %v962 = vmul.f32 %v955, %v728
        %v963 = vmul.f32 %v955, %v732
        %v964 = vmul.f32 %v959, %v724
        %v965 = vmul.f32 %v959, %v728
        %v966 = vmul.f32 %v959, %v732
        %973 = vrot.lane.b32.xlu0 %v961, 122
        %v974 = vpop.permute.xlu0 %973
        %975 = vrot.lane.b32.xlu0 %v962, 122
        %v976 = vpop.permute.xlu0 %975
        %977 = vrot.lane.b32.xlu0 %v963, 122
        %v978 = vpop.permute.xlu0 %977
        %979 = vrot.lane.b32.xlu0 %v964, 122
        %v980 = vpop.permute.xlu0 %979
        %981 = vrot.lane.b32.xlu0 %v965, 122
        %v982 = vpop.permute.xlu0 %981
        %983 = vrot.lane.b32.xlu0 %v966, 122
        %v984 = vpop.permute.xlu0 %983
        %vm985 = vcmask 998400
        %v986 = vsel %vm985, %v974, %v976
        %v987 = vsel %vm985, %v976, %v978
        %v988 = vsel %vm985, %v980, %v982
        %v989 = vsel %vm985, %v982, %v984
        %v994 = vadd.f32 %v949, %v986
        %v995 = vadd.f32 %v950, %v987
        %v996 = vadd.f32 %v951, %v988
        %v997 = vadd.f32 %v952, %v989
        %998 = vset.pattern.permute.xlu0 7
        %999 = vperm.xlu0 %998, %v679
        %v1000 = vpop.permute.xlu0 %999
        %1002 = vset.pattern.permute.xlu0 7
        %1003 = vperm.xlu0 %1002, %v680
        %v1004 = vpop.permute.xlu0 %1003
        %v1006 = vmul.f32 %v1000, %v724
        %v1007 = vmul.f32 %v1000, %v728
        %v1008 = vmul.f32 %v1000, %v732
        %v1009 = vmul.f32 %v1004, %v724
        %v1010 = vmul.f32 %v1004, %v728
        %v1011 = vmul.f32 %v1004, %v732
        %1018 = vrot.lane.b32.xlu0 %v1006, 121
        %v1019 = vpop.permute.xlu0 %1018
        %1020 = vrot.lane.b32.xlu0 %v1007, 121
        %v1021 = vpop.permute.xlu0 %1020
        %1022 = vrot.lane.b32.xlu0 %v1008, 121
        %v1023 = vpop.permute.xlu0 %1022
        %1024 = vrot.lane.b32.xlu0 %v1009, 121
        %v1025 = vpop.permute.xlu0 %1024
        %1026 = vrot.lane.b32.xlu0 %v1010, 121
        %v1027 = vpop.permute.xlu0 %1026
        %1028 = vrot.lane.b32.xlu0 %v1011, 121
        %v1029 = vpop.permute.xlu0 %1028
        %vm1030 = vcmask 990208
        %v1031 = vsel %vm1030, %v1019, %v1021
        %v1032 = vsel %vm1030, %v1021, %v1023
        %v1033 = vsel %vm1030, %v1025, %v1027
        %v1034 = vsel %vm1030, %v1027, %v1029
        %v1039 = vadd.f32 %v994, %v1031
        %v1040 = vadd.f32 %v995, %v1032
        %v1041 = vadd.f32 %v996, %v1033
        %v1042 = vadd.f32 %v997, %v1034
        %1043 = vset.pattern.permute.xlu0 8
        %1044 = vperm.xlu0 %1043, %v679
        %v1045 = vpop.permute.xlu0 %1044
        %1047 = vset.pattern.permute.xlu0 8
        %1048 = vperm.xlu0 %1047, %v680
        %v1049 = vpop.permute.xlu0 %1048
        %v1051 = vmul.f32 %v1045, %v724
        %v1052 = vmul.f32 %v1045, %v728
        %v1053 = vmul.f32 %v1045, %v732
        %v1054 = vmul.f32 %v1049, %v724
        %v1055 = vmul.f32 %v1049, %v728
        %v1056 = vmul.f32 %v1049, %v732
        %1063 = vrot.lane.b32.xlu0 %v1051, 120
        %v1064 = vpop.permute.xlu0 %1063
        %1065 = vrot.lane.b32.xlu0 %v1052, 120
        %v1066 = vpop.permute.xlu0 %1065
        %1067 = vrot.lane.b32.xlu0 %v1053, 120
        %v1068 = vpop.permute.xlu0 %1067
        %1069 = vrot.lane.b32.xlu0 %v1054, 120
        %v1070 = vpop.permute.xlu0 %1069
        %1071 = vrot.lane.b32.xlu0 %v1055, 120
        %v1072 = vpop.permute.xlu0 %1071
        %1073 = vrot.lane.b32.xlu0 %v1056, 120
        %v1074 = vpop.permute.xlu0 %1073
        %vm1075 = vcmask 982016
        %v1076 = vsel %vm1075, %v1064, %v1066
        %v1077 = vsel %vm1075, %v1066, %v1068
        %v1078 = vsel %vm1075, %v1070, %v1072
        %v1079 = vsel %vm1075, %v1072, %v1074
        %v1084 = vadd.f32 %v1039, %v1076
        %v1085 = vadd.f32 %v1040, %v1077
        %v1086 = vadd.f32 %v1041, %v1078
        %v1087 = vadd.f32 %v1042, %v1079
        %v1088 = vld [vmem:[%s2] sm:$0xff]
        %v1089 = vld [vmem:[%s2 + $0x8] sm:$0xff]
        %1091 = vset.pattern.permute.xlu0 0
        %1092 = vperm.xlu0 %1091, %v1088
        %v1093 = vpop.permute.xlu0 %1092
        %1096 = vset.pattern.permute.xlu0 0
        %1097 = vperm.xlu0 %1096, %v1089
        %v1098 = vpop.permute.xlu0 %1097
        %v1100 = vadd.f32 %v1084, %v1093
        %v1101 = vadd.f32 %v1085, %v1093
        %v1102 = vadd.f32 %v1086, %v1098
        %v1103 = vadd.f32 %v1087, %v1098
        %v1104 = vmax.f32 %v1100, 0.0
        %v1105 = vmax.f32 %v1101, 0.0
        %v1106 = vmax.f32 %v1102, 0.0
        %v1107 = vmax.f32 %v1103, 0.0
        %1108 = vst.msk [vmem:[#allocation2] sm:$0xff] %vm670, 0.0
        %1109 = vst.msk [vmem:[#allocation2 + $0x18] sm:$0xff] %vm670, 0.0
        %vm1110 = vcmask 64544
        %1111 = vst.msk [vmem:[#allocation2 + $0x10] sm:$0xff] %vm1110, 0.0
        %1112 = vst.msk [vmem:[#allocation2 + $0x28] sm:$0xff] %vm1110, 0.0
        %1117 = vrot.lane.b32.xlu0 %v1104, 4
        %v1118 = vpop.permute.xlu0 %1117
        %1119 = vrot.lane.b32.xlu0 %v1105, 4
        %v1120 = vpop.permute.xlu0 %1119
        %1121 = vrot.lane.b32.xlu0 %v1106, 4
        %v1122 = vpop.permute.xlu0 %1121
        %1123 = vrot.lane.b32.xlu0 %v1107, 4
        %v1124 = vpop.permute.xlu0 %1123
        %v1125 = vsel %vm670, %v1118, %v1120
        %v1126 = vsel %vm670, %v1122, %v1124
        %vm1133 = vcmask 1047584
        %1134 = vst.msk [vmem:[#allocation2] sm:$0xff] %vm1133, %v1118
        %1135 = vst [vmem:[#allocation2 + $0x8] sm:$0xff] %v1125
        %1136 = vst.msk [vmem:[#allocation2 + $0x10] sm:$0xff] %vm670, %v1120
        %1137 = vst.msk [vmem:[#allocation2 + $0x18] sm:$0xff] %vm1133, %v1122
        %1138 = vst [vmem:[#allocation2 + $0x20] sm:$0xff] %v1126
        %1139 = vst.msk [vmem:[#allocation2 + $0x28] sm:$0xff] %vm670, %v1124
        %v1140 = vld [vmem:[#allocation2] sm:$0xff]
        %v1141 = vld [vmem:[#allocation2 + $0x8] sm:$0xff]
        %v1142 = vld [vmem:[#allocation2 + $0x18] sm:$0xff]
        %v1143 = vld [vmem:[#allocation2 + $0x20] sm:$0xff]
        %1144 = vst [vmem:[#allocation3] sm:$0xff] %v1140
        %1145 = vst [vmem:[#allocation3 + $0x8] sm:$0xff] %v1141
        %1146 = vst [vmem:[#allocation3 + $0x10] sm:$0xff] %v1142
        %1147 = vst [vmem:[#allocation3 + $0x18] sm:$0xff] %v1143
        %v1148 = vld [vmem:[#allocation2] sm:$0xff]
        %v1149 = vld [vmem:[#allocation2 + $0x8] sm:$0xff]
        %v1150 = vld [vmem:[#allocation2 + $0x10] sm:$0xff]
        %v1151 = vld [vmem:[#allocation2 + $0x18] sm:$0xff]
        %v1152 = vld [vmem:[#allocation2 + $0x20] sm:$0xff]
        %v1153 = vld [vmem:[#allocation2 + $0x28] sm:$0xff]
        %1160 = vrot.lane.b32.xlu0 %v1148, 127
        %v1161 = vpop.permute.xlu0 %1160
        %1162 = vrot.lane.b32.xlu0 %v1149, 127
        %v1163 = vpop.permute.xlu0 %1162
        %1164 = vrot.lane.b32.xlu0 %v1150, 127
        %v1165 = vpop.permute.xlu0 %1164
        %1166 = vrot.lane.b32.xlu0 %v1151, 127
        %v1167 = vpop.permute.xlu0 %1166
        %1168 = vrot.lane.b32.xlu0 %v1152, 127
        %v1169 = vpop.permute.xlu0 %1168
        %1170 = vrot.lane.b32.xlu0 %v1153, 127
        %v1171 = vpop.permute.xlu0 %1170
        %v1172 = vsel %vm760, %v1161, %v1163
        %v1173 = vsel %vm760, %v1163, %v1165
        %v1174 = vsel %vm760, %v1167, %v1169
        %v1175 = vsel %vm760, %v1169, %v1171
        %1180 = vst [vmem:[#allocation3 + $0x20] sm:$0xff] %v1172
        %1181 = vst [vmem:[#allocation3 + $0x28] sm:$0xff] %v1173
        %1182 = vst [vmem:[#allocation3 + $0x30] sm:$0xff] %v1174
        %1183 = vst [vmem:[#allocation3 + $0x38] sm:$0xff] %v1175
        %v1184 = vld [vmem:[#allocation2] sm:$0xff]
        %v1185 = vld [vmem:[#allocation2 + $0x8] sm:$0xff]
        %v1186 = vld [vmem:[#allocation2 + $0x10] sm:$0xff]
        %v1187 = vld [vmem:[#allocation2 + $0x18] sm:$0xff]
        %v1188 = vld [vmem:[#allocation2 + $0x20] sm:$0xff]
        %v1189 = vld [vmem:[#allocation2 + $0x28] sm:$0xff]
        %1196 = vrot.lane.b32.xlu0 %v1184, 126
        %v1197 = vpop.permute.xlu0 %1196
        %1198 = vrot.lane.b32.xlu0 %v1185, 126
        %v1199 = vpop.permute.xlu0 %1198
        %1200 = vrot.lane.b32.xlu0 %v1186, 126
        %v1201 = vpop.permute.xlu0 %1200
        %1202 = vrot.lane.b32.xlu0 %v1187, 126
        %v1203 = vpop.permute.xlu0 %1202
        %1204 = vrot.lane.b32.xlu0 %v1188, 126
        %v1205 = vpop.permute.xlu0 %1204
        %1206 = vrot.lane.b32.xlu0 %v1189, 126
        %v1207 = vpop.permute.xlu0 %1206
        %v1208 = vsel %vm805, %v1197, %v1199
        %v1209 = vsel %vm805, %v1199, %v1201
        %v1210 = vsel %vm805, %v1203, %v1205
        %v1211 = vsel %vm805, %v1205, %v1207
        %1216 = vst [vmem:[#allocation3 + $0x40] sm:$0xff] %v1208
        %1217 = vst [vmem:[#allocation3 + $0x48] sm:$0xff] %v1209
        %1218 = vst [vmem:[#allocation3 + $0x50] sm:$0xff] %v1210
        %1219 = vst [vmem:[#allocation3 + $0x58] sm:$0xff] %v1211
        %v1220 = vld [vmem:[#allocation2] sm:$0xff]
        %v1221 = vld [vmem:[#allocation2 + $0x8] sm:$0xff]
        %v1222 = vld [vmem:[#allocation2 + $0x10] sm:$0xff]
        %v1223 = vld [vmem:[#allocation2 + $0x18] sm:$0xff]
        %v1224 = vld [vmem:[#allocation2 + $0x20] sm:$0xff]
        %v1225 = vld [vmem:[#allocation2 + $0x28] sm:$0xff]
        %1232 = vrot.lane.b32.xlu0 %v1220, 125
        %v1233 = vpop.permute.xlu0 %1232
        %1234 = vrot.lane.b32.xlu0 %v1221, 125
        %v1235 = vpop.permute.xlu0 %1234
        %1236 = vrot.lane.b32.xlu0 %v1222, 125
        %v1237 = vpop.permute.xlu0 %1236
        %1238 = vrot.lane.b32.xlu0 %v1223, 125
        %v1239 = vpop.permute.xlu0 %1238
        %1240 = vrot.lane.b32.xlu0 %v1224, 125
        %v1241 = vpop.permute.xlu0 %1240
        %1242 = vrot.lane.b32.xlu0 %v1225, 125
        %v1243 = vpop.permute.xlu0 %1242
        %v1244 = vsel %vm850, %v1233, %v1235
        %v1245 = vsel %vm850, %v1235, %v1237
        %v1246 = vsel %vm850, %v1239, %v1241
        %v1247 = vsel %vm850, %v1241, %v1243
        %1252 = vst [vmem:[#allocation3 + $0x60] sm:$0xff] %v1244
        %1253 = vst [vmem:[#allocation3 + $0x68] sm:$0xff] %v1245
        %1254 = vst [vmem:[#allocation3 + $0x70] sm:$0xff] %v1246
        %1255 = vst [vmem:[#allocation3 + $0x78] sm:$0xff] %v1247
        %v1256 = vld [vmem:[#allocation2] sm:$0xff]
        %v1257 = vld [vmem:[#allocation2 + $0x8] sm:$0xff]
        %v1258 = vld [vmem:[#allocation2 + $0x10] sm:$0xff]
        %v1259 = vld [vmem:[#allocation2 + $0x18] sm:$0xff]
        %v1260 = vld [vmem:[#allocation2 + $0x20] sm:$0xff]
        %v1261 = vld [vmem:[#allocation2 + $0x28] sm:$0xff]
        %1268 = vrot.lane.b32.xlu0 %v1256, 124
        %v1269 = vpop.permute.xlu0 %1268
        %1270 = vrot.lane.b32.xlu0 %v1257, 124
        %v1271 = vpop.permute.xlu0 %1270
        %1272 = vrot.lane.b32.xlu0 %v1258, 124
        %v1273 = vpop.permute.xlu0 %1272
        %1274 = vrot.lane.b32.xlu0 %v1259, 124
        %v1275 = vpop.permute.xlu0 %1274
        %1276 = vrot.lane.b32.xlu0 %v1260, 124
        %v1277 = vpop.permute.xlu0 %1276
        %1278 = vrot.lane.b32.xlu0 %v1261, 124
        %v1279 = vpop.permute.xlu0 %1278
        %v1280 = vsel %vm895, %v1269, %v1271
        %v1281 = vsel %vm895, %v1271, %v1273
        %v1282 = vsel %vm895, %v1275, %v1277
        %v1283 = vsel %vm895, %v1277, %v1279
        %1288 = vst [vmem:[#allocation3 + $0x80] sm:$0xff] %v1280
        %1289 = vst [vmem:[#allocation3 + $0x88] sm:$0xff] %v1281
        %1290 = vst [vmem:[#allocation3 + $0x90] sm:$0xff] %v1282
        %1291 = vst [vmem:[#allocation3 + $0x98] sm:$0xff] %v1283
        %v1292 = vld [vmem:[#allocation2] sm:$0xff]
        %v1293 = vld [vmem:[#allocation2 + $0x8] sm:$0xff]
        %v1294 = vld [vmem:[#allocation2 + $0x10] sm:$0xff]
        %v1295 = vld [vmem:[#allocation2 + $0x18] sm:$0xff]
        %v1296 = vld [vmem:[#allocation2 + $0x20] sm:$0xff]
        %v1297 = vld [vmem:[#allocation2 + $0x28] sm:$0xff]
        %1304 = vrot.lane.b32.xlu0 %v1292, 123
        %v1305 = vpop.permute.xlu0 %1304
        %1306 = vrot.lane.b32.xlu0 %v1293, 123
        %v1307 = vpop.permute.xlu0 %1306
        %1308 = vrot.lane.b32.xlu0 %v1294, 123
        %v1309 = vpop.permute.xlu0 %1308
        %1310 = vrot.lane.b32.xlu0 %v1295, 123
        %v1311 = vpop.permute.xlu0 %1310
        %1312 = vrot.lane.b32.xlu0 %v1296, 123
        %v1313 = vpop.permute.xlu0 %1312
        %1314 = vrot.lane.b32.xlu0 %v1297, 123
        %v1315 = vpop.permute.xlu0 %1314
        %v1316 = vsel %vm940, %v1305, %v1307
        %v1317 = vsel %vm940, %v1307, %v1309
        %v1318 = vsel %vm940, %v1311, %v1313
        %v1319 = vsel %vm940, %v1313, %v1315
        %1324 = vst [vmem:[#allocation3 + $0xa0] sm:$0xff] %v1316
        %1325 = vst [vmem:[#allocation3 + $0xa8] sm:$0xff] %v1317
        %1326 = vst [vmem:[#allocation3 + $0xb0] sm:$0xff] %v1318
        %1327 = vst [vmem:[#allocation3 + $0xb8] sm:$0xff] %v1319
        %v1328 = vld [vmem:[#allocation2] sm:$0xff]
        %v1329 = vld [vmem:[#allocation2 + $0x8] sm:$0xff]
        %v1330 = vld [vmem:[#allocation2 + $0x10] sm:$0xff]
        %v1331 = vld [vmem:[#allocation2 + $0x18] sm:$0xff]
        %v1332 = vld [vmem:[#allocation2 + $0x20] sm:$0xff]
        %v1333 = vld [vmem:[#allocation2 + $0x28] sm:$0xff]
        %1340 = vrot.lane.b32.xlu0 %v1328, 122
        %v1341 = vpop.permute.xlu0 %1340
        %1342 = vrot.lane.b32.xlu0 %v1329, 122
        %v1343 = vpop.permute.xlu0 %1342
        %1344 = vrot.lane.b32.xlu0 %v1330, 122
        %v1345 = vpop.permute.xlu0 %1344
        %1346 = vrot.lane.b32.xlu0 %v1331, 122
        %v1347 = vpop.permute.xlu0 %1346
        %1348 = vrot.lane.b32.xlu0 %v1332, 122
        %v1349 = vpop.permute.xlu0 %1348
        %1350 = vrot.lane.b32.xlu0 %v1333, 122
        %v1351 = vpop.permute.xlu0 %1350
        %v1352 = vsel %vm985, %v1341, %v1343
        %v1353 = vsel %vm985, %v1343, %v1345
        %v1354 = vsel %vm985, %v1347, %v1349
        %v1355 = vsel %vm985, %v1349, %v1351
        %1360 = vst [vmem:[#allocation3 + $0xc0] sm:$0xff] %v1352
        %1361 = vst [vmem:[#allocation3 + $0xc8] sm:$0xff] %v1353
        %1362 = vst [vmem:[#allocation3 + $0xd0] sm:$0xff] %v1354
        %1363 = vst [vmem:[#allocation3 + $0xd8] sm:$0xff] %v1355
        %v1364 = vld [vmem:[#allocation2] sm:$0xff]
        %v1365 = vld [vmem:[#allocation2 + $0x8] sm:$0xff]
        %v1366 = vld [vmem:[#allocation2 + $0x10] sm:$0xff]
        %v1367 = vld [vmem:[#allocation2 + $0x18] sm:$0xff]
        %v1368 = vld [vmem:[#allocation2 + $0x20] sm:$0xff]
        %v1369 = vld [vmem:[#allocation2 + $0x28] sm:$0xff]
        %1376 = vrot.lane.b32.xlu0 %v1364, 121
        %v1377 = vpop.permute.xlu0 %1376
        %1378 = vrot.lane.b32.xlu0 %v1365, 121
        %v1379 = vpop.permute.xlu0 %1378
        %1380 = vrot.lane.b32.xlu0 %v1366, 121
        %v1381 = vpop.permute.xlu0 %1380
        %1382 = vrot.lane.b32.xlu0 %v1367, 121
        %v1383 = vpop.permute.xlu0 %1382
        %1384 = vrot.lane.b32.xlu0 %v1368, 121
        %v1385 = vpop.permute.xlu0 %1384
        %1386 = vrot.lane.b32.xlu0 %v1369, 121
        %v1387 = vpop.permute.xlu0 %1386
        %v1388 = vsel %vm1030, %v1377, %v1379
        %v1389 = vsel %vm1030, %v1379, %v1381
        %v1390 = vsel %vm1030, %v1383, %v1385
        %v1391 = vsel %vm1030, %v1385, %v1387
        %1396 = vst [vmem:[#allocation3 + $0xe0] sm:$0xff] %v1388
        %1397 = vst [vmem:[#allocation3 + $0xe8] sm:$0xff] %v1389
        %1398 = vst [vmem:[#allocation3 + $0xf0] sm:$0xff] %v1390
        %1399 = vst [vmem:[#allocation3 + $0xf8] sm:$0xff] %v1391
        %v1400 = vld [vmem:[#allocation2] sm:$0xff]
        %v1401 = vld [vmem:[#allocation2 + $0x8] sm:$0xff]
        %v1402 = vld [vmem:[#allocation2 + $0x10] sm:$0xff]
        %v1403 = vld [vmem:[#allocation2 + $0x18] sm:$0xff]
        %v1404 = vld [vmem:[#allocation2 + $0x20] sm:$0xff]
        %v1405 = vld [vmem:[#allocation2 + $0x28] sm:$0xff]
        %1412 = vrot.lane.b32.xlu0 %v1400, 120
        %v1413 = vpop.permute.xlu0 %1412
        %1414 = vrot.lane.b32.xlu0 %v1401, 120
        %v1415 = vpop.permute.xlu0 %1414
        %1416 = vrot.lane.b32.xlu0 %v1402, 120
        %v1417 = vpop.permute.xlu0 %1416
        %1418 = vrot.lane.b32.xlu0 %v1403, 120
        %v1419 = vpop.permute.xlu0 %1418
        %1420 = vrot.lane.b32.xlu0 %v1404, 120
        %v1421 = vpop.permute.xlu0 %1420
        %1422 = vrot.lane.b32.xlu0 %v1405, 120
        %v1423 = vpop.permute.xlu0 %1422
        %v1424 = vsel %vm1075, %v1413, %v1415
        %v1425 = vsel %vm1075, %v1415, %v1417
        %v1426 = vsel %vm1075, %v1419, %v1421
        %v1427 = vsel %vm1075, %v1421, %v1423
        %1432 = vst [vmem:[#allocation3 + $0x100] sm:$0xff] %v1424
        %1433 = vst [vmem:[#allocation3 + $0x108] sm:$0xff] %v1425
        %1434 = vst [vmem:[#allocation3 + $0x110] sm:$0xff] %v1426
        %1435 = vst [vmem:[#allocation3 + $0x118] sm:$0xff] %v1427
        %v1436 = vld [vmem:[#allocation3] sm:$0xff]
        %v1437 = vld [vmem:[#allocation3 + $0x8] sm:$0xff]
        %v1438 = vld [vmem:[#allocation3 + $0x10] sm:$0xff]
        %v1439 = vld [vmem:[#allocation3 + $0x18] sm:$0xff]
        %v1440 = vld [vmem:[#allocation3 + $0x20] sm:$0xff]
        %v1441 = vld [vmem:[#allocation3 + $0x28] sm:$0xff]
        %v1442 = vld [vmem:[#allocation3 + $0x30] sm:$0xff]
        %v1443 = vld [vmem:[#allocation3 + $0x38] sm:$0xff]
        %v1444 = vld [vmem:[#allocation3 + $0x40] sm:$0xff]
        %v1445 = vld [vmem:[#allocation3 + $0x48] sm:$0xff]
        %v1446 = vld [vmem:[#allocation3 + $0x50] sm:$0xff]
        %v1447 = vld [vmem:[#allocation3 + $0x58] sm:$0xff]
        %v1448 = vld [vmem:[#allocation3 + $0x60] sm:$0xff]
        %v1449 = vld [vmem:[#allocation3 + $0x68] sm:$0xff]
        %v1450 = vld [vmem:[#allocation3 + $0x70] sm:$0xff]
        %v1451 = vld [vmem:[#allocation3 + $0x78] sm:$0xff]
        %v1452 = vld [vmem:[#allocation3 + $0x80] sm:$0xff]
        %v1453 = vld [vmem:[#allocation3 + $0x88] sm:$0xff]
        %v1454 = vld [vmem:[#allocation3 + $0x90] sm:$0xff]
        %v1455 = vld [vmem:[#allocation3 + $0x98] sm:$0xff]
        %v1456 = vld [vmem:[#allocation3 + $0xa0] sm:$0xff]
        %v1457 = vld [vmem:[#allocation3 + $0xa8] sm:$0xff]
        %v1458 = vld [vmem:[#allocation3 + $0xb0] sm:$0xff]
        %v1459 = vld [vmem:[#allocation3 + $0xb8] sm:$0xff]
        %v1460 = vld [vmem:[#allocation3 + $0xc0] sm:$0xff]
        %v1461 = vld [vmem:[#allocation3 + $0xc8] sm:$0xff]
        %v1462 = vld [vmem:[#allocation3 + $0xd0] sm:$0xff]
        %v1463 = vld [vmem:[#allocation3 + $0xd8] sm:$0xff]
        %v1464 = vld [vmem:[#allocation3 + $0xe0] sm:$0xff]
        %v1465 = vld [vmem:[#allocation3 + $0xe8] sm:$0xff]
        %v1466 = vld [vmem:[#allocation3 + $0xf0] sm:$0xff]
        %v1467 = vld [vmem:[#allocation3 + $0xf8] sm:$0xff]
        %v1468 = vld [vmem:[#allocation3 + $0x100] sm:$0xff]
        %v1469 = vld [vmem:[#allocation3 + $0x108] sm:$0xff]
        %v1470 = vld [vmem:[#allocation3 + $0x110] sm:$0xff]
        %v1471 = vld [vmem:[#allocation3 + $0x118] sm:$0xff]
        %v1472 = vld [vmem:[%s3] sm:$0xff]
        %v1473 = vld [vmem:[%s3 + $0x8] sm:$0xff]
        %v1474 = vpack.c.bf16 %v1438, %v1436
        %v1475 = vpack.c.bf16 %v1439, %v1437
        %v1476 = vpack.c.bf16 %v1442, %v1440
        %v1477 = vpack.c.bf16 %v1443, %v1441
        %v1478 = vpack.c.bf16 %v1446, %v1444
        %v1479 = vpack.c.bf16 %v1447, %v1445
        %v1480 = vpack.c.bf16 %v1450, %v1448
        %v1481 = vpack.c.bf16 %v1451, %v1449
        %v1482 = vpack.c.bf16 %v1454, %v1452
        %v1483 = vpack.c.bf16 %v1455, %v1453
        %v1484 = vpack.c.bf16 %v1458, %v1456
        %v1485 = vpack.c.bf16 %v1459, %v1457
        %v1486 = vpack.c.bf16 %v1462, %v1460
        %v1487 = vpack.c.bf16 %v1463, %v1461
        %v1488 = vpack.c.bf16 %v1466, %v1464
        %v1489 = vpack.c.bf16 %v1467, %v1465
        %v1490 = vpack.c.bf16 %v1470, %v1468
        %v1491 = vpack.c.bf16 %v1471, %v1469
        %v1492 = vld [vmem:[%s4] sm:$0xff]
        %v1493 = vld [vmem:[%s4 + $0x8] sm:$0xff]
        %1495 = vset.pattern.permute.xlu0 0
        %1496 = vperm.xlu0 %1495, %v1492
        %v1497 = vpop.permute.xlu0 %1496
        %1500 = vset.pattern.permute.xlu0 0
        %1501 = vperm.xlu0 %1500, %v1493
        %v1502 = vpop.permute.xlu0 %1501
        %v1506 = vunpack.c.l.b16 %v1472
        %v1507 = vunpack.c.h.b16 %v1472
        %v1508 = vunpack.c.l.b16 %v1473
        %v1509 = vunpack.c.h.b16 %v1473
        %v1510 = vpack.c.b16 %v1508, %v1506
        %v1511 = vpack.c.b16 %v1509, %v1507
        %vm1513 = vcmask 130048
        %v1515 = vsel %vm1513, %v1511, 0
        %1517 = vmatprep.subr.bf16.mxu0 %v1475
        %1518 = vmatpush1.bf16.msra.mxu0 %v1474
        %1519 = vmatprep.subr.bf16.mxu0 %v1477
        %1520 = vmatpush1.bf16.msra.mxu0 %v1476
        %1521 = vmatprep.subr.bf16.mxu0 %v1479
        %1522 = vmatpush1.bf16.msra.mxu0 %v1478
        %1523 = vmatprep.subr.bf16.mxu0 %v1481
        %1524 = vmatpush1.bf16.msra.mxu0 %v1480
        %1525 = vmatprep.subr.bf16.mxu0 %v1483
        %1526 = vmatpush1.bf16.msra.mxu0 %v1482
        %1527 = vmatprep.subr.bf16.mxu0 %v1485
        %1528 = vmatpush1.bf16.msra.mxu0 %v1484
        %1529 = vmatprep.subr.bf16.mxu0 %v1487
        %1530 = vmatpush1.bf16.msra.mxu0 %v1486
        %1531 = vmatprep.subr.bf16.mxu0 %v1489
        %1532 = vmatpush1.bf16.msra.mxu0 %v1488
        %1533 = vmatprep.subr.bf16.mxu0 %v1491
        %1534 = vmatpush1.bf16.msra.mxu0 %v1490
        %1535 = vmatprep.subr.bf16.mxu0 0
        %1536 = vmatpush1.bf16.msra.mxu0 0
        %1537 = vmatprep.subr.bf16.mxu0 0
        %1538 = vmatpush1.bf16.msra.mxu0 0
        %1539 = vmatprep.subr.bf16.mxu0 0
        %1540 = vmatpush1.bf16.msra.mxu0 0
        %1541 = vmatprep.subr.bf16.mxu0 0
        %1542 = vmatpush1.bf16.msra.mxu0 0
        %1543 = vmatprep.subr.bf16.mxu0 0
        %1544 = vmatpush1.bf16.msra.mxu0 0
        %1545 = vmatprep.subr.bf16.mxu0 0
        %1546 = vmatpush1.bf16.msra.mxu0 0
        %1547 = vmatprep.subr.bf16.mxu0 0
        %1548 = vmatpush1.bf16.msra.mxu0 0
        %1549 = vmatprep.mubr.bf16.mxu0 %v1515
        %1550 = vmatmul.mubr.bf16.gmra.mrb[0].mxu0 %v1510
        %v1551 = vpop.f32.mrb[0].mxu0
        %v1552 = vadd.f32 %v1497, %v1551
        %v1553 = vpop.f32.mrb[0].mxu0
        %v1554 = vadd.f32 %v1497, %v1553
        %v1555 = vpop.f32.mrb[0].mxu0
        %v1556 = vadd.f32 %v1502, %v1555
        %v1557 = vpop.f32.mrb[0].mxu0
        %v1558 = vadd.f32 %v1502, %v1557
        %1559 = vdwg.mxu0
        %v1560 = vmax.f32 %v1552, 0.0
        %v1561 = vmax.f32 %v1554, 0.0
        %v1562 = vmax.f32 %v1556, 0.0
        %v1563 = vmax.f32 %v1558, 0.0
        %1564 = vst [vmem:[%s624] sm:$0xff] %v1560
        %1565 = vst [vmem:[%s624 + $0x8] sm:$0xff] %v1561
        %1566 = vst [vmem:[%s624 + $0x10] sm:$0xff] %v1562
        %1567 = vst [vmem:[%s624 + $0x18] sm:$0xff] %v1563
        %v1568 = vlaneseq
        %v1569 = vshrl.u32 %v1568, 7
        %v1570 = vadd.s32 %v1569, 8
        %v1571 = vadd.s32 %v1569, 16
        %v1572 = vadd.s32 %v1569, 24
        %v1573 = vadd.s32 %v1569, 32
        %v1574 = vadd.s32 %v1569, 40
        %v1575 = vadd.s32 %v1569, 48
        %v1576 = vadd.s32 %v1569, 56
        %v1577 = vadd.s32 %v1569, 64
        %v1578 = vadd.s32 %v1569, 72
        %v1579 = vadd.s32 %v1569, 80
        %v1580 = vadd.s32 %v1569, 88
        %v1581 = vadd.s32 %v1569, 96
        %v1582 = vadd.s32 %v1569, 104
        %v1583 = vadd.s32 %v1569, 112
        %v1584 = vadd.s32 %v1569, 120
        %v1585 = vadd.s32 %v1569, 128
        %v1586 = vadd.s32 %v1569, 136
        %v1587 = vadd.s32 %v1569, 144
        %v1588 = vadd.s32 %v1569, 152
        %v1589 = vadd.s32 %v1569, 160
        %v1590 = vadd.s32 %v1569, 168
        %v1591 = vadd.s32 %v1569, 176
        %v1592 = vadd.s32 %v1569, 184
        %v1593 = vadd.s32 %v1569, 192
        %v1594 = vadd.s32 %v1569, 200
        %v1595 = vadd.s32 %v1569, 208
        %v1596 = vadd.s32 %v1569, 216
        %v1597 = vadd.s32 %v1569, 224
        %v1598 = vadd.s32 %v1569, 232
        %v1599 = vadd.s32 %v1569, 240
        %v1600 = vadd.s32 %v1569, 248
        %v1601 = vlaneseq
        %v1602 = vand.u32 %v1601, 127
        %v1603 = vmul.u32 %v1602, 4
        %vm1604 = vcmp.eq.s32.totalorder %v1569, %v1603
        %vm1605 = vcmp.eq.s32.totalorder %v1570, %v1603
        %vm1606 = vcmp.eq.s32.totalorder %v1571, %v1603
        %vm1607 = vcmp.eq.s32.totalorder %v1572, %v1603
        %vm1608 = vcmp.eq.s32.totalorder %v1573, %v1603
        %vm1609 = vcmp.eq.s32.totalorder %v1574, %v1603
        %vm1610 = vcmp.eq.s32.totalorder %v1575, %v1603
        %vm1611 = vcmp.eq.s32.totalorder %v1576, %v1603
        %vm1612 = vcmp.eq.s32.totalorder %v1577, %v1603
        %vm1613 = vcmp.eq.s32.totalorder %v1578, %v1603
        %vm1614 = vcmp.eq.s32.totalorder %v1579, %v1603
        %vm1615 = vcmp.eq.s32.totalorder %v1580, %v1603
        %vm1616 = vcmp.eq.s32.totalorder %v1581, %v1603
        %vm1617 = vcmp.eq.s32.totalorder %v1582, %v1603
        %vm1618 = vcmp.eq.s32.totalorder %v1583, %v1603
        %vm1619 = vcmp.eq.s32.totalorder %v1584, %v1603
        %vm1620 = vcmp.eq.s32.totalorder %v1585, %v1603
        %vm1621 = vcmp.eq.s32.totalorder %v1586, %v1603
        %vm1622 = vcmp.eq.s32.totalorder %v1587, %v1603
        %vm1623 = vcmp.eq.s32.totalorder %v1588, %v1603
        %vm1624 = vcmp.eq.s32.totalorder %v1589, %v1603
        %vm1625 = vcmp.eq.s32.totalorder %v1590, %v1603
        %vm1626 = vcmp.eq.s32.totalorder %v1591, %v1603
        %vm1627 = vcmp.eq.s32.totalorder %v1592, %v1603
        %vm1628 = vcmp.eq.s32.totalorder %v1593, %v1603
        %vm1629 = vcmp.eq.s32.totalorder %v1594, %v1603
        %vm1630 = vcmp.eq.s32.totalorder %v1595, %v1603
        %vm1631 = vcmp.eq.s32.totalorder %v1596, %v1603
        %vm1632 = vcmp.eq.s32.totalorder %v1597, %v1603
        %vm1633 = vcmp.eq.s32.totalorder %v1598, %v1603
        %vm1634 = vcmp.eq.s32.totalorder %v1599, %v1603
        %vm1635 = vcmp.eq.s32.totalorder %v1600, %v1603
        %v1636 = vsel %vm1604, 1, 0
        %v1637 = vsel %vm1605, 1, 0
        %v1638 = vsel %vm1606, 1, 0
        %v1639 = vsel %vm1607, 1, 0
        %v1640 = vsel %vm1608, 1, 0
        %v1641 = vsel %vm1609, 1, 0
        %v1642 = vsel %vm1610, 1, 0
        %v1643 = vsel %vm1611, 1, 0
        %v1644 = vsel %vm1612, 1, 0
        %v1645 = vsel %vm1613, 1, 0
        %v1646 = vsel %vm1614, 1, 0
        %v1647 = vsel %vm1615, 1, 0
        %v1648 = vsel %vm1616, 1, 0
        %v1649 = vsel %vm1617, 1, 0
        %v1650 = vsel %vm1618, 1, 0
        %v1651 = vsel %vm1619, 1, 0
        %v1652 = vsel %vm1620, 1, 0
        %v1653 = vsel %vm1621, 1, 0
        %v1654 = vsel %vm1622, 1, 0
        %v1655 = vsel %vm1623, 1, 0
        %v1656 = vsel %vm1624, 1, 0
        %v1657 = vsel %vm1625, 1, 0
        %v1658 = vsel %vm1626, 1, 0
        %v1659 = vsel %vm1627, 1, 0
        %v1660 = vsel %vm1628, 1, 0
        %v1661 = vsel %vm1629, 1, 0
        %v1662 = vsel %vm1630, 1, 0
        %v1663 = vsel %vm1631, 1, 0
        %v1664 = vsel %vm1632, 1, 0
        %v1665 = vsel %vm1633, 1, 0
        %v1666 = vsel %vm1634, 1, 0
        %v1667 = vsel %vm1635, 1, 0
        %v1668 = vcvt.s32.f32 %v1636
        %v1669 = vcvt.s32.f32 %v1637
        %v1670 = vcvt.s32.f32 %v1638
        %v1671 = vcvt.s32.f32 %v1639
        %v1672 = vcvt.s32.f32 %v1640
        %v1673 = vcvt.s32.f32 %v1641
        %v1674 = vcvt.s32.f32 %v1642
        %v1675 = vcvt.s32.f32 %v1643
        %v1676 = vcvt.s32.f32 %v1644
        %v1677 = vcvt.s32.f32 %v1645
        %v1678 = vcvt.s32.f32 %v1646
        %v1679 = vcvt.s32.f32 %v1647
        %v1680 = vcvt.s32.f32 %v1648
        %v1681 = vcvt.s32.f32 %v1649
        %v1682 = vcvt.s32.f32 %v1650
        %v1683 = vcvt.s32.f32 %v1651
        %v1684 = vcvt.s32.f32 %v1652
        %v1685 = vcvt.s32.f32 %v1653
        %v1686 = vcvt.s32.f32 %v1654
        %v1687 = vcvt.s32.f32 %v1655
        %v1688 = vcvt.s32.f32 %v1656
        %v1689 = vcvt.s32.f32 %v1657
        %v1690 = vcvt.s32.f32 %v1658
        %v1691 = vcvt.s32.f32 %v1659
        %v1692 = vcvt.s32.f32 %v1660
        %v1693 = vcvt.s32.f32 %v1661
        %v1694 = vcvt.s32.f32 %v1662
        %v1695 = vcvt.s32.f32 %v1663
        %v1696 = vcvt.s32.f32 %v1664
        %v1697 = vcvt.s32.f32 %v1665
        %v1698 = vcvt.s32.f32 %v1666
        %v1699 = vcvt.s32.f32 %v1667
        %1700 = vmatprep.subr.mxu0 0.0
        %1701 = vmatpush1.msra.mxu0 %v1668
        %1702 = vmatprep.subr.mxu0 0.0
        %1703 = vmatpush1.msra.mxu0 %v1669
        %1704 = vmatprep.subr.mxu0 0.0
        %1705 = vmatpush1.msra.mxu0 %v1670
        %1706 = vmatprep.subr.mxu0 0.0
        %1707 = vmatpush1.msra.mxu0 %v1671
        %1708 = vmatprep.subr.mxu0 0.0
        %1709 = vmatpush1.msra.mxu0 %v1672
        %1710 = vmatprep.subr.mxu0 0.0
        %1711 = vmatpush1.msra.mxu0 %v1673
        %1712 = vmatprep.subr.mxu0 0.0
        %1713 = vmatpush1.msra.mxu0 %v1674
        %1714 = vmatprep.subr.mxu0 0.0
        %1715 = vmatpush1.msra.mxu0 %v1675
        %1716 = vmatprep.subr.mxu0 0.0
        %1717 = vmatpush1.msra.mxu0 %v1676
        %1718 = vmatprep.subr.mxu0 0.0
        %1719 = vmatpush1.msra.mxu0 %v1677
        %1720 = vmatprep.subr.mxu0 0.0
        %1721 = vmatpush1.msra.mxu0 %v1678
        %1722 = vmatprep.subr.mxu0 0.0
        %1723 = vmatpush1.msra.mxu0 %v1679
        %1724 = vmatprep.subr.mxu0 0.0
        %1725 = vmatpush1.msra.mxu0 %v1680
        %1726 = vmatprep.subr.mxu0 0.0
        %1727 = vmatpush1.msra.mxu0 %v1681
        %1728 = vmatprep.subr.mxu0 0.0
        %1729 = vmatpush1.msra.mxu0 %v1682
        %1730 = vmatprep.subr.mxu0 0.0
        %1731 = vmatpush1.msra.mxu0 %v1683
        %1732 = vmatprep.subr.mxu0 0.0
        %1733 = vmatpush1.msra.mxu0 %v1684
        %1734 = vmatprep.subr.mxu0 0.0
        %1735 = vmatpush1.msra.mxu0 %v1685
        %1736 = vmatprep.subr.mxu0 0.0
        %1737 = vmatpush1.msra.mxu0 %v1686
        %1738 = vmatprep.subr.mxu0 0.0
        %1739 = vmatpush1.msra.mxu0 %v1687
        %1740 = vmatprep.subr.mxu0 0.0
        %1741 = vmatpush1.msra.mxu0 %v1688
        %1742 = vmatprep.subr.mxu0 0.0
        %1743 = vmatpush1.msra.mxu0 %v1689
        %1744 = vmatprep.subr.mxu0 0.0
        %1745 = vmatpush1.msra.mxu0 %v1690
        %1746 = vmatprep.subr.mxu0 0.0
        %1747 = vmatpush1.msra.mxu0 %v1691
        %1748 = vmatprep.subr.mxu0 0.0
        %1749 = vmatpush1.msra.mxu0 %v1692
        %1750 = vmatprep.subr.mxu0 0.0
        %1751 = vmatpush1.msra.mxu0 %v1693
        %1752 = vmatprep.subr.mxu0 0.0
        %1753 = vmatpush1.msra.mxu0 %v1694
        %1754 = vmatprep.subr.mxu0 0.0
        %1755 = vmatpush1.msra.mxu0 %v1695
        %1756 = vmatprep.subr.mxu0 0.0
        %1757 = vmatpush1.msra.mxu0 %v1696
        %1758 = vmatprep.subr.mxu0 0.0
        %1759 = vmatpush1.msra.mxu0 %v1697
        %1760 = vmatprep.subr.mxu0 0.0
        %1761 = vmatpush1.msra.mxu0 %v1698
        %1762 = vmatprep.subr.mxu0 0.0
        %1763 = vmatpush1.msra.mxu0 %v1699
        %1764 = vmatprep.mubr.f32.mxu0 %v1561
        %1765 = vmatmul.mubr.f32.gmra.mrb[0].mxu0 %v1560
        %v1766 = vpop.f32.mrb[0].mxu0
        %v1767 = vadd.f32 0.0, %v1766
        %v1768 = vpop.f32.mrb[0].mxu0
        %1769 = vmatprep.mubr.f32.mxu0 %v1563
        %1770 = vmatmul.mubr.f32.gmra.mrb[0].mxu0 %v1562
        %v1771 = vpop.f32.mrb[0].mxu0
        %v1772 = vadd.f32 0.0, %v1771
        %v1773 = vpop.f32.mrb[0].mxu0
        %1774 = vdwg.mxu0
        %v1775 = vadd.s32 %v1603, 1
        %vm1776 = vcmp.eq.s32.totalorder %v1569, %v1775
        %vm1777 = vcmp.eq.s32.totalorder %v1570, %v1775
        %vm1778 = vcmp.eq.s32.totalorder %v1571, %v1775
        %vm1779 = vcmp.eq.s32.totalorder %v1572, %v1775
        %vm1780 = vcmp.eq.s32.totalorder %v1573, %v1775
        %vm1781 = vcmp.eq.s32.totalorder %v1574, %v1775
        %vm1782 = vcmp.eq.s32.totalorder %v1575, %v1775
        %vm1783 = vcmp.eq.s32.totalorder %v1576, %v1775
        %vm1784 = vcmp.eq.s32.totalorder %v1577, %v1775
        %vm1785 = vcmp.eq.s32.totalorder %v1578, %v1775
        %vm1786 = vcmp.eq.s32.totalorder %v1579, %v1775
        %vm1787 = vcmp.eq.s32.totalorder %v1580, %v1775
        %vm1788 = vcmp.eq.s32.totalorder %v1581, %v1775
        %vm1789 = vcmp.eq.s32.totalorder %v1582, %v1775
        %vm1790 = vcmp.eq.s32.totalorder %v1583, %v1775
        %vm1791 = vcmp.eq.s32.totalorder %v1584, %v1775
        %vm1792 = vcmp.eq.s32.totalorder %v1585, %v1775
        %vm1793 = vcmp.eq.s32.totalorder %v1586, %v1775
        %vm1794 = vcmp.eq.s32.totalorder %v1587, %v1775
        %vm1795 = vcmp.eq.s32.totalorder %v1588, %v1775
        %vm1796 = vcmp.eq.s32.totalorder %v1589, %v1775
        %vm1797 = vcmp.eq.s32.totalorder %v1590, %v1775
        %vm1798 = vcmp.eq.s32.totalorder %v1591, %v1775
        %vm1799 = vcmp.eq.s32.totalorder %v1592, %v1775
        %vm1800 = vcmp.eq.s32.totalorder %v1593, %v1775
        %vm1801 = vcmp.eq.s32.totalorder %v1594, %v1775
        %vm1802 = vcmp.eq.s32.totalorder %v1595, %v1775
        %vm1803 = vcmp.eq.s32.totalorder %v1596, %v1775
        %vm1804 = vcmp.eq.s32.totalorder %v1597, %v1775
        %vm1805 = vcmp.eq.s32.totalorder %v1598, %v1775
        %vm1806 = vcmp.eq.s32.totalorder %v1599, %v1775
        %vm1807 = vcmp.eq.s32.totalorder %v1600, %v1775
        %v1808 = vsel %vm1776, 1, 0
        %v1809 = vsel %vm1777, 1, 0
        %v1810 = vsel %vm1778, 1, 0
        %v1811 = vsel %vm1779, 1, 0
        %v1812 = vsel %vm1780, 1, 0
        %v1813 = vsel %vm1781, 1, 0
        %v1814 = vsel %vm1782, 1, 0
        %v1815 = vsel %vm1783, 1, 0
        %v1816 = vsel %vm1784, 1, 0
        %v1817 = vsel %vm1785, 1, 0
        %v1818 = vsel %vm1786, 1, 0
        %v1819 = vsel %vm1787, 1, 0
        %v1820 = vsel %vm1788, 1, 0
        %v1821 = vsel %vm1789, 1, 0
        %v1822 = vsel %vm1790, 1, 0
        %v1823 = vsel %vm1791, 1, 0
        %v1824 = vsel %vm1792, 1, 0
        %v1825 = vsel %vm1793, 1, 0
        %v1826 = vsel %vm1794, 1, 0
        %v1827 = vsel %vm1795, 1, 0
        %v1828 = vsel %vm1796, 1, 0
        %v1829 = vsel %vm1797, 1, 0
        %v1830 = vsel %vm1798, 1, 0
        %v1831 = vsel %vm1799, 1, 0
        %v1832 = vsel %vm1800, 1, 0
        %v1833 = vsel %vm1801, 1, 0
        %v1834 = vsel %vm1802, 1, 0
        %v1835 = vsel %vm1803, 1, 0
        %v1836 = vsel %vm1804, 1, 0
        %v1837 = vsel %vm1805, 1, 0
        %v1838 = vsel %vm1806, 1, 0
        %v1839 = vsel %vm1807, 1, 0
        %v1840 = vcvt.s32.f32 %v1808
        %v1841 = vcvt.s32.f32 %v1809
        %v1842 = vcvt.s32.f32 %v1810
        %v1843 = vcvt.s32.f32 %v1811
        %v1844 = vcvt.s32.f32 %v1812
        %v1845 = vcvt.s32.f32 %v1813
        %v1846 = vcvt.s32.f32 %v1814
        %v1847 = vcvt.s32.f32 %v1815
        %v1848 = vcvt.s32.f32 %v1816
        %v1849 = vcvt.s32.f32 %v1817
        %v1850 = vcvt.s32.f32 %v1818
        %v1851 = vcvt.s32.f32 %v1819
        %v1852 = vcvt.s32.f32 %v1820
        %v1853 = vcvt.s32.f32 %v1821
        %v1854 = vcvt.s32.f32 %v1822
        %v1855 = vcvt.s32.f32 %v1823
        %v1856 = vcvt.s32.f32 %v1824
        %v1857 = vcvt.s32.f32 %v1825
        %v1858 = vcvt.s32.f32 %v1826
        %v1859 = vcvt.s32.f32 %v1827
        %v1860 = vcvt.s32.f32 %v1828
        %v1861 = vcvt.s32.f32 %v1829
        %v1862 = vcvt.s32.f32 %v1830
        %v1863 = vcvt.s32.f32 %v1831
        %v1864 = vcvt.s32.f32 %v1832
        %v1865 = vcvt.s32.f32 %v1833
        %v1866 = vcvt.s32.f32 %v1834
        %v1867 = vcvt.s32.f32 %v1835
        %v1868 = vcvt.s32.f32 %v1836
        %v1869 = vcvt.s32.f32 %v1837
        %v1870 = vcvt.s32.f32 %v1838
        %v1871 = vcvt.s32.f32 %v1839
        %1872 = vmatprep.subr.mxu0 0.0
        %1873 = vmatpush1.msra.mxu0 %v1840
        %1874 = vmatprep.subr.mxu0 0.0
        %1875 = vmatpush1.msra.mxu0 %v1841
        %1876 = vmatprep.subr.mxu0 0.0
        %1877 = vmatpush1.msra.mxu0 %v1842
        %1878 = vmatprep.subr.mxu0 0.0
        %1879 = vmatpush1.msra.mxu0 %v1843
        %1880 = vmatprep.subr.mxu0 0.0
        %1881 = vmatpush1.msra.mxu0 %v1844
        %1882 = vmatprep.subr.mxu0 0.0
        %1883 = vmatpush1.msra.mxu0 %v1845
        %1884 = vmatprep.subr.mxu0 0.0
        %1885 = vmatpush1.msra.mxu0 %v1846
        %1886 = vmatprep.subr.mxu0 0.0
        %1887 = vmatpush1.msra.mxu0 %v1847
        %1888 = vmatprep.subr.mxu0 0.0
        %1889 = vmatpush1.msra.mxu0 %v1848
        %1890 = vmatprep.subr.mxu0 0.0
        %1891 = vmatpush1.msra.mxu0 %v1849
        %1892 = vmatprep.subr.mxu0 0.0
        %1893 = vmatpush1.msra.mxu0 %v1850
        %1894 = vmatprep.subr.mxu0 0.0
        %1895 = vmatpush1.msra.mxu0 %v1851
        %1896 = vmatprep.subr.mxu0 0.0
        %1897 = vmatpush1.msra.mxu0 %v1852
        %1898 = vmatprep.subr.mxu0 0.0
        %1899 = vmatpush1.msra.mxu0 %v1853
        %1900 = vmatprep.subr.mxu0 0.0
        %1901 = vmatpush1.msra.mxu0 %v1854
        %1902 = vmatprep.subr.mxu0 0.0
        %1903 = vmatpush1.msra.mxu0 %v1855
        %1904 = vmatprep.subr.mxu0 0.0
        %1905 = vmatpush1.msra.mxu0 %v1856
        %1906 = vmatprep.subr.mxu0 0.0
        %1907 = vmatpush1.msra.mxu0 %v1857
        %1908 = vmatprep.subr.mxu0 0.0
        %1909 = vmatpush1.msra.mxu0 %v1858
        %1910 = vmatprep.subr.mxu0 0.0
        %1911 = vmatpush1.msra.mxu0 %v1859
        %1912 = vmatprep.subr.mxu0 0.0
        %1913 = vmatpush1.msra.mxu0 %v1860
        %1914 = vmatprep.subr.mxu0 0.0
        %1915 = vmatpush1.msra.mxu0 %v1861
        %1916 = vmatprep.subr.mxu0 0.0
        %1917 = vmatpush1.msra.mxu0 %v1862
        %1918 = vmatprep.subr.mxu0 0.0
        %1919 = vmatpush1.msra.mxu0 %v1863
        %1920 = vmatprep.subr.mxu0 0.0
        %1921 = vmatpush1.msra.mxu0 %v1864
        %1922 = vmatprep.subr.mxu0 0.0
        %1923 = vmatpush1.msra.mxu0 %v1865
        %1924 = vmatprep.subr.mxu0 0.0
        %1925 = vmatpush1.msra.mxu0 %v1866
        %1926 = vmatprep.subr.mxu0 0.0
        %1927 = vmatpush1.msra.mxu0 %v1867
        %1928 = vmatprep.subr.mxu0 0.0
        %1929 = vmatpush1.msra.mxu0 %v1868
        %1930 = vmatprep.subr.mxu0 0.0
        %1931 = vmatpush1.msra.mxu0 %v1869
        %1932 = vmatprep.subr.mxu0 0.0
        %1933 = vmatpush1.msra.mxu0 %v1870
        %1934 = vmatprep.subr.mxu0 0.0
        %1935 = vmatpush1.msra.mxu0 %v1871
        %1936 = vmatprep.mubr.f32.mxu0 %v1561
        %1937 = vmatmul.mubr.f32.gmra.mrb[0].mxu0 %v1560
        %v1938 = vpop.f32.mrb[0].mxu0
        %v1939 = vadd.f32 0.0, %v1938
        %v1940 = vpop.f32.mrb[0].mxu0
        %1941 = vmatprep.mubr.f32.mxu0 %v1563
        %1942 = vmatmul.mubr.f32.gmra.mrb[0].mxu0 %v1562
        %v1943 = vpop.f32.mrb[0].mxu0
        %v1944 = vadd.f32 0.0, %v1943
        %v1945 = vpop.f32.mrb[0].mxu0
        %1946 = vdwg.mxu0
        %v1947 = vmax.f32 %v1767, %v1939
        %v1948 = vmax.f32 %v1772, %v1944
        %v1949 = vadd.s32 %v1603, 2
        %vm1950 = vcmp.eq.s32.totalorder %v1569, %v1949
        %vm1951 = vcmp.eq.s32.totalorder %v1570, %v1949
        %vm1952 = vcmp.eq.s32.totalorder %v1571, %v1949
        %vm1953 = vcmp.eq.s32.totalorder %v1572, %v1949
        %vm1954 = vcmp.eq.s32.totalorder %v1573, %v1949
        %vm1955 = vcmp.eq.s32.totalorder %v1574, %v1949
        %vm1956 = vcmp.eq.s32.totalorder %v1575, %v1949
        %vm1957 = vcmp.eq.s32.totalorder %v1576, %v1949
        %vm1958 = vcmp.eq.s32.totalorder %v1577, %v1949
        %vm1959 = vcmp.eq.s32.totalorder %v1578, %v1949
        %vm1960 = vcmp.eq.s32.totalorder %v1579, %v1949
        %vm1961 = vcmp.eq.s32.totalorder %v1580, %v1949
        %vm1962 = vcmp.eq.s32.totalorder %v1581, %v1949
        %vm1963 = vcmp.eq.s32.totalorder %v1582, %v1949
        %vm1964 = vcmp.eq.s32.totalorder %v1583, %v1949
        %vm1965 = vcmp.eq.s32.totalorder %v1584, %v1949
        %vm1966 = vcmp.eq.s32.totalorder %v1585, %v1949
        %vm1967 = vcmp.eq.s32.totalorder %v1586, %v1949
        %vm1968 = vcmp.eq.s32.totalorder %v1587, %v1949
        %vm1969 = vcmp.eq.s32.totalorder %v1588, %v1949
        %vm1970 = vcmp.eq.s32.totalorder %v1589, %v1949
        %vm1971 = vcmp.eq.s32.totalorder %v1590, %v1949
        %vm1972 = vcmp.eq.s32.totalorder %v1591, %v1949
        %vm1973 = vcmp.eq.s32.totalorder %v1592, %v1949
        %vm1974 = vcmp.eq.s32.totalorder %v1593, %v1949
        %vm1975 = vcmp.eq.s32.totalorder %v1594, %v1949
        %vm1976 = vcmp.eq.s32.totalorder %v1595, %v1949
        %vm1977 = vcmp.eq.s32.totalorder %v1596, %v1949
        %vm1978 = vcmp.eq.s32.totalorder %v1597, %v1949
        %vm1979 = vcmp.eq.s32.totalorder %v1598, %v1949
        %vm1980 = vcmp.eq.s32.totalorder %v1599, %v1949
        %vm1981 = vcmp.eq.s32.totalorder %v1600, %v1949
        %v1982 = vsel %vm1950, 1, 0
        %v1983 = vsel %vm1951, 1, 0
        %v1984 = vsel %vm1952, 1, 0
        %v1985 = vsel %vm1953, 1, 0
        %v1986 = vsel %vm1954, 1, 0
        %v1987 = vsel %vm1955, 1, 0
        %v1988 = vsel %vm1956, 1, 0
        %v1989 = vsel %vm1957, 1, 0
        %v1990 = vsel %vm1958, 1, 0
        %v1991 = vsel %vm1959, 1, 0
        %v1992 = vsel %vm1960, 1, 0
        %v1993 = vsel %vm1961, 1, 0
        %v1994 = vsel %vm1962, 1, 0
        %v1995 = vsel %vm1963, 1, 0
        %v1996 = vsel %vm1964, 1, 0
        %v1997 = vsel %vm1965, 1, 0
        %v1998 = vsel %vm1966, 1, 0
        %v1999 = vsel %vm1967, 1, 0
        %v2000 = vsel %vm1968, 1, 0
        %v2001 = vsel %vm1969, 1, 0
        %v2002 = vsel %vm1970, 1, 0
        %v2003 = vsel %vm1971, 1, 0
        %v2004 = vsel %vm1972, 1, 0
        %v2005 = vsel %vm1973, 1, 0
        %v2006 = vsel %vm1974, 1, 0
        %v2007 = vsel %vm1975, 1, 0
        %v2008 = vsel %vm1976, 1, 0
        %v2009 = vsel %vm1977, 1, 0
        %v2010 = vsel %vm1978, 1, 0
        %v2011 = vsel %vm1979, 1, 0
        %v2012 = vsel %vm1980, 1, 0
        %v2013 = vsel %vm1981, 1, 0
        %v2014 = vcvt.s32.f32 %v1982
        %v2015 = vcvt.s32.f32 %v1983
        %v2016 = vcvt.s32.f32 %v1984
        %v2017 = vcvt.s32.f32 %v1985
        %v2018 = vcvt.s32.f32 %v1986
        %v2019 = vcvt.s32.f32 %v1987
        %v2020 = vcvt.s32.f32 %v1988
        %v2021 = vcvt.s32.f32 %v1989
        %v2022 = vcvt.s32.f32 %v1990
        %v2023 = vcvt.s32.f32 %v1991
        %v2024 = vcvt.s32.f32 %v1992
        %v2025 = vcvt.s32.f32 %v1993
        %v2026 = vcvt.s32.f32 %v1994
        %v2027 = vcvt.s32.f32 %v1995
        %v2028 = vcvt.s32.f32 %v1996
        %v2029 = vcvt.s32.f32 %v1997
        %v2030 = vcvt.s32.f32 %v1998
        %v2031 = vcvt.s32.f32 %v1999
        %v2032 = vcvt.s32.f32 %v2000
        %v2033 = vcvt.s32.f32 %v2001
        %v2034 = vcvt.s32.f32 %v2002
        %v2035 = vcvt.s32.f32 %v2003
        %v2036 = vcvt.s32.f32 %v2004
        %v2037 = vcvt.s32.f32 %v2005
        %v2038 = vcvt.s32.f32 %v2006
        %v2039 = vcvt.s32.f32 %v2007
        %v2040 = vcvt.s32.f32 %v2008
        %v2041 = vcvt.s32.f32 %v2009
        %v2042 = vcvt.s32.f32 %v2010
        %v2043 = vcvt.s32.f32 %v2011
        %v2044 = vcvt.s32.f32 %v2012
        %v2045 = vcvt.s32.f32 %v2013
        %2046 = vmatprep.subr.mxu0 0.0
        %2047 = vmatpush1.msra.mxu0 %v2014
        %2048 = vmatprep.subr.mxu0 0.0
        %2049 = vmatpush1.msra.mxu0 %v2015
        %2050 = vmatprep.subr.mxu0 0.0
        %2051 = vmatpush1.msra.mxu0 %v2016
        %2052 = vmatprep.subr.mxu0 0.0
        %2053 = vmatpush1.msra.mxu0 %v2017
        %2054 = vmatprep.subr.mxu0 0.0
        %2055 = vmatpush1.msra.mxu0 %v2018
        %2056 = vmatprep.subr.mxu0 0.0
        %2057 = vmatpush1.msra.mxu0 %v2019
        %2058 = vmatprep.subr.mxu0 0.0
        %2059 = vmatpush1.msra.mxu0 %v2020
        %2060 = vmatprep.subr.mxu0 0.0
        %2061 = vmatpush1.msra.mxu0 %v2021
        %2062 = vmatprep.subr.mxu0 0.0
        %2063 = vmatpush1.msra.mxu0 %v2022
        %2064 = vmatprep.subr.mxu0 0.0
        %2065 = vmatpush1.msra.mxu0 %v2023
        %2066 = vmatprep.subr.mxu0 0.0
        %2067 = vmatpush1.msra.mxu0 %v2024
        %2068 = vmatprep.subr.mxu0 0.0
        %2069 = vmatpush1.msra.mxu0 %v2025
        %2070 = vmatprep.subr.mxu0 0.0
        %2071 = vmatpush1.msra.mxu0 %v2026
        %2072 = vmatprep.subr.mxu0 0.0
        %2073 = vmatpush1.msra.mxu0 %v2027
        %2074 = vmatprep.subr.mxu0 0.0
        %2075 = vmatpush1.msra.mxu0 %v2028
        %2076 = vmatprep.subr.mxu0 0.0
        %2077 = vmatpush1.msra.mxu0 %v2029
        %2078 = vmatprep.subr.mxu0 0.0
        %2079 = vmatpush1.msra.mxu0 %v2030
        %2080 = vmatprep.subr.mxu0 0.0
        %2081 = vmatpush1.msra.mxu0 %v2031
        %2082 = vmatprep.subr.mxu0 0.0
        %2083 = vmatpush1.msra.mxu0 %v2032
        %2084 = vmatprep.subr.mxu0 0.0
        %2085 = vmatpush1.msra.mxu0 %v2033
        %2086 = vmatprep.subr.mxu0 0.0
        %2087 = vmatpush1.msra.mxu0 %v2034
        %2088 = vmatprep.subr.mxu0 0.0
        %2089 = vmatpush1.msra.mxu0 %v2035
        %2090 = vmatprep.subr.mxu0 0.0
        %2091 = vmatpush1.msra.mxu0 %v2036
        %2092 = vmatprep.subr.mxu0 0.0
        %2093 = vmatpush1.msra.mxu0 %v2037
        %2094 = vmatprep.subr.mxu0 0.0
        %2095 = vmatpush1.msra.mxu0 %v2038
        %2096 = vmatprep.subr.mxu0 0.0
        %2097 = vmatpush1.msra.mxu0 %v2039
        %2098 = vmatprep.subr.mxu0 0.0
        %2099 = vmatpush1.msra.mxu0 %v2040
        %2100 = vmatprep.subr.mxu0 0.0
        %2101 = vmatpush1.msra.mxu0 %v2041
        %2102 = vmatprep.subr.mxu0 0.0
        %2103 = vmatpush1.msra.mxu0 %v2042
        %2104 = vmatprep.subr.mxu0 0.0
        %2105 = vmatpush1.msra.mxu0 %v2043
        %2106 = vmatprep.subr.mxu0 0.0
        %2107 = vmatpush1.msra.mxu0 %v2044
        %2108 = vmatprep.subr.mxu0 0.0
        %2109 = vmatpush1.msra.mxu0 %v2045
        %2110 = vmatprep.mubr.f32.mxu0 %v1561
        %2111 = vmatmul.mubr.f32.gmra.mrb[0].mxu0 %v1560
        %v2112 = vpop.f32.mrb[0].mxu0
        %v2113 = vadd.f32 0.0, %v2112
        %v2114 = vpop.f32.mrb[0].mxu0
        %2115 = vmatprep.mubr.f32.mxu0 %v1563
        %2116 = vmatmul.mubr.f32.gmra.mrb[0].mxu0 %v1562
        %v2117 = vpop.f32.mrb[0].mxu0
        %v2118 = vadd.f32 0.0, %v2117
        %v2119 = vpop.f32.mrb[0].mxu0
        %2120 = vdwg.mxu0
        %v2121 = vmax.f32 %v1947, %v2113
        %v2122 = vmax.f32 %v1948, %v2118
        %v2123 = vadd.s32 %v1603, 3
        %vm2124 = vcmp.eq.s32.totalorder %v1569, %v2123
        %vm2125 = vcmp.eq.s32.totalorder %v1570, %v2123
        %vm2126 = vcmp.eq.s32.totalorder %v1571, %v2123
        %vm2127 = vcmp.eq.s32.totalorder %v1572, %v2123
        %vm2128 = vcmp.eq.s32.totalorder %v1573, %v2123
        %vm2129 = vcmp.eq.s32.totalorder %v1574, %v2123
        %vm2130 = vcmp.eq.s32.totalorder %v1575, %v2123
        %vm2131 = vcmp.eq.s32.totalorder %v1576, %v2123
        %vm2132 = vcmp.eq.s32.totalorder %v1577, %v2123
        %vm2133 = vcmp.eq.s32.totalorder %v1578, %v2123
        %vm2134 = vcmp.eq.s32.totalorder %v1579, %v2123
        %vm2135 = vcmp.eq.s32.totalorder %v1580, %v2123
        %vm2136 = vcmp.eq.s32.totalorder %v1581, %v2123
        %vm2137 = vcmp.eq.s32.totalorder %v1582, %v2123
        %vm2138 = vcmp.eq.s32.totalorder %v1583, %v2123
        %vm2139 = vcmp.eq.s32.totalorder %v1584, %v2123
        %vm2140 = vcmp.eq.s32.totalorder %v1585, %v2123
        %vm2141 = vcmp.eq.s32.totalorder %v1586, %v2123
        %vm2142 = vcmp.eq.s32.totalorder %v1587, %v2123
        %vm2143 = vcmp.eq.s32.totalorder %v1588, %v2123
        %vm2144 = vcmp.eq.s32.totalorder %v1589, %v2123
        %vm2145 = vcmp.eq.s32.totalorder %v1590, %v2123
        %vm2146 = vcmp.eq.s32.totalorder %v1591, %v2123
        %vm2147 = vcmp.eq.s32.totalorder %v1592, %v2123
        %vm2148 = vcmp.eq.s32.totalorder %v1593, %v2123
        %vm2149 = vcmp.eq.s32.totalorder %v1594, %v2123
        %vm2150 = vcmp.eq.s32.totalorder %v1595, %v2123
        %vm2151 = vcmp.eq.s32.totalorder %v1596, %v2123
        %vm2152 = vcmp.eq.s32.totalorder %v1597, %v2123
        %vm2153 = vcmp.eq.s32.totalorder %v1598, %v2123
        %vm2154 = vcmp.eq.s32.totalorder %v1599, %v2123
        %vm2155 = vcmp.eq.s32.totalorder %v1600, %v2123
        %v2156 = vsel %vm2124, 1, 0
        %v2157 = vsel %vm2125, 1, 0
        %v2158 = vsel %vm2126, 1, 0
        %v2159 = vsel %vm2127, 1, 0
        %v2160 = vsel %vm2128, 1, 0
        %v2161 = vsel %vm2129, 1, 0
        %v2162 = vsel %vm2130, 1, 0
        %v2163 = vsel %vm2131, 1, 0
        %v2164 = vsel %vm2132, 1, 0
        %v2165 = vsel %vm2133, 1, 0
        %v2166 = vsel %vm2134, 1, 0
        %v2167 = vsel %vm2135, 1, 0
        %v2168 = vsel %vm2136, 1, 0
        %v2169 = vsel %vm2137, 1, 0
        %v2170 = vsel %vm2138, 1, 0
        %v2171 = vsel %vm2139, 1, 0
        %v2172 = vsel %vm2140, 1, 0
        %v2173 = vsel %vm2141, 1, 0
        %v2174 = vsel %vm2142, 1, 0
        %v2175 = vsel %vm2143, 1, 0
        %v2176 = vsel %vm2144, 1, 0
        %v2177 = vsel %vm2145, 1, 0
        %v2178 = vsel %vm2146, 1, 0
        %v2179 = vsel %vm2147, 1, 0
        %v2180 = vsel %vm2148, 1, 0
        %v2181 = vsel %vm2149, 1, 0
        %v2182 = vsel %vm2150, 1, 0
        %v2183 = vsel %vm2151, 1, 0
        %v2184 = vsel %vm2152, 1, 0
        %v2185 = vsel %vm2153, 1, 0
        %v2186 = vsel %vm2154, 1, 0
        %v2187 = vsel %vm2155, 1, 0
        %v2188 = vcvt.s32.f32 %v2156
        %v2189 = vcvt.s32.f32 %v2157
        %v2190 = vcvt.s32.f32 %v2158
        %v2191 = vcvt.s32.f32 %v2159
        %v2192 = vcvt.s32.f32 %v2160
        %v2193 = vcvt.s32.f32 %v2161
        %v2194 = vcvt.s32.f32 %v2162
        %v2195 = vcvt.s32.f32 %v2163
        %v2196 = vcvt.s32.f32 %v2164
        %v2197 = vcvt.s32.f32 %v2165
        %v2198 = vcvt.s32.f32 %v2166
        %v2199 = vcvt.s32.f32 %v2167
        %v2200 = vcvt.s32.f32 %v2168
        %v2201 = vcvt.s32.f32 %v2169
        %v2202 = vcvt.s32.f32 %v2170
        %v2203 = vcvt.s32.f32 %v2171
        %v2204 = vcvt.s32.f32 %v2172
        %v2205 = vcvt.s32.f32 %v2173
        %v2206 = vcvt.s32.f32 %v2174
        %v2207 = vcvt.s32.f32 %v2175
        %v2208 = vcvt.s32.f32 %v2176
        %v2209 = vcvt.s32.f32 %v2177
        %v2210 = vcvt.s32.f32 %v2178
        %v2211 = vcvt.s32.f32 %v2179
        %v2212 = vcvt.s32.f32 %v2180
        %v2213 = vcvt.s32.f32 %v2181
        %v2214 = vcvt.s32.f32 %v2182
        %v2215 = vcvt.s32.f32 %v2183
        %v2216 = vcvt.s32.f32 %v2184
        %v2217 = vcvt.s32.f32 %v2185
        %v2218 = vcvt.s32.f32 %v2186
        %v2219 = vcvt.s32.f32 %v2187
        %2220 = vmatprep.subr.mxu0 0.0
        %2221 = vmatpush1.msra.mxu0 %v2188
        %2222 = vmatprep.subr.mxu0 0.0
        %2223 = vmatpush1.msra.mxu0 %v2189
        %2224 = vmatprep.subr.mxu0 0.0
        %2225 = vmatpush1.msra.mxu0 %v2190
        %2226 = vmatprep.subr.mxu0 0.0
        %2227 = vmatpush1.msra.mxu0 %v2191
        %2228 = vmatprep.subr.mxu0 0.0
        %2229 = vmatpush1.msra.mxu0 %v2192
        %2230 = vmatprep.subr.mxu0 0.0
        %2231 = vmatpush1.msra.mxu0 %v2193
        %2232 = vmatprep.subr.mxu0 0.0
        %2233 = vmatpush1.msra.mxu0 %v2194
        %2234 = vmatprep.subr.mxu0 0.0
        %2235 = vmatpush1.msra.mxu0 %v2195
        %2236 = vmatprep.subr.mxu0 0.0
        %2237 = vmatpush1.msra.mxu0 %v2196
        %2238 = vmatprep.subr.mxu0 0.0
        %2239 = vmatpush1.msra.mxu0 %v2197
        %2240 = vmatprep.subr.mxu0 0.0
        %2241 = vmatpush1.msra.mxu0 %v2198
        %2242 = vmatprep.subr.mxu0 0.0
        %2243 = vmatpush1.msra.mxu0 %v2199
        %2244 = vmatprep.subr.mxu0 0.0
        %2245 = vmatpush1.msra.mxu0 %v2200
        %2246 = vmatprep.subr.mxu0 0.0
        %2247 = vmatpush1.msra.mxu0 %v2201
        %2248 = vmatprep.subr.mxu0 0.0
        %2249 = vmatpush1.msra.mxu0 %v2202
        %2250 = vmatprep.subr.mxu0 0.0
        %2251 = vmatpush1.msra.mxu0 %v2203
        %2252 = vmatprep.subr.mxu0 0.0
        %2253 = vmatpush1.msra.mxu0 %v2204
        %2254 = vmatprep.subr.mxu0 0.0
        %2255 = vmatpush1.msra.mxu0 %v2205
        %2256 = vmatprep.subr.mxu0 0.0
        %2257 = vmatpush1.msra.mxu0 %v2206
        %2258 = vmatprep.subr.mxu0 0.0
        %2259 = vmatpush1.msra.mxu0 %v2207
        %2260 = vmatprep.subr.mxu0 0.0
        %2261 = vmatpush1.msra.mxu0 %v2208
        %2262 = vmatprep.subr.mxu0 0.0
        %2263 = vmatpush1.msra.mxu0 %v2209
        %2264 = vmatprep.subr.mxu0 0.0
        %2265 = vmatpush1.msra.mxu0 %v2210
        %2266 = vmatprep.subr.mxu0 0.0
        %2267 = vmatpush1.msra.mxu0 %v2211
        %2268 = vmatprep.subr.mxu0 0.0
        %2269 = vmatpush1.msra.mxu0 %v2212
        %2270 = vmatprep.subr.mxu0 0.0
        %2271 = vmatpush1.msra.mxu0 %v2213
        %2272 = vmatprep.subr.mxu0 0.0
        %2273 = vmatpush1.msra.mxu0 %v2214
        %2274 = vmatprep.subr.mxu0 0.0
        %2275 = vmatpush1.msra.mxu0 %v2215
        %2276 = vmatprep.subr.mxu0 0.0
        %2277 = vmatpush1.msra.mxu0 %v2216
        %2278 = vmatprep.subr.mxu0 0.0
        %2279 = vmatpush1.msra.mxu0 %v2217
        %2280 = vmatprep.subr.mxu0 0.0
        %2281 = vmatpush1.msra.mxu0 %v2218
        %2282 = vmatprep.subr.mxu0 0.0
        %2283 = vmatpush1.msra.mxu0 %v2219
        %2284 = vmatprep.mubr.f32.mxu0 %v1561
        %2285 = vmatmul.mubr.f32.gmra.mrb[0].mxu0 %v1560
        %v2286 = vpop.f32.mrb[0].mxu0
        %v2287 = vadd.f32 0.0, %v2286
        %v2288 = vpop.f32.mrb[0].mxu0
        %2289 = vmatprep.mubr.f32.mxu0 %v1563
        %2290 = vmatmul.mubr.f32.gmra.mrb[0].mxu0 %v1562
        %v2291 = vpop.f32.mrb[0].mxu0
        %v2292 = vadd.f32 0.0, %v2291
        %v2293 = vpop.f32.mrb[0].mxu0
        %2294 = vdwg.mxu0
        %v2295 = vmax.f32 %v2121, %v2287
        %v2296 = vmax.f32 %v2122, %v2292
        %vm2297 = vcmask 23552
        %2298 = vst.msk [vmem:[#allocation2] sm:$0xff] %vm2297, 0.0
        %2299 = vst.msk [vmem:[#allocation2 + $0x18] sm:$0xff] %vm2297, 0.0
        %vm2300 = vcmask 572952
        %2301 = vst.msk [vmem:[#allocation2] sm:$0xff] %vm2300, 0.0
        %2302 = vst.msk [vmem:[#allocation2 + $0x18] sm:$0xff] %vm2300, 0.0
        %2305 = vrot.lane.b32.xlu0 %v2295, 3
        %v2306 = vpop.permute.xlu0 %2305
        %2307 = vrot.lane.b32.xlu0 %v2296, 3
        %v2308 = vpop.permute.xlu0 %2307
        %vm2311 = vcmask 547864
        %2312 = vst.msk [vmem:[#allocation2] sm:$0xff] %vm2311, %v2306
        %2313 = vst.msk [vmem:[#allocation2 + $0x18] sm:$0xff] %vm2311, %v2308
        %v2314 = vld [vmem:[#allocation2] sm:$0xff]
        %v2315 = vld [vmem:[#allocation2 + $0x18] sm:$0xff]
        %vm2316 = vcmask 523264
        %2317 = vst.msk [vmem:[#allocation3] sm:$0xff] %vm2316, %v2314
        %2318 = vst.msk [vmem:[#allocation3 + $0x10] sm:$0xff] %vm2316, %v2315
        %v2319 = vld [vmem:[#allocation2] sm:$0xff]
        %v2320 = vld [vmem:[#allocation2 + $0x18] sm:$0xff]
        %2323 = vrot.lane.b32.xlu0 %v2319, 127
        %v2324 = vpop.permute.xlu0 %2323
        %2325 = vrot.lane.b32.xlu0 %v2320, 127
        %v2326 = vpop.permute.xlu0 %2325
        %2329 = vst.msk [vmem:[#allocation3 + $0x20] sm:$0xff] %vm2316, %v2324
        %2330 = vst.msk [vmem:[#allocation3 + $0x30] sm:$0xff] %vm2316, %v2326
        %v2331 = vld [vmem:[#allocation2] sm:$0xff]
        %v2332 = vld [vmem:[#allocation2 + $0x18] sm:$0xff]
        %2335 = vrot.lane.b32.xlu0 %v2331, 126
        %v2336 = vpop.permute.xlu0 %2335
        %2337 = vrot.lane.b32.xlu0 %v2332, 126
        %v2338 = vpop.permute.xlu0 %2337
        %2341 = vst.msk [vmem:[#allocation3 + $0x40] sm:$0xff] %vm2316, %v2336
        %2342 = vst.msk [vmem:[#allocation3 + $0x50] sm:$0xff] %vm2316, %v2338
        %v2343 = vld [vmem:[#allocation2] sm:$0xff]
        %v2344 = vld [vmem:[#allocation2 + $0x18] sm:$0xff]
        %2347 = vrot.lane.b32.xlu0 %v2343, 125
        %v2348 = vpop.permute.xlu0 %2347
        %2349 = vrot.lane.b32.xlu0 %v2344, 125
        %v2350 = vpop.permute.xlu0 %2349
        %2353 = vst.msk [vmem:[#allocation3 + $0x60] sm:$0xff] %vm2316, %v2348
        %2354 = vst.msk [vmem:[#allocation3 + $0x70] sm:$0xff] %vm2316, %v2350
        %v2355 = vld [vmem:[#allocation2] sm:$0xff]
        %v2356 = vld [vmem:[#allocation2 + $0x18] sm:$0xff]
        %2359 = vrot.lane.b32.xlu0 %v2355, 124
        %v2360 = vpop.permute.xlu0 %2359
        %2361 = vrot.lane.b32.xlu0 %v2356, 124
        %v2362 = vpop.permute.xlu0 %2361
        %2365 = vst.msk [vmem:[#allocation3 + $0x80] sm:$0xff] %vm2316, %v2360
        %2366 = vst.msk [vmem:[#allocation3 + $0x90] sm:$0xff] %vm2316, %v2362
        %v2367 = vld [vmem:[#allocation2] sm:$0xff]
        %v2368 = vld [vmem:[#allocation2 + $0x18] sm:$0xff]
        %2371 = vrot.lane.b32.xlu0 %v2367, 123
        %v2372 = vpop.permute.xlu0 %2371
        %2373 = vrot.lane.b32.xlu0 %v2368, 123
        %v2374 = vpop.permute.xlu0 %2373
        %2377 = vst.msk [vmem:[#allocation3 + $0xa0] sm:$0xff] %vm2316, %v2372
        %2378 = vst.msk [vmem:[#allocation3 + $0xb0] sm:$0xff] %vm2316, %v2374
        %v2379 = vld [vmem:[#allocation2] sm:$0xff]
        %v2380 = vld [vmem:[#allocation2 + $0x18] sm:$0xff]
        %2383 = vrot.lane.b32.xlu0 %v2379, 122
        %v2384 = vpop.permute.xlu0 %2383
        %2385 = vrot.lane.b32.xlu0 %v2380, 122
        %v2386 = vpop.permute.xlu0 %2385
        %2389 = vst.msk [vmem:[#allocation3 + $0xc0] sm:$0xff] %vm2316, %v2384
        %2390 = vst.msk [vmem:[#allocation3 + $0xd0] sm:$0xff] %vm2316, %v2386
        %v2391 = vld [vmem:[#allocation3] sm:$0xff]
        %v2392 = vld [vmem:[#allocation3 + $0x10] sm:$0xff]
        %v2393 = vld [vmem:[#allocation3 + $0x20] sm:$0xff]
        %v2394 = vld [vmem:[#allocation3 + $0x30] sm:$0xff]
        %v2395 = vld [vmem:[#allocation3 + $0x40] sm:$0xff]
        %v2396 = vld [vmem:[#allocation3 + $0x50] sm:$0xff]
        %v2397 = vld [vmem:[#allocation3 + $0x60] sm:$0xff]
        %v2398 = vld [vmem:[#allocation3 + $0x70] sm:$0xff]
        %v2399 = vld [vmem:[#allocation3 + $0x80] sm:$0xff]
        %v2400 = vld [vmem:[#allocation3 + $0x90] sm:$0xff]
        %v2401 = vld [vmem:[#allocation3 + $0xa0] sm:$0xff]
        %v2402 = vld [vmem:[#allocation3 + $0xb0] sm:$0xff]
        %v2403 = vld [vmem:[#allocation3 + $0xc0] sm:$0xff]
        %v2404 = vld [vmem:[#allocation3 + $0xd0] sm:$0xff]
        %v2405 = vld [vmem:[%s5] sm:$0xf]
        %v2406 = vld [vmem:[%s5 + $0x4] sm:$0xf]
        %v2407 = vld [vmem:[%s5 + $0x8] sm:$0xf]
        %v2408 = vld [vmem:[%s5 + $0xc] sm:$0xf]
        %v2409 = vpack.c.bf16 %v2392, %v2391
        %v2410 = vpack.c.bf16 %v2394, %v2393
        %v2411 = vpack.c.bf16 %v2396, %v2395
        %v2412 = vpack.c.bf16 %v2398, %v2397
        %v2413 = vpack.c.bf16 %v2400, %v2399
        %v2414 = vpack.c.bf16 %v2402, %v2401
        %v2415 = vpack.c.bf16 %v2404, %v2403
        %v2416 = vld [vmem:[%s6] sm:$0xff]
        %v2417 = vld [vmem:[%s6 + $0x8] sm:$0xff]
        %v2418 = vld [vmem:[%s6 + $0x10] sm:$0xff]
        %v2419 = vld [vmem:[%s6 + $0x18] sm:$0xff]
        %2421 = vset.pattern.permute.xlu0 0
        %2422 = vperm.xlu0 %2421, %v2416
        %v2423 = vpop.permute.xlu0 %2422
        %2426 = vset.pattern.permute.xlu0 0
        %2427 = vperm.xlu0 %2426, %v2417
        %v2428 = vpop.permute.xlu0 %2427
        %2431 = vset.pattern.permute.xlu0 0
        %2432 = vperm.xlu0 %2431, %v2418
        %v2433 = vpop.permute.xlu0 %2432
        %2436 = vset.pattern.permute.xlu0 0
        %2437 = vperm.xlu0 %2436, %v2419
        %v2438 = vpop.permute.xlu0 %2437
        %v2444 = vunpack.c.l.b16 %v2405
        %v2445 = vunpack.c.l.b16 %v2406
        %v2446 = vunpack.c.l.b16 %v2407
        %v2447 = vunpack.c.l.b16 %v2408
        %v2448 = vpack.c.b16 %v2445, %v2444
        %v2449 = vpack.c.b16 %v2447, %v2446
        %vm2450 = vcmask 916480
        %v2452 = vsel %vm2450, %v2448, 0
        %v2455 = vsel %vm2450, %v2449, 0
        %2457 = vmatprep.subr.bf16.mxu0 0
        %2458 = vmatpush1.bf16.msra.mxu0 %v2409
        %2459 = vmatprep.subr.bf16.mxu0 0
        %2460 = vmatpush1.bf16.msra.mxu0 %v2410
        %2461 = vmatprep.subr.bf16.mxu0 0
        %2462 = vmatpush1.bf16.msra.mxu0 %v2411
        %2463 = vmatprep.subr.bf16.mxu0 0
        %2464 = vmatpush1.bf16.msra.mxu0 %v2412
        %2465 = vmatprep.subr.bf16.mxu0 0
        %2466 = vmatpush1.bf16.msra.mxu0 %v2413
        %2467 = vmatprep.subr.bf16.mxu0 0
        %2468 = vmatpush1.bf16.msra.mxu0 %v2414
        %2469 = vmatprep.subr.bf16.mxu0 0
        %2470 = vmatpush1.bf16.msra.mxu0 %v2415
        %2471 = vmatprep.subr.bf16.mxu0 0
        %2472 = vmatpush1.bf16.msra.mxu0 0
        %2473 = vmatprep.subr.bf16.mxu0 0
        %2474 = vmatpush1.bf16.msra.mxu0 0
        %2475 = vmatprep.subr.bf16.mxu0 0
        %2476 = vmatpush1.bf16.msra.mxu0 0
        %2477 = vmatprep.subr.bf16.mxu0 0
        %2478 = vmatpush1.bf16.msra.mxu0 0
        %2479 = vmatprep.subr.bf16.mxu0 0
        %2480 = vmatpush1.bf16.msra.mxu0 0
        %2481 = vmatprep.subr.bf16.mxu0 0
        %2482 = vmatpush1.bf16.msra.mxu0 0
        %2483 = vmatprep.subr.bf16.mxu0 0
        %2484 = vmatpush1.bf16.msra.mxu0 0
        %2485 = vmatprep.subr.bf16.mxu0 0
        %2486 = vmatpush1.bf16.msra.mxu0 0
        %2487 = vmatprep.subr.bf16.mxu0 0
        %2488 = vmatpush1.bf16.msra.mxu0 0
        %2489 = vmatprep.mubr.bf16.mxu0 0
        %2490 = vmatmul.mubr.bf16.gmra.mrb[0].mxu0 %v2452
        %v2491 = vpop.f32.mrb[0].mxu0
        %v2492 = vadd.f32 %v2423, %v2491
        %v2493 = vpop.f32.mrb[0].mxu0
        %v2494 = vpop.f32.mrb[0].mxu0
        %v2495 = vadd.f32 %v2428, %v2494
        %v2496 = vpop.f32.mrb[0].mxu0
        %2497 = vmatprep.mubr.bf16.mxu0 0
        %2498 = vmatmul.mubr.bf16.gmra.mrb[0].mxu0 %v2455
        %v2499 = vpop.f32.mrb[0].mxu0
        %v2500 = vadd.f32 %v2433, %v2499
        %v2501 = vpop.f32.mrb[0].mxu0
        %v2502 = vpop.f32.mrb[0].mxu0
        %v2503 = vadd.f32 %v2438, %v2502
        %v2504 = vpop.f32.mrb[0].mxu0
        %2505 = vdwg.mxu0
        %v2506 = vmax.f32 %v2492, 0.0
        %v2507 = vmax.f32 %v2495, 0.0
        %v2508 = vmax.f32 %v2500, 0.0
        %v2509 = vmax.f32 %v2503, 0.0
        %2510 = vst.msk [vmem:[#allocation2] sm:$0xff] %vm2297, 0.0
        %2511 = vst.msk [vmem:[#allocation2 + $0x18] sm:$0xff] %vm2297, 0.0
        %2512 = vst.msk [vmem:[#allocation2 + $0x30] sm:$0xff] %vm2297, 0.0
        %2513 = vst.msk [vmem:[#allocation2 + $0x48] sm:$0xff] %vm2297, 0.0
        %2514 = vst.msk [vmem:[#allocation2] sm:$0xff] %vm2300, 0.0
        %2515 = vst.msk [vmem:[#allocation2 + $0x18] sm:$0xff] %vm2300, 0.0
        %2516 = vst.msk [vmem:[#allocation2 + $0x30] sm:$0xff] %vm2300, 0.0
        %2517 = vst.msk [vmem:[#allocation2 + $0x48] sm:$0xff] %vm2300, 0.0
        %2522 = vrot.lane.b32.xlu0 %v2506, 3
        %v2523 = vpop.permute.xlu0 %2522
        %2524 = vrot.lane.b32.xlu0 %v2507, 3
        %v2525 = vpop.permute.xlu0 %2524
        %2526 = vrot.lane.b32.xlu0 %v2508, 3
        %v2527 = vpop.permute.xlu0 %2526
        %2528 = vrot.lane.b32.xlu0 %v2509, 3
        %v2529 = vpop.permute.xlu0 %2528
        %2534 = vst.msk [vmem:[#allocation2] sm:$0xff] %vm2311, %v2523
        %2535 = vst.msk [vmem:[#allocation2 + $0x18] sm:$0xff] %vm2311, %v2525
        %2536 = vst.msk [vmem:[#allocation2 + $0x30] sm:$0xff] %vm2311, %v2527
        %2537 = vst.msk [vmem:[#allocation2 + $0x48] sm:$0xff] %vm2311, %v2529
        %v2538 = vld [vmem:[#allocation2] sm:$0xff]
        %v2539 = vld [vmem:[#allocation2 + $0x18] sm:$0xff]
        %v2540 = vld [vmem:[#allocation2 + $0x30] sm:$0xff]
        %v2541 = vld [vmem:[#allocation2 + $0x48] sm:$0xff]
        %2542 = vst.msk [vmem:[#allocation3] sm:$0xff] %vm2316, %v2538
        %2543 = vst.msk [vmem:[#allocation3 + $0x10] sm:$0xff] %vm2316, %v2539
        %2544 = vst.msk [vmem:[#allocation3 + $0x20] sm:$0xff] %vm2316, %v2540
        %2545 = vst.msk [vmem:[#allocation3 + $0x30] sm:$0xff] %vm2316, %v2541
        %v2546 = vld [vmem:[#allocation2] sm:$0xff]
        %v2547 = vld [vmem:[#allocation2 + $0x18] sm:$0xff]
        %v2548 = vld [vmem:[#allocation2 + $0x30] sm:$0xff]
        %v2549 = vld [vmem:[#allocation2 + $0x48] sm:$0xff]
        %2554 = vrot.lane.b32.xlu0 %v2546, 127
        %v2555 = vpop.permute.xlu0 %2554
        %2556 = vrot.lane.b32.xlu0 %v2547, 127
        %v2557 = vpop.permute.xlu0 %2556
        %2558 = vrot.lane.b32.xlu0 %v2548, 127
        %v2559 = vpop.permute.xlu0 %2558
        %2560 = vrot.lane.b32.xlu0 %v2549, 127
        %v2561 = vpop.permute.xlu0 %2560
        %2566 = vst.msk [vmem:[#allocation3 + $0x40] sm:$0xff] %vm2316, %v2555
        %2567 = vst.msk [vmem:[#allocation3 + $0x50] sm:$0xff] %vm2316, %v2557
        %2568 = vst.msk [vmem:[#allocation3 + $0x60] sm:$0xff] %vm2316, %v2559
        %2569 = vst.msk [vmem:[#allocation3 + $0x70] sm:$0xff] %vm2316, %v2561
        %v2570 = vld [vmem:[#allocation2] sm:$0xff]
        %v2571 = vld [vmem:[#allocation2 + $0x18] sm:$0xff]
        %v2572 = vld [vmem:[#allocation2 + $0x30] sm:$0xff]
        %v2573 = vld [vmem:[#allocation2 + $0x48] sm:$0xff]
        %2578 = vrot.lane.b32.xlu0 %v2570, 126
        %v2579 = vpop.permute.xlu0 %2578
        %2580 = vrot.lane.b32.xlu0 %v2571, 126
        %v2581 = vpop.permute.xlu0 %2580
        %2582 = vrot.lane.b32.xlu0 %v2572, 126
        %v2583 = vpop.permute.xlu0 %2582
        %2584 = vrot.lane.b32.xlu0 %v2573, 126
        %v2585 = vpop.permute.xlu0 %2584
        %2590 = vst.msk [vmem:[#allocation3 + $0x80] sm:$0xff] %vm2316, %v2579
        %2591 = vst.msk [vmem:[#allocation3 + $0x90] sm:$0xff] %vm2316, %v2581
        %2592 = vst.msk [vmem:[#allocation3 + $0xa0] sm:$0xff] %vm2316, %v2583
        %2593 = vst.msk [vmem:[#allocation3 + $0xb0] sm:$0xff] %vm2316, %v2585
        %v2594 = vld [vmem:[#allocation2] sm:$0xff]
        %v2595 = vld [vmem:[#allocation2 + $0x18] sm:$0xff]
        %v2596 = vld [vmem:[#allocation2 + $0x30] sm:$0xff]
        %v2597 = vld [vmem:[#allocation2 + $0x48] sm:$0xff]
        %2602 = vrot.lane.b32.xlu0 %v2594, 125
        %v2603 = vpop.permute.xlu0 %2602
        %2604 = vrot.lane.b32.xlu0 %v2595, 125
        %v2605 = vpop.permute.xlu0 %2604
        %2606 = vrot.lane.b32.xlu0 %v2596, 125
        %v2607 = vpop.permute.xlu0 %2606
        %2608 = vrot.lane.b32.xlu0 %v2597, 125
        %v2609 = vpop.permute.xlu0 %2608
        %2614 = vst.msk [vmem:[#allocation3 + $0xc0] sm:$0xff] %vm2316, %v2603
        %2615 = vst.msk [vmem:[#allocation3 + $0xd0] sm:$0xff] %vm2316, %v2605
        %2616 = vst.msk [vmem:[#allocation3 + $0xe0] sm:$0xff] %vm2316, %v2607
        %2617 = vst.msk [vmem:[#allocation3 + $0xf0] sm:$0xff] %vm2316, %v2609
        %v2618 = vld [vmem:[#allocation2] sm:$0xff]
        %v2619 = vld [vmem:[#allocation2 + $0x18] sm:$0xff]
        %v2620 = vld [vmem:[#allocation2 + $0x30] sm:$0xff]
        %v2621 = vld [vmem:[#allocation2 + $0x48] sm:$0xff]
        %2626 = vrot.lane.b32.xlu0 %v2618, 124
        %v2627 = vpop.permute.xlu0 %2626
        %2628 = vrot.lane.b32.xlu0 %v2619, 124
        %v2629 = vpop.permute.xlu0 %2628
        %2630 = vrot.lane.b32.xlu0 %v2620, 124
        %v2631 = vpop.permute.xlu0 %2630
        %2632 = vrot.lane.b32.xlu0 %v2621, 124
        %v2633 = vpop.permute.xlu0 %2632
        %2638 = vst.msk [vmem:[#allocation3 + $0x100] sm:$0xff] %vm2316, %v2627
        %2639 = vst.msk [vmem:[#allocation3 + $0x110] sm:$0xff] %vm2316, %v2629
        %2640 = vst.msk [vmem:[#allocation3 + $0x120] sm:$0xff] %vm2316, %v2631
        %2641 = vst.msk [vmem:[#allocation3 + $0x130] sm:$0xff] %vm2316, %v2633
        %v2642 = vld [vmem:[#allocation2] sm:$0xff]
        %v2643 = vld [vmem:[#allocation2 + $0x18] sm:$0xff]
        %v2644 = vld [vmem:[#allocation2 + $0x30] sm:$0xff]
        %v2645 = vld [vmem:[#allocation2 + $0x48] sm:$0xff]
        %2650 = vrot.lane.b32.xlu0 %v2642, 123
        %v2651 = vpop.permute.xlu0 %2650
        %2652 = vrot.lane.b32.xlu0 %v2643, 123
        %v2653 = vpop.permute.xlu0 %2652
        %2654 = vrot.lane.b32.xlu0 %v2644, 123
        %v2655 = vpop.permute.xlu0 %2654
        %2656 = vrot.lane.b32.xlu0 %v2645, 123
        %v2657 = vpop.permute.xlu0 %2656
        %2662 = vst.msk [vmem:[#allocation3 + $0x140] sm:$0xff] %vm2316, %v2651
        %2663 = vst.msk [vmem:[#allocation3 + $0x150] sm:$0xff] %vm2316, %v2653
        %2664 = vst.msk [vmem:[#allocation3 + $0x160] sm:$0xff] %vm2316, %v2655
        %2665 = vst.msk [vmem:[#allocation3 + $0x170] sm:$0xff] %vm2316, %v2657
        %v2666 = vld [vmem:[#allocation2] sm:$0xff]
        %v2667 = vld [vmem:[#allocation2 + $0x18] sm:$0xff]
        %v2668 = vld [vmem:[#allocation2 + $0x30] sm:$0xff]
        %v2669 = vld [vmem:[#allocation2 + $0x48] sm:$0xff]
        %2674 = vrot.lane.b32.xlu0 %v2666, 122
        %v2675 = vpop.permute.xlu0 %2674
        %2676 = vrot.lane.b32.xlu0 %v2667, 122
        %v2677 = vpop.permute.xlu0 %2676
        %2678 = vrot.lane.b32.xlu0 %v2668, 122
        %v2679 = vpop.permute.xlu0 %2678
        %2680 = vrot.lane.b32.xlu0 %v2669, 122
        %v2681 = vpop.permute.xlu0 %2680
        %2686 = vst.msk [vmem:[#allocation3 + $0x180] sm:$0xff] %vm2316, %v2675
        %2687 = vst.msk [vmem:[#allocation3 + $0x190] sm:$0xff] %vm2316, %v2677
        %2688 = vst.msk [vmem:[#allocation3 + $0x1a0] sm:$0xff] %vm2316, %v2679
        %2689 = vst.msk [vmem:[#allocation3 + $0x1b0] sm:$0xff] %vm2316, %v2681
        %v2690 = vld [vmem:[#allocation3] sm:$0xff]
        %v2691 = vld [vmem:[#allocation3 + $0x10] sm:$0xff]
        %v2692 = vld [vmem:[#allocation3 + $0x20] sm:$0xff]
        %v2693 = vld [vmem:[#allocation3 + $0x30] sm:$0xff]
        %v2694 = vld [vmem:[#allocation3 + $0x40] sm:$0xff]
        %v2695 = vld [vmem:[#allocation3 + $0x50] sm:$0xff]
        %v2696 = vld [vmem:[#allocation3 + $0x60] sm:$0xff]
        %v2697 = vld [vmem:[#allocation3 + $0x70] sm:$0xff]
        %v2698 = vld [vmem:[#allocation3 + $0x80] sm:$0xff]
        %v2699 = vld [vmem:[#allocation3 + $0x90] sm:$0xff]
        %v2700 = vld [vmem:[#allocation3 + $0xa0] sm:$0xff]
        %v2701 = vld [vmem:[#allocation3 + $0xb0] sm:$0xff]
        %v2702 = vld [vmem:[#allocation3 + $0xc0] sm:$0xff]
        %v2703 = vld [vmem:[#allocation3 + $0xd0] sm:$0xff]
        %v2704 = vld [vmem:[#allocation3 + $0xe0] sm:$0xff]
        %v2705 = vld [vmem:[#allocation3 + $0xf0] sm:$0xff]
        %v2706 = vld [vmem:[#allocation3 + $0x100] sm:$0xff]
        %v2707 = vld [vmem:[#allocation3 + $0x110] sm:$0xff]
        %v2708 = vld [vmem:[#allocation3 + $0x120] sm:$0xff]
        %v2709 = vld [vmem:[#allocation3 + $0x130] sm:$0xff]
        %v2710 = vld [vmem:[#allocation3 + $0x140] sm:$0xff]
        %v2711 = vld [vmem:[#allocation3 + $0x150] sm:$0xff]
        %v2712 = vld [vmem:[#allocation3 + $0x160] sm:$0xff]
        %v2713 = vld [vmem:[#allocation3 + $0x170] sm:$0xff]
        %v2714 = vld [vmem:[#allocation3 + $0x180] sm:$0xff]
        %v2715 = vld [vmem:[#allocation3 + $0x190] sm:$0xff]
        %v2716 = vld [vmem:[#allocation3 + $0x1a0] sm:$0xff]
        %v2717 = vld [vmem:[#allocation3 + $0x1b0] sm:$0xff]
        %v2718 = vld [vmem:[%s7] sm:$0xff]
        %v2719 = vld [vmem:[%s7 + $0x8] sm:$0xff]
        %v2720 = vld [vmem:[%s7 + $0x10] sm:$0xff]
        %v2721 = vld [vmem:[%s7 + $0x18] sm:$0xff]
        %v2722 = vpack.c.bf16 %v2691, %v2690
        %v2723 = vpack.c.bf16 %v2693, %v2692
        %v2724 = vpack.c.bf16 %v2695, %v2694
        %v2725 = vpack.c.bf16 %v2697, %v2696
        %v2726 = vpack.c.bf16 %v2699, %v2698
        %v2727 = vpack.c.bf16 %v2701, %v2700
        %v2728 = vpack.c.bf16 %v2703, %v2702
        %v2729 = vpack.c.bf16 %v2705, %v2704
        %v2730 = vpack.c.bf16 %v2707, %v2706
        %v2731 = vpack.c.bf16 %v2709, %v2708
        %v2732 = vpack.c.bf16 %v2711, %v2710
        %v2733 = vpack.c.bf16 %v2713, %v2712
        %v2734 = vpack.c.bf16 %v2715, %v2714
        %v2735 = vpack.c.bf16 %v2717, %v2716
        %v2736 = vld [vmem:[%s8] sm:$0xff]
        %v2737 = vld [vmem:[%s8 + $0x8] sm:$0xff]
        %v2738 = vld [vmem:[%s8 + $0x10] sm:$0xff]
        %v2739 = vld [vmem:[%s8 + $0x18] sm:$0xff]
        %2741 = vset.pattern.permute.xlu0 0
        %2742 = vperm.xlu0 %2741, %v2736
        %v2743 = vpop.permute.xlu0 %2742
        %2746 = vset.pattern.permute.xlu0 0
        %2747 = vperm.xlu0 %2746, %v2737
        %v2748 = vpop.permute.xlu0 %2747
        %2751 = vset.pattern.permute.xlu0 0
        %2752 = vperm.xlu0 %2751, %v2738
        %v2753 = vpop.permute.xlu0 %2752
        %2756 = vset.pattern.permute.xlu0 0
        %2757 = vperm.xlu0 %2756, %v2739
        %v2758 = vpop.permute.xlu0 %2757
        %v2764 = vunpack.c.l.b16 %v2718
        %v2765 = vunpack.c.h.b16 %v2718
        %v2766 = vunpack.c.l.b16 %v2719
        %v2767 = vunpack.c.h.b16 %v2719
        %v2768 = vunpack.c.l.b16 %v2720
        %v2769 = vunpack.c.h.b16 %v2720
        %v2770 = vunpack.c.l.b16 %v2721
        %v2771 = vunpack.c.h.b16 %v2721
        %v2772 = vpack.c.b16 %v2766, %v2764
        %v2773 = vpack.c.b16 %v2767, %v2765
        %v2774 = vpack.c.b16 %v2770, %v2768
        %v2775 = vpack.c.b16 %v2771, %v2769
        %vm2778 = vcmask 785408
        %v2780 = vsel %vm2778, %v2773, 0
        %v2783 = vsel %vm2778, %v2775, 0
        %2785 = vmatprep.subr.bf16.mxu0 0
        %2786 = vmatpush1.bf16.msra.mxu0 %v2722
        %2787 = vmatprep.subr.bf16.mxu0 0
        %2788 = vmatpush1.bf16.msra.mxu0 %v2723
        %2789 = vmatprep.subr.bf16.mxu0 0
        %2790 = vmatpush1.bf16.msra.mxu0 %v2724
        %2791 = vmatprep.subr.bf16.mxu0 0
        %2792 = vmatpush1.bf16.msra.mxu0 %v2725
        %2793 = vmatprep.subr.bf16.mxu0 0
        %2794 = vmatpush1.bf16.msra.mxu0 %v2726
        %2795 = vmatprep.subr.bf16.mxu0 0
        %2796 = vmatpush1.bf16.msra.mxu0 %v2727
        %2797 = vmatprep.subr.bf16.mxu0 0
        %2798 = vmatpush1.bf16.msra.mxu0 %v2728
        %2799 = vmatprep.subr.bf16.mxu0 0
        %2800 = vmatpush1.bf16.msra.mxu0 %v2729
        %2801 = vmatprep.subr.bf16.mxu0 0
        %2802 = vmatpush1.bf16.msra.mxu0 %v2730
        %2803 = vmatprep.subr.bf16.mxu0 0
        %2804 = vmatpush1.bf16.msra.mxu0 %v2731
        %2805 = vmatprep.subr.bf16.mxu0 0
        %2806 = vmatpush1.bf16.msra.mxu0 %v2732
        %2807 = vmatprep.subr.bf16.mxu0 0
        %2808 = vmatpush1.bf16.msra.mxu0 %v2733
        %2809 = vmatprep.subr.bf16.mxu0 0
        %2810 = vmatpush1.bf16.msra.mxu0 %v2734
        %2811 = vmatprep.subr.bf16.mxu0 0
        %2812 = vmatpush1.bf16.msra.mxu0 %v2735
        %2813 = vmatprep.subr.bf16.mxu0 0
        %2814 = vmatpush1.bf16.msra.mxu0 0
        %2815 = vmatprep.subr.bf16.mxu0 0
        %2816 = vmatpush1.bf16.msra.mxu0 0
        %2817 = vmatprep.mubr.bf16.mxu0 %v2780
        %2818 = vmatmul.mubr.bf16.gmra.mrb[0].mxu0 %v2772
        %v2819 = vpop.f32.mrb[0].mxu0
        %v2820 = vadd.f32 %v2743, %v2819
        %v2821 = vpop.f32.mrb[0].mxu0
        %v2822 = vpop.f32.mrb[0].mxu0
        %v2823 = vadd.f32 %v2748, %v2822
        %v2824 = vpop.f32.mrb[0].mxu0
        %2825 = vmatprep.mubr.bf16.mxu0 %v2783
        %2826 = vmatmul.mubr.bf16.gmra.mrb[0].mxu0 %v2774
        %v2827 = vpop.f32.mrb[0].mxu0
        %v2828 = vadd.f32 %v2753, %v2827
        %v2829 = vpop.f32.mrb[0].mxu0
        %v2830 = vpop.f32.mrb[0].mxu0
        %v2831 = vadd.f32 %v2758, %v2830
        %v2832 = vpop.f32.mrb[0].mxu0
        %2833 = vdwg.mxu0
        %v2834 = vmax.f32 %v2820, 0.0
        %v2835 = vmax.f32 %v2823, 0.0
        %v2836 = vmax.f32 %v2828, 0.0
        %v2837 = vmax.f32 %v2831, 0.0
        %2838 = vst.msk [vmem:[%s631] sm:$0xff] %vm2316, %v2834
        %2839 = vst.msk [vmem:[%s631 + $0x8] sm:$0xff] %vm2316, %v2835
        %2840 = vst.msk [vmem:[%s631 + $0x10] sm:$0xff] %vm2316, %v2836
        %2841 = vst.msk [vmem:[%s631 + $0x18] sm:$0xff] %vm2316, %v2837
        %v2843 = vsel %vm2316, %v2834, 0
        %v2846 = vsel %vm2316, %v2835, 0
        %v2849 = vsel %vm2316, %v2836, 0
        %v2852 = vsel %vm2316, %v2837, 0
        %2854 = vmatprep.subr.mxu0 0.0
        %2855 = vmatpush1.msra.mxu0 %v1668
        %2856 = vmatprep.subr.mxu0 0.0
        %2857 = vmatpush1.msra.mxu0 %v1669
        %2858 = vmatprep.subr.mxu0 0.0
        %2859 = vmatpush1.msra.mxu0 %v1670
        %2860 = vmatprep.subr.mxu0 0.0
        %2861 = vmatpush1.msra.mxu0 %v1671
        %2862 = vmatprep.subr.mxu0 0.0
        %2863 = vmatpush1.msra.mxu0 %v1672
        %2864 = vmatprep.subr.mxu0 0.0
        %2865 = vmatpush1.msra.mxu0 %v1673
        %2866 = vmatprep.subr.mxu0 0.0
        %2867 = vmatpush1.msra.mxu0 %v1674
        %2868 = vmatprep.subr.mxu0 0.0
        %2869 = vmatpush1.msra.mxu0 %v1675
        %2870 = vmatprep.subr.mxu0 0.0
        %2871 = vmatpush1.msra.mxu0 0.0
        %2872 = vmatprep.subr.mxu0 0.0
        %2873 = vmatpush1.msra.mxu0 0.0
        %2874 = vmatprep.subr.mxu0 0.0
        %2875 = vmatpush1.msra.mxu0 0.0
        %2876 = vmatprep.subr.mxu0 0.0
        %2877 = vmatpush1.msra.mxu0 0.0
        %2878 = vmatprep.subr.mxu0 0.0
        %2879 = vmatpush1.msra.mxu0 0.0
        %2880 = vmatprep.subr.mxu0 0.0
        %2881 = vmatpush1.msra.mxu0 0.0
        %2882 = vmatprep.subr.mxu0 0.0
        %2883 = vmatpush1.msra.mxu0 0.0
        %2884 = vmatprep.subr.mxu0 0.0
        %2885 = vmatpush1.msra.mxu0 0.0
        %2886 = vmatprep.subr.mxu0 0.0
        %2887 = vmatpush1.msra.mxu0 0.0
        %2888 = vmatprep.subr.mxu0 0.0
        %2889 = vmatpush1.msra.mxu0 0.0
        %2890 = vmatprep.subr.mxu0 0.0
        %2891 = vmatpush1.msra.mxu0 0.0
        %2892 = vmatprep.subr.mxu0 0.0
        %2893 = vmatpush1.msra.mxu0 0.0
        %2894 = vmatprep.subr.mxu0 0.0
        %2895 = vmatpush1.msra.mxu0 0.0
        %2896 = vmatprep.subr.mxu0 0.0
        %2897 = vmatpush1.msra.mxu0 0.0
        %2898 = vmatprep.subr.mxu0 0.0
        %2899 = vmatpush1.msra.mxu0 0.0
        %2900 = vmatprep.subr.mxu0 0.0
        %2901 = vmatpush1.msra.mxu0 0.0
        %2902 = vmatprep.subr.mxu0 0.0
        %2903 = vmatpush1.msra.mxu0 0.0
        %2904 = vmatprep.subr.mxu0 0.0
        %2905 = vmatpush1.msra.mxu0 0.0
        %2906 = vmatprep.subr.mxu0 0.0
        %2907 = vmatpush1.msra.mxu0 0.0
        %2908 = vmatprep.subr.mxu0 0.0
        %2909 = vmatpush1.msra.mxu0 0.0
        %2910 = vmatprep.subr.mxu0 0.0
        %2911 = vmatpush1.msra.mxu0 0.0
        %2912 = vmatprep.subr.mxu0 0.0
        %2913 = vmatpush1.msra.mxu0 0.0
        %2914 = vmatprep.subr.mxu0 0.0
        %2915 = vmatpush1.msra.mxu0 0.0
        %2916 = vmatprep.subr.mxu0 0.0
        %2917 = vmatpush1.msra.mxu0 0.0
        %2918 = vmatprep.mubr.f32.mxu0 0.0
        %2919 = vmatmul.mubr.f32.gmra.mrb[0].mxu0 %v2843
        %v2920 = vpop.f32.mrb[0].mxu0
        %v2921 = vadd.f32 0.0, %v2920
        %v2922 = vpop.f32.mrb[0].mxu0
        %2923 = vmatprep.mubr.f32.mxu0 0.0
        %2924 = vmatmul.mubr.f32.gmra.mrb[0].mxu0 %v2846
        %v2925 = vpop.f32.mrb[0].mxu0
        %v2926 = vadd.f32 0.0, %v2925
        %v2927 = vpop.f32.mrb[0].mxu0
        %2928 = vmatprep.mubr.f32.mxu0 0.0
        %2929 = vmatmul.mubr.f32.gmra.mrb[0].mxu0 %v2849
        %v2930 = vpop.f32.mrb[0].mxu0
        %v2931 = vadd.f32 0.0, %v2930
        %v2932 = vpop.f32.mrb[0].mxu0
        %2933 = vmatprep.mubr.f32.mxu0 0.0
        %2934 = vmatmul.mubr.f32.gmra.mrb[0].mxu0 %v2852
        %v2935 = vpop.f32.mrb[0].mxu0
        %v2936 = vadd.f32 0.0, %v2935
        %v2937 = vpop.f32.mrb[0].mxu0
        %2938 = vdwg.mxu0
        %2939 = vmatprep.subr.mxu0 0.0
        %2940 = vmatpush1.msra.mxu0 %v1840
        %2941 = vmatprep.subr.mxu0 0.0
        %2942 = vmatpush1.msra.mxu0 %v1841
        %2943 = vmatprep.subr.mxu0 0.0
        %2944 = vmatpush1.msra.mxu0 %v1842
        %2945 = vmatprep.subr.mxu0 0.0
        %2946 = vmatpush1.msra.mxu0 %v1843
        %2947 = vmatprep.subr.mxu0 0.0
        %2948 = vmatpush1.msra.mxu0 %v1844
        %2949 = vmatprep.subr.mxu0 0.0
        %2950 = vmatpush1.msra.mxu0 %v1845
        %2951 = vmatprep.subr.mxu0 0.0
        %2952 = vmatpush1.msra.mxu0 %v1846
        %2953 = vmatprep.subr.mxu0 0.0
        %2954 = vmatpush1.msra.mxu0 %v1847
        %2955 = vmatprep.subr.mxu0 0.0
        %2956 = vmatpush1.msra.mxu0 0.0
        %2957 = vmatprep.subr.mxu0 0.0
        %2958 = vmatpush1.msra.mxu0 0.0
        %2959 = vmatprep.subr.mxu0 0.0
        %2960 = vmatpush1.msra.mxu0 0.0
        %2961 = vmatprep.subr.mxu0 0.0
        %2962 = vmatpush1.msra.mxu0 0.0
        %2963 = vmatprep.subr.mxu0 0.0
        %2964 = vmatpush1.msra.mxu0 0.0
        %2965 = vmatprep.subr.mxu0 0.0
        %2966 = vmatpush1.msra.mxu0 0.0
        %2967 = vmatprep.subr.mxu0 0.0
        %2968 = vmatpush1.msra.mxu0 0.0
        %2969 = vmatprep.subr.mxu0 0.0
        %2970 = vmatpush1.msra.mxu0 0.0
        %2971 = vmatprep.subr.mxu0 0.0
        %2972 = vmatpush1.msra.mxu0 0.0
        %2973 = vmatprep.subr.mxu0 0.0
        %2974 = vmatpush1.msra.mxu0 0.0
        %2975 = vmatprep.subr.mxu0 0.0
        %2976 = vmatpush1.msra.mxu0 0.0
        %2977 = vmatprep.subr.mxu0 0.0
        %2978 = vmatpush1.msra.mxu0 0.0
        %2979 = vmatprep.subr.mxu0 0.0
        %2980 = vmatpush1.msra.mxu0 0.0
        %2981 = vmatprep.subr.mxu0 0.0
        %2982 = vmatpush1.msra.mxu0 0.0
        %2983 = vmatprep.subr.mxu0 0.0
        %2984 = vmatpush1.msra.mxu0 0.0
        %2985 = vmatprep.subr.mxu0 0.0
        %2986 = vmatpush1.msra.mxu0 0.0
        %2987 = vmatprep.subr.mxu0 0.0
        %2988 = vmatpush1.msra.mxu0 0.0
        %2989 = vmatprep.subr.mxu0 0.0
        %2990 = vmatpush1.msra.mxu0 0.0
        %2991 = vmatprep.subr.mxu0 0.0
        %2992 = vmatpush1.msra.mxu0 0.0
        %2993 = vmatprep.subr.mxu0 0.0
        %2994 = vmatpush1.msra.mxu0 0.0
        %2995 = vmatprep.subr.mxu0 0.0
        %2996 = vmatpush1.msra.mxu0 0.0
        %2997 = vmatprep.subr.mxu0 0.0
        %2998 = vmatpush1.msra.mxu0 0.0
        %2999 = vmatprep.subr.mxu0 0.0
        %3000 = vmatpush1.msra.mxu0 0.0
        %3001 = vmatprep.subr.mxu0 0.0
        %3002 = vmatpush1.msra.mxu0 0.0
        %3003 = vmatprep.mubr.f32.mxu0 0.0
        %3004 = vmatmul.mubr.f32.gmra.mrb[0].mxu0 %v2843
        %v3005 = vpop.f32.mrb[0].mxu0
        %v3006 = vadd.f32 0.0, %v3005
        %v3007 = vpop.f32.mrb[0].mxu0
        %3008 = vmatprep.mubr.f32.mxu0 0.0
        %3009 = vmatmul.mubr.f32.gmra.mrb[0].mxu0 %v2846
        %v3010 = vpop.f32.mrb[0].mxu0
        %v3011 = vadd.f32 0.0, %v3010
        %v3012 = vpop.f32.mrb[0].mxu0
        %3013 = vmatprep.mubr.f32.mxu0 0.0
        %3014 = vmatmul.mubr.f32.gmra.mrb[0].mxu0 %v2849
        %v3015 = vpop.f32.mrb[0].mxu0
        %v3016 = vadd.f32 0.0, %v3015
        %v3017 = vpop.f32.mrb[0].mxu0
        %3018 = vmatprep.mubr.f32.mxu0 0.0
        %3019 = vmatmul.mubr.f32.gmra.mrb[0].mxu0 %v2852
        %v3020 = vpop.f32.mrb[0].mxu0
        %v3021 = vadd.f32 0.0, %v3020
        %v3022 = vpop.f32.mrb[0].mxu0
        %3023 = vdwg.mxu0
        %v3024 = vmax.f32 %v2921, %v3006
        %v3025 = vmax.f32 %v2926, %v3011
        %v3026 = vmax.f32 %v2931, %v3016
        %v3027 = vmax.f32 %v2936, %v3021
        %3028 = vmatprep.subr.mxu0 0.0
        %3029 = vmatpush1.msra.mxu0 %v2014
        %3030 = vmatprep.subr.mxu0 0.0
        %3031 = vmatpush1.msra.mxu0 %v2015
        %3032 = vmatprep.subr.mxu0 0.0
        %3033 = vmatpush1.msra.mxu0 %v2016
        %3034 = vmatprep.subr.mxu0 0.0
        %3035 = vmatpush1.msra.mxu0 %v2017
        %3036 = vmatprep.subr.mxu0 0.0
        %3037 = vmatpush1.msra.mxu0 %v2018
        %3038 = vmatprep.subr.mxu0 0.0
        %3039 = vmatpush1.msra.mxu0 %v2019
        %3040 = vmatprep.subr.mxu0 0.0
        %3041 = vmatpush1.msra.mxu0 %v2020
        %3042 = vmatprep.subr.mxu0 0.0
        %3043 = vmatpush1.msra.mxu0 %v2021
        %3044 = vmatprep.subr.mxu0 0.0
        %3045 = vmatpush1.msra.mxu0 0.0
        %3046 = vmatprep.subr.mxu0 0.0
        %3047 = vmatpush1.msra.mxu0 0.0
        %3048 = vmatprep.subr.mxu0 0.0
        %3049 = vmatpush1.msra.mxu0 0.0
        %3050 = vmatprep.subr.mxu0 0.0
        %3051 = vmatpush1.msra.mxu0 0.0
        %3052 = vmatprep.subr.mxu0 0.0
        %3053 = vmatpush1.msra.mxu0 0.0
        %3054 = vmatprep.subr.mxu0 0.0
        %3055 = vmatpush1.msra.mxu0 0.0
        %3056 = vmatprep.subr.mxu0 0.0
        %3057 = vmatpush1.msra.mxu0 0.0
        %3058 = vmatprep.subr.mxu0 0.0
        %3059 = vmatpush1.msra.mxu0 0.0
        %3060 = vmatprep.subr.mxu0 0.0
        %3061 = vmatpush1.msra.mxu0 0.0
        %3062 = vmatprep.subr.mxu0 0.0
        %3063 = vmatpush1.msra.mxu0 0.0
        %3064 = vmatprep.subr.mxu0 0.0
        %3065 = vmatpush1.msra.mxu0 0.0
        %3066 = vmatprep.subr.mxu0 0.0
        %3067 = vmatpush1.msra.mxu0 0.0
        %3068 = vmatprep.subr.mxu0 0.0
        %3069 = vmatpush1.msra.mxu0 0.0
        %3070 = vmatprep.subr.mxu0 0.0
        %3071 = vmatpush1.msra.mxu0 0.0
        %3072 = vmatprep.subr.mxu0 0.0
        %3073 = vmatpush1.msra.mxu0 0.0
        %3074 = vmatprep.subr.mxu0 0.0
        %3075 = vmatpush1.msra.mxu0 0.0
        %3076 = vmatprep.subr.mxu0 0.0
        %3077 = vmatpush1.msra.mxu0 0.0
        %3078 = vmatprep.subr.mxu0 0.0
        %3079 = vmatpush1.msra.mxu0 0.0
        %3080 = vmatprep.subr.mxu0 0.0
        %3081 = vmatpush1.msra.mxu0 0.0
        %3082 = vmatprep.subr.mxu0 0.0
        %3083 = vmatpush1.msra.mxu0 0.0
        %3084 = vmatprep.subr.mxu0 0.0
        %3085 = vmatpush1.msra.mxu0 0.0
        %3086 = vmatprep.subr.mxu0 0.0
        %3087 = vmatpush1.msra.mxu0 0.0
        %3088 = vmatprep.subr.mxu0 0.0
        %3089 = vmatpush1.msra.mxu0 0.0
        %3090 = vmatprep.subr.mxu0 0.0
        %3091 = vmatpush1.msra.mxu0 0.0
        %3092 = vmatprep.mubr.f32.mxu0 0.0
        %3093 = vmatmul.mubr.f32.gmra.mrb[0].mxu0 %v2843
        %v3094 = vpop.f32.mrb[0].mxu0
        %v3095 = vadd.f32 0.0, %v3094
        %v3096 = vpop.f32.mrb[0].mxu0
        %3097 = vmatprep.mubr.f32.mxu0 0.0
        %3098 = vmatmul.mubr.f32.gmra.mrb[0].mxu0 %v2846
        %v3099 = vpop.f32.mrb[0].mxu0
        %v3100 = vadd.f32 0.0, %v3099
        %v3101 = vpop.f32.mrb[0].mxu0
        %3102 = vmatprep.mubr.f32.mxu0 0.0
        %3103 = vmatmul.mubr.f32.gmra.mrb[0].mxu0 %v2849
        %v3104 = vpop.f32.mrb[0].mxu0
        %v3105 = vadd.f32 0.0, %v3104
        %v3106 = vpop.f32.mrb[0].mxu0
        %3107 = vmatprep.mubr.f32.mxu0 0.0
        %3108 = vmatmul.mubr.f32.gmra.mrb[0].mxu0 %v2852
        %v3109 = vpop.f32.mrb[0].mxu0
        %v3110 = vadd.f32 0.0, %v3109
        %v3111 = vpop.f32.mrb[0].mxu0
        %3112 = vdwg.mxu0
        %v3113 = vmax.f32 %v3024, %v3095
        %v3114 = vmax.f32 %v3025, %v3100
        %v3115 = vmax.f32 %v3026, %v3105
        %v3116 = vmax.f32 %v3027, %v3110
        %3117 = vmatprep.subr.mxu0 0.0
        %3118 = vmatpush1.msra.mxu0 %v2188
        %3119 = vmatprep.subr.mxu0 0.0
        %3120 = vmatpush1.msra.mxu0 %v2189
        %3121 = vmatprep.subr.mxu0 0.0
        %3122 = vmatpush1.msra.mxu0 %v2190
        %3123 = vmatprep.subr.mxu0 0.0
        %3124 = vmatpush1.msra.mxu0 %v2191
        %3125 = vmatprep.subr.mxu0 0.0
        %3126 = vmatpush1.msra.mxu0 %v2192
        %3127 = vmatprep.subr.mxu0 0.0
        %3128 = vmatpush1.msra.mxu0 %v2193
        %3129 = vmatprep.subr.mxu0 0.0
        %3130 = vmatpush1.msra.mxu0 %v2194
        %3131 = vmatprep.subr.mxu0 0.0
        %3132 = vmatpush1.msra.mxu0 %v2195
        %3133 = vmatprep.subr.mxu0 0.0
        %3134 = vmatpush1.msra.mxu0 0.0
        %3135 = vmatprep.subr.mxu0 0.0
        %3136 = vmatpush1.msra.mxu0 0.0
        %3137 = vmatprep.subr.mxu0 0.0
        %3138 = vmatpush1.msra.mxu0 0.0
        %3139 = vmatprep.subr.mxu0 0.0
        %3140 = vmatpush1.msra.mxu0 0.0
        %3141 = vmatprep.subr.mxu0 0.0
        %3142 = vmatpush1.msra.mxu0 0.0
        %3143 = vmatprep.subr.mxu0 0.0
        %3144 = vmatpush1.msra.mxu0 0.0
        %3145 = vmatprep.subr.mxu0 0.0
        %3146 = vmatpush1.msra.mxu0 0.0
        %3147 = vmatprep.subr.mxu0 0.0
        %3148 = vmatpush1.msra.mxu0 0.0
        %3149 = vmatprep.subr.mxu0 0.0
        %3150 = vmatpush1.msra.mxu0 0.0
        %3151 = vmatprep.subr.mxu0 0.0
        %3152 = vmatpush1.msra.mxu0 0.0
        %3153 = vmatprep.subr.mxu0 0.0
        %3154 = vmatpush1.msra.mxu0 0.0
        %3155 = vmatprep.subr.mxu0 0.0
        %3156 = vmatpush1.msra.mxu0 0.0
        %3157 = vmatprep.subr.mxu0 0.0
        %3158 = vmatpush1.msra.mxu0 0.0
        %3159 = vmatprep.subr.mxu0 0.0
        %3160 = vmatpush1.msra.mxu0 0.0
        %3161 = vmatprep.subr.mxu0 0.0
        %3162 = vmatpush1.msra.mxu0 0.0
        %3163 = vmatprep.subr.mxu0 0.0
        %3164 = vmatpush1.msra.mxu0 0.0
        %3165 = vmatprep.subr.mxu0 0.0
        %3166 = vmatpush1.msra.mxu0 0.0
        %3167 = vmatprep.subr.mxu0 0.0
        %3168 = vmatpush1.msra.mxu0 0.0
        %3169 = vmatprep.subr.mxu0 0.0
        %3170 = vmatpush1.msra.mxu0 0.0
        %3171 = vmatprep.subr.mxu0 0.0
        %3172 = vmatpush1.msra.mxu0 0.0
        %3173 = vmatprep.subr.mxu0 0.0
        %3174 = vmatpush1.msra.mxu0 0.0
        %3175 = vmatprep.subr.mxu0 0.0
        %3176 = vmatpush1.msra.mxu0 0.0
        %3177 = vmatprep.subr.mxu0 0.0
        %3178 = vmatpush1.msra.mxu0 0.0
        %3179 = vmatprep.subr.mxu0 0.0
        %3180 = vmatpush1.msra.mxu0 0.0
        %3181 = vmatprep.mubr.f32.mxu0 0.0
        %3182 = vmatmul.mubr.f32.gmra.mrb[0].mxu0 %v2843
        %v3183 = vpop.f32.mrb[0].mxu0
        %v3184 = vadd.f32 0.0, %v3183
        %v3185 = vpop.f32.mrb[0].mxu0
        %3186 = vmatprep.mubr.f32.mxu0 0.0
        %3187 = vmatmul.mubr.f32.gmra.mrb[0].mxu0 %v2846
        %v3188 = vpop.f32.mrb[0].mxu0
        %v3189 = vadd.f32 0.0, %v3188
        %v3190 = vpop.f32.mrb[0].mxu0
        %3191 = vmatprep.mubr.f32.mxu0 0.0
        %3192 = vmatmul.mubr.f32.gmra.mrb[0].mxu0 %v2849
        %v3193 = vpop.f32.mrb[0].mxu0
        %v3194 = vadd.f32 0.0, %v3193
        %v3195 = vpop.f32.mrb[0].mxu0
        %3196 = vmatprep.mubr.f32.mxu0 0.0
        %3197 = vmatmul.mubr.f32.gmra.mrb[0].mxu0 %v2852
        %v3198 = vpop.f32.mrb[0].mxu0
        %v3199 = vadd.f32 0.0, %v3198
        %v3200 = vpop.f32.mrb[0].mxu0
        %3201 = vdwg.mxu0
        %v3202 = vmax.f32 %v3113, %v3184
        %v3203 = vmax.f32 %v3114, %v3189
        %v3204 = vmax.f32 %v3115, %v3194
        %v3205 = vmax.f32 %v3116, %v3199
        %vm3206 = vcmask 7168
        %3207 = vst.msk [vmem:[#allocation2] sm:$0xff] %vm3206, 0.0
        %3208 = vst.msk [vmem:[#allocation2 + $0x18] sm:$0xff] %vm3206, 0.0
        %3209 = vst.msk [vmem:[#allocation2 + $0x30] sm:$0xff] %vm3206, 0.0
        %3210 = vst.msk [vmem:[#allocation2 + $0x48] sm:$0xff] %vm3206, 0.0
        %vm3211 = vcmask 146568
        %3212 = vst.msk [vmem:[#allocation2] sm:$0xff] %vm3211, 0.0
        %3213 = vst.msk [vmem:[#allocation2 + $0x18] sm:$0xff] %vm3211, 0.0
        %3214 = vst.msk [vmem:[#allocation2 + $0x30] sm:$0xff] %vm3211, 0.0
        %3215 = vst.msk [vmem:[#allocation2 + $0x48] sm:$0xff] %vm3211, 0.0
        %3220 = vrot.lane.b32.xlu0 %v3202, 1
        %v3221 = vpop.permute.xlu0 %3220
        %3222 = vrot.lane.b32.xlu0 %v3203, 1
        %v3223 = vpop.permute.xlu0 %3222
        %3224 = vrot.lane.b32.xlu0 %v3204, 1
        %v3225 = vpop.permute.xlu0 %3224
        %3226 = vrot.lane.b32.xlu0 %v3205, 1
        %v3227 = vpop.permute.xlu0 %3226
        %vm3232 = vcmask 138248
        %3233 = vst.msk [vmem:[#allocation2] sm:$0xff] %vm3232, %v3221
        %3234 = vst.msk [vmem:[#allocation2 + $0x18] sm:$0xff] %vm3232, %v3223
        %3235 = vst.msk [vmem:[#allocation2 + $0x30] sm:$0xff] %vm3232, %v3225
        %3236 = vst.msk [vmem:[#allocation2 + $0x48] sm:$0xff] %vm3232, %v3227
        %v3237 = vld [vmem:[#allocation2] sm:$0xff]
        %v3238 = vld [vmem:[#allocation2 + $0x18] sm:$0xff]
        %v3239 = vld [vmem:[#allocation2 + $0x30] sm:$0xff]
        %v3240 = vld [vmem:[#allocation2 + $0x48] sm:$0xff]
        %3241 = vst.msk [vmem:[#allocation3] sm:$0xff] %vm1513, %v3237
        %3242 = vst.msk [vmem:[#allocation3 + $0x10] sm:$0xff] %vm1513, %v3238
        %3243 = vst.msk [vmem:[#allocation3 + $0x20] sm:$0xff] %vm1513, %v3239
        %3244 = vst.msk [vmem:[#allocation3 + $0x30] sm:$0xff] %vm1513, %v3240
        %v3245 = vld [vmem:[#allocation2] sm:$0xff]
        %v3246 = vld [vmem:[#allocation2 + $0x18] sm:$0xff]
        %v3247 = vld [vmem:[#allocation2 + $0x30] sm:$0xff]
        %v3248 = vld [vmem:[#allocation2 + $0x48] sm:$0xff]
        %3253 = vrot.lane.b32.xlu0 %v3245, 127
        %v3254 = vpop.permute.xlu0 %3253
        %3255 = vrot.lane.b32.xlu0 %v3246, 127
        %v3256 = vpop.permute.xlu0 %3255
        %3257 = vrot.lane.b32.xlu0 %v3247, 127
        %v3258 = vpop.permute.xlu0 %3257
        %3259 = vrot.lane.b32.xlu0 %v3248, 127
        %v3260 = vpop.permute.xlu0 %3259
        %3265 = vst.msk [vmem:[#allocation3 + $0x40] sm:$0xff] %vm1513, %v3254
        %3266 = vst.msk [vmem:[#allocation3 + $0x50] sm:$0xff] %vm1513, %v3256
        %3267 = vst.msk [vmem:[#allocation3 + $0x60] sm:$0xff] %vm1513, %v3258
        %3268 = vst.msk [vmem:[#allocation3 + $0x70] sm:$0xff] %vm1513, %v3260
        %v3269 = vld [vmem:[#allocation2] sm:$0xff]
        %v3270 = vld [vmem:[#allocation2 + $0x18] sm:$0xff]
        %v3271 = vld [vmem:[#allocation2 + $0x30] sm:$0xff]
        %v3272 = vld [vmem:[#allocation2 + $0x48] sm:$0xff]
        %3277 = vrot.lane.b32.xlu0 %v3269, 126
        %v3278 = vpop.permute.xlu0 %3277
        %3279 = vrot.lane.b32.xlu0 %v3270, 126
        %v3280 = vpop.permute.xlu0 %3279
        %3281 = vrot.lane.b32.xlu0 %v3271, 126
        %v3282 = vpop.permute.xlu0 %3281
        %3283 = vrot.lane.b32.xlu0 %v3272, 126
        %v3284 = vpop.permute.xlu0 %3283
        %3289 = vst.msk [vmem:[#allocation3 + $0x80] sm:$0xff] %vm1513, %v3278
        %3290 = vst.msk [vmem:[#allocation3 + $0x90] sm:$0xff] %vm1513, %v3280
        %3291 = vst.msk [vmem:[#allocation3 + $0xa0] sm:$0xff] %vm1513, %v3282
        %3292 = vst.msk [vmem:[#allocation3 + $0xb0] sm:$0xff] %vm1513, %v3284
        %v3293 = vld [vmem:[#allocation3] sm:$0xff]
        %v3294 = vld [vmem:[#allocation3 + $0x10] sm:$0xff]
        %v3295 = vld [vmem:[#allocation3 + $0x20] sm:$0xff]
        %v3296 = vld [vmem:[#allocation3 + $0x30] sm:$0xff]
        %v3297 = vld [vmem:[#allocation3 + $0x40] sm:$0xff]
        %v3298 = vld [vmem:[#allocation3 + $0x50] sm:$0xff]
        %v3299 = vld [vmem:[#allocation3 + $0x60] sm:$0xff]
        %v3300 = vld [vmem:[#allocation3 + $0x70] sm:$0xff]
        %v3301 = vld [vmem:[#allocation3 + $0x80] sm:$0xff]
        %v3302 = vld [vmem:[#allocation3 + $0x90] sm:$0xff]
        %v3303 = vld [vmem:[#allocation3 + $0xa0] sm:$0xff]
        %v3304 = vld [vmem:[#allocation3 + $0xb0] sm:$0xff]
        %v3305 = vld [vmem:[%s9] sm:$0xf]
        %v3306 = vld [vmem:[%s9 + $0x4] sm:$0xf]
        %v3307 = vld [vmem:[%s9 + $0x8] sm:$0xf]
        %v3308 = vld [vmem:[%s9 + $0xc] sm:$0xf]
        %v3309 = vld [vmem:[%s9 + $0x10] sm:$0xf]
        %v3310 = vld [vmem:[%s9 + $0x14] sm:$0xf]
        %v3311 = vld [vmem:[%s9 + $0x18] sm:$0xf]
        %v3312 = vld [vmem:[%s9 + $0x1c] sm:$0xf]
        %v3313 = vpack.c.bf16 %v3294, %v3293
        %v3314 = vpack.c.bf16 %v3296, %v3295
        %v3315 = vpack.c.bf16 %v3298, %v3297
        %v3316 = vpack.c.bf16 %v3300, %v3299
        %v3317 = vpack.c.bf16 %v3302, %v3301
        %v3318 = vpack.c.bf16 %v3304, %v3303
        %v3319 = vld [vmem:[%s10] sm:$0xff]
        %v3320 = vld [vmem:[%s10 + $0x8] sm:$0xff]
        %v3321 = vld [vmem:[%s10 + $0x10] sm:$0xff]
        %v3322 = vld [vmem:[%s10 + $0x18] sm:$0xff]
        %v3323 = vld [vmem:[%s10 + $0x20] sm:$0xff]
        %v3324 = vld [vmem:[%s10 + $0x28] sm:$0xff]
        %v3325 = vld [vmem:[%s10 + $0x30] sm:$0xff]
        %v3326 = vld [vmem:[%s10 + $0x38] sm:$0xff]
        %3328 = vset.pattern.permute.xlu0 0
        %3329 = vperm.xlu0 %3328, %v3319
        %v3330 = vpop.permute.xlu0 %3329
        %3333 = vset.pattern.permute.xlu0 0
        %3334 = vperm.xlu0 %3333, %v3320
        %v3335 = vpop.permute.xlu0 %3334
        %3338 = vset.pattern.permute.xlu0 0
        %3339 = vperm.xlu0 %3338, %v3321
        %v3340 = vpop.permute.xlu0 %3339
        %3343 = vset.pattern.permute.xlu0 0
        %3344 = vperm.xlu0 %3343, %v3322
        %v3345 = vpop.permute.xlu0 %3344
        %3348 = vset.pattern.permute.xlu0 0
        %3349 = vperm.xlu0 %3348, %v3323
        %v3350 = vpop.permute.xlu0 %3349
        %3353 = vset.pattern.permute.xlu0 0
        %3354 = vperm.xlu0 %3353, %v3324
        %v3355 = vpop.permute.xlu0 %3354
        %3358 = vset.pattern.permute.xlu0 0
        %3359 = vperm.xlu0 %3358, %v3325
        %v3360 = vpop.permute.xlu0 %3359
        %3363 = vset.pattern.permute.xlu0 0
        %3364 = vperm.xlu0 %3363, %v3326
        %v3365 = vpop.permute.xlu0 %3364
        %v3375 = vunpack.c.l.b16 %v3305
        %v3376 = vunpack.c.l.b16 %v3306
        %v3377 = vunpack.c.l.b16 %v3307
        %v3378 = vunpack.c.l.b16 %v3308
        %v3379 = vunpack.c.l.b16 %v3309
        %v3380 = vunpack.c.l.b16 %v3310
        %v3381 = vunpack.c.l.b16 %v3311
        %v3382 = vunpack.c.l.b16 %v3312
        %v3383 = vpack.c.b16 %v3376, %v3375
        %v3384 = vpack.c.b16 %v3378, %v3377
        %v3385 = vpack.c.b16 %v3380, %v3379
        %v3386 = vpack.c.b16 %v3382, %v3381
        %v3388 = vsel %vm2778, %v3383, 0
        %v3391 = vsel %vm2778, %v3384, 0
        %v3394 = vsel %vm2778, %v3385, 0
        %v3397 = vsel %vm2778, %v3386, 0
        %3399 = vmatprep.subr.bf16.mxu0 0
        %3400 = vmatpush1.bf16.msra.mxu0 %v3313
        %3401 = vmatprep.subr.bf16.mxu0 0
        %3402 = vmatpush1.bf16.msra.mxu0 %v3314
        %3403 = vmatprep.subr.bf16.mxu0 0
        %3404 = vmatpush1.bf16.msra.mxu0 %v3315
        %3405 = vmatprep.subr.bf16.mxu0 0
        %3406 = vmatpush1.bf16.msra.mxu0 %v3316
        %3407 = vmatprep.subr.bf16.mxu0 0
        %3408 = vmatpush1.bf16.msra.mxu0 %v3317
        %3409 = vmatprep.subr.bf16.mxu0 0
        %3410 = vmatpush1.bf16.msra.mxu0 %v3318
        %3411 = vmatprep.subr.bf16.mxu0 0
        %3412 = vmatpush1.bf16.msra.mxu0 0
        %3413 = vmatprep.subr.bf16.mxu0 0
        %3414 = vmatpush1.bf16.msra.mxu0 0
        %3415 = vmatprep.subr.bf16.mxu0 0
        %3416 = vmatpush1.bf16.msra.mxu0 0
        %3417 = vmatprep.subr.bf16.mxu0 0
        %3418 = vmatpush1.bf16.msra.mxu0 0
        %3419 = vmatprep.subr.bf16.mxu0 0
        %3420 = vmatpush1.bf16.msra.mxu0 0
        %3421 = vmatprep.subr.bf16.mxu0 0
        %3422 = vmatpush1.bf16.msra.mxu0 0
        %3423 = vmatprep.subr.bf16.mxu0 0
        %3424 = vmatpush1.bf16.msra.mxu0 0
        %3425 = vmatprep.subr.bf16.mxu0 0
        %3426 = vmatpush1.bf16.msra.mxu0 0
        %3427 = vmatprep.subr.bf16.mxu0 0
        %3428 = vmatpush1.bf16.msra.mxu0 0
        %3429 = vmatprep.subr.bf16.mxu0 0
        %3430 = vmatpush1.bf16.msra.mxu0 0
        %3431 = vmatprep.mubr.bf16.mxu0 0
        %3432 = vmatmul.mubr.bf16.gmra.mrb[0].mxu0 %v3388
        %v3433 = vpop.f32.mrb[0].mxu0
        %v3434 = vadd.f32 %v3330, %v3433
        %v3435 = vpop.f32.mrb[0].mxu0
        %v3436 = vpop.f32.mrb[0].mxu0
        %v3437 = vadd.f32 %v3335, %v3436
        %v3438 = vpop.f32.mrb[0].mxu0
        %3439 = vmatprep.mubr.bf16.mxu0 0
        %3440 = vmatmul.mubr.bf16.gmra.mrb[0].mxu0 %v3391
        %v3441 = vpop.f32.mrb[0].mxu0
        %v3442 = vadd.f32 %v3340, %v3441
        %v3443 = vpop.f32.mrb[0].mxu0
        %v3444 = vpop.f32.mrb[0].mxu0
        %v3445 = vadd.f32 %v3345, %v3444
        %v3446 = vpop.f32.mrb[0].mxu0
        %3447 = vmatprep.mubr.bf16.mxu0 0
        %3448 = vmatmul.mubr.bf16.gmra.mrb[0].mxu0 %v3394
        %v3449 = vpop.f32.mrb[0].mxu0
        %v3450 = vadd.f32 %v3350, %v3449
        %v3451 = vpop.f32.mrb[0].mxu0
        %v3452 = vpop.f32.mrb[0].mxu0
        %v3453 = vadd.f32 %v3355, %v3452
        %v3454 = vpop.f32.mrb[0].mxu0
        %3455 = vmatprep.mubr.bf16.mxu0 0
        %3456 = vmatmul.mubr.bf16.gmra.mrb[0].mxu0 %v3397
        %v3457 = vpop.f32.mrb[0].mxu0
        %v3458 = vadd.f32 %v3360, %v3457
        %v3459 = vpop.f32.mrb[0].mxu0
        %v3460 = vpop.f32.mrb[0].mxu0
        %v3461 = vadd.f32 %v3365, %v3460
        %v3462 = vpop.f32.mrb[0].mxu0
        %3463 = vdwg.mxu0
        %v3464 = vmax.f32 %v3434, 0.0
        %v3465 = vmax.f32 %v3437, 0.0
        %v3466 = vmax.f32 %v3442, 0.0
        %v3467 = vmax.f32 %v3445, 0.0
        %v3468 = vmax.f32 %v3450, 0.0
        %v3469 = vmax.f32 %v3453, 0.0
        %v3470 = vmax.f32 %v3458, 0.0
        %v3471 = vmax.f32 %v3461, 0.0
        %3472 = vst.msk [vmem:[#allocation2] sm:$0xff] %vm3206, 0.0
        %3473 = vst.msk [vmem:[#allocation2 + $0x18] sm:$0xff] %vm3206, 0.0
        %3474 = vst.msk [vmem:[#allocation2 + $0x30] sm:$0xff] %vm3206, 0.0
        %3475 = vst.msk [vmem:[#allocation2 + $0x48] sm:$0xff] %vm3206, 0.0
        %3476 = vst.msk [vmem:[#allocation2 + $0x60] sm:$0xff] %vm3206, 0.0
        %3477 = vst.msk [vmem:[#allocation2 + $0x78] sm:$0xff] %vm3206, 0.0
        %3478 = vst.msk [vmem:[#allocation2 + $0x90] sm:$0xff] %vm3206, 0.0
        %3479 = vst.msk [vmem:[#allocation2 + $0xa8] sm:$0xff] %vm3206, 0.0
        %3480 = vst.msk [vmem:[#allocation2] sm:$0xff] %vm3211, 0.0
        %3481 = vst.msk [vmem:[#allocation2 + $0x18] sm:$0xff] %vm3211, 0.0
        %3482 = vst.msk [vmem:[#allocation2 + $0x30] sm:$0xff] %vm3211, 0.0
        %3483 = vst.msk [vmem:[#allocation2 + $0x48] sm:$0xff] %vm3211, 0.0
        %3484 = vst.msk [vmem:[#allocation2 + $0x60] sm:$0xff] %vm3211, 0.0
        %3485 = vst.msk [vmem:[#allocation2 + $0x78] sm:$0xff] %vm3211, 0.0
        %3486 = vst.msk [vmem:[#allocation2 + $0x90] sm:$0xff] %vm3211, 0.0
        %3487 = vst.msk [vmem:[#allocation2 + $0xa8] sm:$0xff] %vm3211, 0.0
        %3496 = vrot.lane.b32.xlu0 %v3464, 1
        %v3497 = vpop.permute.xlu0 %3496
        %3498 = vrot.lane.b32.xlu0 %v3465, 1
        %v3499 = vpop.permute.xlu0 %3498
        %3500 = vrot.lane.b32.xlu0 %v3466, 1
        %v3501 = vpop.permute.xlu0 %3500
        %3502 = vrot.lane.b32.xlu0 %v3467, 1
        %v3503 = vpop.permute.xlu0 %3502
        %3504 = vrot.lane.b32.xlu0 %v3468, 1
        %v3505 = vpop.permute.xlu0 %3504
        %3506 = vrot.lane.b32.xlu0 %v3469, 1
        %v3507 = vpop.permute.xlu0 %3506
        %3508 = vrot.lane.b32.xlu0 %v3470, 1
        %v3509 = vpop.permute.xlu0 %3508
        %3510 = vrot.lane.b32.xlu0 %v3471, 1
        %v3511 = vpop.permute.xlu0 %3510
        %3520 = vst.msk [vmem:[#allocation2] sm:$0xff] %vm3232, %v3497
        %3521 = vst.msk [vmem:[#allocation2 + $0x18] sm:$0xff] %vm3232, %v3499
        %3522 = vst.msk [vmem:[#allocation2 + $0x30] sm:$0xff] %vm3232, %v3501
        %3523 = vst.msk [vmem:[#allocation2 + $0x48] sm:$0xff] %vm3232, %v3503
        %3524 = vst.msk [vmem:[#allocation2 + $0x60] sm:$0xff] %vm3232, %v3505
        %3525 = vst.msk [vmem:[#allocation2 + $0x78] sm:$0xff] %vm3232, %v3507
        %3526 = vst.msk [vmem:[#allocation2 + $0x90] sm:$0xff] %vm3232, %v3509
        %3527 = vst.msk [vmem:[#allocation2 + $0xa8] sm:$0xff] %vm3232, %v3511
        %v3528 = vld [vmem:[#allocation2] sm:$0xff]
        %v3529 = vld [vmem:[#allocation2 + $0x18] sm:$0xff]
        %v3530 = vld [vmem:[#allocation2 + $0x30] sm:$0xff]
        %v3531 = vld [vmem:[#allocation2 + $0x48] sm:$0xff]
        %v3532 = vld [vmem:[#allocation2 + $0x60] sm:$0xff]
        %v3533 = vld [vmem:[#allocation2 + $0x78] sm:$0xff]
        %v3534 = vld [vmem:[#allocation2 + $0x90] sm:$0xff]
        %v3535 = vld [vmem:[#allocation2 + $0xa8] sm:$0xff]
        %3536 = vst.msk [vmem:[#allocation3] sm:$0xff] %vm1513, %v3528
        %3537 = vst.msk [vmem:[#allocation3 + $0x10] sm:$0xff] %vm1513, %v3529
        %3538 = vst.msk [vmem:[#allocation3 + $0x20] sm:$0xff] %vm1513, %v3530
        %3539 = vst.msk [vmem:[#allocation3 + $0x30] sm:$0xff] %vm1513, %v3531
        %3540 = vst.msk [vmem:[#allocation3 + $0x40] sm:$0xff] %vm1513, %v3532
        %3541 = vst.msk [vmem:[#allocation3 + $0x50] sm:$0xff] %vm1513, %v3533
        %3542 = vst.msk [vmem:[#allocation3 + $0x60] sm:$0xff] %vm1513, %v3534
        %3543 = vst.msk [vmem:[#allocation3 + $0x70] sm:$0xff] %vm1513, %v3535
        %v3544 = vld [vmem:[#allocation2] sm:$0xff]
        %v3545 = vld [vmem:[#allocation2 + $0x18] sm:$0xff]
        %v3546 = vld [vmem:[#allocation2 + $0x30] sm:$0xff]
        %v3547 = vld [vmem:[#allocation2 + $0x48] sm:$0xff]
        %v3548 = vld [vmem:[#allocation2 + $0x60] sm:$0xff]
        %v3549 = vld [vmem:[#allocation2 + $0x78] sm:$0xff]
        %v3550 = vld [vmem:[#allocation2 + $0x90] sm:$0xff]
        %v3551 = vld [vmem:[#allocation2 + $0xa8] sm:$0xff]
        %3560 = vrot.lane.b32.xlu0 %v3544, 127
        %v3561 = vpop.permute.xlu0 %3560
        %3562 = vrot.lane.b32.xlu0 %v3545, 127
        %v3563 = vpop.permute.xlu0 %3562
        %3564 = vrot.lane.b32.xlu0 %v3546, 127
        %v3565 = vpop.permute.xlu0 %3564
        %3566 = vrot.lane.b32.xlu0 %v3547, 127
        %v3567 = vpop.permute.xlu0 %3566
        %3568 = vrot.lane.b32.xlu0 %v3548, 127
        %v3569 = vpop.permute.xlu0 %3568
        %3570 = vrot.lane.b32.xlu0 %v3549, 127
        %v3571 = vpop.permute.xlu0 %3570
        %3572 = vrot.lane.b32.xlu0 %v3550, 127
        %v3573 = vpop.permute.xlu0 %3572
        %3574 = vrot.lane.b32.xlu0 %v3551, 127
        %v3575 = vpop.permute.xlu0 %3574
        %3584 = vst.msk [vmem:[#allocation3 + $0x80] sm:$0xff] %vm1513, %v3561
        %3585 = vst.msk [vmem:[#allocation3 + $0x90] sm:$0xff] %vm1513, %v3563
        %3586 = vst.msk [vmem:[#allocation3 + $0xa0] sm:$0xff] %vm1513, %v3565
        %3587 = vst.msk [vmem:[#allocation3 + $0xb0] sm:$0xff] %vm1513, %v3567
        %3588 = vst.msk [vmem:[#allocation3 + $0xc0] sm:$0xff] %vm1513, %v3569
        %3589 = vst.msk [vmem:[#allocation3 + $0xd0] sm:$0xff] %vm1513, %v3571
        %3590 = vst.msk [vmem:[#allocation3 + $0xe0] sm:$0xff] %vm1513, %v3573
        %3591 = vst.msk [vmem:[#allocation3 + $0xf0] sm:$0xff] %vm1513, %v3575
        %v3592 = vld [vmem:[#allocation2] sm:$0xff]
        %v3593 = vld [vmem:[#allocation2 + $0x18] sm:$0xff]
        %v3594 = vld [vmem:[#allocation2 + $0x30] sm:$0xff]
        %v3595 = vld [vmem:[#allocation2 + $0x48] sm:$0xff]
        %v3596 = vld [vmem:[#allocation2 + $0x60] sm:$0xff]
        %v3597 = vld [vmem:[#allocation2 + $0x78] sm:$0xff]
        %v3598 = vld [vmem:[#allocation2 + $0x90] sm:$0xff]
        %v3599 = vld [vmem:[#allocation2 + $0xa8] sm:$0xff]
        %3608 = vrot.lane.b32.xlu0 %v3592, 126
        %v3609 = vpop.permute.xlu0 %3608
        %3610 = vrot.lane.b32.xlu0 %v3593, 126
        %v3611 = vpop.permute.xlu0 %3610
        %3612 = vrot.lane.b32.xlu0 %v3594, 126
        %v3613 = vpop.permute.xlu0 %3612
        %3614 = vrot.lane.b32.xlu0 %v3595, 126
        %v3615 = vpop.permute.xlu0 %3614
        %3616 = vrot.lane.b32.xlu0 %v3596, 126
        %v3617 = vpop.permute.xlu0 %3616
        %3618 = vrot.lane.b32.xlu0 %v3597, 126
        %v3619 = vpop.permute.xlu0 %3618
        %3620 = vrot.lane.b32.xlu0 %v3598, 126
        %v3621 = vpop.permute.xlu0 %3620
        %3622 = vrot.lane.b32.xlu0 %v3599, 126
        %v3623 = vpop.permute.xlu0 %3622
        %3632 = vst.msk [vmem:[#allocation3 + $0x100] sm:$0xff] %vm1513, %v3609
        %3633 = vst.msk [vmem:[#allocation3 + $0x110] sm:$0xff] %vm1513, %v3611
        %3634 = vst.msk [vmem:[#allocation3 + $0x120] sm:$0xff] %vm1513, %v3613
        %3635 = vst.msk [vmem:[#allocation3 + $0x130] sm:$0xff] %vm1513, %v3615
        %3636 = vst.msk [vmem:[#allocation3 + $0x140] sm:$0xff] %vm1513, %v3617
        %3637 = vst.msk [vmem:[#allocation3 + $0x150] sm:$0xff] %vm1513, %v3619
        %3638 = vst.msk [vmem:[#allocation3 + $0x160] sm:$0xff] %vm1513, %v3621
        %3639 = vst.msk [vmem:[#allocation3 + $0x170] sm:$0xff] %vm1513, %v3623
        %v3640 = vld [vmem:[#allocation3] sm:$0xff]
        %v3641 = vld [vmem:[#allocation3 + $0x10] sm:$0xff]
        %v3642 = vld [vmem:[#allocation3 + $0x20] sm:$0xff]
        %v3643 = vld [vmem:[#allocation3 + $0x30] sm:$0xff]
        %v3644 = vld [vmem:[#allocation3 + $0x40] sm:$0xff]
        %v3645 = vld [vmem:[#allocation3 + $0x50] sm:$0xff]
        %v3646 = vld [vmem:[#allocation3 + $0x60] sm:$0xff]
        %v3647 = vld [vmem:[#allocation3 + $0x70] sm:$0xff]
        %v3648 = vld [vmem:[#allocation3 + $0x80] sm:$0xff]
        %v3649 = vld [vmem:[#allocation3 + $0x90] sm:$0xff]
        %v3650 = vld [vmem:[#allocation3 + $0xa0] sm:$0xff]
        %v3651 = vld [vmem:[#allocation3 + $0xb0] sm:$0xff]
        %v3652 = vld [vmem:[#allocation3 + $0xc0] sm:$0xff]
        %v3653 = vld [vmem:[#allocation3 + $0xd0] sm:$0xff]
        %v3654 = vld [vmem:[#allocation3 + $0xe0] sm:$0xff]
        %v3655 = vld [vmem:[#allocation3 + $0xf0] sm:$0xff]
        %v3656 = vld [vmem:[#allocation3 + $0x100] sm:$0xff]
        %v3657 = vld [vmem:[#allocation3 + $0x110] sm:$0xff]
        %v3658 = vld [vmem:[#allocation3 + $0x120] sm:$0xff]
        %v3659 = vld [vmem:[#allocation3 + $0x130] sm:$0xff]
        %v3660 = vld [vmem:[#allocation3 + $0x140] sm:$0xff]
        %v3661 = vld [vmem:[#allocation3 + $0x150] sm:$0xff]
        %v3662 = vld [vmem:[#allocation3 + $0x160] sm:$0xff]
        %v3663 = vld [vmem:[#allocation3 + $0x170] sm:$0xff]
        %v3664 = vld [vmem:[%s11] sm:$0xff]
        %v3665 = vld [vmem:[%s11 + $0x8] sm:$0xff]
        %v3666 = vld [vmem:[%s11 + $0x10] sm:$0xff]
        %v3667 = vld [vmem:[%s11 + $0x18] sm:$0xff]
        %v3668 = vld [vmem:[%s11 + $0x20] sm:$0xff]
        %v3669 = vld [vmem:[%s11 + $0x28] sm:$0xff]
        %v3670 = vld [vmem:[%s11 + $0x30] sm:$0xff]
        %v3671 = vld [vmem:[%s11 + $0x38] sm:$0xff]
        %v3672 = vpack.c.bf16 %v3641, %v3640
        %v3673 = vpack.c.bf16 %v3643, %v3642
        %v3674 = vpack.c.bf16 %v3645, %v3644
        %v3675 = vpack.c.bf16 %v3647, %v3646
        %v3676 = vpack.c.bf16 %v3649, %v3648
        %v3677 = vpack.c.bf16 %v3651, %v3650
        %v3678 = vpack.c.bf16 %v3653, %v3652
        %v3679 = vpack.c.bf16 %v3655, %v3654
        %v3680 = vpack.c.bf16 %v3657, %v3656
        %v3681 = vpack.c.bf16 %v3659, %v3658
        %v3682 = vpack.c.bf16 %v3661, %v3660
        %v3683 = vpack.c.bf16 %v3663, %v3662
        %v3684 = vld [vmem:[%s12] sm:$0xff]
        %v3685 = vld [vmem:[%s12 + $0x8] sm:$0xff]
        %v3686 = vld [vmem:[%s12 + $0x10] sm:$0xff]
        %v3687 = vld [vmem:[%s12 + $0x18] sm:$0xff]
        %v3688 = vld [vmem:[%s12 + $0x20] sm:$0xff]
        %v3689 = vld [vmem:[%s12 + $0x28] sm:$0xff]
        %v3690 = vld [vmem:[%s12 + $0x30] sm:$0xff]
        %v3691 = vld [vmem:[%s12 + $0x38] sm:$0xff]
        %3693 = vset.pattern.permute.xlu0 0
        %3694 = vperm.xlu0 %3693, %v3684
        %v3695 = vpop.permute.xlu0 %3694
        %3698 = vset.pattern.permute.xlu0 0
        %3699 = vperm.xlu0 %3698, %v3685
        %v3700 = vpop.permute.xlu0 %3699
        %3703 = vset.pattern.permute.xlu0 0
        %3704 = vperm.xlu0 %3703, %v3686
        %v3705 = vpop.permute.xlu0 %3704
        %3708 = vset.pattern.permute.xlu0 0
        %3709 = vperm.xlu0 %3708, %v3687
        %v3710 = vpop.permute.xlu0 %3709
        %3713 = vset.pattern.permute.xlu0 0
        %3714 = vperm.xlu0 %3713, %v3688
        %v3715 = vpop.permute.xlu0 %3714
        %3718 = vset.pattern.permute.xlu0 0
        %3719 = vperm.xlu0 %3718, %v3689
        %v3720 = vpop.permute.xlu0 %3719
        %3723 = vset.pattern.permute.xlu0 0
        %3724 = vperm.xlu0 %3723, %v3690
        %v3725 = vpop.permute.xlu0 %3724
        %3728 = vset.pattern.permute.xlu0 0
        %3729 = vperm.xlu0 %3728, %v3691
        %v3730 = vpop.permute.xlu0 %3729
        %v3740 = vunpack.c.l.b16 %v3664
        %v3741 = vunpack.c.h.b16 %v3664
        %v3742 = vunpack.c.l.b16 %v3665
        %v3743 = vunpack.c.h.b16 %v3665
        %v3744 = vunpack.c.l.b16 %v3666
        %v3745 = vunpack.c.h.b16 %v3666
        %v3746 = vunpack.c.l.b16 %v3667
        %v3747 = vunpack.c.h.b16 %v3667
        %v3748 = vunpack.c.l.b16 %v3668
        %v3749 = vunpack.c.h.b16 %v3668
        %v3750 = vunpack.c.l.b16 %v3669
        %v3751 = vunpack.c.h.b16 %v3669
        %v3752 = vunpack.c.l.b16 %v3670
        %v3753 = vunpack.c.h.b16 %v3670
        %v3754 = vunpack.c.l.b16 %v3671
        %v3755 = vunpack.c.h.b16 %v3671
        %v3756 = vpack.c.b16 %v3742, %v3740
        %v3757 = vpack.c.b16 %v3743, %v3741
        %v3758 = vpack.c.b16 %v3746, %v3744
        %v3759 = vpack.c.b16 %v3747, %v3745
        %v3760 = vpack.c.b16 %v3750, %v3748
        %v3761 = vpack.c.b16 %v3751, %v3749
        %v3762 = vpack.c.b16 %v3754, %v3752
        %v3763 = vpack.c.b16 %v3755, %v3753
        %v3769 = vsel %vm2316, %v3757, 0
        %v3772 = vsel %vm2316, %v3759, 0
        %v3775 = vsel %vm2316, %v3761, 0
        %v3778 = vsel %vm2316, %v3763, 0
        %3780 = vmatprep.subr.bf16.mxu0 0
        %3781 = vmatpush1.bf16.msra.mxu0 %v3672
        %3782 = vmatprep.subr.bf16.mxu0 0
        %3783 = vmatpush1.bf16.msra.mxu0 %v3673
        %3784 = vmatprep.subr.bf16.mxu0 0
        %3785 = vmatpush1.bf16.msra.mxu0 %v3674
        %3786 = vmatprep.subr.bf16.mxu0 0
        %3787 = vmatpush1.bf16.msra.mxu0 %v3675
        %3788 = vmatprep.subr.bf16.mxu0 0
        %3789 = vmatpush1.bf16.msra.mxu0 %v3676
        %3790 = vmatprep.subr.bf16.mxu0 0
        %3791 = vmatpush1.bf16.msra.mxu0 %v3677
        %3792 = vmatprep.subr.bf16.mxu0 0
        %3793 = vmatpush1.bf16.msra.mxu0 %v3678
        %3794 = vmatprep.subr.bf16.mxu0 0
        %3795 = vmatpush1.bf16.msra.mxu0 %v3679
        %3796 = vmatprep.subr.bf16.mxu0 0
        %3797 = vmatpush1.bf16.msra.mxu0 %v3680
        %3798 = vmatprep.subr.bf16.mxu0 0
        %3799 = vmatpush1.bf16.msra.mxu0 %v3681
        %3800 = vmatprep.subr.bf16.mxu0 0
        %3801 = vmatpush1.bf16.msra.mxu0 %v3682
        %3802 = vmatprep.subr.bf16.mxu0 0
        %3803 = vmatpush1.bf16.msra.mxu0 %v3683
        %3804 = vmatprep.subr.bf16.mxu0 0
        %3805 = vmatpush1.bf16.msra.mxu0 0
        %3806 = vmatprep.subr.bf16.mxu0 0
        %3807 = vmatpush1.bf16.msra.mxu0 0
        %3808 = vmatprep.subr.bf16.mxu0 0
        %3809 = vmatpush1.bf16.msra.mxu0 0
        %3810 = vmatprep.subr.bf16.mxu0 0
        %3811 = vmatpush1.bf16.msra.mxu0 0
        %3812 = vmatprep.mubr.bf16.mxu0 %v3769
        %3813 = vmatmul.mubr.bf16.gmra.mrb[0].mxu0 %v3756
        %v3814 = vpop.f32.mrb[0].mxu0
        %v3815 = vadd.f32 %v3695, %v3814
        %v3816 = vpop.f32.mrb[0].mxu0
        %v3817 = vpop.f32.mrb[0].mxu0
        %v3818 = vadd.f32 %v3700, %v3817
        %v3819 = vpop.f32.mrb[0].mxu0
        %3820 = vmatprep.mubr.bf16.mxu0 %v3772
        %3821 = vmatmul.mubr.bf16.gmra.mrb[0].mxu0 %v3758
        %v3822 = vpop.f32.mrb[0].mxu0
        %v3823 = vadd.f32 %v3705, %v3822
        %v3824 = vpop.f32.mrb[0].mxu0
        %v3825 = vpop.f32.mrb[0].mxu0
        %v3826 = vadd.f32 %v3710, %v3825
        %v3827 = vpop.f32.mrb[0].mxu0
        %3828 = vmatprep.mubr.bf16.mxu0 %v3775
        %3829 = vmatmul.mubr.bf16.gmra.mrb[0].mxu0 %v3760
        %v3830 = vpop.f32.mrb[0].mxu0
        %v3831 = vadd.f32 %v3715, %v3830
        %v3832 = vpop.f32.mrb[0].mxu0
        %v3833 = vpop.f32.mrb[0].mxu0
        %v3834 = vadd.f32 %v3720, %v3833
        %v3835 = vpop.f32.mrb[0].mxu0
        %3836 = vmatprep.mubr.bf16.mxu0 %v3778
        %3837 = vmatmul.mubr.bf16.gmra.mrb[0].mxu0 %v3762
        %v3838 = vpop.f32.mrb[0].mxu0
        %v3839 = vadd.f32 %v3725, %v3838
        %v3840 = vpop.f32.mrb[0].mxu0
        %v3841 = vpop.f32.mrb[0].mxu0
        %v3842 = vadd.f32 %v3730, %v3841
        %v3843 = vpop.f32.mrb[0].mxu0
        %3844 = vdwg.mxu0
        %v3845 = vmax.f32 %v3815, 0.0
        %v3846 = vmax.f32 %v3818, 0.0
        %v3847 = vmax.f32 %v3823, 0.0
        %v3848 = vmax.f32 %v3826, 0.0
        %v3849 = vmax.f32 %v3831, 0.0
        %v3850 = vmax.f32 %v3834, 0.0
        %v3851 = vmax.f32 %v3839, 0.0
        %v3852 = vmax.f32 %v3842, 0.0
        %3853 = vst.msk [vmem:[%s654] sm:$0xff] %vm1513, %v3845
        %3854 = vst.msk [vmem:[%s654 + $0x8] sm:$0xff] %vm1513, %v3846
        %3855 = vst.msk [vmem:[%s654 + $0x10] sm:$0xff] %vm1513, %v3847
        %3856 = vst.msk [vmem:[%s654 + $0x18] sm:$0xff] %vm1513, %v3848
        %3857 = vst.msk [vmem:[%s654 + $0x20] sm:$0xff] %vm1513, %v3849
        %3858 = vst.msk [vmem:[%s654 + $0x28] sm:$0xff] %vm1513, %v3850
        %3859 = vst.msk [vmem:[%s654 + $0x30] sm:$0xff] %vm1513, %v3851
        %3860 = vst.msk [vmem:[%s654 + $0x38] sm:$0xff] %vm1513, %v3852
        %v3862 = vsel %vm1513, %v3845, 0
        %v3865 = vsel %vm1513, %v3846, 0
        %v3868 = vsel %vm1513, %v3847, 0
        %v3871 = vsel %vm1513, %v3848, 0
        %v3874 = vsel %vm1513, %v3849, 0
        %v3877 = vsel %vm1513, %v3850, 0
        %v3880 = vsel %vm1513, %v3851, 0
        %v3883 = vsel %vm1513, %v3852, 0
        %3885 = vmatprep.subr.mxu0 0.0
        %3886 = vmatpush1.msra.mxu0 %v1668
        %3887 = vmatprep.subr.mxu0 0.0
        %3888 = vmatpush1.msra.mxu0 %v1669
        %3889 = vmatprep.subr.mxu0 0.0
        %3890 = vmatpush1.msra.mxu0 0.0
        %3891 = vmatprep.subr.mxu0 0.0
        %3892 = vmatpush1.msra.mxu0 0.0
        %3893 = vmatprep.subr.mxu0 0.0
        %3894 = vmatpush1.msra.mxu0 0.0
        %3895 = vmatprep.subr.mxu0 0.0
        %3896 = vmatpush1.msra.mxu0 0.0
        %3897 = vmatprep.subr.mxu0 0.0
        %3898 = vmatpush1.msra.mxu0 0.0
        %3899 = vmatprep.subr.mxu0 0.0
        %3900 = vmatpush1.msra.mxu0 0.0
        %3901 = vmatprep.subr.mxu0 0.0
        %3902 = vmatpush1.msra.mxu0 0.0
        %3903 = vmatprep.subr.mxu0 0.0
        %3904 = vmatpush1.msra.mxu0 0.0
        %3905 = vmatprep.subr.mxu0 0.0
        %3906 = vmatpush1.msra.mxu0 0.0
        %3907 = vmatprep.subr.mxu0 0.0
        %3908 = vmatpush1.msra.mxu0 0.0
        %3909 = vmatprep.subr.mxu0 0.0
        %3910 = vmatpush1.msra.mxu0 0.0
        %3911 = vmatprep.subr.mxu0 0.0
        %3912 = vmatpush1.msra.mxu0 0.0
        %3913 = vmatprep.subr.mxu0 0.0
        %3914 = vmatpush1.msra.mxu0 0.0
        %3915 = vmatprep.subr.mxu0 0.0
        %3916 = vmatpush1.msra.mxu0 0.0
        %3917 = vmatprep.subr.mxu0 0.0
        %3918 = vmatpush1.msra.mxu0 0.0
        %3919 = vmatprep.subr.mxu0 0.0
        %3920 = vmatpush1.msra.mxu0 0.0
        %3921 = vmatprep.subr.mxu0 0.0
        %3922 = vmatpush1.msra.mxu0 0.0
        %3923 = vmatprep.subr.mxu0 0.0
        %3924 = vmatpush1.msra.mxu0 0.0
        %3925 = vmatprep.subr.mxu0 0.0
        %3926 = vmatpush1.msra.mxu0 0.0
        %3927 = vmatprep.subr.mxu0 0.0
        %3928 = vmatpush1.msra.mxu0 0.0
        %3929 = vmatprep.subr.mxu0 0.0
        %3930 = vmatpush1.msra.mxu0 0.0
        %3931 = vmatprep.subr.mxu0 0.0
        %3932 = vmatpush1.msra.mxu0 0.0
        %3933 = vmatprep.subr.mxu0 0.0
        %3934 = vmatpush1.msra.mxu0 0.0
        %3935 = vmatprep.subr.mxu0 0.0
        %3936 = vmatpush1.msra.mxu0 0.0
        %3937 = vmatprep.subr.mxu0 0.0
        %3938 = vmatpush1.msra.mxu0 0.0
        %3939 = vmatprep.subr.mxu0 0.0
        %3940 = vmatpush1.msra.mxu0 0.0
        %3941 = vmatprep.subr.mxu0 0.0
        %3942 = vmatpush1.msra.mxu0 0.0
        %3943 = vmatprep.subr.mxu0 0.0
        %3944 = vmatpush1.msra.mxu0 0.0
        %3945 = vmatprep.subr.mxu0 0.0
        %3946 = vmatpush1.msra.mxu0 0.0
        %3947 = vmatprep.subr.mxu0 0.0
        %3948 = vmatpush1.msra.mxu0 0.0
        %3949 = vmatprep.mubr.f32.mxu0 0.0
        %3950 = vmatmul.mubr.f32.gmra.mrb[0].mxu0 %v3862
        %v3951 = vpop.f32.mrb[0].mxu0
        %v3952 = vadd.f32 0.0, %v3951
        %v3953 = vpop.f32.mrb[0].mxu0
        %3954 = vmatprep.mubr.f32.mxu0 0.0
        %3955 = vmatmul.mubr.f32.gmra.mrb[0].mxu0 %v3865
        %v3956 = vpop.f32.mrb[0].mxu0
        %v3957 = vadd.f32 0.0, %v3956
        %v3958 = vpop.f32.mrb[0].mxu0
        %3959 = vmatprep.mubr.f32.mxu0 0.0
        %3960 = vmatmul.mubr.f32.gmra.mrb[0].mxu0 %v3868
        %v3961 = vpop.f32.mrb[0].mxu0
        %v3962 = vadd.f32 0.0, %v3961
        %v3963 = vpop.f32.mrb[0].mxu0
        %3964 = vmatprep.mubr.f32.mxu0 0.0
        %3965 = vmatmul.mubr.f32.gmra.mrb[0].mxu0 %v3871
        %v3966 = vpop.f32.mrb[0].mxu0
        %v3967 = vadd.f32 0.0, %v3966
        %v3968 = vpop.f32.mrb[0].mxu0
        %3969 = vmatprep.mubr.f32.mxu0 0.0
        %3970 = vmatmul.mubr.f32.gmra.mrb[0].mxu0 %v3874
        %v3971 = vpop.f32.mrb[0].mxu0
        %v3972 = vadd.f32 0.0, %v3971
        %v3973 = vpop.f32.mrb[0].mxu0
        %3974 = vmatprep.mubr.f32.mxu0 0.0
        %3975 = vmatmul.mubr.f32.gmra.mrb[0].mxu0 %v3877
        %v3976 = vpop.f32.mrb[0].mxu0
        %v3977 = vadd.f32 0.0, %v3976
        %v3978 = vpop.f32.mrb[0].mxu0
        %3979 = vmatprep.mubr.f32.mxu0 0.0
        %3980 = vmatmul.mubr.f32.gmra.mrb[0].mxu0 %v3880
        %v3981 = vpop.f32.mrb[0].mxu0
        %v3982 = vadd.f32 0.0, %v3981
        %v3983 = vpop.f32.mrb[0].mxu0
        %3984 = vmatprep.mubr.f32.mxu0 0.0
        %3985 = vmatmul.mubr.f32.gmra.mrb[0].mxu0 %v3883
        %v3986 = vpop.f32.mrb[0].mxu0
        %v3987 = vadd.f32 0.0, %v3986
        %v3988 = vpop.f32.mrb[0].mxu0
        %3989 = vdwg.mxu0
        %3990 = vmatprep.subr.mxu0 0.0
        %3991 = vmatpush1.msra.mxu0 %v1840
        %3992 = vmatprep.subr.mxu0 0.0
        %3993 = vmatpush1.msra.mxu0 %v1841
        %3994 = vmatprep.subr.mxu0 0.0
        %3995 = vmatpush1.msra.mxu0 0.0
        %3996 = vmatprep.subr.mxu0 0.0
        %3997 = vmatpush1.msra.mxu0 0.0
        %3998 = vmatprep.subr.mxu0 0.0
        %3999 = vmatpush1.msra.mxu0 0.0
        %4000 = vmatprep.subr.mxu0 0.0
        %4001 = vmatpush1.msra.mxu0 0.0
        %4002 = vmatprep.subr.mxu0 0.0
        %4003 = vmatpush1.msra.mxu0 0.0
        %4004 = vmatprep.subr.mxu0 0.0
        %4005 = vmatpush1.msra.mxu0 0.0
        %4006 = vmatprep.subr.mxu0 0.0
        %4007 = vmatpush1.msra.mxu0 0.0
        %4008 = vmatprep.subr.mxu0 0.0
        %4009 = vmatpush1.msra.mxu0 0.0
        %4010 = vmatprep.subr.mxu0 0.0
        %4011 = vmatpush1.msra.mxu0 0.0
        %4012 = vmatprep.subr.mxu0 0.0
        %4013 = vmatpush1.msra.mxu0 0.0
        %4014 = vmatprep.subr.mxu0 0.0
        %4015 = vmatpush1.msra.mxu0 0.0
        %4016 = vmatprep.subr.mxu0 0.0
        %4017 = vmatpush1.msra.mxu0 0.0
        %4018 = vmatprep.subr.mxu0 0.0
        %4019 = vmatpush1.msra.mxu0 0.0
        %4020 = vmatprep.subr.mxu0 0.0
        %4021 = vmatpush1.msra.mxu0 0.0
        %4022 = vmatprep.subr.mxu0 0.0
        %4023 = vmatpush1.msra.mxu0 0.0
        %4024 = vmatprep.subr.mxu0 0.0
        %4025 = vmatpush1.msra.mxu0 0.0
        %4026 = vmatprep.subr.mxu0 0.0
        %4027 = vmatpush1.msra.mxu0 0.0
        %4028 = vmatprep.subr.mxu0 0.0
        %4029 = vmatpush1.msra.mxu0 0.0
        %4030 = vmatprep.subr.mxu0 0.0
        %4031 = vmatpush1.msra.mxu0 0.0
        %4032 = vmatprep.subr.mxu0 0.0
        %4033 = vmatpush1.msra.mxu0 0.0
        %4034 = vmatprep.subr.mxu0 0.0
        %4035 = vmatpush1.msra.mxu0 0.0
        %4036 = vmatprep.subr.mxu0 0.0
        %4037 = vmatpush1.msra.mxu0 0.0
        %4038 = vmatprep.subr.mxu0 0.0
        %4039 = vmatpush1.msra.mxu0 0.0
        %4040 = vmatprep.subr.mxu0 0.0
        %4041 = vmatpush1.msra.mxu0 0.0
        %4042 = vmatprep.subr.mxu0 0.0
        %4043 = vmatpush1.msra.mxu0 0.0
        %4044 = vmatprep.subr.mxu0 0.0
        %4045 = vmatpush1.msra.mxu0 0.0
        %4046 = vmatprep.subr.mxu0 0.0
        %4047 = vmatpush1.msra.mxu0 0.0
        %4048 = vmatprep.subr.mxu0 0.0
        %4049 = vmatpush1.msra.mxu0 0.0
        %4050 = vmatprep.subr.mxu0 0.0
        %4051 = vmatpush1.msra.mxu0 0.0
        %4052 = vmatprep.subr.mxu0 0.0
        %4053 = vmatpush1.msra.mxu0 0.0
        %4054 = vmatprep.mubr.f32.mxu0 0.0
        %4055 = vmatmul.mubr.f32.gmra.mrb[0].mxu0 %v3862
        %v4056 = vpop.f32.mrb[0].mxu0
        %v4057 = vadd.f32 0.0, %v4056
        %v4058 = vpop.f32.mrb[0].mxu0
        %4059 = vmatprep.mubr.f32.mxu0 0.0
        %4060 = vmatmul.mubr.f32.gmra.mrb[0].mxu0 %v3865
        %v4061 = vpop.f32.mrb[0].mxu0
        %v4062 = vadd.f32 0.0, %v4061
        %v4063 = vpop.f32.mrb[0].mxu0
        %4064 = vmatprep.mubr.f32.mxu0 0.0
        %4065 = vmatmul.mubr.f32.gmra.mrb[0].mxu0 %v3868
        %v4066 = vpop.f32.mrb[0].mxu0
        %v4067 = vadd.f32 0.0, %v4066
        %v4068 = vpop.f32.mrb[0].mxu0
        %4069 = vmatprep.mubr.f32.mxu0 0.0
        %4070 = vmatmul.mubr.f32.gmra.mrb[0].mxu0 %v3871
        %v4071 = vpop.f32.mrb[0].mxu0
        %v4072 = vadd.f32 0.0, %v4071
        %v4073 = vpop.f32.mrb[0].mxu0
        %4074 = vmatprep.mubr.f32.mxu0 0.0
        %4075 = vmatmul.mubr.f32.gmra.mrb[0].mxu0 %v3874
        %v4076 = vpop.f32.mrb[0].mxu0
        %v4077 = vadd.f32 0.0, %v4076
        %v4078 = vpop.f32.mrb[0].mxu0
        %4079 = vmatprep.mubr.f32.mxu0 0.0
        %4080 = vmatmul.mubr.f32.gmra.mrb[0].mxu0 %v3877
        %v4081 = vpop.f32.mrb[0].mxu0
        %v4082 = vadd.f32 0.0, %v4081
        %v4083 = vpop.f32.mrb[0].mxu0
        %4084 = vmatprep.mubr.f32.mxu0 0.0
        %4085 = vmatmul.mubr.f32.gmra.mrb[0].mxu0 %v3880
        %v4086 = vpop.f32.mrb[0].mxu0
        %v4087 = vadd.f32 0.0, %v4086
        %v4088 = vpop.f32.mrb[0].mxu0
        %4089 = vmatprep.mubr.f32.mxu0 0.0
        %4090 = vmatmul.mubr.f32.gmra.mrb[0].mxu0 %v3883
        %v4091 = vpop.f32.mrb[0].mxu0
        %v4092 = vadd.f32 0.0, %v4091
        %v4093 = vpop.f32.mrb[0].mxu0
        %4094 = vdwg.mxu0
        %v4095 = vmax.f32 %v3952, %v4057
        %v4096 = vmax.f32 %v3957, %v4062
        %v4097 = vmax.f32 %v3962, %v4067
        %v4098 = vmax.f32 %v3967, %v4072
        %v4099 = vmax.f32 %v3972, %v4077
        %v4100 = vmax.f32 %v3977, %v4082
        %v4101 = vmax.f32 %v3982, %v4087
        %v4102 = vmax.f32 %v3987, %v4092
        %4103 = vmatprep.subr.mxu0 0.0
        %4104 = vmatpush1.msra.mxu0 %v2014
        %4105 = vmatprep.subr.mxu0 0.0
        %4106 = vmatpush1.msra.mxu0 %v2015
        %4107 = vmatprep.subr.mxu0 0.0
        %4108 = vmatpush1.msra.mxu0 0.0
        %4109 = vmatprep.subr.mxu0 0.0
        %4110 = vmatpush1.msra.mxu0 0.0
        %4111 = vmatprep.subr.mxu0 0.0
        %4112 = vmatpush1.msra.mxu0 0.0
        %4113 = vmatprep.subr.mxu0 0.0
        %4114 = vmatpush1.msra.mxu0 0.0
        %4115 = vmatprep.subr.mxu0 0.0
        %4116 = vmatpush1.msra.mxu0 0.0
        %4117 = vmatprep.subr.mxu0 0.0
        %4118 = vmatpush1.msra.mxu0 0.0
        %4119 = vmatprep.subr.mxu0 0.0
        %4120 = vmatpush1.msra.mxu0 0.0
        %4121 = vmatprep.subr.mxu0 0.0
        %4122 = vmatpush1.msra.mxu0 0.0
        %4123 = vmatprep.subr.mxu0 0.0
        %4124 = vmatpush1.msra.mxu0 0.0
        %4125 = vmatprep.subr.mxu0 0.0
        %4126 = vmatpush1.msra.mxu0 0.0
        %4127 = vmatprep.subr.mxu0 0.0
        %4128 = vmatpush1.msra.mxu0 0.0
        %4129 = vmatprep.subr.mxu0 0.0
        %4130 = vmatpush1.msra.mxu0 0.0
        %4131 = vmatprep.subr.mxu0 0.0
        %4132 = vmatpush1.msra.mxu0 0.0
        %4133 = vmatprep.subr.mxu0 0.0
        %4134 = vmatpush1.msra.mxu0 0.0
        %4135 = vmatprep.subr.mxu0 0.0
        %4136 = vmatpush1.msra.mxu0 0.0
        %4137 = vmatprep.subr.mxu0 0.0
        %4138 = vmatpush1.msra.mxu0 0.0
        %4139 = vmatprep.subr.mxu0 0.0
        %4140 = vmatpush1.msra.mxu0 0.0
        %4141 = vmatprep.subr.mxu0 0.0
        %4142 = vmatpush1.msra.mxu0 0.0
        %4143 = vmatprep.subr.mxu0 0.0
        %4144 = vmatpush1.msra.mxu0 0.0
        %4145 = vmatprep.subr.mxu0 0.0
        %4146 = vmatpush1.msra.mxu0 0.0
        %4147 = vmatprep.subr.mxu0 0.0
        %4148 = vmatpush1.msra.mxu0 0.0
        %4149 = vmatprep.subr.mxu0 0.0
        %4150 = vmatpush1.msra.mxu0 0.0
        %4151 = vmatprep.subr.mxu0 0.0
        %4152 = vmatpush1.msra.mxu0 0.0
        %4153 = vmatprep.subr.mxu0 0.0
        %4154 = vmatpush1.msra.mxu0 0.0
        %4155 = vmatprep.subr.mxu0 0.0
        %4156 = vmatpush1.msra.mxu0 0.0
        %4157 = vmatprep.subr.mxu0 0.0
        %4158 = vmatpush1.msra.mxu0 0.0
        %4159 = vmatprep.subr.mxu0 0.0
        %4160 = vmatpush1.msra.mxu0 0.0
        %4161 = vmatprep.subr.mxu0 0.0
        %4162 = vmatpush1.msra.mxu0 0.0
        %4163 = vmatprep.subr.mxu0 0.0
        %4164 = vmatpush1.msra.mxu0 0.0
        %4165 = vmatprep.subr.mxu0 0.0
        %4166 = vmatpush1.msra.mxu0 0.0
        %4167 = vmatprep.mubr.f32.mxu0 0.0
        %4168 = vmatmul.mubr.f32.gmra.mrb[0].mxu0 %v3862
        %v4169 = vpop.f32.mrb[0].mxu0
        %v4170 = vadd.f32 0.0, %v4169
        %v4171 = vpop.f32.mrb[0].mxu0
        %4172 = vmatprep.mubr.f32.mxu0 0.0
        %4173 = vmatmul.mubr.f32.gmra.mrb[0].mxu0 %v3865
        %v4174 = vpop.f32.mrb[0].mxu0
        %v4175 = vadd.f32 0.0, %v4174
        %v4176 = vpop.f32.mrb[0].mxu0
        %4177 = vmatprep.mubr.f32.mxu0 0.0
        %4178 = vmatmul.mubr.f32.gmra.mrb[0].mxu0 %v3868
        %v4179 = vpop.f32.mrb[0].mxu0
        %v4180 = vadd.f32 0.0, %v4179
        %v4181 = vpop.f32.mrb[0].mxu0
        %4182 = vmatprep.mubr.f32.mxu0 0.0
        %4183 = vmatmul.mubr.f32.gmra.mrb[0].mxu0 %v3871
        %v4184 = vpop.f32.mrb[0].mxu0
        %v4185 = vadd.f32 0.0, %v4184
        %v4186 = vpop.f32.mrb[0].mxu0
        %4187 = vmatprep.mubr.f32.mxu0 0.0
        %4188 = vmatmul.mubr.f32.gmra.mrb[0].mxu0 %v3874
        %v4189 = vpop.f32.mrb[0].mxu0
        %v4190 = vadd.f32 0.0, %v4189
        %v4191 = vpop.f32.mrb[0].mxu0
        %4192 = vmatprep.mubr.f32.mxu0 0.0
        %4193 = vmatmul.mubr.f32.gmra.mrb[0].mxu0 %v3877
        %v4194 = vpop.f32.mrb[0].mxu0
        %v4195 = vadd.f32 0.0, %v4194
        %v4196 = vpop.f32.mrb[0].mxu0
        %4197 = vmatprep.mubr.f32.mxu0 0.0
        %4198 = vmatmul.mubr.f32.gmra.mrb[0].mxu0 %v3880
        %v4199 = vpop.f32.mrb[0].mxu0
        %v4200 = vadd.f32 0.0, %v4199
        %v4201 = vpop.f32.mrb[0].mxu0
        %4202 = vmatprep.mubr.f32.mxu0 0.0
        %4203 = vmatmul.mubr.f32.gmra.mrb[0].mxu0 %v3883
        %v4204 = vpop.f32.mrb[0].mxu0
        %v4205 = vadd.f32 0.0, %v4204
        %v4206 = vpop.f32.mrb[0].mxu0
        %4207 = vdwg.mxu0
        %v4208 = vmax.f32 %v4095, %v4170
        %v4209 = vmax.f32 %v4096, %v4175
        %v4210 = vmax.f32 %v4097, %v4180
        %v4211 = vmax.f32 %v4098, %v4185
        %v4212 = vmax.f32 %v4099, %v4190
        %v4213 = vmax.f32 %v4100, %v4195
        %v4214 = vmax.f32 %v4101, %v4200
        %v4215 = vmax.f32 %v4102, %v4205
        %4216 = vmatprep.subr.mxu0 0.0
        %4217 = vmatpush1.msra.mxu0 %v2188
        %4218 = vmatprep.subr.mxu0 0.0
        %4219 = vmatpush1.msra.mxu0 %v2189
        %4220 = vmatprep.subr.mxu0 0.0
        %4221 = vmatpush1.msra.mxu0 0.0
        %4222 = vmatprep.subr.mxu0 0.0
        %4223 = vmatpush1.msra.mxu0 0.0
        %4224 = vmatprep.subr.mxu0 0.0
        %4225 = vmatpush1.msra.mxu0 0.0
        %4226 = vmatprep.subr.mxu0 0.0
        %4227 = vmatpush1.msra.mxu0 0.0
        %4228 = vmatprep.subr.mxu0 0.0
        %4229 = vmatpush1.msra.mxu0 0.0
        %4230 = vmatprep.subr.mxu0 0.0
        %4231 = vmatpush1.msra.mxu0 0.0
        %4232 = vmatprep.subr.mxu0 0.0
        %4233 = vmatpush1.msra.mxu0 0.0
        %4234 = vmatprep.subr.mxu0 0.0
        %4235 = vmatpush1.msra.mxu0 0.0
        %4236 = vmatprep.subr.mxu0 0.0
        %4237 = vmatpush1.msra.mxu0 0.0
        %4238 = vmatprep.subr.mxu0 0.0
        %4239 = vmatpush1.msra.mxu0 0.0
        %4240 = vmatprep.subr.mxu0 0.0
        %4241 = vmatpush1.msra.mxu0 0.0
        %4242 = vmatprep.subr.mxu0 0.0
        %4243 = vmatpush1.msra.mxu0 0.0
        %4244 = vmatprep.subr.mxu0 0.0
        %4245 = vmatpush1.msra.mxu0 0.0
        %4246 = vmatprep.subr.mxu0 0.0
        %4247 = vmatpush1.msra.mxu0 0.0
        %4248 = vmatprep.subr.mxu0 0.0
        %4249 = vmatpush1.msra.mxu0 0.0
        %4250 = vmatprep.subr.mxu0 0.0
        %4251 = vmatpush1.msra.mxu0 0.0
        %4252 = vmatprep.subr.mxu0 0.0
        %4253 = vmatpush1.msra.mxu0 0.0
        %4254 = vmatprep.subr.mxu0 0.0
        %4255 = vmatpush1.msra.mxu0 0.0
        %4256 = vmatprep.subr.mxu0 0.0
        %4257 = vmatpush1.msra.mxu0 0.0
        %4258 = vmatprep.subr.mxu0 0.0
        %4259 = vmatpush1.msra.mxu0 0.0
        %4260 = vmatprep.subr.mxu0 0.0
        %4261 = vmatpush1.msra.mxu0 0.0
        %4262 = vmatprep.subr.mxu0 0.0
        %4263 = vmatpush1.msra.mxu0 0.0
        %4264 = vmatprep.subr.mxu0 0.0
        %4265 = vmatpush1.msra.mxu0 0.0
        %4266 = vmatprep.subr.mxu0 0.0
        %4267 = vmatpush1.msra.mxu0 0.0
        %4268 = vmatprep.subr.mxu0 0.0
        %4269 = vmatpush1.msra.mxu0 0.0
        %4270 = vmatprep.subr.mxu0 0.0
        %4271 = vmatpush1.msra.mxu0 0.0
        %4272 = vmatprep.subr.mxu0 0.0
        %4273 = vmatpush1.msra.mxu0 0.0
        %4274 = vmatprep.subr.mxu0 0.0
        %4275 = vmatpush1.msra.mxu0 0.0
        %4276 = vmatprep.subr.mxu0 0.0
        %4277 = vmatpush1.msra.mxu0 0.0
        %4278 = vmatprep.subr.mxu0 0.0
        %4279 = vmatpush1.msra.mxu0 0.0
        %4280 = vmatprep.mubr.f32.mxu0 0.0
        %4281 = vmatmul.mubr.f32.gmra.mrb[0].mxu0 %v3862
        %v4282 = vpop.f32.mrb[0].mxu0
        %v4283 = vadd.f32 0.0, %v4282
        %v4284 = vpop.f32.mrb[0].mxu0
        %4285 = vmatprep.mubr.f32.mxu0 0.0
        %4286 = vmatmul.mubr.f32.gmra.mrb[0].mxu0 %v3865
        %v4287 = vpop.f32.mrb[0].mxu0
        %v4288 = vadd.f32 0.0, %v4287
        %v4289 = vpop.f32.mrb[0].mxu0
        %4290 = vmatprep.mubr.f32.mxu0 0.0
        %4291 = vmatmul.mubr.f32.gmra.mrb[0].mxu0 %v3868
        %v4292 = vpop.f32.mrb[0].mxu0
        %v4293 = vadd.f32 0.0, %v4292
        %v4294 = vpop.f32.mrb[0].mxu0
        %4295 = vmatprep.mubr.f32.mxu0 0.0
        %4296 = vmatmul.mubr.f32.gmra.mrb[0].mxu0 %v3871
        %v4297 = vpop.f32.mrb[0].mxu0
        %v4298 = vadd.f32 0.0, %v4297
        %v4299 = vpop.f32.mrb[0].mxu0
        %4300 = vmatprep.mubr.f32.mxu0 0.0
        %4301 = vmatmul.mubr.f32.gmra.mrb[0].mxu0 %v3874
        %v4302 = vpop.f32.mrb[0].mxu0
        %v4303 = vadd.f32 0.0, %v4302
        %v4304 = vpop.f32.mrb[0].mxu0
        %4305 = vmatprep.mubr.f32.mxu0 0.0
        %4306 = vmatmul.mubr.f32.gmra.mrb[0].mxu0 %v3877
        %v4307 = vpop.f32.mrb[0].mxu0
        %v4308 = vadd.f32 0.0, %v4307
        %v4309 = vpop.f32.mrb[0].mxu0
        %4310 = vmatprep.mubr.f32.mxu0 0.0
        %4311 = vmatmul.mubr.f32.gmra.mrb[0].mxu0 %v3880
        %v4312 = vpop.f32.mrb[0].mxu0
        %v4313 = vadd.f32 0.0, %v4312
        %v4314 = vpop.f32.mrb[0].mxu0
        %4315 = vmatprep.mubr.f32.mxu0 0.0
        %4316 = vmatmul.mubr.f32.gmra.mrb[0].mxu0 %v3883
        %v4317 = vpop.f32.mrb[0].mxu0
        %v4318 = vadd.f32 0.0, %v4317
        %v4319 = vpop.f32.mrb[0].mxu0
        %4320 = vdwg.mxu0
        %v4321 = vmax.f32 %v4208, %v4283
        %v4322 = vmax.f32 %v4209, %v4288
        %v4323 = vmax.f32 %v4210, %v4293
        %v4324 = vmax.f32 %v4211, %v4298
        %v4325 = vmax.f32 %v4212, %v4303
        %v4326 = vmax.f32 %v4213, %v4308
        %v4327 = vmax.f32 %v4214, %v4313
        %v4328 = vmax.f32 %v4215, %v4318
        %4329 = vst.msk [vmem:[#allocation2] sm:$0xff] %vm3206, 0.0
        %4330 = vst.msk [vmem:[#allocation2 + $0x18] sm:$0xff] %vm3206, 0.0
        %4331 = vst.msk [vmem:[#allocation2 + $0x30] sm:$0xff] %vm3206, 0.0
        %4332 = vst.msk [vmem:[#allocation2 + $0x48] sm:$0xff] %vm3206, 0.0
        %4333 = vst.msk [vmem:[#allocation2 + $0x60] sm:$0xff] %vm3206, 0.0
        %4334 = vst.msk [vmem:[#allocation2 + $0x78] sm:$0xff] %vm3206, 0.0
        %4335 = vst.msk [vmem:[#allocation2 + $0x90] sm:$0xff] %vm3206, 0.0
        %4336 = vst.msk [vmem:[#allocation2 + $0xa8] sm:$0xff] %vm3206, 0.0
        %vm4337 = vcmask 48168
        %4338 = vst.msk [vmem:[#allocation2] sm:$0xff] %vm4337, 0.0
        %4339 = vst.msk [vmem:[#allocation2 + $0x18] sm:$0xff] %vm4337, 0.0
        %4340 = vst.msk [vmem:[#allocation2 + $0x30] sm:$0xff] %vm4337, 0.0
        %4341 = vst.msk [vmem:[#allocation2 + $0x48] sm:$0xff] %vm4337, 0.0
        %4342 = vst.msk [vmem:[#allocation2 + $0x60] sm:$0xff] %vm4337, 0.0
        %4343 = vst.msk [vmem:[#allocation2 + $0x78] sm:$0xff] %vm4337, 0.0
        %4344 = vst.msk [vmem:[#allocation2 + $0x90] sm:$0xff] %vm4337, 0.0
        %4345 = vst.msk [vmem:[#allocation2 + $0xa8] sm:$0xff] %vm4337, 0.0
        %4354 = vrot.lane.b32.xlu0 %v4321, 1
        %v4355 = vpop.permute.xlu0 %4354
        %4356 = vrot.lane.b32.xlu0 %v4322, 1
        %v4357 = vpop.permute.xlu0 %4356
        %4358 = vrot.lane.b32.xlu0 %v4323, 1
        %v4359 = vpop.permute.xlu0 %4358
        %4360 = vrot.lane.b32.xlu0 %v4324, 1
        %v4361 = vpop.permute.xlu0 %4360
        %4362 = vrot.lane.b32.xlu0 %v4325, 1
        %v4363 = vpop.permute.xlu0 %4362
        %4364 = vrot.lane.b32.xlu0 %v4326, 1
        %v4365 = vpop.permute.xlu0 %4364
        %4366 = vrot.lane.b32.xlu0 %v4327, 1
        %v4367 = vpop.permute.xlu0 %4366
        %4368 = vrot.lane.b32.xlu0 %v4328, 1
        %v4369 = vpop.permute.xlu0 %4368
        %vm4378 = vcmask 39944
        %4379 = vst.msk [vmem:[#allocation2] sm:$0xff] %vm4378, %v4355
        %4380 = vst.msk [vmem:[#allocation2 + $0x18] sm:$0xff] %vm4378, %v4357
        %4381 = vst.msk [vmem:[#allocation2 + $0x30] sm:$0xff] %vm4378, %v4359
        %4382 = vst.msk [vmem:[#allocation2 + $0x48] sm:$0xff] %vm4378, %v4361
        %4383 = vst.msk [vmem:[#allocation2 + $0x60] sm:$0xff] %vm4378, %v4363
        %4384 = vst.msk [vmem:[#allocation2 + $0x78] sm:$0xff] %vm4378, %v4365
        %4385 = vst.msk [vmem:[#allocation2 + $0x90] sm:$0xff] %vm4378, %v4367
        %4386 = vst.msk [vmem:[#allocation2 + $0xa8] sm:$0xff] %vm4378, %v4369
        %v4387 = vld [vmem:[#allocation2] sm:$0xff]
        %v4388 = vld [vmem:[#allocation2 + $0x18] sm:$0xff]
        %v4389 = vld [vmem:[#allocation2 + $0x30] sm:$0xff]
        %v4390 = vld [vmem:[#allocation2 + $0x48] sm:$0xff]
        %v4391 = vld [vmem:[#allocation2 + $0x60] sm:$0xff]
        %v4392 = vld [vmem:[#allocation2 + $0x78] sm:$0xff]
        %v4393 = vld [vmem:[#allocation2 + $0x90] sm:$0xff]
        %v4394 = vld [vmem:[#allocation2 + $0xa8] sm:$0xff]
        %4395 = vst.msk [vmem:[#allocation3] sm:$0xff] %vm670, %v4387
        %4396 = vst.msk [vmem:[#allocation3 + $0x10] sm:$0xff] %vm670, %v4388
        %4397 = vst.msk [vmem:[#allocation3 + $0x20] sm:$0xff] %vm670, %v4389
        %4398 = vst.msk [vmem:[#allocation3 + $0x30] sm:$0xff] %vm670, %v4390
        %4399 = vst.msk [vmem:[#allocation3 + $0x40] sm:$0xff] %vm670, %v4391
        %4400 = vst.msk [vmem:[#allocation3 + $0x50] sm:$0xff] %vm670, %v4392
        %4401 = vst.msk [vmem:[#allocation3 + $0x60] sm:$0xff] %vm670, %v4393
        %4402 = vst.msk [vmem:[#allocation3 + $0x70] sm:$0xff] %vm670, %v4394
        %v4403 = vld [vmem:[#allocation2] sm:$0xff]
        %v4404 = vld [vmem:[#allocation2 + $0x18] sm:$0xff]
        %v4405 = vld [vmem:[#allocation2 + $0x30] sm:$0xff]
        %v4406 = vld [vmem:[#allocation2 + $0x48] sm:$0xff]
        %v4407 = vld [vmem:[#allocation2 + $0x60] sm:$0xff]
        %v4408 = vld [vmem:[#allocation2 + $0x78] sm:$0xff]
        %v4409 = vld [vmem:[#allocation2 + $0x90] sm:$0xff]
        %v4410 = vld [vmem:[#allocation2 + $0xa8] sm:$0xff]
        %4419 = vrot.lane.b32.xlu0 %v4403, 127
        %v4420 = vpop.permute.xlu0 %4419
        %4421 = vrot.lane.b32.xlu0 %v4404, 127
        %v4422 = vpop.permute.xlu0 %4421
        %4423 = vrot.lane.b32.xlu0 %v4405, 127
        %v4424 = vpop.permute.xlu0 %4423
        %4425 = vrot.lane.b32.xlu0 %v4406, 127
        %v4426 = vpop.permute.xlu0 %4425
        %4427 = vrot.lane.b32.xlu0 %v4407, 127
        %v4428 = vpop.permute.xlu0 %4427
        %4429 = vrot.lane.b32.xlu0 %v4408, 127
        %v4430 = vpop.permute.xlu0 %4429
        %4431 = vrot.lane.b32.xlu0 %v4409, 127
        %v4432 = vpop.permute.xlu0 %4431
        %4433 = vrot.lane.b32.xlu0 %v4410, 127
        %v4434 = vpop.permute.xlu0 %4433
        %4443 = vst.msk [vmem:[#allocation3 + $0x80] sm:$0xff] %vm670, %v4420
        %4444 = vst.msk [vmem:[#allocation3 + $0x90] sm:$0xff] %vm670, %v4422
        %4445 = vst.msk [vmem:[#allocation3 + $0xa0] sm:$0xff] %vm670, %v4424
        %4446 = vst.msk [vmem:[#allocation3 + $0xb0] sm:$0xff] %vm670, %v4426
        %4447 = vst.msk [vmem:[#allocation3 + $0xc0] sm:$0xff] %vm670, %v4428
        %4448 = vst.msk [vmem:[#allocation3 + $0xd0] sm:$0xff] %vm670, %v4430
        %4449 = vst.msk [vmem:[#allocation3 + $0xe0] sm:$0xff] %vm670, %v4432
        %4450 = vst.msk [vmem:[#allocation3 + $0xf0] sm:$0xff] %vm670, %v4434
        %v4451 = vld [vmem:[#allocation2] sm:$0xff]
        %v4452 = vld [vmem:[#allocation2 + $0x18] sm:$0xff]
        %v4453 = vld [vmem:[#allocation2 + $0x30] sm:$0xff]
        %v4454 = vld [vmem:[#allocation2 + $0x48] sm:$0xff]
        %v4455 = vld [vmem:[#allocation2 + $0x60] sm:$0xff]
        %v4456 = vld [vmem:[#allocation2 + $0x78] sm:$0xff]
        %v4457 = vld [vmem:[#allocation2 + $0x90] sm:$0xff]
        %v4458 = vld [vmem:[#allocation2 + $0xa8] sm:$0xff]
        %4467 = vrot.lane.b32.xlu0 %v4451, 126
        %v4468 = vpop.permute.xlu0 %4467
        %4469 = vrot.lane.b32.xlu0 %v4452, 126
        %v4470 = vpop.permute.xlu0 %4469
        %4471 = vrot.lane.b32.xlu0 %v4453, 126
        %v4472 = vpop.permute.xlu0 %4471
        %4473 = vrot.lane.b32.xlu0 %v4454, 126
        %v4474 = vpop.permute.xlu0 %4473
        %4475 = vrot.lane.b32.xlu0 %v4455, 126
        %v4476 = vpop.permute.xlu0 %4475
        %4477 = vrot.lane.b32.xlu0 %v4456, 126
        %v4478 = vpop.permute.xlu0 %4477
        %4479 = vrot.lane.b32.xlu0 %v4457, 126
        %v4480 = vpop.permute.xlu0 %4479
        %4481 = vrot.lane.b32.xlu0 %v4458, 126
        %v4482 = vpop.permute.xlu0 %4481
        %4491 = vst.msk [vmem:[#allocation3 + $0x100] sm:$0xff] %vm670, %v4468
        %4492 = vst.msk [vmem:[#allocation3 + $0x110] sm:$0xff] %vm670, %v4470
        %4493 = vst.msk [vmem:[#allocation3 + $0x120] sm:$0xff] %vm670, %v4472
        %4494 = vst.msk [vmem:[#allocation3 + $0x130] sm:$0xff] %vm670, %v4474
        %4495 = vst.msk [vmem:[#allocation3 + $0x140] sm:$0xff] %vm670, %v4476
        %4496 = vst.msk [vmem:[#allocation3 + $0x150] sm:$0xff] %vm670, %v4478
        %4497 = vst.msk [vmem:[#allocation3 + $0x160] sm:$0xff] %vm670, %v4480
        %4498 = vst.msk [vmem:[#allocation3 + $0x170] sm:$0xff] %vm670, %v4482
        %v4499 = vld [vmem:[#allocation3] sm:$0xff]
        %v4500 = vld [vmem:[#allocation3 + $0x10] sm:$0xff]
        %v4501 = vld [vmem:[#allocation3 + $0x20] sm:$0xff]
        %v4502 = vld [vmem:[#allocation3 + $0x30] sm:$0xff]
        %v4503 = vld [vmem:[#allocation3 + $0x40] sm:$0xff]
        %v4504 = vld [vmem:[#allocation3 + $0x50] sm:$0xff]
        %v4505 = vld [vmem:[#allocation3 + $0x60] sm:$0xff]
        %v4506 = vld [vmem:[#allocation3 + $0x70] sm:$0xff]
        %v4507 = vld [vmem:[#allocation3 + $0x80] sm:$0xff]
        %v4508 = vld [vmem:[#allocation3 + $0x90] sm:$0xff]
        %v4509 = vld [vmem:[#allocation3 + $0xa0] sm:$0xff]
        %v4510 = vld [vmem:[#allocation3 + $0xb0] sm:$0xff]
        %v4511 = vld [vmem:[#allocation3 + $0xc0] sm:$0xff]
        %v4512 = vld [vmem:[#allocation3 + $0xd0] sm:$0xff]
        %v4513 = vld [vmem:[#allocation3 + $0xe0] sm:$0xff]
        %v4514 = vld [vmem:[#allocation3 + $0xf0] sm:$0xff]
        %v4515 = vld [vmem:[#allocation3 + $0x100] sm:$0xff]
        %v4516 = vld [vmem:[#allocation3 + $0x110] sm:$0xff]
        %v4517 = vld [vmem:[#allocation3 + $0x120] sm:$0xff]
        %v4518 = vld [vmem:[#allocation3 + $0x130] sm:$0xff]
        %v4519 = vld [vmem:[#allocation3 + $0x140] sm:$0xff]
        %v4520 = vld [vmem:[#allocation3 + $0x150] sm:$0xff]
        %v4521 = vld [vmem:[#allocation3 + $0x160] sm:$0xff]
        %v4522 = vld [vmem:[#allocation3 + $0x170] sm:$0xff]
        %v4523 = vld [vmem:[%s13] sm:$0xff]
        %v4524 = vld [vmem:[%s13 + $0x8] sm:$0xff]
        %v4525 = vld [vmem:[%s13 + $0x10] sm:$0xff]
        %v4526 = vld [vmem:[%s13 + $0x18] sm:$0xff]
        %v4527 = vld [vmem:[%s13 + $0x20] sm:$0xff]
        %v4528 = vld [vmem:[%s13 + $0x28] sm:$0xff]
        %v4529 = vld [vmem:[%s13 + $0x30] sm:$0xff]
        %v4530 = vld [vmem:[%s13 + $0x38] sm:$0xff]
        %v4531 = vld [vmem:[%s13 + $0x40] sm:$0xff]
        %v4532 = vld [vmem:[%s13 + $0x48] sm:$0xff]
        %v4533 = vld [vmem:[%s13 + $0x50] sm:$0xff]
        %v4534 = vld [vmem:[%s13 + $0x58] sm:$0xff]
        %v4535 = vld [vmem:[%s13 + $0x60] sm:$0xff]
        %v4536 = vld [vmem:[%s13 + $0x68] sm:$0xff]
        %v4537 = vld [vmem:[%s13 + $0x70] sm:$0xff]
        %v4538 = vld [vmem:[%s13 + $0x78] sm:$0xff]
        %v4539 = vpack.c.bf16 %v4500, %v4499
        %v4540 = vpack.c.bf16 %v4502, %v4501
        %v4541 = vpack.c.bf16 %v4504, %v4503
        %v4542 = vpack.c.bf16 %v4506, %v4505
        %v4543 = vpack.c.bf16 %v4508, %v4507
        %v4544 = vpack.c.bf16 %v4510, %v4509
        %v4545 = vpack.c.bf16 %v4512, %v4511
        %v4546 = vpack.c.bf16 %v4514, %v4513
        %v4547 = vpack.c.bf16 %v4516, %v4515
        %v4548 = vpack.c.bf16 %v4518, %v4517
        %v4549 = vpack.c.bf16 %v4520, %v4519
        %v4550 = vpack.c.bf16 %v4522, %v4521
        %v4551 = vld [vmem:[%s14] sm:$0xff]
        %v4552 = vld [vmem:[%s14 + $0x8] sm:$0xff]
        %v4553 = vld [vmem:[%s14 + $0x10] sm:$0xff]
        %v4554 = vld [vmem:[%s14 + $0x18] sm:$0xff]
        %v4555 = vld [vmem:[%s14 + $0x20] sm:$0xff]
        %v4556 = vld [vmem:[%s14 + $0x28] sm:$0xff]
        %v4557 = vld [vmem:[%s14 + $0x30] sm:$0xff]
        %v4558 = vld [vmem:[%s14 + $0x38] sm:$0xff]
        %v4559 = vld [vmem:[%s14 + $0x40] sm:$0xff]
        %v4560 = vld [vmem:[%s14 + $0x48] sm:$0xff]
        %v4561 = vld [vmem:[%s14 + $0x50] sm:$0xff]
        %v4562 = vld [vmem:[%s14 + $0x58] sm:$0xff]
        %v4563 = vld [vmem:[%s14 + $0x60] sm:$0xff]
        %v4564 = vld [vmem:[%s14 + $0x68] sm:$0xff]
        %v4565 = vld [vmem:[%s14 + $0x70] sm:$0xff]
        %v4566 = vld [vmem:[%s14 + $0x78] sm:$0xff]
        %4568 = vset.pattern.permute.xlu0 0
        %4569 = vperm.xlu0 %4568, %v4551
        %v4570 = vpop.permute.xlu0 %4569
        %4573 = vset.pattern.permute.xlu0 0
        %4574 = vperm.xlu0 %4573, %v4552
        %v4575 = vpop.permute.xlu0 %4574
        %4578 = vset.pattern.permute.xlu0 0
        %4579 = vperm.xlu0 %4578, %v4553
        %v4580 = vpop.permute.xlu0 %4579
        %4583 = vset.pattern.permute.xlu0 0
        %4584 = vperm.xlu0 %4583, %v4554
        %v4585 = vpop.permute.xlu0 %4584
        %4588 = vset.pattern.permute.xlu0 0
        %4589 = vperm.xlu0 %4588, %v4555
        %v4590 = vpop.permute.xlu0 %4589
        %4593 = vset.pattern.permute.xlu0 0
        %4594 = vperm.xlu0 %4593, %v4556
        %v4595 = vpop.permute.xlu0 %4594
        %4598 = vset.pattern.permute.xlu0 0
        %4599 = vperm.xlu0 %4598, %v4557
        %v4600 = vpop.permute.xlu0 %4599
        %4603 = vset.pattern.permute.xlu0 0
        %4604 = vperm.xlu0 %4603, %v4558
        %v4605 = vpop.permute.xlu0 %4604
        %4608 = vset.pattern.permute.xlu0 0
        %4609 = vperm.xlu0 %4608, %v4559
        %v4610 = vpop.permute.xlu0 %4609
        %4613 = vset.pattern.permute.xlu0 0
        %4614 = vperm.xlu0 %4613, %v4560
        %v4615 = vpop.permute.xlu0 %4614
        %4618 = vset.pattern.permute.xlu0 0
        %4619 = vperm.xlu0 %4618, %v4561
        %v4620 = vpop.permute.xlu0 %4619
        %4623 = vset.pattern.permute.xlu0 0
        %4624 = vperm.xlu0 %4623, %v4562
        %v4625 = vpop.permute.xlu0 %4624
        %4628 = vset.pattern.permute.xlu0 0
        %4629 = vperm.xlu0 %4628, %v4563
        %v4630 = vpop.permute.xlu0 %4629
        %4633 = vset.pattern.permute.xlu0 0
        %4634 = vperm.xlu0 %4633, %v4564
        %v4635 = vpop.permute.xlu0 %4634
        %4638 = vset.pattern.permute.xlu0 0
        %4639 = vperm.xlu0 %4638, %v4565
        %v4640 = vpop.permute.xlu0 %4639
        %4643 = vset.pattern.permute.xlu0 0
        %4644 = vperm.xlu0 %4643, %v4566
        %v4645 = vpop.permute.xlu0 %4644
        %v4663 = vunpack.c.l.b16 %v4523
        %v4664 = vunpack.c.h.b16 %v4523
        %v4665 = vunpack.c.l.b16 %v4524
        %v4666 = vunpack.c.h.b16 %v4524
        %v4667 = vunpack.c.l.b16 %v4525
        %v4668 = vunpack.c.h.b16 %v4525
        %v4669 = vunpack.c.l.b16 %v4526
        %v4670 = vunpack.c.h.b16 %v4526
        %v4671 = vunpack.c.l.b16 %v4527
        %v4672 = vunpack.c.h.b16 %v4527
        %v4673 = vunpack.c.l.b16 %v4528
        %v4674 = vunpack.c.h.b16 %v4528
        %v4675 = vunpack.c.l.b16 %v4529
        %v4676 = vunpack.c.h.b16 %v4529
        %v4677 = vunpack.c.l.b16 %v4530
        %v4678 = vunpack.c.h.b16 %v4530
        %v4679 = vunpack.c.l.b16 %v4531
        %v4680 = vunpack.c.h.b16 %v4531
        %v4681 = vunpack.c.l.b16 %v4532
        %v4682 = vunpack.c.h.b16 %v4532
        %v4683 = vunpack.c.l.b16 %v4533
        %v4684 = vunpack.c.h.b16 %v4533
        %v4685 = vunpack.c.l.b16 %v4534
        %v4686 = vunpack.c.h.b16 %v4534
        %v4687 = vunpack.c.l.b16 %v4535
        %v4688 = vunpack.c.h.b16 %v4535
        %v4689 = vunpack.c.l.b16 %v4536
        %v4690 = vunpack.c.h.b16 %v4536
        %v4691 = vunpack.c.l.b16 %v4537
        %v4692 = vunpack.c.h.b16 %v4537
        %v4693 = vunpack.c.l.b16 %v4538
        %v4694 = vunpack.c.h.b16 %v4538
        %v4695 = vpack.c.b16 %v4665, %v4663
        %v4696 = vpack.c.b16 %v4666, %v4664
        %v4697 = vpack.c.b16 %v4669, %v4667
        %v4698 = vpack.c.b16 %v4670, %v4668
        %v4699 = vpack.c.b16 %v4673, %v4671
        %v4700 = vpack.c.b16 %v4674, %v4672
        %v4701 = vpack.c.b16 %v4677, %v4675
        %v4702 = vpack.c.b16 %v4678, %v4676
        %v4703 = vpack.c.b16 %v4681, %v4679
        %v4704 = vpack.c.b16 %v4682, %v4680
        %v4705 = vpack.c.b16 %v4685, %v4683
        %v4706 = vpack.c.b16 %v4686, %v4684
        %v4707 = vpack.c.b16 %v4689, %v4687
        %v4708 = vpack.c.b16 %v4690, %v4688
        %v4709 = vpack.c.b16 %v4693, %v4691
        %v4710 = vpack.c.b16 %v4694, %v4692
        %v4720 = vsel %vm2316, %v4696, 0
        %v4723 = vsel %vm2316, %v4698, 0
        %v4726 = vsel %vm2316, %v4700, 0
        %v4729 = vsel %vm2316, %v4702, 0
        %v4732 = vsel %vm2316, %v4704, 0
        %v4735 = vsel %vm2316, %v4706, 0
        %v4738 = vsel %vm2316, %v4708, 0
        %v4741 = vsel %vm2316, %v4710, 0
        %4743 = vmatprep.subr.bf16.mxu0 0
        %4744 = vmatpush1.bf16.msra.mxu0 %v4539
        %4745 = vmatprep.subr.bf16.mxu0 0
        %4746 = vmatpush1.bf16.msra.mxu0 %v4540
        %4747 = vmatprep.subr.bf16.mxu0 0
        %4748 = vmatpush1.bf16.msra.mxu0 %v4541
        %4749 = vmatprep.subr.bf16.mxu0 0
        %4750 = vmatpush1.bf16.msra.mxu0 %v4542
        %4751 = vmatprep.subr.bf16.mxu0 0
        %4752 = vmatpush1.bf16.msra.mxu0 %v4543
        %4753 = vmatprep.subr.bf16.mxu0 0
        %4754 = vmatpush1.bf16.msra.mxu0 %v4544
        %4755 = vmatprep.subr.bf16.mxu0 0
        %4756 = vmatpush1.bf16.msra.mxu0 %v4545
        %4757 = vmatprep.subr.bf16.mxu0 0
        %4758 = vmatpush1.bf16.msra.mxu0 %v4546
        %4759 = vmatprep.subr.bf16.mxu0 0
        %4760 = vmatpush1.bf16.msra.mxu0 %v4547
        %4761 = vmatprep.subr.bf16.mxu0 0
        %4762 = vmatpush1.bf16.msra.mxu0 %v4548
        %4763 = vmatprep.subr.bf16.mxu0 0
        %4764 = vmatpush1.bf16.msra.mxu0 %v4549
        %4765 = vmatprep.subr.bf16.mxu0 0
        %4766 = vmatpush1.bf16.msra.mxu0 %v4550
        %4767 = vmatprep.subr.bf16.mxu0 0
        %4768 = vmatpush1.bf16.msra.mxu0 0
        %4769 = vmatprep.subr.bf16.mxu0 0
        %4770 = vmatpush1.bf16.msra.mxu0 0
        %4771 = vmatprep.subr.bf16.mxu0 0
        %4772 = vmatpush1.bf16.msra.mxu0 0
        %4773 = vmatprep.subr.bf16.mxu0 0
        %4774 = vmatpush1.bf16.msra.mxu0 0
        %4775 = vmatprep.mubr.bf16.mxu0 %v4720
        %4776 = vmatmul.mubr.bf16.gmra.mrb[0].mxu0 %v4695
        %v4777 = vpop.f32.mrb[0].mxu0
        %v4778 = vadd.f32 %v4570, %v4777
        %v4779 = vpop.f32.mrb[0].mxu0
        %v4780 = vpop.f32.mrb[0].mxu0
        %v4781 = vadd.f32 %v4575, %v4780
        %v4782 = vpop.f32.mrb[0].mxu0
        %4783 = vmatprep.mubr.bf16.mxu0 %v4723
        %4784 = vmatmul.mubr.bf16.gmra.mrb[0].mxu0 %v4697
        %v4785 = vpop.f32.mrb[0].mxu0
        %v4786 = vadd.f32 %v4580, %v4785
        %v4787 = vpop.f32.mrb[0].mxu0
        %v4788 = vpop.f32.mrb[0].mxu0
        %v4789 = vadd.f32 %v4585, %v4788
        %v4790 = vpop.f32.mrb[0].mxu0
        %4791 = vmatprep.mubr.bf16.mxu0 %v4726
        %4792 = vmatmul.mubr.bf16.gmra.mrb[0].mxu0 %v4699
        %v4793 = vpop.f32.mrb[0].mxu0
        %v4794 = vadd.f32 %v4590, %v4793
        %v4795 = vpop.f32.mrb[0].mxu0
        %v4796 = vpop.f32.mrb[0].mxu0
        %v4797 = vadd.f32 %v4595, %v4796
        %v4798 = vpop.f32.mrb[0].mxu0
        %4799 = vmatprep.mubr.bf16.mxu0 %v4729
        %4800 = vmatmul.mubr.bf16.gmra.mrb[0].mxu0 %v4701
        %v4801 = vpop.f32.mrb[0].mxu0
        %v4802 = vadd.f32 %v4600, %v4801
        %v4803 = vpop.f32.mrb[0].mxu0
        %v4804 = vpop.f32.mrb[0].mxu0
        %v4805 = vadd.f32 %v4605, %v4804
        %v4806 = vpop.f32.mrb[0].mxu0
        %4807 = vmatprep.mubr.bf16.mxu0 %v4732
        %4808 = vmatmul.mubr.bf16.gmra.mrb[0].mxu0 %v4703
        %v4809 = vpop.f32.mrb[0].mxu0
        %v4810 = vadd.f32 %v4610, %v4809
        %v4811 = vpop.f32.mrb[0].mxu0
        %v4812 = vpop.f32.mrb[0].mxu0
        %v4813 = vadd.f32 %v4615, %v4812
        %v4814 = vpop.f32.mrb[0].mxu0
        %4815 = vmatprep.mubr.bf16.mxu0 %v4735
        %4816 = vmatmul.mubr.bf16.gmra.mrb[0].mxu0 %v4705
        %v4817 = vpop.f32.mrb[0].mxu0
        %v4818 = vadd.f32 %v4620, %v4817
        %v4819 = vpop.f32.mrb[0].mxu0
        %v4820 = vpop.f32.mrb[0].mxu0
        %v4821 = vadd.f32 %v4625, %v4820
        %v4822 = vpop.f32.mrb[0].mxu0
        %4823 = vmatprep.mubr.bf16.mxu0 %v4738
        %4824 = vmatmul.mubr.bf16.gmra.mrb[0].mxu0 %v4707
        %v4825 = vpop.f32.mrb[0].mxu0
        %v4826 = vadd.f32 %v4630, %v4825
        %v4827 = vpop.f32.mrb[0].mxu0
        %v4828 = vpop.f32.mrb[0].mxu0
        %v4829 = vadd.f32 %v4635, %v4828
        %v4830 = vpop.f32.mrb[0].mxu0
        %4831 = vmatprep.mubr.bf16.mxu0 %v4741
        %4832 = vmatmul.mubr.bf16.gmra.mrb[0].mxu0 %v4709
        %v4833 = vpop.f32.mrb[0].mxu0
        %v4834 = vadd.f32 %v4640, %v4833
        %v4835 = vpop.f32.mrb[0].mxu0
        %v4836 = vpop.f32.mrb[0].mxu0
        %v4837 = vadd.f32 %v4645, %v4836
        %v4838 = vpop.f32.mrb[0].mxu0
        %4839 = vdwg.mxu0
        %v4840 = vmax.f32 %v4778, 0.0
        %v4841 = vmax.f32 %v4781, 0.0
        %v4842 = vmax.f32 %v4786, 0.0
        %v4843 = vmax.f32 %v4789, 0.0
        %v4844 = vmax.f32 %v4794, 0.0
        %v4845 = vmax.f32 %v4797, 0.0
        %v4846 = vmax.f32 %v4802, 0.0
        %v4847 = vmax.f32 %v4805, 0.0
        %v4848 = vmax.f32 %v4810, 0.0
        %v4849 = vmax.f32 %v4813, 0.0
        %v4850 = vmax.f32 %v4818, 0.0
        %v4851 = vmax.f32 %v4821, 0.0
        %v4852 = vmax.f32 %v4826, 0.0
        %v4853 = vmax.f32 %v4829, 0.0
        %v4854 = vmax.f32 %v4834, 0.0
        %v4855 = vmax.f32 %v4837, 0.0
        %4856 = vst.msk [vmem:[#allocation2] sm:$0xff] %vm3206, 0.0
        %4857 = vst.msk [vmem:[#allocation2 + $0x18] sm:$0xff] %vm3206, 0.0
        %4858 = vst.msk [vmem:[#allocation2 + $0x30] sm:$0xff] %vm3206, 0.0
        %4859 = vst.msk [vmem:[#allocation2 + $0x48] sm:$0xff] %vm3206, 0.0
        %4860 = vst.msk [vmem:[#allocation2 + $0x60] sm:$0xff] %vm3206, 0.0
        %4861 = vst.msk [vmem:[#allocation2 + $0x78] sm:$0xff] %vm3206, 0.0
        %4862 = vst.msk [vmem:[#allocation2 + $0x90] sm:$0xff] %vm3206, 0.0
        %4863 = vst.msk [vmem:[#allocation2 + $0xa8] sm:$0xff] %vm3206, 0.0
        %4864 = vst.msk [vmem:[#allocation2 + $0xc0] sm:$0xff] %vm3206, 0.0
        %4865 = vst.msk [vmem:[#allocation2 + $0xd8] sm:$0xff] %vm3206, 0.0
        %4866 = vst.msk [vmem:[#allocation2 + $0xf0] sm:$0xff] %vm3206, 0.0
        %4867 = vst.msk [vmem:[#allocation2 + $0x108] sm:$0xff] %vm3206, 0.0
        %4868 = vst.msk [vmem:[#allocation2 + $0x120] sm:$0xff] %vm3206, 0.0
        %4869 = vst.msk [vmem:[#allocation2 + $0x138] sm:$0xff] %vm3206, 0.0
        %4870 = vst.msk [vmem:[#allocation2 + $0x150] sm:$0xff] %vm3206, 0.0
        %4871 = vst.msk [vmem:[#allocation2 + $0x168] sm:$0xff] %vm3206, 0.0
        %4872 = vst.msk [vmem:[#allocation2] sm:$0xff] %vm4337, 0.0
        %4873 = vst.msk [vmem:[#allocation2 + $0x18] sm:$0xff] %vm4337, 0.0
        %4874 = vst.msk [vmem:[#allocation2 + $0x30] sm:$0xff] %vm4337, 0.0
        %4875 = vst.msk [vmem:[#allocation2 + $0x48] sm:$0xff] %vm4337, 0.0
        %4876 = vst.msk [vmem:[#allocation2 + $0x60] sm:$0xff] %vm4337, 0.0
        %4877 = vst.msk [vmem:[#allocation2 + $0x78] sm:$0xff] %vm4337, 0.0
        %4878 = vst.msk [vmem:[#allocation2 + $0x90] sm:$0xff] %vm4337, 0.0
        %4879 = vst.msk [vmem:[#allocation2 + $0xa8] sm:$0xff] %vm4337, 0.0
        %4880 = vst.msk [vmem:[#allocation2 + $0xc0] sm:$0xff] %vm4337, 0.0
        %4881 = vst.msk [vmem:[#allocation2 + $0xd8] sm:$0xff] %vm4337, 0.0
        %4882 = vst.msk [vmem:[#allocation2 + $0xf0] sm:$0xff] %vm4337, 0.0
        %4883 = vst.msk [vmem:[#allocation2 + $0x108] sm:$0xff] %vm4337, 0.0
        %4884 = vst.msk [vmem:[#allocation2 + $0x120] sm:$0xff] %vm4337, 0.0
        %4885 = vst.msk [vmem:[#allocation2 + $0x138] sm:$0xff] %vm4337, 0.0
        %4886 = vst.msk [vmem:[#allocation2 + $0x150] sm:$0xff] %vm4337, 0.0
        %4887 = vst.msk [vmem:[#allocation2 + $0x168] sm:$0xff] %vm4337, 0.0
        %4904 = vrot.lane.b32.xlu0 %v4840, 1
        %v4905 = vpop.permute.xlu0 %4904
        %4906 = vrot.lane.b32.xlu0 %v4841, 1
        %v4907 = vpop.permute.xlu0 %4906
        %4908 = vrot.lane.b32.xlu0 %v4842, 1
        %v4909 = vpop.permute.xlu0 %4908
        %4910 = vrot.lane.b32.xlu0 %v4843, 1
        %v4911 = vpop.permute.xlu0 %4910
        %4912 = vrot.lane.b32.xlu0 %v4844, 1
        %v4913 = vpop.permute.xlu0 %4912
        %4914 = vrot.lane.b32.xlu0 %v4845, 1
        %v4915 = vpop.permute.xlu0 %4914
        %4916 = vrot.lane.b32.xlu0 %v4846, 1
        %v4917 = vpop.permute.xlu0 %4916
        %4918 = vrot.lane.b32.xlu0 %v4847, 1
        %v4919 = vpop.permute.xlu0 %4918
        %4920 = vrot.lane.b32.xlu0 %v4848, 1
        %v4921 = vpop.permute.xlu0 %4920
        %4922 = vrot.lane.b32.xlu0 %v4849, 1
        %v4923 = vpop.permute.xlu0 %4922
        %4924 = vrot.lane.b32.xlu0 %v4850, 1
        %v4925 = vpop.permute.xlu0 %4924
        %4926 = vrot.lane.b32.xlu0 %v4851, 1
        %v4927 = vpop.permute.xlu0 %4926
        %4928 = vrot.lane.b32.xlu0 %v4852, 1
        %v4929 = vpop.permute.xlu0 %4928
        %4930 = vrot.lane.b32.xlu0 %v4853, 1
        %v4931 = vpop.permute.xlu0 %4930
        %4932 = vrot.lane.b32.xlu0 %v4854, 1
        %v4933 = vpop.permute.xlu0 %4932
        %4934 = vrot.lane.b32.xlu0 %v4855, 1
        %v4935 = vpop.permute.xlu0 %4934
        %4952 = vst.msk [vmem:[#allocation2] sm:$0xff] %vm4378, %v4905
        %4953 = vst.msk [vmem:[#allocation2 + $0x18] sm:$0xff] %vm4378, %v4907
        %4954 = vst.msk [vmem:[#allocation2 + $0x30] sm:$0xff] %vm4378, %v4909
        %4955 = vst.msk [vmem:[#allocation2 + $0x48] sm:$0xff] %vm4378, %v4911
        %4956 = vst.msk [vmem:[#allocation2 + $0x60] sm:$0xff] %vm4378, %v4913
        %4957 = vst.msk [vmem:[#allocation2 + $0x78] sm:$0xff] %vm4378, %v4915
        %4958 = vst.msk [vmem:[#allocation2 + $0x90] sm:$0xff] %vm4378, %v4917
        %4959 = vst.msk [vmem:[#allocation2 + $0xa8] sm:$0xff] %vm4378, %v4919
        %4960 = vst.msk [vmem:[#allocation2 + $0xc0] sm:$0xff] %vm4378, %v4921
        %4961 = vst.msk [vmem:[#allocation2 + $0xd8] sm:$0xff] %vm4378, %v4923
        %4962 = vst.msk [vmem:[#allocation2 + $0xf0] sm:$0xff] %vm4378, %v4925
        %4963 = vst.msk [vmem:[#allocation2 + $0x108] sm:$0xff] %vm4378, %v4927
        %4964 = vst.msk [vmem:[#allocation2 + $0x120] sm:$0xff] %vm4378, %v4929
        %4965 = vst.msk [vmem:[#allocation2 + $0x138] sm:$0xff] %vm4378, %v4931
        %4966 = vst.msk [vmem:[#allocation2 + $0x150] sm:$0xff] %vm4378, %v4933
        %4967 = vst.msk [vmem:[#allocation2 + $0x168] sm:$0xff] %vm4378, %v4935
        %v4968 = vld [vmem:[#allocation2] sm:$0xff]
        %v4969 = vld [vmem:[#allocation2 + $0x18] sm:$0xff]
        %v4970 = vld [vmem:[#allocation2 + $0x30] sm:$0xff]
        %v4971 = vld [vmem:[#allocation2 + $0x48] sm:$0xff]
        %v4972 = vld [vmem:[#allocation2 + $0x60] sm:$0xff]
        %v4973 = vld [vmem:[#allocation2 + $0x78] sm:$0xff]
        %v4974 = vld [vmem:[#allocation2 + $0x90] sm:$0xff]
        %v4975 = vld [vmem:[#allocation2 + $0xa8] sm:$0xff]
        %v4976 = vld [vmem:[#allocation2 + $0xc0] sm:$0xff]
        %v4977 = vld [vmem:[#allocation2 + $0xd8] sm:$0xff]
        %v4978 = vld [vmem:[#allocation2 + $0xf0] sm:$0xff]
        %v4979 = vld [vmem:[#allocation2 + $0x108] sm:$0xff]
        %v4980 = vld [vmem:[#allocation2 + $0x120] sm:$0xff]
        %v4981 = vld [vmem:[#allocation2 + $0x138] sm:$0xff]
        %v4982 = vld [vmem:[#allocation2 + $0x150] sm:$0xff]
        %v4983 = vld [vmem:[#allocation2 + $0x168] sm:$0xff]
        %4984 = vst.msk [vmem:[#allocation3] sm:$0xff] %vm670, %v4968
        %4985 = vst.msk [vmem:[#allocation3 + $0x10] sm:$0xff] %vm670, %v4969
        %4986 = vst.msk [vmem:[#allocation3 + $0x20] sm:$0xff] %vm670, %v4970
        %4987 = vst.msk [vmem:[#allocation3 + $0x30] sm:$0xff] %vm670, %v4971
        %4988 = vst.msk [vmem:[#allocation3 + $0x40] sm:$0xff] %vm670, %v4972
        %4989 = vst.msk [vmem:[#allocation3 + $0x50] sm:$0xff] %vm670, %v4973
        %4990 = vst.msk [vmem:[#allocation3 + $0x60] sm:$0xff] %vm670, %v4974
        %4991 = vst.msk [vmem:[#allocation3 + $0x70] sm:$0xff] %vm670, %v4975
        %4992 = vst.msk [vmem:[#allocation3 + $0x80] sm:$0xff] %vm670, %v4976
        %4993 = vst.msk [vmem:[#allocation3 + $0x90] sm:$0xff] %vm670, %v4977
        %4994 = vst.msk [vmem:[#allocation3 + $0xa0] sm:$0xff] %vm670, %v4978
        %4995 = vst.msk [vmem:[#allocation3 + $0xb0] sm:$0xff] %vm670, %v4979
        %4996 = vst.msk [vmem:[#allocation3 + $0xc0] sm:$0xff] %vm670, %v4980
        %4997 = vst.msk [vmem:[#allocation3 + $0xd0] sm:$0xff] %vm670, %v4981
        %4998 = vst.msk [vmem:[#allocation3 + $0xe0] sm:$0xff] %vm670, %v4982
        %4999 = vst.msk [vmem:[#allocation3 + $0xf0] sm:$0xff] %vm670, %v4983
        %v5000 = vld [vmem:[#allocation2] sm:$0xff]
        %v5001 = vld [vmem:[#allocation2 + $0x18] sm:$0xff]
        %v5002 = vld [vmem:[#allocation2 + $0x30] sm:$0xff]
        %v5003 = vld [vmem:[#allocation2 + $0x48] sm:$0xff]
        %v5004 = vld [vmem:[#allocation2 + $0x60] sm:$0xff]
        %v5005 = vld [vmem:[#allocation2 + $0x78] sm:$0xff]
        %v5006 = vld [vmem:[#allocation2 + $0x90] sm:$0xff]
        %v5007 = vld [vmem:[#allocation2 + $0xa8] sm:$0xff]
        %v5008 = vld [vmem:[#allocation2 + $0xc0] sm:$0xff]
        %v5009 = vld [vmem:[#allocation2 + $0xd8] sm:$0xff]
        %v5010 = vld [vmem:[#allocation2 + $0xf0] sm:$0xff]
        %v5011 = vld [vmem:[#allocation2 + $0x108] sm:$0xff]
        %v5012 = vld [vmem:[#allocation2 + $0x120] sm:$0xff]
        %v5013 = vld [vmem:[#allocation2 + $0x138] sm:$0xff]
        %v5014 = vld [vmem:[#allocation2 + $0x150] sm:$0xff]
        %v5015 = vld [vmem:[#allocation2 + $0x168] sm:$0xff]
        %5032 = vrot.lane.b32.xlu0 %v5000, 127
        %v5033 = vpop.permute.xlu0 %5032
        %5034 = vrot.lane.b32.xlu0 %v5001, 127
        %v5035 = vpop.permute.xlu0 %5034
        %5036 = vrot.lane.b32.xlu0 %v5002, 127
        %v5037 = vpop.permute.xlu0 %5036
        %5038 = vrot.lane.b32.xlu0 %v5003, 127
        %v5039 = vpop.permute.xlu0 %5038
        %5040 = vrot.lane.b32.xlu0 %v5004, 127
        %v5041 = vpop.permute.xlu0 %5040
        %5042 = vrot.lane.b32.xlu0 %v5005, 127
        %v5043 = vpop.permute.xlu0 %5042
        %5044 = vrot.lane.b32.xlu0 %v5006, 127
        %v5045 = vpop.permute.xlu0 %5044
        %5046 = vrot.lane.b32.xlu0 %v5007, 127
        %v5047 = vpop.permute.xlu0 %5046
        %5048 = vrot.lane.b32.xlu0 %v5008, 127
        %v5049 = vpop.permute.xlu0 %5048
        %5050 = vrot.lane.b32.xlu0 %v5009, 127
        %v5051 = vpop.permute.xlu0 %5050
        %5052 = vrot.lane.b32.xlu0 %v5010, 127
        %v5053 = vpop.permute.xlu0 %5052
        %5054 = vrot.lane.b32.xlu0 %v5011, 127
        %v5055 = vpop.permute.xlu0 %5054
        %5056 = vrot.lane.b32.xlu0 %v5012, 127
        %v5057 = vpop.permute.xlu0 %5056
        %5058 = vrot.lane.b32.xlu0 %v5013, 127
        %v5059 = vpop.permute.xlu0 %5058
        %5060 = vrot.lane.b32.xlu0 %v5014, 127
        %v5061 = vpop.permute.xlu0 %5060
        %5062 = vrot.lane.b32.xlu0 %v5015, 127
        %v5063 = vpop.permute.xlu0 %5062
        %5080 = vst.msk [vmem:[#allocation3 + $0x100] sm:$0xff] %vm670, %v5033
        %5081 = vst.msk [vmem:[#allocation3 + $0x110] sm:$0xff] %vm670, %v5035
        %5082 = vst.msk [vmem:[#allocation3 + $0x120] sm:$0xff] %vm670, %v5037
        %5083 = vst.msk [vmem:[#allocation3 + $0x130] sm:$0xff] %vm670, %v5039
        %5084 = vst.msk [vmem:[#allocation3 + $0x140] sm:$0xff] %vm670, %v5041
        %5085 = vst.msk [vmem:[#allocation3 + $0x150] sm:$0xff] %vm670, %v5043
        %5086 = vst.msk [vmem:[#allocation3 + $0x160] sm:$0xff] %vm670, %v5045
        %5087 = vst.msk [vmem:[#allocation3 + $0x170] sm:$0xff] %vm670, %v5047
        %5088 = vst.msk [vmem:[#allocation3 + $0x180] sm:$0xff] %vm670, %v5049
        %5089 = vst.msk [vmem:[#allocation3 + $0x190] sm:$0xff] %vm670, %v5051
        %5090 = vst.msk [vmem:[#allocation3 + $0x1a0] sm:$0xff] %vm670, %v5053
        %5091 = vst.msk [vmem:[#allocation3 + $0x1b0] sm:$0xff] %vm670, %v5055
        %5092 = vst.msk [vmem:[#allocation3 + $0x1c0] sm:$0xff] %vm670, %v5057
        %5093 = vst.msk [vmem:[#allocation3 + $0x1d0] sm:$0xff] %vm670, %v5059
        %5094 = vst.msk [vmem:[#allocation3 + $0x1e0] sm:$0xff] %vm670, %v5061
        %5095 = vst.msk [vmem:[#allocation3 + $0x1f0] sm:$0xff] %vm670, %v5063
        %v5096 = vld [vmem:[#allocation2] sm:$0xff]
        %v5097 = vld [vmem:[#allocation2 + $0x18] sm:$0xff]
        %v5098 = vld [vmem:[#allocation2 + $0x30] sm:$0xff]
        %v5099 = vld [vmem:[#allocation2 + $0x48] sm:$0xff]
        %v5100 = vld [vmem:[#allocation2 + $0x60] sm:$0xff]
        %v5101 = vld [vmem:[#allocation2 + $0x78] sm:$0xff]
        %v5102 = vld [vmem:[#allocation2 + $0x90] sm:$0xff]
        %v5103 = vld [vmem:[#allocation2 + $0xa8] sm:$0xff]
        %v5104 = vld [vmem:[#allocation2 + $0xc0] sm:$0xff]
        %v5105 = vld [vmem:[#allocation2 + $0xd8] sm:$0xff]
        %v5106 = vld [vmem:[#allocation2 + $0xf0] sm:$0xff]
        %v5107 = vld [vmem:[#allocation2 + $0x108] sm:$0xff]
        %v5108 = vld [vmem:[#allocation2 + $0x120] sm:$0xff]
        %v5109 = vld [vmem:[#allocation2 + $0x138] sm:$0xff]
        %v5110 = vld [vmem:[#allocation2 + $0x150] sm:$0xff]
        %v5111 = vld [vmem:[#allocation2 + $0x168] sm:$0xff]
        %5128 = vrot.lane.b32.xlu0 %v5096, 126
        %v5129 = vpop.permute.xlu0 %5128
        %5130 = vrot.lane.b32.xlu0 %v5097, 126
        %v5131 = vpop.permute.xlu0 %5130
        %5132 = vrot.lane.b32.xlu0 %v5098, 126
        %v5133 = vpop.permute.xlu0 %5132
        %5134 = vrot.lane.b32.xlu0 %v5099, 126
        %v5135 = vpop.permute.xlu0 %5134
        %5136 = vrot.lane.b32.xlu0 %v5100, 126
        %v5137 = vpop.permute.xlu0 %5136
        %5138 = vrot.lane.b32.xlu0 %v5101, 126
        %v5139 = vpop.permute.xlu0 %5138
        %5140 = vrot.lane.b32.xlu0 %v5102, 126
        %v5141 = vpop.permute.xlu0 %5140
        %5142 = vrot.lane.b32.xlu0 %v5103, 126
        %v5143 = vpop.permute.xlu0 %5142
        %5144 = vrot.lane.b32.xlu0 %v5104, 126
        %v5145 = vpop.permute.xlu0 %5144
        %5146 = vrot.lane.b32.xlu0 %v5105, 126
        %v5147 = vpop.permute.xlu0 %5146
        %5148 = vrot.lane.b32.xlu0 %v5106, 126
        %v5149 = vpop.permute.xlu0 %5148
        %5150 = vrot.lane.b32.xlu0 %v5107, 126
        %v5151 = vpop.permute.xlu0 %5150
        %5152 = vrot.lane.b32.xlu0 %v5108, 126
        %v5153 = vpop.permute.xlu0 %5152
        %5154 = vrot.lane.b32.xlu0 %v5109, 126
        %v5155 = vpop.permute.xlu0 %5154
        %5156 = vrot.lane.b32.xlu0 %v5110, 126
        %v5157 = vpop.permute.xlu0 %5156
        %5158 = vrot.lane.b32.xlu0 %v5111, 126
        %v5159 = vpop.permute.xlu0 %5158
        %5176 = vst.msk [vmem:[#allocation3 + $0x200] sm:$0xff] %vm670, %v5129
        %5177 = vst.msk [vmem:[#allocation3 + $0x210] sm:$0xff] %vm670, %v5131
        %5178 = vst.msk [vmem:[#allocation3 + $0x220] sm:$0xff] %vm670, %v5133
        %5179 = vst.msk [vmem:[#allocation3 + $0x230] sm:$0xff] %vm670, %v5135
        %5180 = vst.msk [vmem:[#allocation3 + $0x240] sm:$0xff] %vm670, %v5137
        %5181 = vst.msk [vmem:[#allocation3 + $0x250] sm:$0xff] %vm670, %v5139
        %5182 = vst.msk [vmem:[#allocation3 + $0x260] sm:$0xff] %vm670, %v5141
        %5183 = vst.msk [vmem:[#allocation3 + $0x270] sm:$0xff] %vm670, %v5143
        %5184 = vst.msk [vmem:[#allocation3 + $0x280] sm:$0xff] %vm670, %v5145
        %5185 = vst.msk [vmem:[#allocation3 + $0x290] sm:$0xff] %vm670, %v5147
        %5186 = vst.msk [vmem:[#allocation3 + $0x2a0] sm:$0xff] %vm670, %v5149
        %5187 = vst.msk [vmem:[#allocation3 + $0x2b0] sm:$0xff] %vm670, %v5151
        %5188 = vst.msk [vmem:[#allocation3 + $0x2c0] sm:$0xff] %vm670, %v5153
        %5189 = vst.msk [vmem:[#allocation3 + $0x2d0] sm:$0xff] %vm670, %v5155
        %5190 = vst.msk [vmem:[#allocation3 + $0x2e0] sm:$0xff] %vm670, %v5157
        %5191 = vst.msk [vmem:[#allocation3 + $0x2f0] sm:$0xff] %vm670, %v5159
        %v5192 = vld [vmem:[#allocation3] sm:$0xff]
        %v5193 = vld [vmem:[#allocation3 + $0x10] sm:$0xff]
        %v5194 = vld [vmem:[#allocation3 + $0x20] sm:$0xff]
        %v5195 = vld [vmem:[#allocation3 + $0x30] sm:$0xff]
        %v5196 = vld [vmem:[#allocation3 + $0x40] sm:$0xff]
        %v5197 = vld [vmem:[#allocation3 + $0x50] sm:$0xff]
        %v5198 = vld [vmem:[#allocation3 + $0x60] sm:$0xff]
        %v5199 = vld [vmem:[#allocation3 + $0x70] sm:$0xff]
        %v5200 = vld [vmem:[#allocation3 + $0x80] sm:$0xff]
        %v5201 = vld [vmem:[#allocation3 + $0x90] sm:$0xff]
        %v5202 = vld [vmem:[#allocation3 + $0xa0] sm:$0xff]
        %v5203 = vld [vmem:[#allocation3 + $0xb0] sm:$0xff]
        %v5204 = vld [vmem:[#allocation3 + $0xc0] sm:$0xff]
        %v5205 = vld [vmem:[#allocation3 + $0xd0] sm:$0xff]
        %v5206 = vld [vmem:[#allocation3 + $0xe0] sm:$0xff]
        %v5207 = vld [vmem:[#allocation3 + $0xf0] sm:$0xff]
        %v5208 = vld [vmem:[#allocation3 + $0x100] sm:$0xff]
        %v5209 = vld [vmem:[#allocation3 + $0x110] sm:$0xff]
        %v5210 = vld [vmem:[#allocation3 + $0x120] sm:$0xff]
        %v5211 = vld [vmem:[#allocation3 + $0x130] sm:$0xff]
        %v5212 = vld [vmem:[#allocation3 + $0x140] sm:$0xff]
        %v5213 = vld [vmem:[#allocation3 + $0x150] sm:$0xff]
        %v5214 = vld [vmem:[#allocation3 + $0x160] sm:$0xff]
        %v5215 = vld [vmem:[#allocation3 + $0x170] sm:$0xff]
        %v5216 = vld [vmem:[#allocation3 + $0x180] sm:$0xff]
        %v5217 = vld [vmem:[#allocation3 + $0x190] sm:$0xff]
        %v5218 = vld [vmem:[#allocation3 + $0x1a0] sm:$0xff]
        %v5219 = vld [vmem:[#allocation3 + $0x1b0] sm:$0xff]
        %v5220 = vld [vmem:[#allocation3 + $0x1c0] sm:$0xff]
        %v5221 = vld [vmem:[#allocation3 + $0x1d0] sm:$0xff]
        %v5222 = vld [vmem:[#allocation3 + $0x1e0] sm:$0xff]
        %v5223 = vld [vmem:[#allocation3 + $0x1f0] sm:$0xff]
        %v5224 = vld [vmem:[#allocation3 + $0x200] sm:$0xff]
        %v5225 = vld [vmem:[#allocation3 + $0x210] sm:$0xff]
        %v5226 = vld [vmem:[#allocation3 + $0x220] sm:$0xff]
        %v5227 = vld [vmem:[#allocation3 + $0x230] sm:$0xff]
        %v5228 = vld [vmem:[#allocation3 + $0x240] sm:$0xff]
        %v5229 = vld [vmem:[#allocation3 + $0x250] sm:$0xff]
        %v5230 = vld [vmem:[#allocation3 + $0x260] sm:$0xff]
        %v5231 = vld [vmem:[#allocation3 + $0x270] sm:$0xff]
        %v5232 = vld [vmem:[#allocation3 + $0x280] sm:$0xff]
        %v5233 = vld [vmem:[#allocation3 + $0x290] sm:$0xff]
        %v5234 = vld [vmem:[#allocation3 + $0x2a0] sm:$0xff]
        %v5235 = vld [vmem:[#allocation3 + $0x2b0] sm:$0xff]
        %v5236 = vld [vmem:[#allocation3 + $0x2c0] sm:$0xff]
        %v5237 = vld [vmem:[#allocation3 + $0x2d0] sm:$0xff]
        %v5238 = vld [vmem:[#allocation3 + $0x2e0] sm:$0xff]
        %v5239 = vld [vmem:[#allocation3 + $0x2f0] sm:$0xff]
        %v5240 = vld [vmem:[%s15] sm:$0xff]
        %v5241 = vld [vmem:[%s15 + $0x8] sm:$0xf]
        %v5242 = vld [vmem:[%s15 + $0xc] sm:$0xff]
        %v5243 = vld [vmem:[%s15 + $0x14] sm:$0xf]
        %v5244 = vld [vmem:[%s15 + $0x18] sm:$0xff]
        %v5245 = vld [vmem:[%s15 + $0x20] sm:$0xf]
        %v5246 = vld [vmem:[%s15 + $0x24] sm:$0xff]
        %v5247 = vld [vmem:[%s15 + $0x2c] sm:$0xf]
        %v5248 = vld [vmem:[%s15 + $0x30] sm:$0xff]
        %v5249 = vld [vmem:[%s15 + $0x38] sm:$0xf]
        %v5250 = vld [vmem:[%s15 + $0x3c] sm:$0xff]
        %v5251 = vld [vmem:[%s15 + $0x44] sm:$0xf]
        %v5252 = vld [vmem:[%s15 + $0x48] sm:$0xff]
        %v5253 = vld [vmem:[%s15 + $0x50] sm:$0xf]
        %v5254 = vld [vmem:[%s15 + $0x54] sm:$0xff]
        %v5255 = vld [vmem:[%s15 + $0x5c] sm:$0xf]
        %v5256 = vld [vmem:[%s15 + $0x60] sm:$0xff]
        %v5257 = vld [vmem:[%s15 + $0x68] sm:$0xf]
        %v5258 = vld [vmem:[%s15 + $0x6c] sm:$0xff]
        %v5259 = vld [vmem:[%s15 + $0x74] sm:$0xf]
        %v5260 = vld [vmem:[%s15 + $0x78] sm:$0xff]
        %v5261 = vld [vmem:[%s15 + $0x80] sm:$0xf]
        %v5262 = vld [vmem:[%s15 + $0x84] sm:$0xff]
        %v5263 = vld [vmem:[%s15 + $0x8c] sm:$0xf]
        %v5264 = vld [vmem:[%s15 + $0x90] sm:$0xff]
        %v5265 = vld [vmem:[%s15 + $0x98] sm:$0xf]
        %v5266 = vld [vmem:[%s15 + $0x9c] sm:$0xff]
        %v5267 = vld [vmem:[%s15 + $0xa4] sm:$0xf]
        %v5268 = vld [vmem:[%s15 + $0xa8] sm:$0xff]
        %v5269 = vld [vmem:[%s15 + $0xb0] sm:$0xf]
        %v5270 = vld [vmem:[%s15 + $0xb4] sm:$0xff]
        %v5271 = vld [vmem:[%s15 + $0xbc] sm:$0xf]
        %v5272 = vpack.c.bf16 %v5193, %v5192
        %v5273 = vpack.c.bf16 %v5195, %v5194
        %v5274 = vpack.c.bf16 %v5197, %v5196
        %v5275 = vpack.c.bf16 %v5199, %v5198
        %v5276 = vpack.c.bf16 %v5201, %v5200
        %v5277 = vpack.c.bf16 %v5203, %v5202
        %v5278 = vpack.c.bf16 %v5205, %v5204
        %v5279 = vpack.c.bf16 %v5207, %v5206
        %v5280 = vpack.c.bf16 %v5209, %v5208
        %v5281 = vpack.c.bf16 %v5211, %v5210
        %v5282 = vpack.c.bf16 %v5213, %v5212
        %v5283 = vpack.c.bf16 %v5215, %v5214
        %v5284 = vpack.c.bf16 %v5217, %v5216
        %v5285 = vpack.c.bf16 %v5219, %v5218
        %v5286 = vpack.c.bf16 %v5221, %v5220
        %v5287 = vpack.c.bf16 %v5223, %v5222
        %v5288 = vpack.c.bf16 %v5225, %v5224
        %v5289 = vpack.c.bf16 %v5227, %v5226
        %v5290 = vpack.c.bf16 %v5229, %v5228
        %v5291 = vpack.c.bf16 %v5231, %v5230
        %v5292 = vpack.c.bf16 %v5233, %v5232
        %v5293 = vpack.c.bf16 %v5235, %v5234
        %v5294 = vpack.c.bf16 %v5237, %v5236
        %v5295 = vpack.c.bf16 %v5239, %v5238
        %v5296 = vld [vmem:[%s16] sm:$0xff]
        %v5297 = vld [vmem:[%s16 + $0x8] sm:$0xff]
        %v5298 = vld [vmem:[%s16 + $0x10] sm:$0xff]
        %v5299 = vld [vmem:[%s16 + $0x18] sm:$0xff]
        %v5300 = vld [vmem:[%s16 + $0x20] sm:$0xff]
        %v5301 = vld [vmem:[%s16 + $0x28] sm:$0xff]
        %v5302 = vld [vmem:[%s16 + $0x30] sm:$0xff]
        %v5303 = vld [vmem:[%s16 + $0x38] sm:$0xff]
        %v5304 = vld [vmem:[%s16 + $0x40] sm:$0xff]
        %v5305 = vld [vmem:[%s16 + $0x48] sm:$0xff]
        %v5306 = vld [vmem:[%s16 + $0x50] sm:$0xff]
        %v5307 = vld [vmem:[%s16 + $0x58] sm:$0xff]
        %v5308 = vld [vmem:[%s16 + $0x60] sm:$0xff]
        %v5309 = vld [vmem:[%s16 + $0x68] sm:$0xff]
        %v5310 = vld [vmem:[%s16 + $0x70] sm:$0xff]
        %v5311 = vld [vmem:[%s16 + $0x78] sm:$0xff]
        %5313 = vset.pattern.permute.xlu0 0
        %5314 = vperm.xlu0 %5313, %v5296
        %v5315 = vpop.permute.xlu0 %5314
        %5318 = vset.pattern.permute.xlu0 0
        %5319 = vperm.xlu0 %5318, %v5297
        %v5320 = vpop.permute.xlu0 %5319
        %5323 = vset.pattern.permute.xlu0 0
        %5324 = vperm.xlu0 %5323, %v5298
        %v5325 = vpop.permute.xlu0 %5324
        %5328 = vset.pattern.permute.xlu0 0
        %5329 = vperm.xlu0 %5328, %v5299
        %v5330 = vpop.permute.xlu0 %5329
        %5333 = vset.pattern.permute.xlu0 0
        %5334 = vperm.xlu0 %5333, %v5300
        %v5335 = vpop.permute.xlu0 %5334
        %5338 = vset.pattern.permute.xlu0 0
        %5339 = vperm.xlu0 %5338, %v5301
        %v5340 = vpop.permute.xlu0 %5339
        %5343 = vset.pattern.permute.xlu0 0
        %5344 = vperm.xlu0 %5343, %v5302
        %v5345 = vpop.permute.xlu0 %5344
        %5348 = vset.pattern.permute.xlu0 0
        %5349 = vperm.xlu0 %5348, %v5303
        %v5350 = vpop.permute.xlu0 %5349
        %5353 = vset.pattern.permute.xlu0 0
        %5354 = vperm.xlu0 %5353, %v5304
        %v5355 = vpop.permute.xlu0 %5354
        %5358 = vset.pattern.permute.xlu0 0
        %5359 = vperm.xlu0 %5358, %v5305
        %v5360 = vpop.permute.xlu0 %5359
        %5363 = vset.pattern.permute.xlu0 0
        %5364 = vperm.xlu0 %5363, %v5306
        %v5365 = vpop.permute.xlu0 %5364
        %5368 = vset.pattern.permute.xlu0 0
        %5369 = vperm.xlu0 %5368, %v5307
        %v5370 = vpop.permute.xlu0 %5369
        %5373 = vset.pattern.permute.xlu0 0
        %5374 = vperm.xlu0 %5373, %v5308
        %v5375 = vpop.permute.xlu0 %5374
        %5378 = vset.pattern.permute.xlu0 0
        %5379 = vperm.xlu0 %5378, %v5309
        %v5380 = vpop.permute.xlu0 %5379
        %5383 = vset.pattern.permute.xlu0 0
        %5384 = vperm.xlu0 %5383, %v5310
        %v5385 = vpop.permute.xlu0 %5384
        %5388 = vset.pattern.permute.xlu0 0
        %5389 = vperm.xlu0 %5388, %v5311
        %v5390 = vpop.permute.xlu0 %5389
        %v5424 = vunpack.c.l.b16 %v5240
        %v5425 = vunpack.c.h.b16 %v5240
        %v5426 = vunpack.c.l.b16 %v5241
        %v5427 = vunpack.c.l.b16 %v5242
        %v5428 = vunpack.c.h.b16 %v5242
        %v5429 = vunpack.c.l.b16 %v5243
        %v5430 = vunpack.c.l.b16 %v5244
        %v5431 = vunpack.c.h.b16 %v5244
        %v5432 = vunpack.c.l.b16 %v5245
        %v5433 = vunpack.c.l.b16 %v5246
        %v5434 = vunpack.c.h.b16 %v5246
        %v5435 = vunpack.c.l.b16 %v5247
        %v5436 = vunpack.c.l.b16 %v5248
        %v5437 = vunpack.c.h.b16 %v5248
        %v5438 = vunpack.c.l.b16 %v5249
        %v5439 = vunpack.c.l.b16 %v5250
        %v5440 = vunpack.c.h.b16 %v5250
        %v5441 = vunpack.c.l.b16 %v5251
        %v5442 = vunpack.c.l.b16 %v5252
        %v5443 = vunpack.c.h.b16 %v5252
        %v5444 = vunpack.c.l.b16 %v5253
        %v5445 = vunpack.c.l.b16 %v5254
        %v5446 = vunpack.c.h.b16 %v5254
        %v5447 = vunpack.c.l.b16 %v5255
        %v5448 = vunpack.c.l.b16 %v5256
        %v5449 = vunpack.c.h.b16 %v5256
        %v5450 = vunpack.c.l.b16 %v5257
        %v5451 = vunpack.c.l.b16 %v5258
        %v5452 = vunpack.c.h.b16 %v5258
        %v5453 = vunpack.c.l.b16 %v5259
        %v5454 = vunpack.c.l.b16 %v5260
        %v5455 = vunpack.c.h.b16 %v5260
        %v5456 = vunpack.c.l.b16 %v5261
        %v5457 = vunpack.c.l.b16 %v5262
        %v5458 = vunpack.c.h.b16 %v5262
        %v5459 = vunpack.c.l.b16 %v5263
        %v5460 = vunpack.c.l.b16 %v5264
        %v5461 = vunpack.c.h.b16 %v5264
        %v5462 = vunpack.c.l.b16 %v5265
        %v5463 = vunpack.c.l.b16 %v5266
        %v5464 = vunpack.c.h.b16 %v5266
        %v5465 = vunpack.c.l.b16 %v5267
        %v5466 = vunpack.c.l.b16 %v5268
        %v5467 = vunpack.c.h.b16 %v5268
        %v5468 = vunpack.c.l.b16 %v5269
        %v5469 = vunpack.c.l.b16 %v5270
        %v5470 = vunpack.c.h.b16 %v5270
        %v5471 = vunpack.c.l.b16 %v5271
        %v5472 = vpack.c.b16 %v5427, %v5424
        %v5473 = vpack.c.b16 %v5428, %v5425
        %v5474 = vpack.c.b16 %v5429, %v5426
        %v5475 = vpack.c.b16 %v5433, %v5430
        %v5476 = vpack.c.b16 %v5434, %v5431
        %v5477 = vpack.c.b16 %v5435, %v5432
        %v5478 = vpack.c.b16 %v5439, %v5436
        %v5479 = vpack.c.b16 %v5440, %v5437
        %v5480 = vpack.c.b16 %v5441, %v5438
        %v5481 = vpack.c.b16 %v5445, %v5442
        %v5482 = vpack.c.b16 %v5446, %v5443
        %v5483 = vpack.c.b16 %v5447, %v5444
        %v5484 = vpack.c.b16 %v5451, %v5448
        %v5485 = vpack.c.b16 %v5452, %v5449
        %v5486 = vpack.c.b16 %v5453, %v5450
        %v5487 = vpack.c.b16 %v5457, %v5454
        %v5488 = vpack.c.b16 %v5458, %v5455
        %v5489 = vpack.c.b16 %v5459, %v5456
        %v5490 = vpack.c.b16 %v5463, %v5460
        %v5491 = vpack.c.b16 %v5464, %v5461
        %v5492 = vpack.c.b16 %v5465, %v5462
        %v5493 = vpack.c.b16 %v5469, %v5466
        %v5494 = vpack.c.b16 %v5470, %v5467
        %v5495 = vpack.c.b16 %v5471, %v5468
        %5520 = vmatprep.subr.bf16.mxu0 0
        %5521 = vmatpush1.bf16.msra.mxu0 %v5272
        %5522 = vmatprep.subr.bf16.mxu0 0
        %5523 = vmatpush1.bf16.msra.mxu0 %v5273
        %5524 = vmatprep.subr.bf16.mxu0 0
        %5525 = vmatpush1.bf16.msra.mxu0 %v5274
        %5526 = vmatprep.subr.bf16.mxu0 0
        %5527 = vmatpush1.bf16.msra.mxu0 %v5275
        %5528 = vmatprep.subr.bf16.mxu0 0
        %5529 = vmatpush1.bf16.msra.mxu0 %v5276
        %5530 = vmatprep.subr.bf16.mxu0 0
        %5531 = vmatpush1.bf16.msra.mxu0 %v5277
        %5532 = vmatprep.subr.bf16.mxu0 0
        %5533 = vmatpush1.bf16.msra.mxu0 %v5278
        %5534 = vmatprep.subr.bf16.mxu0 0
        %5535 = vmatpush1.bf16.msra.mxu0 %v5279
        %5536 = vmatprep.subr.bf16.mxu0 0
        %5537 = vmatpush1.bf16.msra.mxu0 %v5280
        %5538 = vmatprep.subr.bf16.mxu0 0
        %5539 = vmatpush1.bf16.msra.mxu0 %v5281
        %5540 = vmatprep.subr.bf16.mxu0 0
        %5541 = vmatpush1.bf16.msra.mxu0 %v5282
        %5542 = vmatprep.subr.bf16.mxu0 0
        %5543 = vmatpush1.bf16.msra.mxu0 %v5283
        %5544 = vmatprep.subr.bf16.mxu0 0
        %5545 = vmatpush1.bf16.msra.mxu0 %v5284
        %5546 = vmatprep.subr.bf16.mxu0 0
        %5547 = vmatpush1.bf16.msra.mxu0 %v5285
        %5548 = vmatprep.subr.bf16.mxu0 0
        %5549 = vmatpush1.bf16.msra.mxu0 %v5286
        %5550 = vmatprep.subr.bf16.mxu0 0
        %5551 = vmatpush1.bf16.msra.mxu0 %v5287
        %5552 = vmatprep.mubr.bf16.mxu0 %v5473
        %5553 = vmatmul.mubr.bf16.gmra.mrb[0].mxu0 %v5472
        %v5554 = vpop.f32.mrb[0].mxu0
        %v5555 = vadd.f32 %v5315, %v5554
        %v5556 = vpop.f32.mrb[0].mxu0
        %v5557 = vpop.f32.mrb[0].mxu0
        %v5558 = vadd.f32 %v5320, %v5557
        %v5559 = vpop.f32.mrb[0].mxu0
        %5560 = vmatprep.mubr.bf16.mxu0 %v5476
        %5561 = vmatmul.mubr.bf16.gmra.mrb[0].mxu0 %v5475
        %v5562 = vpop.f32.mrb[0].mxu0
        %v5563 = vadd.f32 %v5325, %v5562
        %v5564 = vpop.f32.mrb[0].mxu0
        %v5565 = vpop.f32.mrb[0].mxu0
        %v5566 = vadd.f32 %v5330, %v5565
        %v5567 = vpop.f32.mrb[0].mxu0
        %5568 = vmatprep.mubr.bf16.mxu0 %v5479
        %5569 = vmatmul.mubr.bf16.gmra.mrb[0].mxu0 %v5478
        %v5570 = vpop.f32.mrb[0].mxu0
        %v5571 = vadd.f32 %v5335, %v5570
        %v5572 = vpop.f32.mrb[0].mxu0
        %v5573 = vpop.f32.mrb[0].mxu0
        %v5574 = vadd.f32 %v5340, %v5573
        %v5575 = vpop.f32.mrb[0].mxu0
        %5576 = vmatprep.mubr.bf16.mxu0 %v5482
        %5577 = vmatmul.mubr.bf16.gmra.mrb[0].mxu0 %v5481
        %v5578 = vpop.f32.mrb[0].mxu0
        %v5579 = vadd.f32 %v5345, %v5578
        %v5580 = vpop.f32.mrb[0].mxu0
        %v5581 = vpop.f32.mrb[0].mxu0
        %v5582 = vadd.f32 %v5350, %v5581
        %v5583 = vpop.f32.mrb[0].mxu0
        %5584 = vmatprep.mubr.bf16.mxu0 %v5485
        %5585 = vmatmul.mubr.bf16.gmra.mrb[0].mxu0 %v5484
        %v5586 = vpop.f32.mrb[0].mxu0
        %v5587 = vadd.f32 %v5355, %v5586
        %v5588 = vpop.f32.mrb[0].mxu0
        %v5589 = vpop.f32.mrb[0].mxu0
        %v5590 = vadd.f32 %v5360, %v5589
        %v5591 = vpop.f32.mrb[0].mxu0
        %5592 = vmatprep.mubr.bf16.mxu0 %v5488
        %5593 = vmatmul.mubr.bf16.gmra.mrb[0].mxu0 %v5487
        %v5594 = vpop.f32.mrb[0].mxu0
        %v5595 = vadd.f32 %v5365, %v5594
        %v5596 = vpop.f32.mrb[0].mxu0
        %v5597 = vpop.f32.mrb[0].mxu0
        %v5598 = vadd.f32 %v5370, %v5597
        %v5599 = vpop.f32.mrb[0].mxu0
        %5600 = vmatprep.mubr.bf16.mxu0 %v5491
        %5601 = vmatmul.mubr.bf16.gmra.mrb[0].mxu0 %v5490
        %v5602 = vpop.f32.mrb[0].mxu0
        %v5603 = vadd.f32 %v5375, %v5602
        %v5604 = vpop.f32.mrb[0].mxu0
        %v5605 = vpop.f32.mrb[0].mxu0
        %v5606 = vadd.f32 %v5380, %v5605
        %v5607 = vpop.f32.mrb[0].mxu0
        %5608 = vmatprep.mubr.bf16.mxu0 %v5494
        %5609 = vmatmul.mubr.bf16.gmra.mrb[0].mxu0 %v5493
        %v5610 = vpop.f32.mrb[0].mxu0
        %v5611 = vadd.f32 %v5385, %v5610
        %v5612 = vpop.f32.mrb[0].mxu0
        %v5613 = vpop.f32.mrb[0].mxu0
        %v5614 = vadd.f32 %v5390, %v5613
        %v5615 = vpop.f32.mrb[0].mxu0
        %5616 = vdwg.mxu0
        %5617 = vmatprep.subr.bf16.mxu0 0
        %5618 = vmatpush1.bf16.msra.mxu0 %v5288
        %5619 = vmatprep.subr.bf16.mxu0 0
        %5620 = vmatpush1.bf16.msra.mxu0 %v5289
        %5621 = vmatprep.subr.bf16.mxu0 0
        %5622 = vmatpush1.bf16.msra.mxu0 %v5290
        %5623 = vmatprep.subr.bf16.mxu0 0
        %5624 = vmatpush1.bf16.msra.mxu0 %v5291
        %5625 = vmatprep.subr.bf16.mxu0 0
        %5626 = vmatpush1.bf16.msra.mxu0 %v5292
        %5627 = vmatprep.subr.bf16.mxu0 0
        %5628 = vmatpush1.bf16.msra.mxu0 %v5293
        %5629 = vmatprep.subr.bf16.mxu0 0
        %5630 = vmatpush1.bf16.msra.mxu0 %v5294
        %5631 = vmatprep.subr.bf16.mxu0 0
        %5632 = vmatpush1.bf16.msra.mxu0 %v5295
        %5633 = vmatprep.subr.bf16.mxu0 0
        %5634 = vmatpush1.bf16.msra.mxu0 0
        %5635 = vmatprep.subr.bf16.mxu0 0
        %5636 = vmatpush1.bf16.msra.mxu0 0
        %5637 = vmatprep.subr.bf16.mxu0 0
        %5638 = vmatpush1.bf16.msra.mxu0 0
        %5639 = vmatprep.subr.bf16.mxu0 0
        %5640 = vmatpush1.bf16.msra.mxu0 0
        %5641 = vmatprep.subr.bf16.mxu0 0
        %5642 = vmatpush1.bf16.msra.mxu0 0
        %5643 = vmatprep.subr.bf16.mxu0 0
        %5644 = vmatpush1.bf16.msra.mxu0 0
        %5645 = vmatprep.subr.bf16.mxu0 0
        %5646 = vmatpush1.bf16.msra.mxu0 0
        %5647 = vmatprep.subr.bf16.mxu0 0
        %5648 = vmatpush1.bf16.msra.mxu0 0
        %5649 = vmatprep.mubr.bf16.mxu0 0
        %5650 = vmatmul.mubr.bf16.gmra.mrb[0].mxu0 %v5474
        %v5651 = vpop.f32.mrb[0].mxu0
        %v5652 = vadd.f32 %v5555, %v5651
        %v5653 = vpop.f32.mrb[0].mxu0
        %v5654 = vpop.f32.mrb[0].mxu0
        %v5655 = vadd.f32 %v5558, %v5654
        %v5656 = vpop.f32.mrb[0].mxu0
        %5657 = vmatprep.mubr.bf16.mxu0 0
        %5658 = vmatmul.mubr.bf16.gmra.mrb[0].mxu0 %v5477
        %v5659 = vpop.f32.mrb[0].mxu0
        %v5660 = vadd.f32 %v5563, %v5659
        %v5661 = vpop.f32.mrb[0].mxu0
        %v5662 = vpop.f32.mrb[0].mxu0
        %v5663 = vadd.f32 %v5566, %v5662
        %v5664 = vpop.f32.mrb[0].mxu0
        %5665 = vmatprep.mubr.bf16.mxu0 0
        %5666 = vmatmul.mubr.bf16.gmra.mrb[0].mxu0 %v5480
        %v5667 = vpop.f32.mrb[0].mxu0
        %v5668 = vadd.f32 %v5571, %v5667
        %v5669 = vpop.f32.mrb[0].mxu0
        %v5670 = vpop.f32.mrb[0].mxu0
        %v5671 = vadd.f32 %v5574, %v5670
        %v5672 = vpop.f32.mrb[0].mxu0
        %5673 = vmatprep.mubr.bf16.mxu0 0
        %5674 = vmatmul.mubr.bf16.gmra.mrb[0].mxu0 %v5483
        %v5675 = vpop.f32.mrb[0].mxu0
        %v5676 = vadd.f32 %v5579, %v5675
        %v5677 = vpop.f32.mrb[0].mxu0
        %v5678 = vpop.f32.mrb[0].mxu0
        %v5679 = vadd.f32 %v5582, %v5678
        %v5680 = vpop.f32.mrb[0].mxu0
        %5681 = vmatprep.mubr.bf16.mxu0 0
        %5682 = vmatmul.mubr.bf16.gmra.mrb[0].mxu0 %v5486
        %v5683 = vpop.f32.mrb[0].mxu0
        %v5684 = vadd.f32 %v5587, %v5683
        %v5685 = vpop.f32.mrb[0].mxu0
        %v5686 = vpop.f32.mrb[0].mxu0
        %v5687 = vadd.f32 %v5590, %v5686
        %v5688 = vpop.f32.mrb[0].mxu0
        %5689 = vmatprep.mubr.bf16.mxu0 0
        %5690 = vmatmul.mubr.bf16.gmra.mrb[0].mxu0 %v5489
        %v5691 = vpop.f32.mrb[0].mxu0
        %v5692 = vadd.f32 %v5595, %v5691
        %v5693 = vpop.f32.mrb[0].mxu0
        %v5694 = vpop.f32.mrb[0].mxu0
        %v5695 = vadd.f32 %v5598, %v5694
        %v5696 = vpop.f32.mrb[0].mxu0
        %5697 = vmatprep.mubr.bf16.mxu0 0
        %5698 = vmatmul.mubr.bf16.gmra.mrb[0].mxu0 %v5492
        %v5699 = vpop.f32.mrb[0].mxu0
        %v5700 = vadd.f32 %v5603, %v5699
        %v5701 = vpop.f32.mrb[0].mxu0
        %v5702 = vpop.f32.mrb[0].mxu0
        %v5703 = vadd.f32 %v5606, %v5702
        %v5704 = vpop.f32.mrb[0].mxu0
        %5705 = vmatprep.mubr.bf16.mxu0 0
        %5706 = vmatmul.mubr.bf16.gmra.mrb[0].mxu0 %v5495
        %v5707 = vpop.f32.mrb[0].mxu0
        %v5708 = vadd.f32 %v5611, %v5707
        %v5709 = vpop.f32.mrb[0].mxu0
        %v5710 = vpop.f32.mrb[0].mxu0
        %v5711 = vadd.f32 %v5614, %v5710
        %v5712 = vpop.f32.mrb[0].mxu0
        %5713 = vdwg.mxu0
        %v5714 = vmax.f32 %v5652, 0.0
        %v5715 = vmax.f32 %v5655, 0.0
        %v5716 = vmax.f32 %v5660, 0.0
        %v5717 = vmax.f32 %v5663, 0.0
        %v5718 = vmax.f32 %v5668, 0.0
        %v5719 = vmax.f32 %v5671, 0.0
        %v5720 = vmax.f32 %v5676, 0.0
        %v5721 = vmax.f32 %v5679, 0.0
        %v5722 = vmax.f32 %v5684, 0.0
        %v5723 = vmax.f32 %v5687, 0.0
        %v5724 = vmax.f32 %v5692, 0.0
        %v5725 = vmax.f32 %v5695, 0.0
        %v5726 = vmax.f32 %v5700, 0.0
        %v5727 = vmax.f32 %v5703, 0.0
        %v5728 = vmax.f32 %v5708, 0.0
        %v5729 = vmax.f32 %v5711, 0.0
        %5730 = vst.msk [vmem:[%s659] sm:$0xff] %vm670, %v5714
        %5731 = vst.msk [vmem:[%s659 + $0x8] sm:$0xff] %vm670, %v5715
        %5732 = vst.msk [vmem:[%s659 + $0x10] sm:$0xff] %vm670, %v5716
        %5733 = vst.msk [vmem:[%s659 + $0x18] sm:$0xff] %vm670, %v5717
        %5734 = vst.msk [vmem:[%s659 + $0x20] sm:$0xff] %vm670, %v5718
        %5735 = vst.msk [vmem:[%s659 + $0x28] sm:$0xff] %vm670, %v5719
        %5736 = vst.msk [vmem:[%s659 + $0x30] sm:$0xff] %vm670, %v5720
        %5737 = vst.msk [vmem:[%s659 + $0x38] sm:$0xff] %vm670, %v5721
        %5738 = vst.msk [vmem:[%s659 + $0x40] sm:$0xff] %vm670, %v5722
        %5739 = vst.msk [vmem:[%s659 + $0x48] sm:$0xff] %vm670, %v5723
        %5740 = vst.msk [vmem:[%s659 + $0x50] sm:$0xff] %vm670, %v5724
        %5741 = vst.msk [vmem:[%s659 + $0x58] sm:$0xff] %vm670, %v5725
        %5742 = vst.msk [vmem:[%s659 + $0x60] sm:$0xff] %vm670, %v5726
        %5743 = vst.msk [vmem:[%s659 + $0x68] sm:$0xff] %vm670, %v5727
        %5744 = vst.msk [vmem:[%s659 + $0x70] sm:$0xff] %vm670, %v5728
        %5745 = vst.msk [vmem:[%s659 + $0x78] sm:$0xff] %vm670, %v5729
        %s5746 = sand.u32 %s408, 1
        %s5747 = scalar_lea.sflag [#allocation5], %s5746
        %s5748 = sand.u32 %s408, 1
        %s5749 = smul.addr %s5748, 32
        %s5750 = scalar_lea.vmem [#allocation4], %s5749
        %s5751 = sand.u32 %s434, 1
        %s5752 = scalar_lea.sflag [#allocation7], %s5751
        %s5753 = sand.u32 %s434, 1
        %s5754 = smul.addr %s5753, 32
        %s5755 = scalar_lea.vmem [#allocation6], %s5754
        %p5756 = scmp.lt.s32.totalorder %s38, 1
        %s5757 = scalar_select %p5756, %s38, 1
        %s5758 = smul.addr %s5757, 8
        %s5759 = smul.addr %s5758, 8
        %s5760 = scalar_lea.vmem %s19, %s5759
        %p5761 = scmp.lt.s32.totalorder %s38, 1
        %s5762 = scalar_select %p5761, %s38, 1
        %s5763 = smul.addr %s5762, 16
        %s5764 = smul.addr %s5763, 8
        %s5765 = scalar_lea.vmem %s20, %s5764
        // Predicated region
        $region89: #{fs_network_forward.1} parent=87 // pred_check
          %p5766 = pneg %p418
        $region90: #{fs_network_forward.1} parent=87 // pred_check_branch
          %5768 = sbr.rel (%p5766) target = $region92
        $region91: #{fs_network_forward.1} parent=87 // pred_region
          %s5770 = ssub.s32 512, 512
          %5771 = vsyncadd %s5747, %s5770
          %s5772 = smul.addr %s38, 4
          %s5773 = smul.addr %s5772, 128
          %s5774 = scalar_lea.hbm %s17, %s5773
          %s5775 = sshll.u32 %s5750, 4
          %s5776 = int_to_ptr.vmem [resolvable:$true] %s5775
          %5781 = dma.vmem_to_hbm [thread:$0]  %s5776, 512, %s5774, %s5747, 256, 256, 16
        $region92: #{fs_network_forward.1} parent=87 // pred_fallthru
          _
        // Predicated region
        $region93: #{fs_network_forward.1} parent=87 // pred_check
          %p5782 = pneg %p444
        $region94: #{fs_network_forward.1} parent=87 // pred_check_branch
          %5784 = sbr.rel (%p5782) target = $region96
        $region95: #{fs_network_forward.1} parent=87 // pred_region
          %s5786 = ssub.s32 512, 512
          %5787 = vsyncadd %s5752, %s5786
          %s5788 = smul.addr %s38, 4
          %s5789 = smul.addr %s5788, 128
          %s5790 = scalar_lea.hbm %s18, %s5789
          %s5791 = sshll.u32 %s5755, 4
          %s5792 = int_to_ptr.vmem [resolvable:$true] %s5791
          %5797 = dma.vmem_to_hbm [thread:$0]  %s5792, 512, %s5790, %s5752, 128, 128, 8
        $region96: #{fs_network_forward.1} parent=87 // pred_fallthru
          _
        // Predicated region
        $region97: #{fs_network_forward.1} parent=87 // pred_check
          %p5798 = pneg %p470
        $region98: #{fs_network_forward.1} parent=87 // pred_check_branch
          %5800 = sbr.rel (%p5798) target = $region100
        $region99: #{fs_network_forward.1} parent=87 // pred_region
          _
        $region100: #{fs_network_forward.1} parent=87 // pred_fallthru
          _
        // Predicated region
        $region101: #{fs_network_forward.1} parent=87 // pred_check
          %p5801 = pneg %p496
        $region102: #{fs_network_forward.1} parent=87 // pred_check_branch
          %5803 = sbr.rel (%p5801) target = $region104
        $region103: #{fs_network_forward.1} parent=87 // pred_region
          _
        $region104: #{fs_network_forward.1} parent=87 // pred_fallthru
          _
      $region88: #{fs_network_forward.1} parent=5 // pred_fallthru
        _
      %p5804 = scmp.le.s32.totalorder 2, %s33
      // Predicated region
      $region105: #{fs_network_forward.1} parent=5 // pred_check
        %p5805 = pneg %p5804
      $region106: #{fs_network_forward.1} parent=5 // pred_check_branch
        %5807 = sbr.rel (%p5805) target = $region108
      $region107: #{fs_network_forward.1} parent=5 // pred_region
        %s5808 = ssub.s32 %s33, 2
        // Predicated region
        $region109: #{fs_network_forward.1} parent=107 // pred_check
          %p5809 = pneg %p424
        $region110: #{fs_network_forward.1} parent=107 // pred_check_branch
          %5811 = sbr.rel (%p5809) target = $region112
        $region111: #{fs_network_forward.1} parent=107 // pred_region
          %s5812 = sand.u32 %s409, 1
          %s5813 = scalar_lea.sflag [#allocation5], %s5812
          %s5814 = sand.u32 %s409, 1
          %s5815 = smul.addr %s5814, 32
          %s5816 = scalar_lea.vmem [#allocation4], %s5815
          %5817 = dma.done %s5813, 512
        $region112: #{fs_network_forward.1} parent=107 // pred_fallthru
          _
        // Predicated region
        $region113: #{fs_network_forward.1} parent=107 // pred_check
          %p5818 = pneg %p450
        $region114: #{fs_network_forward.1} parent=107 // pred_check_branch
          %5820 = sbr.rel (%p5818) target = $region116
        $region115: #{fs_network_forward.1} parent=107 // pred_region
          %s5821 = sand.u32 %s435, 1
          %s5822 = scalar_lea.sflag [#allocation7], %s5821
          %s5823 = sand.u32 %s435, 1
          %s5824 = smul.addr %s5823, 32
          %s5825 = scalar_lea.vmem [#allocation6], %s5824
          %5826 = dma.done %s5822, 512
        $region116: #{fs_network_forward.1} parent=107 // pred_fallthru
          _
        // Predicated region
        $region117: #{fs_network_forward.1} parent=107 // pred_check
          %p5827 = pneg %p476
        $region118: #{fs_network_forward.1} parent=107 // pred_check_branch
          %5829 = sbr.rel (%p5827) target = $region120
        $region119: #{fs_network_forward.1} parent=107 // pred_region
          %p5830 = scmp.lt.s32.totalorder %s39, 1
          %s5831 = scalar_select %p5830, %s39, 1
          %s5832 = smul.addr %s5831, 8
          %s5833 = smul.addr %s5832, 8
          %s5834 = scalar_lea.vmem %s19, %s5833
        $region120: #{fs_network_forward.1} parent=107 // pred_fallthru
          _
        // Predicated region
        $region121: #{fs_network_forward.1} parent=107 // pred_check
          %p5835 = pneg %p502
        $region122: #{fs_network_forward.1} parent=107 // pred_check_branch
          %5837 = sbr.rel (%p5835) target = $region124
        $region123: #{fs_network_forward.1} parent=107 // pred_region
          %p5838 = scmp.lt.s32.totalorder %s39, 1
          %s5839 = scalar_select %p5838, %s39, 1
          %s5840 = smul.addr %s5839, 16
          %s5841 = smul.addr %s5840, 8
          %s5842 = scalar_lea.vmem %s20, %s5841
        $region124: #{fs_network_forward.1} parent=107 // pred_fallthru
          _
      $region108: #{fs_network_forward.1} parent=5 // pred_fallthru
        _
    $region6: #{fs_network_forward.1} parent=1 // loop_footer
      %s37 = sadd.s32 1, %s33
    $region7: #{fs_network_forward.1} parent=1 // loop_footer_branch
      %32 = sbr.rel target = $region3
    $region8: #{fs_network_forward.1} parent=1 // loop_exit
      _
    %5843 = vsyncpa [#allocation5], 1
    %s5844 = scalar_lea.sflag [#allocation5], 1
    %5845 = vsyncpa %s5844, 1
    %5846 = vsyncpa [#allocation7], 1
    %s5847 = scalar_lea.sflag [#allocation7], 1
    %5848 = vsyncpa %s5847, 1

</llo_original>
